<compile_context>
chip_gen: v6e
topology: v6e:2x2x1
jax: 0.10.0
libtpu: 0.0.40
codegen_flags: <defaults>
</compile_context>

<pallas_src>
import functools

import jax
import jax.numpy as jnp
import numpy as np
from jax import lax
from jax.experimental import pallas as pl
from jax.experimental.pallas import tpu as pltpu

# ---------------------------------------------------------------------------
# Synthetic ModelConfig (small, deterministic)
# ---------------------------------------------------------------------------
FEATURE_DEPTH = 64          # config.feature_depth
N_PRED_LAYERS = 1           # config.n_prediction_head_layers
N_CLS_LAYERS = 1            # config.n_classification_layers
N_BOX_LAYERS = 1            # config.n_box_layers
N_MASK_LAYERS = 1           # config.n_mask_layers
N_ANCHORS = 3               # len(config.anchor_aspect_ratios)
N_CLASSES = 4               # config.n_classes
N_PROTO = 8                 # config.n_prototype_masks

BATCH, H, W = 2, 8, 8
HEAD_PAD = 128              # padded (lane-dense) width of the fused head output


# ---------------------------------------------------------------------------
# In-kernel helpers
# ---------------------------------------------------------------------------
def _conv3x3(h_bf16, w_ref, s_ref, nhw, cout):
    """3x3 same-conv via shift-matrix gathers (all MXU, no roll/mask).

    h_bf16: (NHW, Cin) bf16 activation.
    w_ref : (9, Cin, Cout) bf16 tap weights (tap t = ky*3+kx, PyTorch cross-correlation).
    s_ref : (9, NHW, NHW) bf16 0/1 shift matrices (boundary rows are all-zero).
    """
    acc = jnp.zeros((nhw, cout), jnp.float32)
    for t in range(9):
        # Gather the shifted copy (exact: one-hot rows) then apply the tap weight.
        p = jnp.dot(s_ref[t], h_bf16, preferred_element_type=jnp.float32)
        acc = acc + jnp.dot(p.astype(jnp.bfloat16), w_ref[t],
                            preferred_element_type=jnp.float32)
    return acc


def _extra_block(h, res, w1_ref, w2_ref, w3_ref, wc_ref, vec_ref, s_ref, c4, nhw):
    """y = relu(conv1x1(h) + bn(Bottleneck(h))) with BN scales pre-folded into weights.

    h   : (NHW, Cin) f32 block input (Cin = 64 or 192 for the fused branch stage).
    res : (NHW, Ctot) f32 residual for the bottleneck (== h, or [h|h|h] for the first
          fused branch layer).
    vec_ref: (8, Ctot) f32 packed vectors [b1, b2, b3, bc, so, bo, 0, 0].
    """
    vec = vec_ref[...]
    b1 = vec[0:1, :c4]
    b2 = vec[1:2, :c4]
    b3 = vec[2:3, :]
    bc = vec[3:4, :]
    so = vec[4:5, :]
    bo = vec[5:6, :]

    hb = h.astype(jnp.bfloat16)
    # Bottleneck: relu(bn1(conv1)), relu(bn2(conv2 3x3)), bn3(conv3), +residual, relu.
    a1 = jnp.maximum(
        jnp.dot(hb, w1_ref[...], preferred_element_type=jnp.float32) + b1, 0.0)
    a2 = jnp.maximum(
        _conv3x3(a1.astype(jnp.bfloat16), w2_ref, s_ref, nhw, c4) + b2, 0.0)
    a3 = jnp.dot(a2.astype(jnp.bfloat16), w3_ref[...],
                 preferred_element_type=jnp.float32) + b3
    bneck = jnp.maximum(a3 + res, 0.0)
    # Outer: relu(conv1x1(h) + bn(bottleneck)).
    y = jnp.dot(hb, wc_ref[...], preferred_element_type=jnp.float32) + bc
    return jnp.maximum(y + bneck * so + bo, 0.0)


def _fused_kernel(n_shared, n_branch, c4, c4cat, nhw, head_pad, tanh_lo, tanh_hi,
                  x_ref, s_ref, *refs):
    """Entire PredictionHead forward in one kernel invocation (no grid)."""
    o_ref = refs[-1]
    wh_ref = refs[-3]
    bh_ref = refs[-2]
    block_refs = refs[:-3]

    h = x_ref[...]                                           # (NHW, C) f32
    idx = 0
    # Shared extra blocks.
    for _ in range(n_shared):
        w1, w2, w3, wc, vec = block_refs[idx:idx + 5]
        idx += 5
        h = _extra_block(h, h, w1, w2, w3, wc, vec, s_ref, c4, nhw)

    # Branch extra blocks, fused cls|box|mask along the channel (lane) axis.
    z = h
    for i in range(n_branch):
        w1, w2, w3, wc, vec = block_refs[idx:idx + 5]
        idx += 5
        if i == 0:
            res = jnp.concatenate([h, h, h], axis=-1)        # (NHW, 3C) f32, exact
            z = _extra_block(h, res, w1, w2, w3, wc, vec, s_ref, c4cat, nhw)
        else:
            z = _extra_block(z, z, w1, w2, w3, wc, vec, s_ref, c4cat, nhw)

    # Fused 3x3 heads -> one lane-dense (NHW, 128) store.
    out = _conv3x3(z.astype(jnp.bfloat16), wh_ref, s_ref, nhw, head_pad) + bh_ref[...]
    # tanh only on the mask-coefficient lanes (EUP work; padding lanes stay 0).
    lane = lax.broadcasted_iota(jnp.int32, out.shape, 1)
    out = jnp.where((lane >= tanh_lo) & (lane < tanh_hi), jnp.tanh(out), out)
    o_ref[...] = out


# ---------------------------------------------------------------------------
# Parameter preparation (host side, done once): fold BN, fuse branches/heads, bf16.
# ---------------------------------------------------------------------------
def _fold_block(p):
    """Fold BN scales into the preceding conv weights; keep shifts as vectors."""
    return dict(
        w1=p["w1"] * p["s1"], b1=p["b1"][0],
        w2=p["w2"] * p["s2"][:, None, :], b2=p["b2"][0],
        w3=p["w3"] * p["s3"], b3=p["b3"][0],
        wc=p["wc"], bc=p["bc"][0],
        so=p["so"][0], bo=p["bo"][0],
    )


def _pack_vec(b1, b2, b3, bc, so, bo):
    """Pack the six per-block vectors into one (8, Ctot) f32 array (one VMEM tile)."""
    ctot = int(np.asarray(b3).shape[0])
    v = np.zeros((8, ctot), np.float32)
    v[0, :np.asarray(b1).shape[0]] = np.asarray(b1)
    v[1, :np.asarray(b2).shape[0]] = np.asarray(b2)
    v[2, :] = np.asarray(b3)
    v[3, :] = np.asarray(bc)
    v[4, :] = np.asarray(so)
    v[5, :] = np.asarray(bo)
    return jnp.asarray(v)


def _bf16(a):
    return jnp.asarray(a, jnp.bfloat16)


def _prep_shared_block(p):
    f = _fold_block(p)
    vec = _pack_vec(f["b1"], f["b2"], f["b3"], f["bc"], f["so"], f["bo"])
    return [_bf16(f["w1"]), _bf16(f["w2"]), _bf16(f["w3"]), _bf16(f["wc"]), vec]


def _prep_fused_branch_block(p_cls, p_box, p_mask, first):
    """Fuse the cls/box/mask extra blocks of one layer into a single wide block."""
    c = FEATURE_DEPTH
    c4 = c // 4
    fb = [_fold_block(p) for p in (p_cls, p_box, p_mask)]
    if first:                       # input is the shared (NHW, C) activation
        w1 = np.concatenate([np.asarray(f["w1"], np.float32) for f in fb], axis=1)
        wc = np.concatenate([np.asarray(f["wc"], np.float32) for f in fb], axis=1)
    else:                           # input is the previous (NHW, 3C) concat -> block-diag
        w1 = np.zeros((3 * c, 3 * c4), np.float32)
        wc = np.zeros((3 * c, 3 * c), np.float32)
        for b, f in enumerate(fb):
            w1[b * c:(b + 1) * c, b * c4:(b + 1) * c4] = np.asarray(f["w1"])
            wc[b * c:(b + 1) * c, b * c:(b + 1) * c] = np.asarray(f["wc"])
    w2 = np.zeros((9, 3 * c4, 3 * c4), np.float32)
    w3 = np.zeros((3 * c4, 3 * c), np.float32)
    for b, f in enumerate(fb):
        w2[:, b * c4:(b + 1) * c4, b * c4:(b + 1) * c4] = np.asarray(f["w2"])
        w3[b * c4:(b + 1) * c4, b * c:(b + 1) * c] = np.asarray(f["w3"])
    cat = lambda k: np.concatenate([np.asarray(f[k], np.float32) for f in fb])
    vec = _pack_vec(cat("b1"), cat("b2"), cat("b3"), cat("bc"), cat("so"), cat("bo"))
    return [_bf16(w1), _bf16(w2), _bf16(w3), _bf16(wc), vec]


def _prep_fused_head(params, branch_fused):
    """Fuse the three 3x3 heads into one (9, Cin_tot, 128) block-diagonal conv."""
    c = FEATURE_DEPTH
    heads = [(params["cls_w"], params["cls_b"]),
             (params["box_w"], params["box_b"]),
             (params["mask_w"], params["mask_b"])]
    couts = [int(w.shape[-1]) for w, _ in heads]
    offs = [0]
    for co in couts:
        offs.append(offs[-1] + co)                  # [0, 15, 27, 51]
    cin_tot = 3 * c if branch_fused else c
    wh = np.zeros((9, cin_tot, HEAD_PAD), np.float32)
    bh = np.zeros((1, HEAD_PAD), np.float32)
    for b, (w, bias) in enumerate(heads):
        r0 = b * c if branch_fused else 0
        wh[:, r0:r0 + c, offs[b]:offs[b + 1]] = np.asarray(w)
        bh[0, offs[b]:offs[b + 1]] = np.asarray(bias)[0]
    return _bf16(wh), jnp.asarray(bh), offs


def _make_shift_mats(n, h, w):
    """0/1 gather matrices S[t] with S[t] @ x == tap-t shifted copy of x (zero padded)."""
    hw = h * w
    nhw = n * hw
    s = np.zeros((9, nhw, nhw), np.float32)
    for t in range(9):
        dy, dx = t // 3 - 1, t % 3 - 1
        for b in range(n):
            for y in range(h):
                for x in range(w):
                    yy, xx = y + dy, x + dx
                    if 0 <= yy < h and 0 <= xx < w:
                        s[t, b * hw + y * w + x, b * hw + yy * w + xx] = 1.0
    return jnp.asarray(s, jnp.bfloat16)            # 0/1 exact in bf16


# ---------------------------------------------------------------------------
# Full forward (single pallas_call + cheap slicing/reshape glue)
# ---------------------------------------------------------------------------
def prediction_head_forward(x_nchw, params):
    nb, c, hh, ww = x_nchw.shape
    nhw = nb * hh * ww
    c4 = c // 4

    # NCHW -> NHWC -> (N*H*W, C): channels on lanes, batch folded into sublanes (M).
    x2d = jnp.transpose(x_nchw, (0, 2, 3, 1)).reshape(nhw, c).astype(jnp.float32)
    s = _make_shift_mats(nb, hh, ww)

    n_branch = len(params["cls_extra"])
    assert len(params["box_extra"]) == n_branch and len(params["mask_extra"]) == n_branch
    # TODO(synk): unequal per-branch layer counts would need separate (unfused) branch stages.

    flat = []
    for p in params["extra"]:
        flat += _prep_shared_block(p)
    for i in range(n_branch):
        flat += _prep_fused_branch_block(params["cls_extra"][i], params["box_extra"][i],
                                         params["mask_extra"][i], first=(i == 0))
    branch_fused = n_branch > 0
    wh, bh, offs = _prep_fused_head(params, branch_fused)
    flat += [wh, bh]

    kernel = functools.partial(
        _fused_kernel, len(params["extra"]), n_branch, c4, 3 * c4, nhw, HEAD_PAD,
        offs[2], offs[3])

    n_in = 2 + len(flat)
    out = pl.pallas_call(
        kernel,
        out_shape=jax.ShapeDtypeStruct((nhw, HEAD_PAD), jnp.float32),
        in_specs=[pl.BlockSpec(memory_space=pltpu.MemorySpace.VMEM)] * n_in,
        out_specs=pl.BlockSpec(memory_space=pltpu.MemorySpace.VMEM),
    )(x2d, s, *flat)

    out3 = out.reshape(nb, hh * ww, HEAD_PAD)
    cls = out3[:, :, offs[0]:offs[1]].reshape(nb, -1, N_CLASSES + 1)
    box = out3[:, :, offs[1]:offs[2]].reshape(nb, -1, 4)
    mask = out3[:, :, offs[2]:offs[3]].reshape(nb, -1, N_PROTO)   # tanh applied in-kernel
    return cls, box, mask


# ---------------------------------------------------------------------------
# Pure-JAX f32 reference (independent, unfused, padding-based convs)
# ---------------------------------------------------------------------------
def _ref_conv3x3(x4, w9):
    nb, hh, ww, cin = x4.shape
    cout = w9.shape[-1]
    xp = jnp.pad(x4, ((0, 0), (1, 1), (1, 1), (0, 0)))
    out = jnp.zeros((nb, hh, ww, cout), jnp.float32)
    for dy in range(3):
        for dx in range(3):
            patch = xp[:, dy:dy + hh, dx:dx + ww, :]
            out = out + jnp.einsum("nhwc,cd->nhwd", patch, w9[dy * 3 + dx])
    return out


def _ref_extra_block(x, p, hh, ww):
    nb, hw, c = x.shape
    xm = x.reshape(-1, c)
    h1 = jnp.maximum((xm @ p["w1"]) * p["s1"] + p["b1"], 0.0)
    h1s = h1.reshape(nb, hh, ww, -1)
    h2 = _ref_conv3x3(h1s, p["w2"]).reshape(-1, p["w2"].shape[-1])
    h2 = jnp.maximum(h2 * p["s2"] + p["b2"], 0.0)
    h3 = (h2 @ p["w3"]) * p["s3"] + p["b3"]
    bneck = jnp.maximum(h3 + xm, 0.0)
    y = jnp.maximum((xm @ p["wc"]) + p["bc"] + bneck * p["so"] + p["bo"], 0.0)
    return y.reshape(nb, hw, c)


def _ref_head(x, w9, b, hh, ww, apply_tanh):
    nb, hw, c = x.shape
    out = _ref_conv3x3(x.reshape(nb, hh, ww, c), w9) + b.reshape(1, 1, 1, -1)
    out = out.reshape(nb, hw, -1)
    return jnp.tanh(out) if apply_tanh else out


def prediction_head_reference(x_nchw, params):
    nb, c, hh, ww = x_nchw.shape
    x = jnp.transpose(x_nchw, (0, 2, 3, 1)).reshape(nb, hh * ww, c).astype(jnp.float32)
    for p in params["extra"]:
        x = _ref_extra_block(x, p, hh, ww)
    cls, box, mask = x, x, x
    for p in params["cls_extra"]:
        cls = _ref_extra_block(cls, p, hh, ww)
    cls = _ref_head(cls, params["cls_w"], params["cls_b"], hh, ww, False)
    cls = cls.reshape(nb, -1, N_CLASSES + 1)
    for p in params["box_extra"]:
        box = _ref_extra_block(box, p, hh, ww)
    box = _ref_head(box, params["box_w"], params["box_b"], hh, ww, False)
    box = box.reshape(nb, -1, 4)
    for p in params["mask_extra"]:
        mask = _ref_extra_block(mask, p, hh, ww)
    mask = _ref_head(mask, params["mask_w"], params["mask_b"], hh, ww, True)
    mask = mask.reshape(nb, -1, N_PROTO)
    return cls, box, mask


# ---------------------------------------------------------------------------
# Deterministic parameter initialization (raw inference params: folded BN scale/shift)
# ---------------------------------------------------------------------------
def _folded_bn(key, c):
    k1, k2, k3, k4 = jax.random.split(key, 4)
    gamma = 1.0 + 0.1 * jax.random.normal(k1, (c,), jnp.float32)
    beta = 0.1 * jax.random.normal(k2, (c,), jnp.float32)
    mean = 0.1 * jax.random.normal(k3, (c,), jnp.float32)
    var = 1.0 + 0.1 * jax.random.uniform(k4, (c,), jnp.float32)
    scale = gamma / jnp.sqrt(var + 1e-5)
    shift = beta - mean * scale
    return scale.reshape(1, c), shift.reshape(1, c)


def _w(key, shape):
    return 0.05 * jax.random.normal(key, shape, jnp.float32)


def _init_extra_block(key, c):
    c4 = c // 4
    ks = jax.random.split(key, 9)
    s1, b1 = _folded_bn(ks[0], c4)
    s2, b2 = _folded_bn(ks[1], c4)
    s3, b3 = _folded_bn(ks[2], c)
    so, bo = _folded_bn(ks[3], c)
    return dict(
        w1=_w(ks[4], (c, c4)), s1=s1, b1=b1,                 # Bottleneck conv1 (1x1) + bn1
        w2=_w(ks[5], (9, c4, c4)), s2=s2, b2=b2,             # Bottleneck conv2 (3x3) + bn2
        w3=_w(ks[6], (c4, c)), s3=s3, b3=b3,                 # Bottleneck conv3 (1x1) + bn3
        wc=_w(ks[7], (c, c)), bc=_w(ks[8], (1, c)),          # extra 1x1 conv (with bias)
        so=so, bo=bo,                                        # outer BatchNorm
    )


def init_params(key):
    keys = iter(jax.random.split(key, 32))
    c = FEATURE_DEPTH
    cls_out = N_ANCHORS * (N_CLASSES + 1)
    box_out = N_ANCHORS * 4
    mask_out = N_ANCHORS * N_PROTO
    return dict(
        extra=[_init_extra_block(next(keys), c) for _ in range(N_PRED_LAYERS)],
        cls_extra=[_init_extra_block(next(keys), c) for _ in range(N_CLS_LAYERS)],
        box_extra=[_init_extra_block(next(keys), c) for _ in range(N_BOX_LAYERS)],
        mask_extra=[_init_extra_block(next(keys), c) for _ in range(N_MASK_LAYERS)],
        cls_w=_w(next(keys), (9, c, cls_out)), cls_b=_w(next(keys), (1, cls_out)),
        box_w=_w(next(keys), (9, c, box_out)), box_b=_w(next(keys), (1, box_out)),
        mask_w=_w(next(keys), (9, c, mask_out)), mask_b=_w(next(keys), (1, mask_out)),
    )


# ---------------------------------------------------------------------------
if __name__ == "__main__":
    key = jax.random.PRNGKey(0)
    kx, kp = jax.random.split(key)
    # PyTorch-style NCHW input
    fpn_output = jax.random.normal(kx, (BATCH, FEATURE_DEPTH, H, W), jnp.float32)
    params = init_params(kp)

    cls, box, mask = prediction_head_forward(fpn_output, params)
    jax.block_until_ready((cls, box, mask))

    # Shape checks (match PyTorch: (N, H*W*A, n_classes+1), (N, H*W*A, 4), (N, H*W*A, n_proto))
    assert cls.shape == (BATCH, H * W * N_ANCHORS, N_CLASSES + 1)
    assert box.shape == (BATCH, H * W * N_ANCHORS, 4)
    assert mask.shape == (BATCH, H * W * N_ANCHORS, N_PROTO)

    # Numerical check against an independent f32 reference (kernel uses bf16 MXU operands).
    rcls, rbox, rmask = prediction_head_reference(fpn_output, params)
    np.testing.assert_allclose(np.asarray(cls), np.asarray(rcls), rtol=2e-2, atol=2e-2)
    np.testing.assert_allclose(np.asarray(box), np.asarray(rbox), rtol=2e-2, atol=2e-2)
    np.testing.assert_allclose(np.asarray(mask), np.asarray(rmask), rtol=2e-2, atol=2e-2)

    print("KERNEL_OK")
</pallas_src>

<mosaic_0001>
module attributes {stable_mosaic.version = 11 : i64} {
  func.func @_fused_kernel(%arg0: memref<128x64xf32, #tpu.memory_space<vmem>>, %arg1: memref<9x128x128xbf16, #tpu.memory_space<vmem>>, %arg2: memref<64x16xbf16, #tpu.memory_space<vmem>>, %arg3: memref<9x16x16xbf16, #tpu.memory_space<vmem>>, %arg4: memref<16x64xbf16, #tpu.memory_space<vmem>>, %arg5: memref<64x64xbf16, #tpu.memory_space<vmem>>, %arg6: memref<8x64xf32, #tpu.memory_space<vmem>>, %arg7: memref<64x48xbf16, #tpu.memory_space<vmem>>, %arg8: memref<9x48x48xbf16, #tpu.memory_space<vmem>>, %arg9: memref<48x192xbf16, #tpu.memory_space<vmem>>, %arg10: memref<64x192xbf16, #tpu.memory_space<vmem>>, %arg11: memref<8x192xf32, #tpu.memory_space<vmem>>, %arg12: memref<9x192x128xbf16, #tpu.memory_space<vmem>>, %arg13: memref<1x128xf32, #tpu.memory_space<vmem>>, %arg14: memref<128x128xf32, #tpu.memory_space<vmem>>) attributes {dimension_semantics = [], scalar_prefetch = 0 : i64, scratch_operands = 0 : i64, tpu.core_type = #tpu.core_type<tc>} {
    %c0 = arith.constant 0 : index
    %c0_0 = arith.constant 0 : index
    %0 = vector.load %arg0[%c0, %c0_0] : memref<128x64xf32, #tpu.memory_space<vmem>>, vector<128x64xf32>
    %c0_1 = arith.constant 0 : index
    %c0_2 = arith.constant 0 : index
    %1 = vector.load %arg6[%c0_1, %c0_2] : memref<8x64xf32, #tpu.memory_space<vmem>>, vector<8x64xf32>
    %2 = vector.extract_strided_slice %1 {offsets = [0, 0], sizes = [1, 16], strides = [1, 1]} : vector<8x64xf32> to vector<1x16xf32>
    %3 = vector.extract_strided_slice %1 {offsets = [1, 0], sizes = [1, 16], strides = [1, 1]} : vector<8x64xf32> to vector<1x16xf32>
    %4 = vector.extract_strided_slice %1 {offsets = [2, 0], sizes = [1, 64], strides = [1, 1]} : vector<8x64xf32> to vector<1x64xf32>
    %5 = vector.extract_strided_slice %1 {offsets = [3, 0], sizes = [1, 64], strides = [1, 1]} : vector<8x64xf32> to vector<1x64xf32>
    %6 = vector.extract_strided_slice %1 {offsets = [4, 0], sizes = [1, 64], strides = [1, 1]} : vector<8x64xf32> to vector<1x64xf32>
    %7 = vector.extract_strided_slice %1 {offsets = [5, 0], sizes = [1, 64], strides = [1, 1]} : vector<8x64xf32> to vector<1x64xf32>
    %8 = arith.truncf %0 : vector<128x64xf32> to vector<128x64xbf16>
    %c0_3 = arith.constant 0 : index
    %c0_4 = arith.constant 0 : index
    %9 = vector.load %arg2[%c0_3, %c0_4] : memref<64x16xbf16, #tpu.memory_space<vmem>>, vector<64x16xbf16>
    %cst = arith.constant dense<0.000000e+00> : vector<128x16xf32>
    %10 = tpu.matmul %8, %9, %cst {dimension_numbers = #tpu.dot_dimension_numbers<[1], [0], [0], [1], [0, 0, 1, 1], [], []>} : vector<128x64xbf16>, vector<64x16xbf16>, vector<128x16xf32> -> vector<128x16xf32>
    %11 = vector.broadcast %2 : vector<1x16xf32> to vector<128x16xf32>
    %12 = arith.addf %10, %11 : vector<128x16xf32>
    %cst_5 = arith.constant 0.000000e+00 : f32
    %13 = vector.broadcast %cst_5 : f32 to vector<128x16xf32>
    %14 = arith.maximumf %12, %13 : vector<128x16xf32>
    %15 = arith.truncf %14 : vector<128x16xf32> to vector<128x16xbf16>
    %cst_6 = arith.constant 0.000000e+00 : f32
    %16 = vector.broadcast %cst_6 : f32 to vector<128x16xf32>
    %c0_7 = arith.constant 0 : index
    %c0_8 = arith.constant 0 : index
    %c0_9 = arith.constant 0 : index
    %17 = vector.load %arg1[%c0_7, %c0_8, %c0_9] : memref<9x128x128xbf16, #tpu.memory_space<vmem>>, vector<1x128x128xbf16>
    %18 = vector.shape_cast %17 : vector<1x128x128xbf16> to vector<128x128xbf16>
    %cst_10 = arith.constant dense<0.000000e+00> : vector<128x16xf32>
    %19 = tpu.matmul %18, %15, %cst_10 {dimension_numbers = #tpu.dot_dimension_numbers<[1], [0], [0], [1], [0, 0, 1, 1], [], []>} : vector<128x128xbf16>, vector<128x16xbf16>, vector<128x16xf32> -> vector<128x16xf32>
    %20 = arith.truncf %19 : vector<128x16xf32> to vector<128x16xbf16>
    %c0_11 = arith.constant 0 : index
    %c0_12 = arith.constant 0 : index
    %c0_13 = arith.constant 0 : index
    %21 = vector.load %arg3[%c0_11, %c0_12, %c0_13] : memref<9x16x16xbf16, #tpu.memory_space<vmem>>, vector<1x16x16xbf16>
    %22 = vector.shape_cast %21 : vector<1x16x16xbf16> to vector<16x16xbf16>
    %cst_14 = arith.constant dense<0.000000e+00> : vector<128x16xf32>
    %23 = tpu.matmul %20, %22, %cst_14 {dimension_numbers = #tpu.dot_dimension_numbers<[1], [0], [0], [1], [0, 0, 1, 1], [], []>} : vector<128x16xbf16>, vector<16x16xbf16>, vector<128x16xf32> -> vector<128x16xf32>
    %24 = arith.addf %16, %23 : vector<128x16xf32>
    %c1 = arith.constant 1 : index
    %c0_15 = arith.constant 0 : index
    %c0_16 = arith.constant 0 : index
    %25 = vector.load %arg1[%c1, %c0_15, %c0_16] : memref<9x128x128xbf16, #tpu.memory_space<vmem>>, vector<1x128x128xbf16>
    %26 = vector.shape_cast %25 : vector<1x128x128xbf16> to vector<128x128xbf16>
    %cst_17 = arith.constant dense<0.000000e+00> : vector<128x16xf32>
    %27 = tpu.matmul %26, %15, %cst_17 {dimension_numbers = #tpu.dot_dimension_numbers<[1], [0], [0], [1], [0, 0, 1, 1], [], []>} : vector<128x128xbf16>, vector<128x16xbf16>, vector<128x16xf32> -> vector<128x16xf32>
    %28 = arith.truncf %27 : vector<128x16xf32> to vector<128x16xbf16>
    %c1_18 = arith.constant 1 : index
    %c0_19 = arith.constant 0 : index
    %c0_20 = arith.constant 0 : index
    %29 = vector.load %arg3[%c1_18, %c0_19, %c0_20] : memref<9x16x16xbf16, #tpu.memory_space<vmem>>, vector<1x16x16xbf16>
    %30 = vector.shape_cast %29 : vector<1x16x16xbf16> to vector<16x16xbf16>
    %cst_21 = arith.constant dense<0.000000e+00> : vector<128x16xf32>
    %31 = tpu.matmul %28, %30, %cst_21 {dimension_numbers = #tpu.dot_dimension_numbers<[1], [0], [0], [1], [0, 0, 1, 1], [], []>} : vector<128x16xbf16>, vector<16x16xbf16>, vector<128x16xf32> -> vector<128x16xf32>
    %32 = arith.addf %24, %31 : vector<128x16xf32>
    %c2 = arith.constant 2 : index
    %c0_22 = arith.constant 0 : index
    %c0_23 = arith.constant 0 : index
    %33 = vector.load %arg1[%c2, %c0_22, %c0_23] : memref<9x128x128xbf16, #tpu.memory_space<vmem>>, vector<1x128x128xbf16>
    %34 = vector.shape_cast %33 : vector<1x128x128xbf16> to vector<128x128xbf16>
    %cst_24 = arith.constant dense<0.000000e+00> : vector<128x16xf32>
    %35 = tpu.matmul %34, %15, %cst_24 {dimension_numbers = #tpu.dot_dimension_numbers<[1], [0], [0], [1], [0, 0, 1, 1], [], []>} : vector<128x128xbf16>, vector<128x16xbf16>, vector<128x16xf32> -> vector<128x16xf32>
    %36 = arith.truncf %35 : vector<128x16xf32> to vector<128x16xbf16>
    %c2_25 = arith.constant 2 : index
    %c0_26 = arith.constant 0 : index
    %c0_27 = arith.constant 0 : index
    %37 = vector.load %arg3[%c2_25, %c0_26, %c0_27] : memref<9x16x16xbf16, #tpu.memory_space<vmem>>, vector<1x16x16xbf16>
    %38 = vector.shape_cast %37 : vector<1x16x16xbf16> to vector<16x16xbf16>
    %cst_28 = arith.constant dense<0.000000e+00> : vector<128x16xf32>
    %39 = tpu.matmul %36, %38, %cst_28 {dimension_numbers = #tpu.dot_dimension_numbers<[1], [0], [0], [1], [0, 0, 1, 1], [], []>} : vector<128x16xbf16>, vector<16x16xbf16>, vector<128x16xf32> -> vector<128x16xf32>
    %40 = arith.addf %32, %39 : vector<128x16xf32>
    %c3 = arith.constant 3 : index
    %c0_29 = arith.constant 0 : index
    %c0_30 = arith.constant 0 : index
    %41 = vector.load %arg1[%c3, %c0_29, %c0_30] : memref<9x128x128xbf16, #tpu.memory_space<vmem>>, vector<1x128x128xbf16>
    %42 = vector.shape_cast %41 : vector<1x128x128xbf16> to vector<128x128xbf16>
    %cst_31 = arith.constant dense<0.000000e+00> : vector<128x16xf32>
    %43 = tpu.matmul %42, %15, %cst_31 {dimension_numbers = #tpu.dot_dimension_numbers<[1], [0], [0], [1], [0, 0, 1, 1], [], []>} : vector<128x128xbf16>, vector<128x16xbf16>, vector<128x16xf32> -> vector<128x16xf32>
    %44 = arith.truncf %43 : vector<128x16xf32> to vector<128x16xbf16>
    %c3_32 = arith.constant 3 : index
    %c0_33 = arith.constant 0 : index
    %c0_34 = arith.constant 0 : index
    %45 = vector.load %arg3[%c3_32, %c0_33, %c0_34] : memref<9x16x16xbf16, #tpu.memory_space<vmem>>, vector<1x16x16xbf16>
    %46 = vector.shape_cast %45 : vector<1x16x16xbf16> to vector<16x16xbf16>
    %cst_35 = arith.constant dense<0.000000e+00> : vector<128x16xf32>
    %47 = tpu.matmul %44, %46, %cst_35 {dimension_numbers = #tpu.dot_dimension_numbers<[1], [0], [0], [1], [0, 0, 1, 1], [], []>} : vector<128x16xbf16>, vector<16x16xbf16>, vector<128x16xf32> -> vector<128x16xf32>
    %48 = arith.addf %40, %47 : vector<128x16xf32>
    %c4 = arith.constant 4 : index
    %c0_36 = arith.constant 0 : index
    %c0_37 = arith.constant 0 : index
    %49 = vector.load %arg1[%c4, %c0_36, %c0_37] : memref<9x128x128xbf16, #tpu.memory_space<vmem>>, vector<1x128x128xbf16>
    %50 = vector.shape_cast %49 : vector<1x128x128xbf16> to vector<128x128xbf16>
    %cst_38 = arith.constant dense<0.000000e+00> : vector<128x16xf32>
    %51 = tpu.matmul %50, %15, %cst_38 {dimension_numbers = #tpu.dot_dimension_numbers<[1], [0], [0], [1], [0, 0, 1, 1], [], []>} : vector<128x128xbf16>, vector<128x16xbf16>, vector<128x16xf32> -> vector<128x16xf32>
    %52 = arith.truncf %51 : vector<128x16xf32> to vector<128x16xbf16>
    %c4_39 = arith.constant 4 : index
    %c0_40 = arith.constant 0 : index
    %c0_41 = arith.constant 0 : index
    %53 = vector.load %arg3[%c4_39, %c0_40, %c0_41] : memref<9x16x16xbf16, #tpu.memory_space<vmem>>, vector<1x16x16xbf16>
    %54 = vector.shape_cast %53 : vector<1x16x16xbf16> to vector<16x16xbf16>
    %cst_42 = arith.constant dense<0.000000e+00> : vector<128x16xf32>
    %55 = tpu.matmul %52, %54, %cst_42 {dimension_numbers = #tpu.dot_dimension_numbers<[1], [0], [0], [1], [0, 0, 1, 1], [], []>} : vector<128x16xbf16>, vector<16x16xbf16>, vector<128x16xf32> -> vector<128x16xf32>
    %56 = arith.addf %48, %55 : vector<128x16xf32>
    %c5 = arith.constant 5 : index
    %c0_43 = arith.constant 0 : index
    %c0_44 = arith.constant 0 : index
    %57 = vector.load %arg1[%c5, %c0_43, %c0_44] : memref<9x128x128xbf16, #tpu.memory_space<vmem>>, vector<1x128x128xbf16>
    %58 = vector.shape_cast %57 : vector<1x128x128xbf16> to vector<128x128xbf16>
    %cst_45 = arith.constant dense<0.000000e+00> : vector<128x16xf32>
    %59 = tpu.matmul %58, %15, %cst_45 {dimension_numbers = #tpu.dot_dimension_numbers<[1], [0], [0], [1], [0, 0, 1, 1], [], []>} : vector<128x128xbf16>, vector<128x16xbf16>, vector<128x16xf32> -> vector<128x16xf32>
    %60 = arith.truncf %59 : vector<128x16xf32> to vector<128x16xbf16>
    %c5_46 = arith.constant 5 : index
    %c0_47 = arith.constant 0 : index
    %c0_48 = arith.constant 0 : index
    %61 = vector.load %arg3[%c5_46, %c0_47, %c0_48] : memref<9x16x16xbf16, #tpu.memory_space<vmem>>, vector<1x16x16xbf16>
    %62 = vector.shape_cast %61 : vector<1x16x16xbf16> to vector<16x16xbf16>
    %cst_49 = arith.constant dense<0.000000e+00> : vector<128x16xf32>
    %63 = tpu.matmul %60, %62, %cst_49 {dimension_numbers = #tpu.dot_dimension_numbers<[1], [0], [0], [1], [0, 0, 1, 1], [], []>} : vector<128x16xbf16>, vector<16x16xbf16>, vector<128x16xf32> -> vector<128x16xf32>
    %64 = arith.addf %56, %63 : vector<128x16xf32>
    %c6 = arith.constant 6 : index
    %c0_50 = arith.constant 0 : index
    %c0_51 = arith.constant 0 : index
    %65 = vector.load %arg1[%c6, %c0_50, %c0_51] : memref<9x128x128xbf16, #tpu.memory_space<vmem>>, vector<1x128x128xbf16>
    %66 = vector.shape_cast %65 : vector<1x128x128xbf16> to vector<128x128xbf16>
    %cst_52 = arith.constant dense<0.000000e+00> : vector<128x16xf32>
    %67 = tpu.matmul %66, %15, %cst_52 {dimension_numbers = #tpu.dot_dimension_numbers<[1], [0], [0], [1], [0, 0, 1, 1], [], []>} : vector<128x128xbf16>, vector<128x16xbf16>, vector<128x16xf32> -> vector<128x16xf32>
    %68 = arith.truncf %67 : vector<128x16xf32> to vector<128x16xbf16>
    %c6_53 = arith.constant 6 : index
    %c0_54 = arith.constant 0 : index
    %c0_55 = arith.constant 0 : index
    %69 = vector.load %arg3[%c6_53, %c0_54, %c0_55] : memref<9x16x16xbf16, #tpu.memory_space<vmem>>, vector<1x16x16xbf16>
    %70 = vector.shape_cast %69 : vector<1x16x16xbf16> to vector<16x16xbf16>
    %cst_56 = arith.constant dense<0.000000e+00> : vector<128x16xf32>
    %71 = tpu.matmul %68, %70, %cst_56 {dimension_numbers = #tpu.dot_dimension_numbers<[1], [0], [0], [1], [0, 0, 1, 1], [], []>} : vector<128x16xbf16>, vector<16x16xbf16>, vector<128x16xf32> -> vector<128x16xf32>
    %72 = arith.addf %64, %71 : vector<128x16xf32>
    %c7 = arith.constant 7 : index
    %c0_57 = arith.constant 0 : index
    %c0_58 = arith.constant 0 : index
    %73 = vector.load %arg1[%c7, %c0_57, %c0_58] : memref<9x128x128xbf16, #tpu.memory_space<vmem>>, vector<1x128x128xbf16>
    %74 = vector.shape_cast %73 : vector<1x128x128xbf16> to vector<128x128xbf16>
    %cst_59 = arith.constant dense<0.000000e+00> : vector<128x16xf32>
    %75 = tpu.matmul %74, %15, %cst_59 {dimension_numbers = #tpu.dot_dimension_numbers<[1], [0], [0], [1], [0, 0, 1, 1], [], []>} : vector<128x128xbf16>, vector<128x16xbf16>, vector<128x16xf32> -> vector<128x16xf32>
    %76 = arith.truncf %75 : vector<128x16xf32> to vector<128x16xbf16>
    %c7_60 = arith.constant 7 : index
    %c0_61 = arith.constant 0 : index
    %c0_62 = arith.constant 0 : index
    %77 = vector.load %arg3[%c7_60, %c0_61, %c0_62] : memref<9x16x16xbf16, #tpu.memory_space<vmem>>, vector<1x16x16xbf16>
    %78 = vector.shape_cast %77 : vector<1x16x16xbf16> to vector<16x16xbf16>
    %cst_63 = arith.constant dense<0.000000e+00> : vector<128x16xf32>
    %79 = tpu.matmul %76, %78, %cst_63 {dimension_numbers = #tpu.dot_dimension_numbers<[1], [0], [0], [1], [0, 0, 1, 1], [], []>} : vector<128x16xbf16>, vector<16x16xbf16>, vector<128x16xf32> -> vector<128x16xf32>
    %80 = arith.addf %72, %79 : vector<128x16xf32>
    %c8 = arith.constant 8 : index
    %c0_64 = arith.constant 0 : index
    %c0_65 = arith.constant 0 : index
    %81 = vector.load %arg1[%c8, %c0_64, %c0_65] : memref<9x128x128xbf16, #tpu.memory_space<vmem>>, vector<1x128x128xbf16>
    %82 = vector.shape_cast %81 : vector<1x128x128xbf16> to vector<128x128xbf16>
    %cst_66 = arith.constant dense<0.000000e+00> : vector<128x16xf32>
    %83 = tpu.matmul %82, %15, %cst_66 {dimension_numbers = #tpu.dot_dimension_numbers<[1], [0], [0], [1], [0, 0, 1, 1], [], []>} : vector<128x128xbf16>, vector<128x16xbf16>, vector<128x16xf32> -> vector<128x16xf32>
    %84 = arith.truncf %83 : vector<128x16xf32> to vector<128x16xbf16>
    %c8_67 = arith.constant 8 : index
    %c0_68 = arith.constant 0 : index
    %c0_69 = arith.constant 0 : index
    %85 = vector.load %arg3[%c8_67, %c0_68, %c0_69] : memref<9x16x16xbf16, #tpu.memory_space<vmem>>, vector<1x16x16xbf16>
    %86 = vector.shape_cast %85 : vector<1x16x16xbf16> to vector<16x16xbf16>
    %cst_70 = arith.constant dense<0.000000e+00> : vector<128x16xf32>
    %87 = tpu.matmul %84, %86, %cst_70 {dimension_numbers = #tpu.dot_dimension_numbers<[1], [0], [0], [1], [0, 0, 1, 1], [], []>} : vector<128x16xbf16>, vector<16x16xbf16>, vector<128x16xf32> -> vector<128x16xf32>
    %88 = arith.addf %80, %87 : vector<128x16xf32>
    %89 = vector.broadcast %3 : vector<1x16xf32> to vector<128x16xf32>
    %90 = arith.addf %88, %89 : vector<128x16xf32>
    %cst_71 = arith.constant 0.000000e+00 : f32
    %91 = vector.broadcast %cst_71 : f32 to vector<128x16xf32>
    %92 = arith.maximumf %90, %91 : vector<128x16xf32>
    %93 = arith.truncf %92 : vector<128x16xf32> to vector<128x16xbf16>
    %c0_72 = arith.constant 0 : index
    %c0_73 = arith.constant 0 : index
    %94 = vector.load %arg4[%c0_72, %c0_73] : memref<16x64xbf16, #tpu.memory_space<vmem>>, vector<16x64xbf16>
    %cst_74 = arith.constant dense<0.000000e+00> : vector<128x64xf32>
    %95 = tpu.matmul %93, %94, %cst_74 {dimension_numbers = #tpu.dot_dimension_numbers<[1], [0], [0], [1], [0, 0, 1, 1], [], []>} : vector<128x16xbf16>, vector<16x64xbf16>, vector<128x64xf32> -> vector<128x64xf32>
    %96 = vector.broadcast %4 : vector<1x64xf32> to vector<128x64xf32>
    %97 = arith.addf %95, %96 : vector<128x64xf32>
    %98 = arith.addf %97, %0 : vector<128x64xf32>
    %cst_75 = arith.constant 0.000000e+00 : f32
    %99 = vector.broadcast %cst_75 : f32 to vector<128x64xf32>
    %100 = arith.maximumf %98, %99 : vector<128x64xf32>
    %c0_76 = arith.constant 0 : index
    %c0_77 = arith.constant 0 : index
    %101 = vector.load %arg5[%c0_76, %c0_77] : memref<64x64xbf16, #tpu.memory_space<vmem>>, vector<64x64xbf16>
    %cst_78 = arith.constant dense<0.000000e+00> : vector<128x64xf32>
    %102 = tpu.matmul %8, %101, %cst_78 {dimension_numbers = #tpu.dot_dimension_numbers<[1], [0], [0], [1], [0, 0, 1, 1], [], []>} : vector<128x64xbf16>, vector<64x64xbf16>, vector<128x64xf32> -> vector<128x64xf32>
    %103 = vector.broadcast %5 : vector<1x64xf32> to vector<128x64xf32>
    %104 = arith.addf %102, %103 : vector<128x64xf32>
    %105 = vector.broadcast %6 : vector<1x64xf32> to vector<128x64xf32>
    %106 = arith.mulf %100, %105 : vector<128x64xf32>
    %107 = arith.addf %104, %106 : vector<128x64xf32>
    %108 = vector.broadcast %7 : vector<1x64xf32> to vector<128x64xf32>
    %109 = arith.addf %107, %108 : vector<128x64xf32>
    %cst_79 = arith.constant 0.000000e+00 : f32
    %110 = vector.broadcast %cst_79 : f32 to vector<128x64xf32>
    %111 = arith.maximumf %109, %110 : vector<128x64xf32>
    %112 = tpu.concatenate %111, %111, %111 in 1 : vector<128x64xf32>, vector<128x64xf32>, vector<128x64xf32> -> vector<128x192xf32>
    %c0_80 = arith.constant 0 : index
    %c0_81 = arith.constant 0 : index
    %113 = vector.load %arg11[%c0_80, %c0_81] : memref<8x192xf32, #tpu.memory_space<vmem>>, vector<8x192xf32>
    %114 = vector.extract_strided_slice %113 {offsets = [0, 0], sizes = [1, 48], strides = [1, 1]} : vector<8x192xf32> to vector<1x48xf32>
    %115 = vector.extract_strided_slice %113 {offsets = [1, 0], sizes = [1, 48], strides = [1, 1]} : vector<8x192xf32> to vector<1x48xf32>
    %116 = vector.extract_strided_slice %113 {offsets = [2, 0], sizes = [1, 192], strides = [1, 1]} : vector<8x192xf32> to vector<1x192xf32>
    %117 = vector.extract_strided_slice %113 {offsets = [3, 0], sizes = [1, 192], strides = [1, 1]} : vector<8x192xf32> to vector<1x192xf32>
    %118 = vector.extract_strided_slice %113 {offsets = [4, 0], sizes = [1, 192], strides = [1, 1]} : vector<8x192xf32> to vector<1x192xf32>
    %119 = vector.extract_strided_slice %113 {offsets = [5, 0], sizes = [1, 192], strides = [1, 1]} : vector<8x192xf32> to vector<1x192xf32>
    %120 = arith.truncf %111 : vector<128x64xf32> to vector<128x64xbf16>
    %c0_82 = arith.constant 0 : index
    %c0_83 = arith.constant 0 : index
    %121 = vector.load %arg7[%c0_82, %c0_83] : memref<64x48xbf16, #tpu.memory_space<vmem>>, vector<64x48xbf16>
    %cst_84 = arith.constant dense<0.000000e+00> : vector<128x48xf32>
    %122 = tpu.matmul %120, %121, %cst_84 {dimension_numbers = #tpu.dot_dimension_numbers<[1], [0], [0], [1], [0, 0, 1, 1], [], []>} : vector<128x64xbf16>, vector<64x48xbf16>, vector<128x48xf32> -> vector<128x48xf32>
    %123 = vector.broadcast %114 : vector<1x48xf32> to vector<128x48xf32>
    %124 = arith.addf %122, %123 : vector<128x48xf32>
    %cst_85 = arith.constant 0.000000e+00 : f32
    %125 = vector.broadcast %cst_85 : f32 to vector<128x48xf32>
    %126 = arith.maximumf %124, %125 : vector<128x48xf32>
    %127 = arith.truncf %126 : vector<128x48xf32> to vector<128x48xbf16>
    %cst_86 = arith.constant 0.000000e+00 : f32
    %128 = vector.broadcast %cst_86 : f32 to vector<128x48xf32>
    %c0_87 = arith.constant 0 : index
    %c0_88 = arith.constant 0 : index
    %c0_89 = arith.constant 0 : index
    %129 = vector.load %arg1[%c0_87, %c0_88, %c0_89] : memref<9x128x128xbf16, #tpu.memory_space<vmem>>, vector<1x128x128xbf16>
    %130 = vector.shape_cast %129 : vector<1x128x128xbf16> to vector<128x128xbf16>
    %cst_90 = arith.constant dense<0.000000e+00> : vector<128x48xf32>
    %131 = tpu.matmul %130, %127, %cst_90 {dimension_numbers = #tpu.dot_dimension_numbers<[1], [0], [0], [1], [0, 0, 1, 1], [], []>} : vector<128x128xbf16>, vector<128x48xbf16>, vector<128x48xf32> -> vector<128x48xf32>
    %132 = arith.truncf %131 : vector<128x48xf32> to vector<128x48xbf16>
    %c0_91 = arith.constant 0 : index
    %c0_92 = arith.constant 0 : index
    %c0_93 = arith.constant 0 : index
    %133 = vector.load %arg8[%c0_91, %c0_92, %c0_93] : memref<9x48x48xbf16, #tpu.memory_space<vmem>>, vector<1x48x48xbf16>
    %134 = vector.shape_cast %133 : vector<1x48x48xbf16> to vector<48x48xbf16>
    %cst_94 = arith.constant dense<0.000000e+00> : vector<128x48xf32>
    %135 = tpu.matmul %132, %134, %cst_94 {dimension_numbers = #tpu.dot_dimension_numbers<[1], [0], [0], [1], [0, 0, 1, 1], [], []>} : vector<128x48xbf16>, vector<48x48xbf16>, vector<128x48xf32> -> vector<128x48xf32>
    %136 = arith.addf %128, %135 : vector<128x48xf32>
    %c1_95 = arith.constant 1 : index
    %c0_96 = arith.constant 0 : index
    %c0_97 = arith.constant 0 : index
    %137 = vector.load %arg1[%c1_95, %c0_96, %c0_97] : memref<9x128x128xbf16, #tpu.memory_space<vmem>>, vector<1x128x128xbf16>
    %138 = vector.shape_cast %137 : vector<1x128x128xbf16> to vector<128x128xbf16>
    %cst_98 = arith.constant dense<0.000000e+00> : vector<128x48xf32>
    %139 = tpu.matmul %138, %127, %cst_98 {dimension_numbers = #tpu.dot_dimension_numbers<[1], [0], [0], [1], [0, 0, 1, 1], [], []>} : vector<128x128xbf16>, vector<128x48xbf16>, vector<128x48xf32> -> vector<128x48xf32>
    %140 = arith.truncf %139 : vector<128x48xf32> to vector<128x48xbf16>
    %c1_99 = arith.constant 1 : index
    %c0_100 = arith.constant 0 : index
    %c0_101 = arith.constant 0 : index
    %141 = vector.load %arg8[%c1_99, %c0_100, %c0_101] : memref<9x48x48xbf16, #tpu.memory_space<vmem>>, vector<1x48x48xbf16>
    %142 = vector.shape_cast %141 : vector<1x48x48xbf16> to vector<48x48xbf16>
    %cst_102 = arith.constant dense<0.000000e+00> : vector<128x48xf32>
    %143 = tpu.matmul %140, %142, %cst_102 {dimension_numbers = #tpu.dot_dimension_numbers<[1], [0], [0], [1], [0, 0, 1, 1], [], []>} : vector<128x48xbf16>, vector<48x48xbf16>, vector<128x48xf32> -> vector<128x48xf32>
    %144 = arith.addf %136, %143 : vector<128x48xf32>
    %c2_103 = arith.constant 2 : index
    %c0_104 = arith.constant 0 : index
    %c0_105 = arith.constant 0 : index
    %145 = vector.load %arg1[%c2_103, %c0_104, %c0_105] : memref<9x128x128xbf16, #tpu.memory_space<vmem>>, vector<1x128x128xbf16>
    %146 = vector.shape_cast %145 : vector<1x128x128xbf16> to vector<128x128xbf16>
    %cst_106 = arith.constant dense<0.000000e+00> : vector<128x48xf32>
    %147 = tpu.matmul %146, %127, %cst_106 {dimension_numbers = #tpu.dot_dimension_numbers<[1], [0], [0], [1], [0, 0, 1, 1], [], []>} : vector<128x128xbf16>, vector<128x48xbf16>, vector<128x48xf32> -> vector<128x48xf32>
    %148 = arith.truncf %147 : vector<128x48xf32> to vector<128x48xbf16>
    %c2_107 = arith.constant 2 : index
    %c0_108 = arith.constant 0 : index
    %c0_109 = arith.constant 0 : index
    %149 = vector.load %arg8[%c2_107, %c0_108, %c0_109] : memref<9x48x48xbf16, #tpu.memory_space<vmem>>, vector<1x48x48xbf16>
    %150 = vector.shape_cast %149 : vector<1x48x48xbf16> to vector<48x48xbf16>
    %cst_110 = arith.constant dense<0.000000e+00> : vector<128x48xf32>
    %151 = tpu.matmul %148, %150, %cst_110 {dimension_numbers = #tpu.dot_dimension_numbers<[1], [0], [0], [1], [0, 0, 1, 1], [], []>} : vector<128x48xbf16>, vector<48x48xbf16>, vector<128x48xf32> -> vector<128x48xf32>
    %152 = arith.addf %144, %151 : vector<128x48xf32>
    %c3_111 = arith.constant 3 : index
    %c0_112 = arith.constant 0 : index
    %c0_113 = arith.constant 0 : index
    %153 = vector.load %arg1[%c3_111, %c0_112, %c0_113] : memref<9x128x128xbf16, #tpu.memory_space<vmem>>, vector<1x128x128xbf16>
    %154 = vector.shape_cast %153 : vector<1x128x128xbf16> to vector<128x128xbf16>
    %cst_114 = arith.constant dense<0.000000e+00> : vector<128x48xf32>
    %155 = tpu.matmul %154, %127, %cst_114 {dimension_numbers = #tpu.dot_dimension_numbers<[1], [0], [0], [1], [0, 0, 1, 1], [], []>} : vector<128x128xbf16>, vector<128x48xbf16>, vector<128x48xf32> -> vector<128x48xf32>
    %156 = arith.truncf %155 : vector<128x48xf32> to vector<128x48xbf16>
    %c3_115 = arith.constant 3 : index
    %c0_116 = arith.constant 0 : index
    %c0_117 = arith.constant 0 : index
    %157 = vector.load %arg8[%c3_115, %c0_116, %c0_117] : memref<9x48x48xbf16, #tpu.memory_space<vmem>>, vector<1x48x48xbf16>
    %158 = vector.shape_cast %157 : vector<1x48x48xbf16> to vector<48x48xbf16>
    %cst_118 = arith.constant dense<0.000000e+00> : vector<128x48xf32>
    %159 = tpu.matmul %156, %158, %cst_118 {dimension_numbers = #tpu.dot_dimension_numbers<[1], [0], [0], [1], [0, 0, 1, 1], [], []>} : vector<128x48xbf16>, vector<48x48xbf16>, vector<128x48xf32> -> vector<128x48xf32>
    %160 = arith.addf %152, %159 : vector<128x48xf32>
    %c4_119 = arith.constant 4 : index
    %c0_120 = arith.constant 0 : index
    %c0_121 = arith.constant 0 : index
    %161 = vector.load %arg1[%c4_119, %c0_120, %c0_121] : memref<9x128x128xbf16, #tpu.memory_space<vmem>>, vector<1x128x128xbf16>
    %162 = vector.shape_cast %161 : vector<1x128x128xbf16> to vector<128x128xbf16>
    %cst_122 = arith.constant dense<0.000000e+00> : vector<128x48xf32>
    %163 = tpu.matmul %162, %127, %cst_122 {dimension_numbers = #tpu.dot_dimension_numbers<[1], [0], [0], [1], [0, 0, 1, 1], [], []>} : vector<128x128xbf16>, vector<128x48xbf16>, vector<128x48xf32> -> vector<128x48xf32>
    %164 = arith.truncf %163 : vector<128x48xf32> to vector<128x48xbf16>
    %c4_123 = arith.constant 4 : index
    %c0_124 = arith.constant 0 : index
    %c0_125 = arith.constant 0 : index
    %165 = vector.load %arg8[%c4_123, %c0_124, %c0_125] : memref<9x48x48xbf16, #tpu.memory_space<vmem>>, vector<1x48x48xbf16>
    %166 = vector.shape_cast %165 : vector<1x48x48xbf16> to vector<48x48xbf16>
    %cst_126 = arith.constant dense<0.000000e+00> : vector<128x48xf32>
    %167 = tpu.matmul %164, %166, %cst_126 {dimension_numbers = #tpu.dot_dimension_numbers<[1], [0], [0], [1], [0, 0, 1, 1], [], []>} : vector<128x48xbf16>, vector<48x48xbf16>, vector<128x48xf32> -> vector<128x48xf32>
    %168 = arith.addf %160, %167 : vector<128x48xf32>
    %c5_127 = arith.constant 5 : index
    %c0_128 = arith.constant 0 : index
    %c0_129 = arith.constant 0 : index
    %169 = vector.load %arg1[%c5_127, %c0_128, %c0_129] : memref<9x128x128xbf16, #tpu.memory_space<vmem>>, vector<1x128x128xbf16>
    %170 = vector.shape_cast %169 : vector<1x128x128xbf16> to vector<128x128xbf16>
    %cst_130 = arith.constant dense<0.000000e+00> : vector<128x48xf32>
    %171 = tpu.matmul %170, %127, %cst_130 {dimension_numbers = #tpu.dot_dimension_numbers<[1], [0], [0], [1], [0, 0, 1, 1], [], []>} : vector<128x128xbf16>, vector<128x48xbf16>, vector<128x48xf32> -> vector<128x48xf32>
    %172 = arith.truncf %171 : vector<128x48xf32> to vector<128x48xbf16>
    %c5_131 = arith.constant 5 : index
    %c0_132 = arith.constant 0 : index
    %c0_133 = arith.constant 0 : index
    %173 = vector.load %arg8[%c5_131, %c0_132, %c0_133] : memref<9x48x48xbf16, #tpu.memory_space<vmem>>, vector<1x48x48xbf16>
    %174 = vector.shape_cast %173 : vector<1x48x48xbf16> to vector<48x48xbf16>
    %cst_134 = arith.constant dense<0.000000e+00> : vector<128x48xf32>
    %175 = tpu.matmul %172, %174, %cst_134 {dimension_numbers = #tpu.dot_dimension_numbers<[1], [0], [0], [1], [0, 0, 1, 1], [], []>} : vector<128x48xbf16>, vector<48x48xbf16>, vector<128x48xf32> -> vector<128x48xf32>
    %176 = arith.addf %168, %175 : vector<128x48xf32>
    %c6_135 = arith.constant 6 : index
    %c0_136 = arith.constant 0 : index
    %c0_137 = arith.constant 0 : index
    %177 = vector.load %arg1[%c6_135, %c0_136, %c0_137] : memref<9x128x128xbf16, #tpu.memory_space<vmem>>, vector<1x128x128xbf16>
    %178 = vector.shape_cast %177 : vector<1x128x128xbf16> to vector<128x128xbf16>
    %cst_138 = arith.constant dense<0.000000e+00> : vector<128x48xf32>
    %179 = tpu.matmul %178, %127, %cst_138 {dimension_numbers = #tpu.dot_dimension_numbers<[1], [0], [0], [1], [0, 0, 1, 1], [], []>} : vector<128x128xbf16>, vector<128x48xbf16>, vector<128x48xf32> -> vector<128x48xf32>
    %180 = arith.truncf %179 : vector<128x48xf32> to vector<128x48xbf16>
    %c6_139 = arith.constant 6 : index
    %c0_140 = arith.constant 0 : index
    %c0_141 = arith.constant 0 : index
    %181 = vector.load %arg8[%c6_139, %c0_140, %c0_141] : memref<9x48x48xbf16, #tpu.memory_space<vmem>>, vector<1x48x48xbf16>
    %182 = vector.shape_cast %181 : vector<1x48x48xbf16> to vector<48x48xbf16>
    %cst_142 = arith.constant dense<0.000000e+00> : vector<128x48xf32>
    %183 = tpu.matmul %180, %182, %cst_142 {dimension_numbers = #tpu.dot_dimension_numbers<[1], [0], [0], [1], [0, 0, 1, 1], [], []>} : vector<128x48xbf16>, vector<48x48xbf16>, vector<128x48xf32> -> vector<128x48xf32>
    %184 = arith.addf %176, %183 : vector<128x48xf32>
    %c7_143 = arith.constant 7 : index
    %c0_144 = arith.constant 0 : index
    %c0_145 = arith.constant 0 : index
    %185 = vector.load %arg1[%c7_143, %c0_144, %c0_145] : memref<9x128x128xbf16, #tpu.memory_space<vmem>>, vector<1x128x128xbf16>
    %186 = vector.shape_cast %185 : vector<1x128x128xbf16> to vector<128x128xbf16>
    %cst_146 = arith.constant dense<0.000000e+00> : vector<128x48xf32>
    %187 = tpu.matmul %186, %127, %cst_146 {dimension_numbers = #tpu.dot_dimension_numbers<[1], [0], [0], [1], [0, 0, 1, 1], [], []>} : vector<128x128xbf16>, vector<128x48xbf16>, vector<128x48xf32> -> vector<128x48xf32>
    %188 = arith.truncf %187 : vector<128x48xf32> to vector<128x48xbf16>
    %c7_147 = arith.constant 7 : index
    %c0_148 = arith.constant 0 : index
    %c0_149 = arith.constant 0 : index
    %189 = vector.load %arg8[%c7_147, %c0_148, %c0_149] : memref<9x48x48xbf16, #tpu.memory_space<vmem>>, vector<1x48x48xbf16>
    %190 = vector.shape_cast %189 : vector<1x48x48xbf16> to vector<48x48xbf16>
    %cst_150 = arith.constant dense<0.000000e+00> : vector<128x48xf32>
    %191 = tpu.matmul %188, %190, %cst_150 {dimension_numbers = #tpu.dot_dimension_numbers<[1], [0], [0], [1], [0, 0, 1, 1], [], []>} : vector<128x48xbf16>, vector<48x48xbf16>, vector<128x48xf32> -> vector<128x48xf32>
    %192 = arith.addf %184, %191 : vector<128x48xf32>
    %c8_151 = arith.constant 8 : index
    %c0_152 = arith.constant 0 : index
    %c0_153 = arith.constant 0 : index
    %193 = vector.load %arg1[%c8_151, %c0_152, %c0_153] : memref<9x128x128xbf16, #tpu.memory_space<vmem>>, vector<1x128x128xbf16>
    %194 = vector.shape_cast %193 : vector<1x128x128xbf16> to vector<128x128xbf16>
    %cst_154 = arith.constant dense<0.000000e+00> : vector<128x48xf32>
    %195 = tpu.matmul %194, %127, %cst_154 {dimension_numbers = #tpu.dot_dimension_numbers<[1], [0], [0], [1], [0, 0, 1, 1], [], []>} : vector<128x128xbf16>, vector<128x48xbf16>, vector<128x48xf32> -> vector<128x48xf32>
    %196 = arith.truncf %195 : vector<128x48xf32> to vector<128x48xbf16>
    %c8_155 = arith.constant 8 : index
    %c0_156 = arith.constant 0 : index
    %c0_157 = arith.constant 0 : index
    %197 = vector.load %arg8[%c8_155, %c0_156, %c0_157] : memref<9x48x48xbf16, #tpu.memory_space<vmem>>, vector<1x48x48xbf16>
    %198 = vector.shape_cast %197 : vector<1x48x48xbf16> to vector<48x48xbf16>
    %cst_158 = arith.constant dense<0.000000e+00> : vector<128x48xf32>
    %199 = tpu.matmul %196, %198, %cst_158 {dimension_numbers = #tpu.dot_dimension_numbers<[1], [0], [0], [1], [0, 0, 1, 1], [], []>} : vector<128x48xbf16>, vector<48x48xbf16>, vector<128x48xf32> -> vector<128x48xf32>
    %200 = arith.addf %192, %199 : vector<128x48xf32>
    %201 = vector.broadcast %115 : vector<1x48xf32> to vector<128x48xf32>
    %202 = arith.addf %200, %201 : vector<128x48xf32>
    %cst_159 = arith.constant 0.000000e+00 : f32
    %203 = vector.broadcast %cst_159 : f32 to vector<128x48xf32>
    %204 = arith.maximumf %202, %203 : vector<128x48xf32>
    %205 = arith.truncf %204 : vector<128x48xf32> to vector<128x48xbf16>
    %c0_160 = arith.constant 0 : index
    %c0_161 = arith.constant 0 : index
    %206 = vector.load %arg9[%c0_160, %c0_161] : memref<48x192xbf16, #tpu.memory_space<vmem>>, vector<48x192xbf16>
    %cst_162 = arith.constant dense<0.000000e+00> : vector<128x192xf32>
    %207 = tpu.matmul %205, %206, %cst_162 {dimension_numbers = #tpu.dot_dimension_numbers<[1], [0], [0], [1], [0, 0, 1, 1], [], []>} : vector<128x48xbf16>, vector<48x192xbf16>, vector<128x192xf32> -> vector<128x192xf32>
    %208 = vector.broadcast %116 : vector<1x192xf32> to vector<128x192xf32>
    %209 = arith.addf %207, %208 : vector<128x192xf32>
    %210 = arith.addf %209, %112 : vector<128x192xf32>
    %cst_163 = arith.constant 0.000000e+00 : f32
    %211 = vector.broadcast %cst_163 : f32 to vector<128x192xf32>
    %212 = arith.maximumf %210, %211 : vector<128x192xf32>
    %c0_164 = arith.constant 0 : index
    %c0_165 = arith.constant 0 : index
    %213 = vector.load %arg10[%c0_164, %c0_165] : memref<64x192xbf16, #tpu.memory_space<vmem>>, vector<64x192xbf16>
    %cst_166 = arith.constant dense<0.000000e+00> : vector<128x192xf32>
    %214 = tpu.matmul %120, %213, %cst_166 {dimension_numbers = #tpu.dot_dimension_numbers<[1], [0], [0], [1], [0, 0, 1, 1], [], []>} : vector<128x64xbf16>, vector<64x192xbf16>, vector<128x192xf32> -> vector<128x192xf32>
    %215 = vector.broadcast %117 : vector<1x192xf32> to vector<128x192xf32>
    %216 = arith.addf %214, %215 : vector<128x192xf32>
    %217 = vector.broadcast %118 : vector<1x192xf32> to vector<128x192xf32>
    %218 = arith.mulf %212, %217 : vector<128x192xf32>
    %219 = arith.addf %216, %218 : vector<128x192xf32>
    %220 = vector.broadcast %119 : vector<1x192xf32> to vector<128x192xf32>
    %221 = arith.addf %219, %220 : vector<128x192xf32>
    %cst_167 = arith.constant 0.000000e+00 : f32
    %222 = vector.broadcast %cst_167 : f32 to vector<128x192xf32>
    %223 = arith.maximumf %221, %222 : vector<128x192xf32>
    %224 = arith.truncf %223 : vector<128x192xf32> to vector<128x192xbf16>
    %cst_168 = arith.constant 0.000000e+00 : f32
    %225 = vector.broadcast %cst_168 : f32 to vector<128x128xf32>
    %c0_169 = arith.constant 0 : index
    %c0_170 = arith.constant 0 : index
    %c0_171 = arith.constant 0 : index
    %226 = vector.load %arg1[%c0_169, %c0_170, %c0_171] : memref<9x128x128xbf16, #tpu.memory_space<vmem>>, vector<1x128x128xbf16>
    %227 = vector.shape_cast %226 : vector<1x128x128xbf16> to vector<128x128xbf16>
    %cst_172 = arith.constant dense<0.000000e+00> : vector<128x192xf32>
    %228 = tpu.matmul %227, %224, %cst_172 {dimension_numbers = #tpu.dot_dimension_numbers<[1], [0], [0], [1], [0, 0, 1, 1], [], []>} : vector<128x128xbf16>, vector<128x192xbf16>, vector<128x192xf32> -> vector<128x192xf32>
    %229 = arith.truncf %228 : vector<128x192xf32> to vector<128x192xbf16>
    %c0_173 = arith.constant 0 : index
    %c0_174 = arith.constant 0 : index
    %c0_175 = arith.constant 0 : index
    %230 = vector.load %arg12[%c0_173, %c0_174, %c0_175] : memref<9x192x128xbf16, #tpu.memory_space<vmem>>, vector<1x192x128xbf16>
    %231 = vector.shape_cast %230 : vector<1x192x128xbf16> to vector<192x128xbf16>
    %cst_176 = arith.constant dense<0.000000e+00> : vector<128x128xf32>
    %232 = tpu.matmul %229, %231, %cst_176 {dimension_numbers = #tpu.dot_dimension_numbers<[1], [0], [0], [1], [0, 0, 1, 1], [], []>} : vector<128x192xbf16>, vector<192x128xbf16>, vector<128x128xf32> -> vector<128x128xf32>
    %233 = arith.addf %225, %232 : vector<128x128xf32>
    %c1_177 = arith.constant 1 : index
    %c0_178 = arith.constant 0 : index
    %c0_179 = arith.constant 0 : index
    %234 = vector.load %arg1[%c1_177, %c0_178, %c0_179] : memref<9x128x128xbf16, #tpu.memory_space<vmem>>, vector<1x128x128xbf16>
    %235 = vector.shape_cast %234 : vector<1x128x128xbf16> to vector<128x128xbf16>
    %cst_180 = arith.constant dense<0.000000e+00> : vector<128x192xf32>
    %236 = tpu.matmul %235, %224, %cst_180 {dimension_numbers = #tpu.dot_dimension_numbers<[1], [0], [0], [1], [0, 0, 1, 1], [], []>} : vector<128x128xbf16>, vector<128x192xbf16>, vector<128x192xf32> -> vector<128x192xf32>
    %237 = arith.truncf %236 : vector<128x192xf32> to vector<128x192xbf16>
    %c1_181 = arith.constant 1 : index
    %c0_182 = arith.constant 0 : index
    %c0_183 = arith.constant 0 : index
    %238 = vector.load %arg12[%c1_181, %c0_182, %c0_183] : memref<9x192x128xbf16, #tpu.memory_space<vmem>>, vector<1x192x128xbf16>
    %239 = vector.shape_cast %238 : vector<1x192x128xbf16> to vector<192x128xbf16>
    %cst_184 = arith.constant dense<0.000000e+00> : vector<128x128xf32>
    %240 = tpu.matmul %237, %239, %cst_184 {dimension_numbers = #tpu.dot_dimension_numbers<[1], [0], [0], [1], [0, 0, 1, 1], [], []>} : vector<128x192xbf16>, vector<192x128xbf16>, vector<128x128xf32> -> vector<128x128xf32>
    %241 = arith.addf %233, %240 : vector<128x128xf32>
    %c2_185 = arith.constant 2 : index
    %c0_186 = arith.constant 0 : index
    %c0_187 = arith.constant 0 : index
    %242 = vector.load %arg1[%c2_185, %c0_186, %c0_187] : memref<9x128x128xbf16, #tpu.memory_space<vmem>>, vector<1x128x128xbf16>
    %243 = vector.shape_cast %242 : vector<1x128x128xbf16> to vector<128x128xbf16>
    %cst_188 = arith.constant dense<0.000000e+00> : vector<128x192xf32>
    %244 = tpu.matmul %243, %224, %cst_188 {dimension_numbers = #tpu.dot_dimension_numbers<[1], [0], [0], [1], [0, 0, 1, 1], [], []>} : vector<128x128xbf16>, vector<128x192xbf16>, vector<128x192xf32> -> vector<128x192xf32>
    %245 = arith.truncf %244 : vector<128x192xf32> to vector<128x192xbf16>
    %c2_189 = arith.constant 2 : index
    %c0_190 = arith.constant 0 : index
    %c0_191 = arith.constant 0 : index
    %246 = vector.load %arg12[%c2_189, %c0_190, %c0_191] : memref<9x192x128xbf16, #tpu.memory_space<vmem>>, vector<1x192x128xbf16>
    %247 = vector.shape_cast %246 : vector<1x192x128xbf16> to vector<192x128xbf16>
    %cst_192 = arith.constant dense<0.000000e+00> : vector<128x128xf32>
    %248 = tpu.matmul %245, %247, %cst_192 {dimension_numbers = #tpu.dot_dimension_numbers<[1], [0], [0], [1], [0, 0, 1, 1], [], []>} : vector<128x192xbf16>, vector<192x128xbf16>, vector<128x128xf32> -> vector<128x128xf32>
    %249 = arith.addf %241, %248 : vector<128x128xf32>
    %c3_193 = arith.constant 3 : index
    %c0_194 = arith.constant 0 : index
    %c0_195 = arith.constant 0 : index
    %250 = vector.load %arg1[%c3_193, %c0_194, %c0_195] : memref<9x128x128xbf16, #tpu.memory_space<vmem>>, vector<1x128x128xbf16>
    %251 = vector.shape_cast %250 : vector<1x128x128xbf16> to vector<128x128xbf16>
    %cst_196 = arith.constant dense<0.000000e+00> : vector<128x192xf32>
    %252 = tpu.matmul %251, %224, %cst_196 {dimension_numbers = #tpu.dot_dimension_numbers<[1], [0], [0], [1], [0, 0, 1, 1], [], []>} : vector<128x128xbf16>, vector<128x192xbf16>, vector<128x192xf32> -> vector<128x192xf32>
    %253 = arith.truncf %252 : vector<128x192xf32> to vector<128x192xbf16>
    %c3_197 = arith.constant 3 : index
    %c0_198 = arith.constant 0 : index
    %c0_199 = arith.constant 0 : index
    %254 = vector.load %arg12[%c3_197, %c0_198, %c0_199] : memref<9x192x128xbf16, #tpu.memory_space<vmem>>, vector<1x192x128xbf16>
    %255 = vector.shape_cast %254 : vector<1x192x128xbf16> to vector<192x128xbf16>
    %cst_200 = arith.constant dense<0.000000e+00> : vector<128x128xf32>
    %256 = tpu.matmul %253, %255, %cst_200 {dimension_numbers = #tpu.dot_dimension_numbers<[1], [0], [0], [1], [0, 0, 1, 1], [], []>} : vector<128x192xbf16>, vector<192x128xbf16>, vector<128x128xf32> -> vector<128x128xf32>
    %257 = arith.addf %249, %256 : vector<128x128xf32>
    %c4_201 = arith.constant 4 : index
    %c0_202 = arith.constant 0 : index
    %c0_203 = arith.constant 0 : index
    %258 = vector.load %arg1[%c4_201, %c0_202, %c0_203] : memref<9x128x128xbf16, #tpu.memory_space<vmem>>, vector<1x128x128xbf16>
    %259 = vector.shape_cast %258 : vector<1x128x128xbf16> to vector<128x128xbf16>
    %cst_204 = arith.constant dense<0.000000e+00> : vector<128x192xf32>
    %260 = tpu.matmul %259, %224, %cst_204 {dimension_numbers = #tpu.dot_dimension_numbers<[1], [0], [0], [1], [0, 0, 1, 1], [], []>} : vector<128x128xbf16>, vector<128x192xbf16>, vector<128x192xf32> -> vector<128x192xf32>
    %261 = arith.truncf %260 : vector<128x192xf32> to vector<128x192xbf16>
    %c4_205 = arith.constant 4 : index
    %c0_206 = arith.constant 0 : index
    %c0_207 = arith.constant 0 : index
    %262 = vector.load %arg12[%c4_205, %c0_206, %c0_207] : memref<9x192x128xbf16, #tpu.memory_space<vmem>>, vector<1x192x128xbf16>
    %263 = vector.shape_cast %262 : vector<1x192x128xbf16> to vector<192x128xbf16>
    %cst_208 = arith.constant dense<0.000000e+00> : vector<128x128xf32>
    %264 = tpu.matmul %261, %263, %cst_208 {dimension_numbers = #tpu.dot_dimension_numbers<[1], [0], [0], [1], [0, 0, 1, 1], [], []>} : vector<128x192xbf16>, vector<192x128xbf16>, vector<128x128xf32> -> vector<128x128xf32>
    %265 = arith.addf %257, %264 : vector<128x128xf32>
    %c5_209 = arith.constant 5 : index
    %c0_210 = arith.constant 0 : index
    %c0_211 = arith.constant 0 : index
    %266 = vector.load %arg1[%c5_209, %c0_210, %c0_211] : memref<9x128x128xbf16, #tpu.memory_space<vmem>>, vector<1x128x128xbf16>
    %267 = vector.shape_cast %266 : vector<1x128x128xbf16> to vector<128x128xbf16>
    %cst_212 = arith.constant dense<0.000000e+00> : vector<128x192xf32>
    %268 = tpu.matmul %267, %224, %cst_212 {dimension_numbers = #tpu.dot_dimension_numbers<[1], [0], [0], [1], [0, 0, 1, 1], [], []>} : vector<128x128xbf16>, vector<128x192xbf16>, vector<128x192xf32> -> vector<128x192xf32>
    %269 = arith.truncf %268 : vector<128x192xf32> to vector<128x192xbf16>
    %c5_213 = arith.constant 5 : index
    %c0_214 = arith.constant 0 : index
    %c0_215 = arith.constant 0 : index
    %270 = vector.load %arg12[%c5_213, %c0_214, %c0_215] : memref<9x192x128xbf16, #tpu.memory_space<vmem>>, vector<1x192x128xbf16>
    %271 = vector.shape_cast %270 : vector<1x192x128xbf16> to vector<192x128xbf16>
    %cst_216 = arith.constant dense<0.000000e+00> : vector<128x128xf32>
    %272 = tpu.matmul %269, %271, %cst_216 {dimension_numbers = #tpu.dot_dimension_numbers<[1], [0], [0], [1], [0, 0, 1, 1], [], []>} : vector<128x192xbf16>, vector<192x128xbf16>, vector<128x128xf32> -> vector<128x128xf32>
    %273 = arith.addf %265, %272 : vector<128x128xf32>
    %c6_217 = arith.constant 6 : index
    %c0_218 = arith.constant 0 : index
    %c0_219 = arith.constant 0 : index
    %274 = vector.load %arg1[%c6_217, %c0_218, %c0_219] : memref<9x128x128xbf16, #tpu.memory_space<vmem>>, vector<1x128x128xbf16>
    %275 = vector.shape_cast %274 : vector<1x128x128xbf16> to vector<128x128xbf16>
    %cst_220 = arith.constant dense<0.000000e+00> : vector<128x192xf32>
    %276 = tpu.matmul %275, %224, %cst_220 {dimension_numbers = #tpu.dot_dimension_numbers<[1], [0], [0], [1], [0, 0, 1, 1], [], []>} : vector<128x128xbf16>, vector<128x192xbf16>, vector<128x192xf32> -> vector<128x192xf32>
    %277 = arith.truncf %276 : vector<128x192xf32> to vector<128x192xbf16>
    %c6_221 = arith.constant 6 : index
    %c0_222 = arith.constant 0 : index
    %c0_223 = arith.constant 0 : index
    %278 = vector.load %arg12[%c6_221, %c0_222, %c0_223] : memref<9x192x128xbf16, #tpu.memory_space<vmem>>, vector<1x192x128xbf16>
    %279 = vector.shape_cast %278 : vector<1x192x128xbf16> to vector<192x128xbf16>
    %cst_224 = arith.constant dense<0.000000e+00> : vector<128x128xf32>
    %280 = tpu.matmul %277, %279, %cst_224 {dimension_numbers = #tpu.dot_dimension_numbers<[1], [0], [0], [1], [0, 0, 1, 1], [], []>} : vector<128x192xbf16>, vector<192x128xbf16>, vector<128x128xf32> -> vector<128x128xf32>
    %281 = arith.addf %273, %280 : vector<128x128xf32>
    %c7_225 = arith.constant 7 : index
    %c0_226 = arith.constant 0 : index
    %c0_227 = arith.constant 0 : index
    %282 = vector.load %arg1[%c7_225, %c0_226, %c0_227] : memref<9x128x128xbf16, #tpu.memory_space<vmem>>, vector<1x128x128xbf16>
    %283 = vector.shape_cast %282 : vector<1x128x128xbf16> to vector<128x128xbf16>
    %cst_228 = arith.constant dense<0.000000e+00> : vector<128x192xf32>
    %284 = tpu.matmul %283, %224, %cst_228 {dimension_numbers = #tpu.dot_dimension_numbers<[1], [0], [0], [1], [0, 0, 1, 1], [], []>} : vector<128x128xbf16>, vector<128x192xbf16>, vector<128x192xf32> -> vector<128x192xf32>
    %285 = arith.truncf %284 : vector<128x192xf32> to vector<128x192xbf16>
    %c7_229 = arith.constant 7 : index
    %c0_230 = arith.constant 0 : index
    %c0_231 = arith.constant 0 : index
    %286 = vector.load %arg12[%c7_229, %c0_230, %c0_231] : memref<9x192x128xbf16, #tpu.memory_space<vmem>>, vector<1x192x128xbf16>
    %287 = vector.shape_cast %286 : vector<1x192x128xbf16> to vector<192x128xbf16>
    %cst_232 = arith.constant dense<0.000000e+00> : vector<128x128xf32>
    %288 = tpu.matmul %285, %287, %cst_232 {dimension_numbers = #tpu.dot_dimension_numbers<[1], [0], [0], [1], [0, 0, 1, 1], [], []>} : vector<128x192xbf16>, vector<192x128xbf16>, vector<128x128xf32> -> vector<128x128xf32>
    %289 = arith.addf %281, %288 : vector<128x128xf32>
    %c8_233 = arith.constant 8 : index
    %c0_234 = arith.constant 0 : index
    %c0_235 = arith.constant 0 : index
    %290 = vector.load %arg1[%c8_233, %c0_234, %c0_235] : memref<9x128x128xbf16, #tpu.memory_space<vmem>>, vector<1x128x128xbf16>
    %291 = vector.shape_cast %290 : vector<1x128x128xbf16> to vector<128x128xbf16>
    %cst_236 = arith.constant dense<0.000000e+00> : vector<128x192xf32>
    %292 = tpu.matmul %291, %224, %cst_236 {dimension_numbers = #tpu.dot_dimension_numbers<[1], [0], [0], [1], [0, 0, 1, 1], [], []>} : vector<128x128xbf16>, vector<128x192xbf16>, vector<128x192xf32> -> vector<128x192xf32>
    %293 = arith.truncf %292 : vector<128x192xf32> to vector<128x192xbf16>
    %c8_237 = arith.constant 8 : index
    %c0_238 = arith.constant 0 : index
    %c0_239 = arith.constant 0 : index
    %294 = vector.load %arg12[%c8_237, %c0_238, %c0_239] : memref<9x192x128xbf16, #tpu.memory_space<vmem>>, vector<1x192x128xbf16>
    %295 = vector.shape_cast %294 : vector<1x192x128xbf16> to vector<192x128xbf16>
    %cst_240 = arith.constant dense<0.000000e+00> : vector<128x128xf32>
    %296 = tpu.matmul %293, %295, %cst_240 {dimension_numbers = #tpu.dot_dimension_numbers<[1], [0], [0], [1], [0, 0, 1, 1], [], []>} : vector<128x192xbf16>, vector<192x128xbf16>, vector<128x128xf32> -> vector<128x128xf32>
    %297 = arith.addf %289, %296 : vector<128x128xf32>
    %c0_241 = arith.constant 0 : index
    %c0_242 = arith.constant 0 : index
    %298 = vector.load %arg13[%c0_241, %c0_242] : memref<1x128xf32, #tpu.memory_space<vmem>>, vector<1x128xf32>
    %299 = vector.broadcast %298 : vector<1x128xf32> to vector<128x128xf32>
    %300 = arith.addf %297, %299 : vector<128x128xf32>
    %301 = tpu.iota {dimensions = array<i32: 1>} : vector<128x128xi32>
    %c27_i32 = arith.constant 27 : i32
    %302 = vector.broadcast %c27_i32 : i32 to vector<128x128xi32>
    %303 = arith.cmpi sge, %301, %302 : vector<128x128xi32>
    %c51_i32 = arith.constant 51 : i32
    %304 = vector.broadcast %c51_i32 : i32 to vector<128x128xi32>
    %305 = arith.cmpi slt, %301, %304 : vector<128x128xi32>
    %306 = arith.andi %303, %305 : vector<128x128xi1>
    %307 = math.tanh %300 : vector<128x128xf32>
    %308 = arith.select %306, %307, %300 : vector<128x128xi1>, vector<128x128xf32>
    %c0_243 = arith.constant 0 : index
    %c0_244 = arith.constant 0 : index
    %309 = vector.load %arg14[%c0_243, %c0_244] : memref<128x128xf32, #tpu.memory_space<vmem>>, vector<128x128xf32>
    tpu.vector_store %arg14[%c0_243, %c0_244], %308 {strides = array<i32>} : memref<128x128xf32, #tpu.memory_space<vmem>>, vector<128x128xf32>,
    return
  }
}

</mosaic_0001>

<llo_original>
// kernel: tpu_custom_call.1
$region0: #{tpu_custom_call.1}
  #allocation0 [shape = 'u32[]', space=smem, size = 0x4, offset = 0x4, fixed_abs, tag = 'smem constant byte address 0x4 - core index']
  #allocation1 [shape = 'u32[144,128]{1,0:T(1,128)}', space=vmem, size = 0x12000, scoped, tag = 'internal scratch']
  %s0 = inlined_call_operand.vmem [shape: f32[128,64], index: 0, kind: input, shape index: {}]
  %s1 = inlined_call_operand.hbm [shape: bf16[9,128,128], index: 1, kind: input, shape index: {}]
  %s2 = inlined_call_operand.vmem [shape: bf16[64,16], index: 2, kind: input, shape index: {}]
  %s3 = inlined_call_operand.vmem [shape: bf16[9,16,16], index: 3, kind: input, shape index: {}]
  %s4 = inlined_call_operand.hbm [shape: bf16[16,64], index: 4, kind: input, shape index: {}]
  %s5 = inlined_call_operand.hbm [shape: bf16[64,64], index: 5, kind: input, shape index: {}]
  %s6 = inlined_call_operand.hbm [shape: f32[8,64], index: 6, kind: input, shape index: {}]
  %s7 = inlined_call_operand.vmem [shape: bf16[64,48], index: 7, kind: input, shape index: {}]
  %s8 = inlined_call_operand.vmem [shape: bf16[9,48,48], index: 8, kind: input, shape index: {}]
  %s9 = inlined_call_operand.hbm [shape: bf16[48,192], index: 9, kind: input, shape index: {}]
  %s10 = inlined_call_operand.hbm [shape: bf16[64,192], index: 10, kind: input, shape index: {}]
  %s11 = inlined_call_operand.vmem [shape: f32[8,192], index: 11, kind: input, shape index: {}]
  %s12 = inlined_call_operand.hbm [shape: bf16[9,192,128], index: 12, kind: input, shape index: {}]
  %s13 = inlined_call_operand.vmem [shape: f32[1,128], index: 13, kind: input, shape index: {}]
  %s14 = inlined_call_operand.hbm [shape: f32[128,128], index: 14, kind: output, shape index: {}]
  %s15 = sld [smem:[#allocation0]]
  $region94: #{tpu_custom_call.1} parent=0
    _
  %s17 = ssub.s32 1, %s15
  %s18 = scalar_select 0, %s17, %s15
  $region1: #{tpu_custom_call.1} parent=0
    #allocation2 [shape = 'u8[294912]{0}', space=vmem, size = 0x48000, scoped, tag = 'input window, operand 1, single buffered']
    #allocation3 [shape = 's32[1]{0}', space=sflag, size = 0x4, scoped, tag = 'scoped memory for tpu_custom_call.1']
    #allocation4 [shape = 's32[1]{0}', space=sflag, size = 0x4, scoped, tag = 'scoped memory for tpu_custom_call.1']
    #allocation5 [shape = 'u8[4096]{0}', space=vmem, size = 0x1000, scoped, tag = 'input window, operand 4, single buffered']
    #allocation6 [shape = 's32[1]{0}', space=sflag, size = 0x4, scoped, tag = 'scoped memory for tpu_custom_call.1']
    #allocation7 [shape = 'u8[16384]{0}', space=vmem, size = 0x4000, scoped, tag = 'input window, operand 5, single buffered']
    #allocation8 [shape = 'u8[4096]{0}', space=vmem, size = 0x1000, scoped, tag = 'input window, operand 6, single buffered']
    #allocation9 [shape = 's32[1]{0}', space=sflag, size = 0x4, scoped, tag = 'scoped memory for tpu_custom_call.1']
    #allocation10 [shape = 'u8[24576]{0}', space=vmem, size = 0x6000, scoped, tag = 'input window, operand 9, single buffered']
    #allocation11 [shape = 'u8[32768]{0}', space=vmem, size = 0x8000, scoped, tag = 'input window, operand 10, single buffered']
    #allocation12 [shape = 's32[1]{0}', space=sflag, size = 0x4, scoped, tag = 'scoped memory for tpu_custom_call.1']
    #allocation13 [shape = 'u8[442368]{0}', space=vmem, size = 0x6c000, scoped, tag = 'input window, operand 12, single buffered']
    #allocation14 [shape = 'u8[65536]{0}', space=vmem, size = 0x10000, scoped, tag = 'output window, operand 0, single buffered']
    %19 = vsyncpa [#allocation3], 0
    %20 = vsyncpa [#allocation6], 0
    %21 = vsyncpa [#allocation9], 0
    %22 = vsyncpa [#allocation12], 0
    %23 = vsyncpa [#allocation4], 0
    // Predicated region
    $region2: #{tpu_custom_call.1} parent=1 // pred_check
      _
    $region3: #{tpu_custom_call.1} parent=1 // pred_check_branch
      %25 = sbr.rel (0) target = $region5
    $region4: #{tpu_custom_call.1} parent=1 // pred_region
      _
    $region5: #{tpu_custom_call.1} parent=1 // pred_fallthru
      _
    // Predicated region
    $region6: #{tpu_custom_call.1} parent=1 // pred_check
      _
    $region7: #{tpu_custom_call.1} parent=1 // pred_check_branch
      %27 = sbr.rel (0) target = $region9
    $region8: #{tpu_custom_call.1} parent=1 // pred_region
      %s29 = ssub.s32 9216, 9216
      %30 = vsyncadd [#allocation3], %s29
      %s31 = sshll.u32 [#allocation2], 4
      %s32 = int_to_ptr.vmem [resolvable:$true] %s31
      %37 = dma.hbm_to_vmem [thread:$0]  %s1, 9216, %s32, [#allocation3], 64, 64, 4
    $region9: #{tpu_custom_call.1} parent=1 // pred_fallthru
      _
    // Predicated region
    $region10: #{tpu_custom_call.1} parent=1 // pred_check
      _
    $region11: #{tpu_custom_call.1} parent=1 // pred_check_branch
      %39 = sbr.rel (0) target = $region13
    $region12: #{tpu_custom_call.1} parent=1 // pred_region
      _
    $region13: #{tpu_custom_call.1} parent=1 // pred_fallthru
      _
    // Predicated region
    $region14: #{tpu_custom_call.1} parent=1 // pred_check
      _
    $region15: #{tpu_custom_call.1} parent=1 // pred_check_branch
      %41 = sbr.rel (0) target = $region17
    $region16: #{tpu_custom_call.1} parent=1 // pred_region
      _
    $region17: #{tpu_custom_call.1} parent=1 // pred_fallthru
      _
    // Predicated region
    $region18: #{tpu_custom_call.1} parent=1 // pred_check
      _
    $region19: #{tpu_custom_call.1} parent=1 // pred_check_branch
      %43 = sbr.rel (0) target = $region21
    $region20: #{tpu_custom_call.1} parent=1 // pred_region
      %s45 = ssub.s32 128, 128
      %46 = vsyncadd [#allocation6], %s45
      %s47 = sshll.u32 [#allocation5], 4
      %s48 = int_to_ptr.vmem [resolvable:$true] %s47
      %53 = dma.hbm_to_vmem [thread:$0]  %s4, 128, %s48, [#allocation6], 64, 64, 4
    $region21: #{tpu_custom_call.1} parent=1 // pred_fallthru
      _
    // Predicated region
    $region22: #{tpu_custom_call.1} parent=1 // pred_check
      _
    $region23: #{tpu_custom_call.1} parent=1 // pred_check_branch
      %55 = sbr.rel (0) target = $region25
    $region24: #{tpu_custom_call.1} parent=1 // pred_region
      %s57 = ssub.s32 512, 512
      %58 = vsyncadd [#allocation6], %s57
      %s59 = sshll.u32 [#allocation7], 4
      %s60 = int_to_ptr.vmem [resolvable:$true] %s59
      %65 = dma.hbm_to_vmem [thread:$0]  %s5, 512, %s60, [#allocation6], 64, 64, 4
    $region25: #{tpu_custom_call.1} parent=1 // pred_fallthru
      _
    // Predicated region
    $region26: #{tpu_custom_call.1} parent=1 // pred_check
      _
    $region27: #{tpu_custom_call.1} parent=1 // pred_check_branch
      %67 = sbr.rel (0) target = $region29
    $region28: #{tpu_custom_call.1} parent=1 // pred_region
      %s69 = ssub.s32 128, 128
      %70 = vsyncadd [#allocation9], %s69
      %s72 = sshll.u32 [#allocation8], 4
      %s73 = int_to_ptr.vmem [resolvable:$true] %s72
      %75 = dma.hbm_to_vmem [thread:$0]  %s6, 128, %s73, [#allocation9]
    $region29: #{tpu_custom_call.1} parent=1 // pred_fallthru
      _
    // Predicated region
    $region30: #{tpu_custom_call.1} parent=1 // pred_check
      _
    $region31: #{tpu_custom_call.1} parent=1 // pred_check_branch
      %77 = sbr.rel (0) target = $region33
    $region32: #{tpu_custom_call.1} parent=1 // pred_region
      _
    $region33: #{tpu_custom_call.1} parent=1 // pred_fallthru
      _
    // Predicated region
    $region34: #{tpu_custom_call.1} parent=1 // pred_check
      _
    $region35: #{tpu_custom_call.1} parent=1 // pred_check_branch
      %79 = sbr.rel (0) target = $region37
    $region36: #{tpu_custom_call.1} parent=1 // pred_region
      _
    $region37: #{tpu_custom_call.1} parent=1 // pred_fallthru
      _
    // Predicated region
    $region38: #{tpu_custom_call.1} parent=1 // pred_check
      _
    $region39: #{tpu_custom_call.1} parent=1 // pred_check_branch
      %81 = sbr.rel (0) target = $region41
    $region40: #{tpu_custom_call.1} parent=1 // pred_region
      %s83 = ssub.s32 768, 768
      %84 = vsyncadd [#allocation9], %s83
      %s85 = sshll.u32 [#allocation10], 4
      %s86 = int_to_ptr.vmem [resolvable:$true] %s85
      %91 = dma.hbm_to_vmem [thread:$0]  %s9, 768, %s86, [#allocation9], 128, 128, 8
    $region41: #{tpu_custom_call.1} parent=1 // pred_fallthru
      _
    // Predicated region
    $region42: #{tpu_custom_call.1} parent=1 // pred_check
      _
    $region43: #{tpu_custom_call.1} parent=1 // pred_check_branch
      %93 = sbr.rel (0) target = $region45
    $region44: #{tpu_custom_call.1} parent=1 // pred_region
      %s95 = ssub.s32 1024, 1024
      %96 = vsyncadd [#allocation12], %s95
      %s97 = sshll.u32 [#allocation11], 4
      %s98 = int_to_ptr.vmem [resolvable:$true] %s97
      %103 = dma.hbm_to_vmem [thread:$0]  %s10, 1024, %s98, [#allocation12], 128, 128, 8
    $region45: #{tpu_custom_call.1} parent=1 // pred_fallthru
      _
    // Predicated region
    $region46: #{tpu_custom_call.1} parent=1 // pred_check
      _
    $region47: #{tpu_custom_call.1} parent=1 // pred_check_branch
      %105 = sbr.rel (0) target = $region49
    $region48: #{tpu_custom_call.1} parent=1 // pred_region
      _
    $region49: #{tpu_custom_call.1} parent=1 // pred_fallthru
      _
    // Predicated region
    $region50: #{tpu_custom_call.1} parent=1 // pred_check
      _
    $region51: #{tpu_custom_call.1} parent=1 // pred_check_branch
      %107 = sbr.rel (0) target = $region53
    $region52: #{tpu_custom_call.1} parent=1 // pred_region
      %s109 = ssub.s32 13824, 13824
      %110 = vsyncadd [#allocation12], %s109
      %s111 = sshll.u32 [#allocation13], 4
      %s112 = int_to_ptr.vmem [resolvable:$true] %s111
      %117 = dma.hbm_to_vmem [thread:$0]  %s12, 13824, %s112, [#allocation12], 64, 64, 4
    $region53: #{tpu_custom_call.1} parent=1 // pred_fallthru
      _
    // Predicated region
    $region54: #{tpu_custom_call.1} parent=1 // pred_check
      _
    $region55: #{tpu_custom_call.1} parent=1 // pred_check_branch
      %119 = sbr.rel (0) target = $region57
    $region56: #{tpu_custom_call.1} parent=1 // pred_region
      _
    $region57: #{tpu_custom_call.1} parent=1 // pred_fallthru
      _
    // Predicated region
    $region58: #{tpu_custom_call.1} parent=1 // pred_check
      _
    $region59: #{tpu_custom_call.1} parent=1 // pred_check_branch
      %121 = sbr.rel (0) target = $region61
    $region60: #{tpu_custom_call.1} parent=1 // pred_region
      %122 = dma.done [#allocation3], 9216
    $region61: #{tpu_custom_call.1} parent=1 // pred_fallthru
      _
    // Predicated region
    $region62: #{tpu_custom_call.1} parent=1 // pred_check
      _
    $region63: #{tpu_custom_call.1} parent=1 // pred_check_branch
      %124 = sbr.rel (0) target = $region65
    $region64: #{tpu_custom_call.1} parent=1 // pred_region
      %125 = dma.done [#allocation6], 128
    $region65: #{tpu_custom_call.1} parent=1 // pred_fallthru
      _
    // Predicated region
    $region66: #{tpu_custom_call.1} parent=1 // pred_check
      _
    $region67: #{tpu_custom_call.1} parent=1 // pred_check_branch
      %127 = sbr.rel (0) target = $region69
    $region68: #{tpu_custom_call.1} parent=1 // pred_region
      %128 = dma.done [#allocation6], 512
    $region69: #{tpu_custom_call.1} parent=1 // pred_fallthru
      _
    // Predicated region
    $region70: #{tpu_custom_call.1} parent=1 // pred_check
      _
    $region71: #{tpu_custom_call.1} parent=1 // pred_check_branch
      %130 = sbr.rel (0) target = $region73
    $region72: #{tpu_custom_call.1} parent=1 // pred_region
      %131 = dma.done [#allocation9], 128
    $region73: #{tpu_custom_call.1} parent=1 // pred_fallthru
      _
    // Predicated region
    $region74: #{tpu_custom_call.1} parent=1 // pred_check
      _
    $region75: #{tpu_custom_call.1} parent=1 // pred_check_branch
      %133 = sbr.rel (0) target = $region77
    $region76: #{tpu_custom_call.1} parent=1 // pred_region
      %134 = dma.done [#allocation9], 768
    $region77: #{tpu_custom_call.1} parent=1 // pred_fallthru
      _
    // Predicated region
    $region78: #{tpu_custom_call.1} parent=1 // pred_check
      _
    $region79: #{tpu_custom_call.1} parent=1 // pred_check_branch
      %136 = sbr.rel (0) target = $region81
    $region80: #{tpu_custom_call.1} parent=1 // pred_region
      %137 = dma.done [#allocation12], 1024
    $region81: #{tpu_custom_call.1} parent=1 // pred_fallthru
      _
    // Predicated region
    $region82: #{tpu_custom_call.1} parent=1 // pred_check
      _
    $region83: #{tpu_custom_call.1} parent=1 // pred_check_branch
      %139 = sbr.rel (0) target = $region85
    $region84: #{tpu_custom_call.1} parent=1 // pred_region
      %140 = dma.done [#allocation12], 13824
    $region85: #{tpu_custom_call.1} parent=1 // pred_fallthru
      _
    %v142 = vld [vmem:[%s0] sm:$0xff]
    %v143 = vld [vmem:[%s0 + $0x8] sm:$0xff]
    %v144 = vld [vmem:[%s0 + $0x10] sm:$0xff]
    %v145 = vld [vmem:[%s0 + $0x18] sm:$0xff]
    %v146 = vld [vmem:[%s0 + $0x20] sm:$0xff]
    %v147 = vld [vmem:[%s0 + $0x28] sm:$0xff]
    %v148 = vld [vmem:[%s0 + $0x30] sm:$0xff]
    %v149 = vld [vmem:[%s0 + $0x38] sm:$0xff]
    %v150 = vld [vmem:[%s0 + $0x40] sm:$0xff]
    %v151 = vld [vmem:[%s0 + $0x48] sm:$0xff]
    %v152 = vld [vmem:[%s0 + $0x50] sm:$0xff]
    %v153 = vld [vmem:[%s0 + $0x58] sm:$0xff]
    %v154 = vld [vmem:[%s0 + $0x60] sm:$0xff]
    %v155 = vld [vmem:[%s0 + $0x68] sm:$0xff]
    %v156 = vld [vmem:[%s0 + $0x70] sm:$0xff]
    %v157 = vld [vmem:[%s0 + $0x78] sm:$0xff]
    %v158 = vld [vmem:[#allocation8] sm:$0xff]
    %v159 = vpack.c.bf16 %v143, %v142
    %v160 = vpack.c.bf16 %v145, %v144
    %v161 = vpack.c.bf16 %v147, %v146
    %v162 = vpack.c.bf16 %v149, %v148
    %v163 = vpack.c.bf16 %v151, %v150
    %v164 = vpack.c.bf16 %v153, %v152
    %v165 = vpack.c.bf16 %v155, %v154
    %v166 = vpack.c.bf16 %v157, %v156
    %v167 = vld [vmem:[%s2] sm:$0xf]
    %v168 = vld [vmem:[%s2 + $0x4] sm:$0xf]
    %v169 = vld [vmem:[%s2 + $0x8] sm:$0xf]
    %v170 = vld [vmem:[%s2 + $0xc] sm:$0xf]
    %v171 = vld [vmem:[%s2 + $0x10] sm:$0xf]
    %v172 = vld [vmem:[%s2 + $0x14] sm:$0xf]
    %v173 = vld [vmem:[%s2 + $0x18] sm:$0xf]
    %v174 = vld [vmem:[%s2 + $0x1c] sm:$0xf]
    %v175 = vlaneseq
    %v176 = vshrl.u32 %v175, 7
    %v177 = vsub.s32 0, %v176
    %v178 = vrot.slane %v158, %v177
    %v187 = vunpack.c.l.b16 %v167
    %v188 = vunpack.c.l.b16 %v168
    %v189 = vunpack.c.l.b16 %v169
    %v190 = vunpack.c.l.b16 %v170
    %v191 = vunpack.c.l.b16 %v171
    %v192 = vunpack.c.l.b16 %v172
    %v193 = vunpack.c.l.b16 %v173
    %v194 = vunpack.c.l.b16 %v174
    %v195 = vpack.c.b16 %v188, %v187
    %v196 = vpack.c.b16 %v190, %v189
    %v197 = vpack.c.b16 %v192, %v191
    %v198 = vpack.c.b16 %v194, %v193
    %vm203 = vcmask 523264
    %v205 = vsel %vm203, %v159, 0
    %v208 = vsel %vm203, %v160, 0
    %v211 = vsel %vm203, %v161, 0
    %v214 = vsel %vm203, %v162, 0
    %v217 = vsel %vm203, %v163, 0
    %v220 = vsel %vm203, %v164, 0
    %v223 = vsel %vm203, %v165, 0
    %v226 = vsel %vm203, %v166, 0
    %228 = vmatprep.subr.bf16.mxu0 0
    %229 = vmatpush1.bf16.msra.mxu0 0
    %230 = vmatprep.subr.bf16.mxu0 0
    %231 = vmatpush1.bf16.msra.mxu0 0
    %232 = vmatprep.subr.bf16.mxu0 0
    %233 = vmatpush1.bf16.msra.mxu0 0
    %234 = vmatprep.subr.bf16.mxu0 0
    %235 = vmatpush1.bf16.msra.mxu0 0
    %236 = vmatprep.subr.bf16.mxu0 0
    %237 = vmatpush1.bf16.msra.mxu0 %v198
    %238 = vmatprep.subr.bf16.mxu0 0
    %239 = vmatpush1.bf16.msra.mxu0 %v197
    %240 = vmatprep.subr.bf16.mxu0 0
    %241 = vmatpush1.bf16.msra.mxu0 %v196
    %242 = vmatprep.subr.bf16.mxu0 0
    %243 = vmatpush1.bf16.msra.mxu0 %v195
    %244 = vmatprep.subr.bf16.mxu0 0
    %245 = vmatpush2.bf16.msra.mxu0 0
    %246 = vmatprep.subr.bf16.mxu0 0
    %247 = vmatpush2.bf16.msra.mxu0 0
    %248 = vmatprep.subr.bf16.mxu0 0
    %249 = vmatpush2.bf16.msra.mxu0 0
    %250 = vmatprep.subr.bf16.mxu0 0
    %251 = vmatpush2.bf16.msra.mxu0 0
    %252 = vmatprep.subr.bf16.mxu0 0
    %253 = vmatpush2.bf16.msra.mxu0 0
    %254 = vmatprep.subr.bf16.mxu0 0
    %255 = vmatpush2.bf16.msra.mxu0 0
    %256 = vmatprep.subr.bf16.mxu0 0
    %257 = vmatpush2.bf16.msra.mxu0 0
    %258 = vmatprep.subr.bf16.mxu0 0
    %259 = vmatpush2.bf16.msra.mxu0 0
    %260 = vmatprep.mubr.bf16.mxu0 0
    %261 = vmatmul.mubr.bf16.gmra.mxu0 %v205
    %v262 = vpop.f32.mrf.mxu0
    %v263 = vadd.f32 %v178, %v262
    %v264 = vpop.f32.mrf.mxu0
    %v265 = vpop.f32.mrf.mxu0
    %v266 = vadd.f32 %v178, %v265
    %v267 = vpop.f32.mrf.mxu0
    %268 = vmatprep.mubr.bf16.mxu0 0
    %269 = vmatmul.mubr.bf16.gmra.mxu0 %v208
    %v270 = vpop.f32.mrf.mxu0
    %v271 = vadd.f32 %v178, %v270
    %v272 = vpop.f32.mrf.mxu0
    %v273 = vpop.f32.mrf.mxu0
    %v274 = vadd.f32 %v178, %v273
    %v275 = vpop.f32.mrf.mxu0
    %276 = vmatprep.mubr.bf16.mxu0 0
    %277 = vmatmul.mubr.bf16.gmra.mxu0 %v211
    %v278 = vpop.f32.mrf.mxu0
    %v279 = vadd.f32 %v178, %v278
    %v280 = vpop.f32.mrf.mxu0
    %v281 = vpop.f32.mrf.mxu0
    %v282 = vadd.f32 %v178, %v281
    %v283 = vpop.f32.mrf.mxu0
    %284 = vmatprep.mubr.bf16.mxu0 0
    %285 = vmatmul.mubr.bf16.gmra.mxu0 %v214
    %v286 = vpop.f32.mrf.mxu0
    %v287 = vadd.f32 %v178, %v286
    %v288 = vpop.f32.mrf.mxu0
    %v289 = vpop.f32.mrf.mxu0
    %v290 = vadd.f32 %v178, %v289
    %v291 = vpop.f32.mrf.mxu0
    %292 = vmatprep.mubr.bf16.mxu0 0
    %293 = vmatmul.mubr.bf16.gmra.mxu0 %v217
    %v294 = vpop.f32.mrf.mxu0
    %v295 = vadd.f32 %v178, %v294
    %v296 = vpop.f32.mrf.mxu0
    %v297 = vpop.f32.mrf.mxu0
    %v298 = vadd.f32 %v178, %v297
    %v299 = vpop.f32.mrf.mxu0
    %300 = vmatprep.mubr.bf16.mxu0 0
    %301 = vmatmul.mubr.bf16.gmra.mxu0 %v220
    %v302 = vpop.f32.mrf.mxu0
    %v303 = vadd.f32 %v178, %v302
    %v304 = vpop.f32.mrf.mxu0
    %v305 = vpop.f32.mrf.mxu0
    %v306 = vadd.f32 %v178, %v305
    %v307 = vpop.f32.mrf.mxu0
    %308 = vmatprep.mubr.bf16.mxu0 0
    %309 = vmatmul.mubr.bf16.gmra.mxu0 %v223
    %v310 = vpop.f32.mrf.mxu0
    %v311 = vadd.f32 %v178, %v310
    %v312 = vpop.f32.mrf.mxu0
    %v313 = vpop.f32.mrf.mxu0
    %v314 = vadd.f32 %v178, %v313
    %v315 = vpop.f32.mrf.mxu0
    %316 = vmatprep.mubr.bf16.mxu0 0
    %317 = vmatmul.mubr.bf16.gmra.mxu0 %v226
    %v318 = vpop.f32.mrf.mxu0
    %v319 = vadd.f32 %v178, %v318
    %v320 = vpop.f32.mrf.mxu0
    %v321 = vpop.f32.mrf.mxu0
    %v322 = vadd.f32 %v178, %v321
    %v323 = vpop.f32.mrf.mxu0
    %324 = vdwg.mxu0
    %v325 = vmax.f32 %v263, 0.0
    %v326 = vmax.f32 %v266, 0.0
    %v327 = vmax.f32 %v271, 0.0
    %v328 = vmax.f32 %v274, 0.0
    %v329 = vmax.f32 %v279, 0.0
    %v330 = vmax.f32 %v282, 0.0
    %v331 = vmax.f32 %v287, 0.0
    %v332 = vmax.f32 %v290, 0.0
    %v333 = vmax.f32 %v295, 0.0
    %v334 = vmax.f32 %v298, 0.0
    %v335 = vmax.f32 %v303, 0.0
    %v336 = vmax.f32 %v306, 0.0
    %v337 = vmax.f32 %v311, 0.0
    %v338 = vmax.f32 %v314, 0.0
    %v339 = vmax.f32 %v319, 0.0
    %v340 = vmax.f32 %v322, 0.0
    %v341 = vpack.c.bf16 %v326, %v325
    %v342 = vpack.c.bf16 %v328, %v327
    %v343 = vpack.c.bf16 %v330, %v329
    %v344 = vpack.c.bf16 %v332, %v331
    %v345 = vpack.c.bf16 %v334, %v333
    %v346 = vpack.c.bf16 %v336, %v335
    %v347 = vpack.c.bf16 %v338, %v337
    %v348 = vpack.c.bf16 %v340, %v339
    %v349 = vld [vmem:[#allocation2] sm:$0xf]
    %v350 = vld [vmem:[#allocation2 + $0x4] sm:$0xf]
    %v351 = vld [vmem:[#allocation2 + $0x8] sm:$0xf]
    %v352 = vld [vmem:[#allocation2 + $0xc] sm:$0xf]
    %v353 = vld [vmem:[#allocation2 + $0x10] sm:$0xf]
    %v354 = vld [vmem:[#allocation2 + $0x14] sm:$0xf]
    %v355 = vld [vmem:[#allocation2 + $0x18] sm:$0xf]
    %v356 = vld [vmem:[#allocation2 + $0x1c] sm:$0xf]
    %v357 = vld [vmem:[#allocation2 + $0x20] sm:$0xf]
    %v358 = vld [vmem:[#allocation2 + $0x24] sm:$0xf]
    %v359 = vld [vmem:[#allocation2 + $0x28] sm:$0xf]
    %v360 = vld [vmem:[#allocation2 + $0x2c] sm:$0xf]
    %v361 = vld [vmem:[#allocation2 + $0x30] sm:$0xf]
    %v362 = vld [vmem:[#allocation2 + $0x34] sm:$0xf]
    %v363 = vld [vmem:[#allocation2 + $0x38] sm:$0xf]
    %v364 = vld [vmem:[#allocation2 + $0x3c] sm:$0xf]
    %v381 = vunpack.c.l.b16 %v349
    %v382 = vunpack.c.l.b16 %v350
    %v383 = vunpack.c.l.b16 %v351
    %v384 = vunpack.c.l.b16 %v352
    %v385 = vunpack.c.l.b16 %v353
    %v386 = vunpack.c.l.b16 %v354
    %v387 = vunpack.c.l.b16 %v355
    %v388 = vunpack.c.l.b16 %v356
    %v389 = vunpack.c.l.b16 %v357
    %v390 = vunpack.c.l.b16 %v358
    %v391 = vunpack.c.l.b16 %v359
    %v392 = vunpack.c.l.b16 %v360
    %v393 = vunpack.c.l.b16 %v361
    %v394 = vunpack.c.l.b16 %v362
    %v395 = vunpack.c.l.b16 %v363
    %v396 = vunpack.c.l.b16 %v364
    %v397 = vpack.c.b16 %v382, %v381
    %v398 = vpack.c.b16 %v384, %v383
    %v399 = vpack.c.b16 %v386, %v385
    %v400 = vpack.c.b16 %v388, %v387
    %v401 = vpack.c.b16 %v390, %v389
    %v402 = vpack.c.b16 %v392, %v391
    %v403 = vpack.c.b16 %v394, %v393
    %v404 = vpack.c.b16 %v396, %v395
    %413 = vmatprep.subr.bf16.mxu0 0
    %414 = vmatpush1.bf16.msra.mxu0 %v348
    %415 = vmatprep.subr.bf16.mxu0 0
    %416 = vmatpush1.bf16.msra.mxu0 %v347
    %417 = vmatprep.subr.bf16.mxu0 0
    %418 = vmatpush1.bf16.msra.mxu0 %v346
    %419 = vmatprep.subr.bf16.mxu0 0
    %420 = vmatpush1.bf16.msra.mxu0 %v345
    %421 = vmatprep.subr.bf16.mxu0 0
    %422 = vmatpush1.bf16.msra.mxu0 %v344
    %423 = vmatprep.subr.bf16.mxu0 0
    %424 = vmatpush1.bf16.msra.mxu0 %v343
    %425 = vmatprep.subr.bf16.mxu0 0
    %426 = vmatpush1.bf16.msra.mxu0 %v342
    %427 = vmatprep.subr.bf16.mxu0 0
    %428 = vmatpush1.bf16.msra.mxu0 %v341
    %429 = vmatprep.subr.bf16.mxu0 0
    %430 = vmatpush2.bf16.msra.mxu0 0
    %431 = vmatprep.subr.bf16.mxu0 0
    %432 = vmatpush2.bf16.msra.mxu0 0
    %433 = vmatprep.subr.bf16.mxu0 0
    %434 = vmatpush2.bf16.msra.mxu0 0
    %435 = vmatprep.subr.bf16.mxu0 0
    %436 = vmatpush2.bf16.msra.mxu0 0
    %437 = vmatprep.subr.bf16.mxu0 0
    %438 = vmatpush2.bf16.msra.mxu0 0
    %439 = vmatprep.subr.bf16.mxu0 0
    %440 = vmatpush2.bf16.msra.mxu0 0
    %441 = vmatprep.subr.bf16.mxu0 0
    %442 = vmatpush2.bf16.msra.mxu0 0
    %443 = vmatprep.subr.bf16.mxu0 0
    %444 = vmatpush2.bf16.msra.mxu0 0
    %445 = vmatprep.mubr.bf16.mxu0 0
    %446 = vmatmul.mubr.bf16.gmra.mxu0 %v397
    %v447 = vpop.f32.mrf.mxu0
    %v448 = vadd.f32 0.0, %v447
    %v449 = vpop.f32.mrf.mxu0
    %v450 = vpop.f32.mrf.mxu0
    %v451 = vadd.f32 0.0, %v450
    %v452 = vpop.f32.mrf.mxu0
    %453 = vmatprep.mubr.bf16.mxu0 0
    %454 = vmatmul.mubr.bf16.gmra.mxu0 %v398
    %v455 = vpop.f32.mrf.mxu0
    %v456 = vadd.f32 0.0, %v455
    %v457 = vpop.f32.mrf.mxu0
    %v458 = vpop.f32.mrf.mxu0
    %v459 = vadd.f32 0.0, %v458
    %v460 = vpop.f32.mrf.mxu0
    %461 = vmatprep.mubr.bf16.mxu0 0
    %462 = vmatmul.mubr.bf16.gmra.mxu0 %v399
    %v463 = vpop.f32.mrf.mxu0
    %v464 = vadd.f32 0.0, %v463
    %v465 = vpop.f32.mrf.mxu0
    %v466 = vpop.f32.mrf.mxu0
    %v467 = vadd.f32 0.0, %v466
    %v468 = vpop.f32.mrf.mxu0
    %469 = vmatprep.mubr.bf16.mxu0 0
    %470 = vmatmul.mubr.bf16.gmra.mxu0 %v400
    %v471 = vpop.f32.mrf.mxu0
    %v472 = vadd.f32 0.0, %v471
    %v473 = vpop.f32.mrf.mxu0
    %v474 = vpop.f32.mrf.mxu0
    %v475 = vadd.f32 0.0, %v474
    %v476 = vpop.f32.mrf.mxu0
    %477 = vmatprep.mubr.bf16.mxu0 0
    %478 = vmatmul.mubr.bf16.gmra.mxu0 %v401
    %v479 = vpop.f32.mrf.mxu0
    %v480 = vadd.f32 0.0, %v479
    %v481 = vpop.f32.mrf.mxu0
    %v482 = vpop.f32.mrf.mxu0
    %v483 = vadd.f32 0.0, %v482
    %v484 = vpop.f32.mrf.mxu0
    %485 = vmatprep.mubr.bf16.mxu0 0
    %486 = vmatmul.mubr.bf16.gmra.mxu0 %v402
    %v487 = vpop.f32.mrf.mxu0
    %v488 = vadd.f32 0.0, %v487
    %v489 = vpop.f32.mrf.mxu0
    %v490 = vpop.f32.mrf.mxu0
    %v491 = vadd.f32 0.0, %v490
    %v492 = vpop.f32.mrf.mxu0
    %493 = vmatprep.mubr.bf16.mxu0 0
    %494 = vmatmul.mubr.bf16.gmra.mxu0 %v403
    %v495 = vpop.f32.mrf.mxu0
    %v496 = vadd.f32 0.0, %v495
    %v497 = vpop.f32.mrf.mxu0
    %v498 = vpop.f32.mrf.mxu0
    %v499 = vadd.f32 0.0, %v498
    %v500 = vpop.f32.mrf.mxu0
    %501 = vmatprep.mubr.bf16.mxu0 0
    %502 = vmatmul.mubr.bf16.gmra.mxu0 %v404
    %v503 = vpop.f32.mrf.mxu0
    %v504 = vadd.f32 0.0, %v503
    %v505 = vpop.f32.mrf.mxu0
    %v506 = vpop.f32.mrf.mxu0
    %v507 = vadd.f32 0.0, %v506
    %v508 = vpop.f32.mrf.mxu0
    %509 = vdwg.mxu0
    %v510 = vpack.c.bf16 %v451, %v448
    %v511 = vpack.c.bf16 %v459, %v456
    %v512 = vpack.c.bf16 %v467, %v464
    %v513 = vpack.c.bf16 %v475, %v472
    %v514 = vpack.c.bf16 %v483, %v480
    %v515 = vpack.c.bf16 %v491, %v488
    %v516 = vpack.c.bf16 %v499, %v496
    %v517 = vpack.c.bf16 %v507, %v504
    %v518 = vld [vmem:[%s3] sm:$0xf]
    %v519 = vld [vmem:[%s3 + $0x4] sm:$0xf]
    %s520 = scalar_lea.vmem [#allocation2], 64
    %v521 = vld [vmem:[%s520] sm:$0xf]
    %v522 = vld [vmem:[%s520 + $0x4] sm:$0xf]
    %v523 = vld [vmem:[%s520 + $0x8] sm:$0xf]
    %v524 = vld [vmem:[%s520 + $0xc] sm:$0xf]
    %v525 = vld [vmem:[%s520 + $0x10] sm:$0xf]
    %v526 = vld [vmem:[%s520 + $0x14] sm:$0xf]
    %v527 = vld [vmem:[%s520 + $0x18] sm:$0xf]
    %v528 = vld [vmem:[%s520 + $0x1c] sm:$0xf]
    %v529 = vld [vmem:[%s520 + $0x20] sm:$0xf]
    %v530 = vld [vmem:[%s520 + $0x24] sm:$0xf]
    %v531 = vld [vmem:[%s520 + $0x28] sm:$0xf]
    %v532 = vld [vmem:[%s520 + $0x2c] sm:$0xf]
    %v533 = vld [vmem:[%s520 + $0x30] sm:$0xf]
    %v534 = vld [vmem:[%s520 + $0x34] sm:$0xf]
    %v535 = vld [vmem:[%s520 + $0x38] sm:$0xf]
    %v536 = vld [vmem:[%s520 + $0x3c] sm:$0xf]
    %v553 = vunpack.c.l.b16 %v521
    %v554 = vunpack.c.l.b16 %v522
    %v555 = vunpack.c.l.b16 %v523
    %v556 = vunpack.c.l.b16 %v524
    %v557 = vunpack.c.l.b16 %v525
    %v558 = vunpack.c.l.b16 %v526
    %v559 = vunpack.c.l.b16 %v527
    %v560 = vunpack.c.l.b16 %v528
    %v561 = vunpack.c.l.b16 %v529
    %v562 = vunpack.c.l.b16 %v530
    %v563 = vunpack.c.l.b16 %v531
    %v564 = vunpack.c.l.b16 %v532
    %v565 = vunpack.c.l.b16 %v533
    %v566 = vunpack.c.l.b16 %v534
    %v567 = vunpack.c.l.b16 %v535
    %v568 = vunpack.c.l.b16 %v536
    %v569 = vpack.c.b16 %v554, %v553
    %v570 = vpack.c.b16 %v556, %v555
    %v571 = vpack.c.b16 %v558, %v557
    %v572 = vpack.c.b16 %v560, %v559
    %v573 = vpack.c.b16 %v562, %v561
    %v574 = vpack.c.b16 %v564, %v563
    %v575 = vpack.c.b16 %v566, %v565
    %v576 = vpack.c.b16 %v568, %v567
    %585 = vmatprep.subr.bf16.mxu0 0
    %586 = vmatpush1.bf16.msra.mxu0 %v348
    %587 = vmatprep.subr.bf16.mxu0 0
    %588 = vmatpush1.bf16.msra.mxu0 %v347
    %589 = vmatprep.subr.bf16.mxu0 0
    %590 = vmatpush1.bf16.msra.mxu0 %v346
    %591 = vmatprep.subr.bf16.mxu0 0
    %592 = vmatpush1.bf16.msra.mxu0 %v345
    %593 = vmatprep.subr.bf16.mxu0 0
    %594 = vmatpush1.bf16.msra.mxu0 %v344
    %595 = vmatprep.subr.bf16.mxu0 0
    %596 = vmatpush1.bf16.msra.mxu0 %v343
    %597 = vmatprep.subr.bf16.mxu0 0
    %598 = vmatpush1.bf16.msra.mxu0 %v342
    %599 = vmatprep.subr.bf16.mxu0 0
    %600 = vmatpush1.bf16.msra.mxu0 %v341
    %601 = vmatprep.subr.bf16.mxu0 0
    %602 = vmatpush2.bf16.msra.mxu0 0
    %603 = vmatprep.subr.bf16.mxu0 0
    %604 = vmatpush2.bf16.msra.mxu0 0
    %605 = vmatprep.subr.bf16.mxu0 0
    %606 = vmatpush2.bf16.msra.mxu0 0
    %607 = vmatprep.subr.bf16.mxu0 0
    %608 = vmatpush2.bf16.msra.mxu0 0
    %609 = vmatprep.subr.bf16.mxu0 0
    %610 = vmatpush2.bf16.msra.mxu0 0
    %611 = vmatprep.subr.bf16.mxu0 0
    %612 = vmatpush2.bf16.msra.mxu0 0
    %613 = vmatprep.subr.bf16.mxu0 0
    %614 = vmatpush2.bf16.msra.mxu0 0
    %615 = vmatprep.subr.bf16.mxu0 0
    %616 = vmatpush2.bf16.msra.mxu0 0
    %617 = vmatprep.mubr.bf16.mxu0 0
    %618 = vmatmul.mubr.bf16.gmra.mxu0 %v569
    %v619 = vpop.f32.mrf.mxu0
    %v620 = vadd.f32 0.0, %v619
    %v621 = vpop.f32.mrf.mxu0
    %v622 = vpop.f32.mrf.mxu0
    %v623 = vadd.f32 0.0, %v622
    %v624 = vpop.f32.mrf.mxu0
    %625 = vmatprep.mubr.bf16.mxu0 0
    %626 = vmatmul.mubr.bf16.gmra.mxu0 %v570
    %v627 = vpop.f32.mrf.mxu0
    %v628 = vadd.f32 0.0, %v627
    %v629 = vpop.f32.mrf.mxu0
    %v630 = vpop.f32.mrf.mxu0
    %v631 = vadd.f32 0.0, %v630
    %v632 = vpop.f32.mrf.mxu0
    %633 = vmatprep.mubr.bf16.mxu0 0
    %634 = vmatmul.mubr.bf16.gmra.mxu0 %v571
    %v635 = vpop.f32.mrf.mxu0
    %v636 = vadd.f32 0.0, %v635
    %v637 = vpop.f32.mrf.mxu0
    %v638 = vpop.f32.mrf.mxu0
    %v639 = vadd.f32 0.0, %v638
    %v640 = vpop.f32.mrf.mxu0
    %641 = vmatprep.mubr.bf16.mxu0 0
    %642 = vmatmul.mubr.bf16.gmra.mxu0 %v572
    %v643 = vpop.f32.mrf.mxu0
    %v644 = vadd.f32 0.0, %v643
    %v645 = vpop.f32.mrf.mxu0
    %v646 = vpop.f32.mrf.mxu0
    %v647 = vadd.f32 0.0, %v646
    %v648 = vpop.f32.mrf.mxu0
    %649 = vmatprep.mubr.bf16.mxu0 0
    %650 = vmatmul.mubr.bf16.gmra.mxu0 %v573
    %v651 = vpop.f32.mrf.mxu0
    %v652 = vadd.f32 0.0, %v651
    %v653 = vpop.f32.mrf.mxu0
    %v654 = vpop.f32.mrf.mxu0
    %v655 = vadd.f32 0.0, %v654
    %v656 = vpop.f32.mrf.mxu0
    %657 = vmatprep.mubr.bf16.mxu0 0
    %658 = vmatmul.mubr.bf16.gmra.mxu0 %v574
    %v659 = vpop.f32.mrf.mxu0
    %v660 = vadd.f32 0.0, %v659
    %v661 = vpop.f32.mrf.mxu0
    %v662 = vpop.f32.mrf.mxu0
    %v663 = vadd.f32 0.0, %v662
    %v664 = vpop.f32.mrf.mxu0
    %665 = vmatprep.mubr.bf16.mxu0 0
    %666 = vmatmul.mubr.bf16.gmra.mxu0 %v575
    %v667 = vpop.f32.mrf.mxu0
    %v668 = vadd.f32 0.0, %v667
    %v669 = vpop.f32.mrf.mxu0
    %v670 = vpop.f32.mrf.mxu0
    %v671 = vadd.f32 0.0, %v670
    %v672 = vpop.f32.mrf.mxu0
    %673 = vmatprep.mubr.bf16.mxu0 0
    %674 = vmatmul.mubr.bf16.gmra.mxu0 %v576
    %v675 = vpop.f32.mrf.mxu0
    %v676 = vadd.f32 0.0, %v675
    %v677 = vpop.f32.mrf.mxu0
    %v678 = vpop.f32.mrf.mxu0
    %v679 = vadd.f32 0.0, %v678
    %v680 = vpop.f32.mrf.mxu0
    %681 = vdwg.mxu0
    %v682 = vpack.c.bf16 %v623, %v620
    %v683 = vpack.c.bf16 %v631, %v628
    %v684 = vpack.c.bf16 %v639, %v636
    %v685 = vpack.c.bf16 %v647, %v644
    %v686 = vpack.c.bf16 %v655, %v652
    %v687 = vpack.c.bf16 %v663, %v660
    %v688 = vpack.c.bf16 %v671, %v668
    %v689 = vpack.c.bf16 %v679, %v676
    %s690 = scalar_lea.vmem %s3, 8
    %v691 = vld [vmem:[%s690] sm:$0xf]
    %v692 = vld [vmem:[%s690 + $0x4] sm:$0xf]
    %v695 = vunpack.c.l.b16 %v691
    %v696 = vunpack.c.l.b16 %v692
    %v697 = vpack.c.b16 %v696, %v695
    %vm699 = vcmask 130048
    %v701 = vsel %vm699, %v682, 0
    %v704 = vsel %vm699, %v683, 0
    %v707 = vsel %vm699, %v684, 0
    %v710 = vsel %vm699, %v685, 0
    %v713 = vsel %vm699, %v686, 0
    %v716 = vsel %vm699, %v687, 0
    %v719 = vsel %vm699, %v688, 0
    %v722 = vsel %vm699, %v689, 0
    %724 = vmatprep.subr.bf16.mxu0 0
    %725 = vmatpush1.bf16.msra.mxu0 0
    %726 = vmatprep.subr.bf16.mxu0 0
    %727 = vmatpush1.bf16.msra.mxu0 0
    %728 = vmatprep.subr.bf16.mxu0 0
    %729 = vmatpush1.bf16.msra.mxu0 0
    %730 = vmatprep.subr.bf16.mxu0 0
    %731 = vmatpush1.bf16.msra.mxu0 0
    %732 = vmatprep.subr.bf16.mxu0 0
    %733 = vmatpush1.bf16.msra.mxu0 0
    %734 = vmatprep.subr.bf16.mxu0 0
    %735 = vmatpush1.bf16.msra.mxu0 0
    %736 = vmatprep.subr.bf16.mxu0 0
    %737 = vmatpush1.bf16.msra.mxu0 0
    %738 = vmatprep.subr.bf16.mxu0 0
    %739 = vmatpush1.bf16.msra.mxu0 %v697
    %740 = vmatprep.subr.bf16.mxu0 0
    %741 = vmatpush2.bf16.msra.mxu0 0
    %742 = vmatprep.subr.bf16.mxu0 0
    %743 = vmatpush2.bf16.msra.mxu0 0
    %744 = vmatprep.subr.bf16.mxu0 0
    %745 = vmatpush2.bf16.msra.mxu0 0
    %746 = vmatprep.subr.bf16.mxu0 0
    %747 = vmatpush2.bf16.msra.mxu0 0
    %748 = vmatprep.subr.bf16.mxu0 0
    %749 = vmatpush2.bf16.msra.mxu0 0
    %750 = vmatprep.subr.bf16.mxu0 0
    %751 = vmatpush2.bf16.msra.mxu0 0
    %752 = vmatprep.subr.bf16.mxu0 0
    %753 = vmatpush2.bf16.msra.mxu0 0
    %754 = vmatprep.subr.bf16.mxu0 0
    %755 = vmatpush2.bf16.msra.mxu0 0
    %756 = vmatprep.mubr.bf16.mxu0 0
    %757 = vmatmul.mubr.bf16.gmra.mxu0 %v701
    %v758 = vpop.f32.mrf.mxu0
    %v759 = vadd.f32 0.0, %v758
    %v760 = vpop.f32.mrf.mxu0
    %v761 = vpop.f32.mrf.mxu0
    %v762 = vadd.f32 0.0, %v761
    %v763 = vpop.f32.mrf.mxu0
    %764 = vmatprep.mubr.bf16.mxu0 0
    %765 = vmatmul.mubr.bf16.gmra.mxu0 %v704
    %v766 = vpop.f32.mrf.mxu0
    %v767 = vadd.f32 0.0, %v766
    %v768 = vpop.f32.mrf.mxu0
    %v769 = vpop.f32.mrf.mxu0
    %v770 = vadd.f32 0.0, %v769
    %v771 = vpop.f32.mrf.mxu0
    %772 = vmatprep.mubr.bf16.mxu0 0
    %773 = vmatmul.mubr.bf16.gmra.mxu0 %v707
    %v774 = vpop.f32.mrf.mxu0
    %v775 = vadd.f32 0.0, %v774
    %v776 = vpop.f32.mrf.mxu0
    %v777 = vpop.f32.mrf.mxu0
    %v778 = vadd.f32 0.0, %v777
    %v779 = vpop.f32.mrf.mxu0
    %780 = vmatprep.mubr.bf16.mxu0 0
    %781 = vmatmul.mubr.bf16.gmra.mxu0 %v710
    %v782 = vpop.f32.mrf.mxu0
    %v783 = vadd.f32 0.0, %v782
    %v784 = vpop.f32.mrf.mxu0
    %v785 = vpop.f32.mrf.mxu0
    %v786 = vadd.f32 0.0, %v785
    %v787 = vpop.f32.mrf.mxu0
    %788 = vmatprep.mubr.bf16.mxu0 0
    %789 = vmatmul.mubr.bf16.gmra.mxu0 %v713
    %v790 = vpop.f32.mrf.mxu0
    %v791 = vadd.f32 0.0, %v790
    %v792 = vpop.f32.mrf.mxu0
    %v793 = vpop.f32.mrf.mxu0
    %v794 = vadd.f32 0.0, %v793
    %v795 = vpop.f32.mrf.mxu0
    %796 = vmatprep.mubr.bf16.mxu0 0
    %797 = vmatmul.mubr.bf16.gmra.mxu0 %v716
    %v798 = vpop.f32.mrf.mxu0
    %v799 = vadd.f32 0.0, %v798
    %v800 = vpop.f32.mrf.mxu0
    %v801 = vpop.f32.mrf.mxu0
    %v802 = vadd.f32 0.0, %v801
    %v803 = vpop.f32.mrf.mxu0
    %804 = vmatprep.mubr.bf16.mxu0 0
    %805 = vmatmul.mubr.bf16.gmra.mxu0 %v719
    %v806 = vpop.f32.mrf.mxu0
    %v807 = vadd.f32 0.0, %v806
    %v808 = vpop.f32.mrf.mxu0
    %v809 = vpop.f32.mrf.mxu0
    %v810 = vadd.f32 0.0, %v809
    %v811 = vpop.f32.mrf.mxu0
    %812 = vmatprep.mubr.bf16.mxu0 0
    %813 = vmatmul.mubr.bf16.gmra.mxu0 %v722
    %v814 = vpop.f32.mrf.mxu0
    %v815 = vadd.f32 0.0, %v814
    %v816 = vpop.f32.mrf.mxu0
    %v817 = vpop.f32.mrf.mxu0
    %v818 = vadd.f32 0.0, %v817
    %v819 = vpop.f32.mrf.mxu0
    %820 = vdwg.mxu0
    %v823 = vunpack.c.l.b16 %v518
    %v824 = vunpack.c.l.b16 %v519
    %v825 = vpack.c.b16 %v824, %v823
    %v828 = vsel %vm699, %v510, 0
    %v831 = vsel %vm699, %v511, 0
    %v834 = vsel %vm699, %v512, 0
    %v837 = vsel %vm699, %v513, 0
    %v840 = vsel %vm699, %v514, 0
    %v843 = vsel %vm699, %v515, 0
    %v846 = vsel %vm699, %v516, 0
    %v849 = vsel %vm699, %v517, 0
    %851 = vmatprep.subr.bf16.mxu0 0
    %852 = vmatpush1.bf16.msra.mxu0 0
    %853 = vmatprep.subr.bf16.mxu0 0
    %854 = vmatpush1.bf16.msra.mxu0 0
    %855 = vmatprep.subr.bf16.mxu0 0
    %856 = vmatpush1.bf16.msra.mxu0 0
    %857 = vmatprep.subr.bf16.mxu0 0
    %858 = vmatpush1.bf16.msra.mxu0 0
    %859 = vmatprep.subr.bf16.mxu0 0
    %860 = vmatpush1.bf16.msra.mxu0 0
    %861 = vmatprep.subr.bf16.mxu0 0
    %862 = vmatpush1.bf16.msra.mxu0 0
    %863 = vmatprep.subr.bf16.mxu0 0
    %864 = vmatpush1.bf16.msra.mxu0 0
    %865 = vmatprep.subr.bf16.mxu0 0
    %866 = vmatpush1.bf16.msra.mxu0 %v825
    %867 = vmatprep.subr.bf16.mxu0 0
    %868 = vmatpush2.bf16.msra.mxu0 0
    %869 = vmatprep.subr.bf16.mxu0 0
    %870 = vmatpush2.bf16.msra.mxu0 0
    %871 = vmatprep.subr.bf16.mxu0 0
    %872 = vmatpush2.bf16.msra.mxu0 0
    %873 = vmatprep.subr.bf16.mxu0 0
    %874 = vmatpush2.bf16.msra.mxu0 0
    %875 = vmatprep.subr.bf16.mxu0 0
    %876 = vmatpush2.bf16.msra.mxu0 0
    %877 = vmatprep.subr.bf16.mxu0 0
    %878 = vmatpush2.bf16.msra.mxu0 0
    %879 = vmatprep.subr.bf16.mxu0 0
    %880 = vmatpush2.bf16.msra.mxu0 0
    %881 = vmatprep.subr.bf16.mxu0 0
    %882 = vmatpush2.bf16.msra.mxu0 0
    %883 = vmatprep.mubr.bf16.mxu0 0
    %884 = vmatmul.mubr.bf16.gmra.mxu0 %v828
    %v885 = vpop.f32.mrf.mxu0
    %v886 = vadd.f32 %v759, %v885
    %v887 = vpop.f32.mrf.mxu0
    %v888 = vpop.f32.mrf.mxu0
    %v889 = vadd.f32 %v762, %v888
    %v890 = vpop.f32.mrf.mxu0
    %891 = vmatprep.mubr.bf16.mxu0 0
    %892 = vmatmul.mubr.bf16.gmra.mxu0 %v831
    %v893 = vpop.f32.mrf.mxu0
    %v894 = vadd.f32 %v767, %v893
    %v895 = vpop.f32.mrf.mxu0
    %v896 = vpop.f32.mrf.mxu0
    %v897 = vadd.f32 %v770, %v896
    %v898 = vpop.f32.mrf.mxu0
    %899 = vmatprep.mubr.bf16.mxu0 0
    %900 = vmatmul.mubr.bf16.gmra.mxu0 %v834
    %v901 = vpop.f32.mrf.mxu0
    %v902 = vadd.f32 %v775, %v901
    %v903 = vpop.f32.mrf.mxu0
    %v904 = vpop.f32.mrf.mxu0
    %v905 = vadd.f32 %v778, %v904
    %v906 = vpop.f32.mrf.mxu0
    %907 = vmatprep.mubr.bf16.mxu0 0
    %908 = vmatmul.mubr.bf16.gmra.mxu0 %v837
    %v909 = vpop.f32.mrf.mxu0
    %v910 = vadd.f32 %v783, %v909
    %v911 = vpop.f32.mrf.mxu0
    %v912 = vpop.f32.mrf.mxu0
    %v913 = vadd.f32 %v786, %v912
    %v914 = vpop.f32.mrf.mxu0
    %915 = vmatprep.mubr.bf16.mxu0 0
    %916 = vmatmul.mubr.bf16.gmra.mxu0 %v840
    %v917 = vpop.f32.mrf.mxu0
    %v918 = vadd.f32 %v791, %v917
    %v919 = vpop.f32.mrf.mxu0
    %v920 = vpop.f32.mrf.mxu0
    %v921 = vadd.f32 %v794, %v920
    %v922 = vpop.f32.mrf.mxu0
    %923 = vmatprep.mubr.bf16.mxu0 0
    %924 = vmatmul.mubr.bf16.gmra.mxu0 %v843
    %v925 = vpop.f32.mrf.mxu0
    %v926 = vadd.f32 %v799, %v925
    %v927 = vpop.f32.mrf.mxu0
    %v928 = vpop.f32.mrf.mxu0
    %v929 = vadd.f32 %v802, %v928
    %v930 = vpop.f32.mrf.mxu0
    %931 = vmatprep.mubr.bf16.mxu0 0
    %932 = vmatmul.mubr.bf16.gmra.mxu0 %v846
    %v933 = vpop.f32.mrf.mxu0
    %v934 = vadd.f32 %v807, %v933
    %v935 = vpop.f32.mrf.mxu0
    %v936 = vpop.f32.mrf.mxu0
    %v937 = vadd.f32 %v810, %v936
    %v938 = vpop.f32.mrf.mxu0
    %939 = vmatprep.mubr.bf16.mxu0 0
    %940 = vmatmul.mubr.bf16.gmra.mxu0 %v849
    %v941 = vpop.f32.mrf.mxu0
    %v942 = vadd.f32 %v815, %v941
    %v943 = vpop.f32.mrf.mxu0
    %v944 = vpop.f32.mrf.mxu0
    %v945 = vadd.f32 %v818, %v944
    %v946 = vpop.f32.mrf.mxu0
    %947 = vdwg.mxu0
    %s948 = scalar_lea.vmem [#allocation2], 128
    %v949 = vld [vmem:[%s948] sm:$0xf]
    %v950 = vld [vmem:[%s948 + $0x4] sm:$0xf]
    %v951 = vld [vmem:[%s948 + $0x8] sm:$0xf]
    %v952 = vld [vmem:[%s948 + $0xc] sm:$0xf]
    %v953 = vld [vmem:[%s948 + $0x10] sm:$0xf]
    %v954 = vld [vmem:[%s948 + $0x14] sm:$0xf]
    %v955 = vld [vmem:[%s948 + $0x18] sm:$0xf]
    %v956 = vld [vmem:[%s948 + $0x1c] sm:$0xf]
    %v957 = vld [vmem:[%s948 + $0x20] sm:$0xf]
    %v958 = vld [vmem:[%s948 + $0x24] sm:$0xf]
    %v959 = vld [vmem:[%s948 + $0x28] sm:$0xf]
    %v960 = vld [vmem:[%s948 + $0x2c] sm:$0xf]
    %v961 = vld [vmem:[%s948 + $0x30] sm:$0xf]
    %v962 = vld [vmem:[%s948 + $0x34] sm:$0xf]
    %v963 = vld [vmem:[%s948 + $0x38] sm:$0xf]
    %v964 = vld [vmem:[%s948 + $0x3c] sm:$0xf]
    %v981 = vunpack.c.l.b16 %v949
    %v982 = vunpack.c.l.b16 %v950
    %v983 = vunpack.c.l.b16 %v951
    %v984 = vunpack.c.l.b16 %v952
    %v985 = vunpack.c.l.b16 %v953
    %v986 = vunpack.c.l.b16 %v954
    %v987 = vunpack.c.l.b16 %v955
    %v988 = vunpack.c.l.b16 %v956
    %v989 = vunpack.c.l.b16 %v957
    %v990 = vunpack.c.l.b16 %v958
    %v991 = vunpack.c.l.b16 %v959
    %v992 = vunpack.c.l.b16 %v960
    %v993 = vunpack.c.l.b16 %v961
    %v994 = vunpack.c.l.b16 %v962
    %v995 = vunpack.c.l.b16 %v963
    %v996 = vunpack.c.l.b16 %v964
    %v997 = vpack.c.b16 %v982, %v981
    %v998 = vpack.c.b16 %v984, %v983
    %v999 = vpack.c.b16 %v986, %v985
    %v1000 = vpack.c.b16 %v988, %v987
    %v1001 = vpack.c.b16 %v990, %v989
    %v1002 = vpack.c.b16 %v992, %v991
    %v1003 = vpack.c.b16 %v994, %v993
    %v1004 = vpack.c.b16 %v996, %v995
    %1013 = vmatprep.subr.bf16.mxu0 0
    %1014 = vmatpush1.bf16.msra.mxu0 %v348
    %1015 = vmatprep.subr.bf16.mxu0 0
    %1016 = vmatpush1.bf16.msra.mxu0 %v347
    %1017 = vmatprep.subr.bf16.mxu0 0
    %1018 = vmatpush1.bf16.msra.mxu0 %v346
    %1019 = vmatprep.subr.bf16.mxu0 0
    %1020 = vmatpush1.bf16.msra.mxu0 %v345
    %1021 = vmatprep.subr.bf16.mxu0 0
    %1022 = vmatpush1.bf16.msra.mxu0 %v344
    %1023 = vmatprep.subr.bf16.mxu0 0
    %1024 = vmatpush1.bf16.msra.mxu0 %v343
    %1025 = vmatprep.subr.bf16.mxu0 0
    %1026 = vmatpush1.bf16.msra.mxu0 %v342
    %1027 = vmatprep.subr.bf16.mxu0 0
    %1028 = vmatpush1.bf16.msra.mxu0 %v341
    %1029 = vmatprep.subr.bf16.mxu0 0
    %1030 = vmatpush2.bf16.msra.mxu0 0
    %1031 = vmatprep.subr.bf16.mxu0 0
    %1032 = vmatpush2.bf16.msra.mxu0 0
    %1033 = vmatprep.subr.bf16.mxu0 0
    %1034 = vmatpush2.bf16.msra.mxu0 0
    %1035 = vmatprep.subr.bf16.mxu0 0
    %1036 = vmatpush2.bf16.msra.mxu0 0
    %1037 = vmatprep.subr.bf16.mxu0 0
    %1038 = vmatpush2.bf16.msra.mxu0 0
    %1039 = vmatprep.subr.bf16.mxu0 0
    %1040 = vmatpush2.bf16.msra.mxu0 0
    %1041 = vmatprep.subr.bf16.mxu0 0
    %1042 = vmatpush2.bf16.msra.mxu0 0
    %1043 = vmatprep.subr.bf16.mxu0 0
    %1044 = vmatpush2.bf16.msra.mxu0 0
    %1045 = vmatprep.mubr.bf16.mxu0 0
    %1046 = vmatmul.mubr.bf16.gmra.mxu0 %v997
    %v1047 = vpop.f32.mrf.mxu0
    %v1048 = vadd.f32 0.0, %v1047
    %v1049 = vpop.f32.mrf.mxu0
    %v1050 = vpop.f32.mrf.mxu0
    %v1051 = vadd.f32 0.0, %v1050
    %v1052 = vpop.f32.mrf.mxu0
    %1053 = vmatprep.mubr.bf16.mxu0 0
    %1054 = vmatmul.mubr.bf16.gmra.mxu0 %v998
    %v1055 = vpop.f32.mrf.mxu0
    %v1056 = vadd.f32 0.0, %v1055
    %v1057 = vpop.f32.mrf.mxu0
    %v1058 = vpop.f32.mrf.mxu0
    %v1059 = vadd.f32 0.0, %v1058
    %v1060 = vpop.f32.mrf.mxu0
    %1061 = vmatprep.mubr.bf16.mxu0 0
    %1062 = vmatmul.mubr.bf16.gmra.mxu0 %v999
    %v1063 = vpop.f32.mrf.mxu0
    %v1064 = vadd.f32 0.0, %v1063
    %v1065 = vpop.f32.mrf.mxu0
    %v1066 = vpop.f32.mrf.mxu0
    %v1067 = vadd.f32 0.0, %v1066
    %v1068 = vpop.f32.mrf.mxu0
    %1069 = vmatprep.mubr.bf16.mxu0 0
    %1070 = vmatmul.mubr.bf16.gmra.mxu0 %v1000
    %v1071 = vpop.f32.mrf.mxu0
    %v1072 = vadd.f32 0.0, %v1071
    %v1073 = vpop.f32.mrf.mxu0
    %v1074 = vpop.f32.mrf.mxu0
    %v1075 = vadd.f32 0.0, %v1074
    %v1076 = vpop.f32.mrf.mxu0
    %1077 = vmatprep.mubr.bf16.mxu0 0
    %1078 = vmatmul.mubr.bf16.gmra.mxu0 %v1001
    %v1079 = vpop.f32.mrf.mxu0
    %v1080 = vadd.f32 0.0, %v1079
    %v1081 = vpop.f32.mrf.mxu0
    %v1082 = vpop.f32.mrf.mxu0
    %v1083 = vadd.f32 0.0, %v1082
    %v1084 = vpop.f32.mrf.mxu0
    %1085 = vmatprep.mubr.bf16.mxu0 0
    %1086 = vmatmul.mubr.bf16.gmra.mxu0 %v1002
    %v1087 = vpop.f32.mrf.mxu0
    %v1088 = vadd.f32 0.0, %v1087
    %v1089 = vpop.f32.mrf.mxu0
    %v1090 = vpop.f32.mrf.mxu0
    %v1091 = vadd.f32 0.0, %v1090
    %v1092 = vpop.f32.mrf.mxu0
    %1093 = vmatprep.mubr.bf16.mxu0 0
    %1094 = vmatmul.mubr.bf16.gmra.mxu0 %v1003
    %v1095 = vpop.f32.mrf.mxu0
    %v1096 = vadd.f32 0.0, %v1095
    %v1097 = vpop.f32.mrf.mxu0
    %v1098 = vpop.f32.mrf.mxu0
    %v1099 = vadd.f32 0.0, %v1098
    %v1100 = vpop.f32.mrf.mxu0
    %1101 = vmatprep.mubr.bf16.mxu0 0
    %1102 = vmatmul.mubr.bf16.gmra.mxu0 %v1004
    %v1103 = vpop.f32.mrf.mxu0
    %v1104 = vadd.f32 0.0, %v1103
    %v1105 = vpop.f32.mrf.mxu0
    %v1106 = vpop.f32.mrf.mxu0
    %v1107 = vadd.f32 0.0, %v1106
    %v1108 = vpop.f32.mrf.mxu0
    %1109 = vdwg.mxu0
    %v1110 = vpack.c.bf16 %v1051, %v1048
    %v1111 = vpack.c.bf16 %v1059, %v1056
    %v1112 = vpack.c.bf16 %v1067, %v1064
    %v1113 = vpack.c.bf16 %v1075, %v1072
    %v1114 = vpack.c.bf16 %v1083, %v1080
    %v1115 = vpack.c.bf16 %v1091, %v1088
    %v1116 = vpack.c.bf16 %v1099, %v1096
    %v1117 = vpack.c.bf16 %v1107, %v1104
    %s1118 = scalar_lea.vmem %s3, 16
    %v1119 = vld [vmem:[%s1118] sm:$0xf]
    %v1120 = vld [vmem:[%s1118 + $0x4] sm:$0xf]
    %v1123 = vunpack.c.l.b16 %v1119
    %v1124 = vunpack.c.l.b16 %v1120
    %v1125 = vpack.c.b16 %v1124, %v1123
    %v1128 = vsel %vm699, %v1110, 0
    %v1131 = vsel %vm699, %v1111, 0
    %v1134 = vsel %vm699, %v1112, 0
    %v1137 = vsel %vm699, %v1113, 0
    %v1140 = vsel %vm699, %v1114, 0
    %v1143 = vsel %vm699, %v1115, 0
    %v1146 = vsel %vm699, %v1116, 0
    %v1149 = vsel %vm699, %v1117, 0
    %1151 = vmatprep.subr.bf16.mxu0 0
    %1152 = vmatpush1.bf16.msra.mxu0 0
    %1153 = vmatprep.subr.bf16.mxu0 0
    %1154 = vmatpush1.bf16.msra.mxu0 0
    %1155 = vmatprep.subr.bf16.mxu0 0
    %1156 = vmatpush1.bf16.msra.mxu0 0
    %1157 = vmatprep.subr.bf16.mxu0 0
    %1158 = vmatpush1.bf16.msra.mxu0 0
    %1159 = vmatprep.subr.bf16.mxu0 0
    %1160 = vmatpush1.bf16.msra.mxu0 0
    %1161 = vmatprep.subr.bf16.mxu0 0
    %1162 = vmatpush1.bf16.msra.mxu0 0
    %1163 = vmatprep.subr.bf16.mxu0 0
    %1164 = vmatpush1.bf16.msra.mxu0 0
    %1165 = vmatprep.subr.bf16.mxu0 0
    %1166 = vmatpush1.bf16.msra.mxu0 %v1125
    %1167 = vmatprep.subr.bf16.mxu0 0
    %1168 = vmatpush2.bf16.msra.mxu0 0
    %1169 = vmatprep.subr.bf16.mxu0 0
    %1170 = vmatpush2.bf16.msra.mxu0 0
    %1171 = vmatprep.subr.bf16.mxu0 0
    %1172 = vmatpush2.bf16.msra.mxu0 0
    %1173 = vmatprep.subr.bf16.mxu0 0
    %1174 = vmatpush2.bf16.msra.mxu0 0
    %1175 = vmatprep.subr.bf16.mxu0 0
    %1176 = vmatpush2.bf16.msra.mxu0 0
    %1177 = vmatprep.subr.bf16.mxu0 0
    %1178 = vmatpush2.bf16.msra.mxu0 0
    %1179 = vmatprep.subr.bf16.mxu0 0
    %1180 = vmatpush2.bf16.msra.mxu0 0
    %1181 = vmatprep.subr.bf16.mxu0 0
    %1182 = vmatpush2.bf16.msra.mxu0 0
    %1183 = vmatprep.mubr.bf16.mxu0 0
    %1184 = vmatmul.mubr.bf16.gmra.mxu0 %v1128
    %v1185 = vpop.f32.mrf.mxu0
    %v1186 = vadd.f32 0.0, %v1185
    %v1187 = vpop.f32.mrf.mxu0
    %v1188 = vpop.f32.mrf.mxu0
    %v1189 = vadd.f32 0.0, %v1188
    %v1190 = vpop.f32.mrf.mxu0
    %1191 = vmatprep.mubr.bf16.mxu0 0
    %1192 = vmatmul.mubr.bf16.gmra.mxu0 %v1131
    %v1193 = vpop.f32.mrf.mxu0
    %v1194 = vadd.f32 0.0, %v1193
    %v1195 = vpop.f32.mrf.mxu0
    %v1196 = vpop.f32.mrf.mxu0
    %v1197 = vadd.f32 0.0, %v1196
    %v1198 = vpop.f32.mrf.mxu0
    %1199 = vmatprep.mubr.bf16.mxu0 0
    %1200 = vmatmul.mubr.bf16.gmra.mxu0 %v1134
    %v1201 = vpop.f32.mrf.mxu0
    %v1202 = vadd.f32 0.0, %v1201
    %v1203 = vpop.f32.mrf.mxu0
    %v1204 = vpop.f32.mrf.mxu0
    %v1205 = vadd.f32 0.0, %v1204
    %v1206 = vpop.f32.mrf.mxu0
    %1207 = vmatprep.mubr.bf16.mxu0 0
    %1208 = vmatmul.mubr.bf16.gmra.mxu0 %v1137
    %v1209 = vpop.f32.mrf.mxu0
    %v1210 = vadd.f32 0.0, %v1209
    %v1211 = vpop.f32.mrf.mxu0
    %v1212 = vpop.f32.mrf.mxu0
    %v1213 = vadd.f32 0.0, %v1212
    %v1214 = vpop.f32.mrf.mxu0
    %1215 = vmatprep.mubr.bf16.mxu0 0
    %1216 = vmatmul.mubr.bf16.gmra.mxu0 %v1140
    %v1217 = vpop.f32.mrf.mxu0
    %v1218 = vadd.f32 0.0, %v1217
    %v1219 = vpop.f32.mrf.mxu0
    %v1220 = vpop.f32.mrf.mxu0
    %v1221 = vadd.f32 0.0, %v1220
    %v1222 = vpop.f32.mrf.mxu0
    %1223 = vmatprep.mubr.bf16.mxu0 0
    %1224 = vmatmul.mubr.bf16.gmra.mxu0 %v1143
    %v1225 = vpop.f32.mrf.mxu0
    %v1226 = vadd.f32 0.0, %v1225
    %v1227 = vpop.f32.mrf.mxu0
    %v1228 = vpop.f32.mrf.mxu0
    %v1229 = vadd.f32 0.0, %v1228
    %v1230 = vpop.f32.mrf.mxu0
    %1231 = vmatprep.mubr.bf16.mxu0 0
    %1232 = vmatmul.mubr.bf16.gmra.mxu0 %v1146
    %v1233 = vpop.f32.mrf.mxu0
    %v1234 = vadd.f32 0.0, %v1233
    %v1235 = vpop.f32.mrf.mxu0
    %v1236 = vpop.f32.mrf.mxu0
    %v1237 = vadd.f32 0.0, %v1236
    %v1238 = vpop.f32.mrf.mxu0
    %1239 = vmatprep.mubr.bf16.mxu0 0
    %1240 = vmatmul.mubr.bf16.gmra.mxu0 %v1149
    %v1241 = vpop.f32.mrf.mxu0
    %v1242 = vadd.f32 0.0, %v1241
    %v1243 = vpop.f32.mrf.mxu0
    %v1244 = vpop.f32.mrf.mxu0
    %v1245 = vadd.f32 0.0, %v1244
    %v1246 = vpop.f32.mrf.mxu0
    %1247 = vdwg.mxu0
    %v1248 = vadd.f32 %v886, %v1186
    %v1249 = vadd.f32 %v889, %v1189
    %v1250 = vadd.f32 %v894, %v1194
    %v1251 = vadd.f32 %v897, %v1197
    %v1252 = vadd.f32 %v902, %v1202
    %v1253 = vadd.f32 %v905, %v1205
    %v1254 = vadd.f32 %v910, %v1210
    %v1255 = vadd.f32 %v913, %v1213
    %v1256 = vadd.f32 %v918, %v1218
    %v1257 = vadd.f32 %v921, %v1221
    %v1258 = vadd.f32 %v926, %v1226
    %v1259 = vadd.f32 %v929, %v1229
    %v1260 = vadd.f32 %v934, %v1234
    %v1261 = vadd.f32 %v937, %v1237
    %v1262 = vadd.f32 %v942, %v1242
    %v1263 = vadd.f32 %v945, %v1245
    %s1264 = scalar_lea.vmem [#allocation2], 192
    %v1265 = vld [vmem:[%s1264] sm:$0xf]
    %v1266 = vld [vmem:[%s1264 + $0x4] sm:$0xf]
    %v1267 = vld [vmem:[%s1264 + $0x8] sm:$0xf]
    %v1268 = vld [vmem:[%s1264 + $0xc] sm:$0xf]
    %v1269 = vld [vmem:[%s1264 + $0x10] sm:$0xf]
    %v1270 = vld [vmem:[%s1264 + $0x14] sm:$0xf]
    %v1271 = vld [vmem:[%s1264 + $0x18] sm:$0xf]
    %v1272 = vld [vmem:[%s1264 + $0x1c] sm:$0xf]
    %v1273 = vld [vmem:[%s1264 + $0x20] sm:$0xf]
    %v1274 = vld [vmem:[%s1264 + $0x24] sm:$0xf]
    %v1275 = vld [vmem:[%s1264 + $0x28] sm:$0xf]
    %v1276 = vld [vmem:[%s1264 + $0x2c] sm:$0xf]
    %v1277 = vld [vmem:[%s1264 + $0x30] sm:$0xf]
    %v1278 = vld [vmem:[%s1264 + $0x34] sm:$0xf]
    %v1279 = vld [vmem:[%s1264 + $0x38] sm:$0xf]
    %v1280 = vld [vmem:[%s1264 + $0x3c] sm:$0xf]
    %v1297 = vunpack.c.l.b16 %v1265
    %v1298 = vunpack.c.l.b16 %v1266
    %v1299 = vunpack.c.l.b16 %v1267
    %v1300 = vunpack.c.l.b16 %v1268
    %v1301 = vunpack.c.l.b16 %v1269
    %v1302 = vunpack.c.l.b16 %v1270
    %v1303 = vunpack.c.l.b16 %v1271
    %v1304 = vunpack.c.l.b16 %v1272
    %v1305 = vunpack.c.l.b16 %v1273
    %v1306 = vunpack.c.l.b16 %v1274
    %v1307 = vunpack.c.l.b16 %v1275
    %v1308 = vunpack.c.l.b16 %v1276
    %v1309 = vunpack.c.l.b16 %v1277
    %v1310 = vunpack.c.l.b16 %v1278
    %v1311 = vunpack.c.l.b16 %v1279
    %v1312 = vunpack.c.l.b16 %v1280
    %v1313 = vpack.c.b16 %v1298, %v1297
    %v1314 = vpack.c.b16 %v1300, %v1299
    %v1315 = vpack.c.b16 %v1302, %v1301
    %v1316 = vpack.c.b16 %v1304, %v1303
    %v1317 = vpack.c.b16 %v1306, %v1305
    %v1318 = vpack.c.b16 %v1308, %v1307
    %v1319 = vpack.c.b16 %v1310, %v1309
    %v1320 = vpack.c.b16 %v1312, %v1311
    %1329 = vmatprep.subr.bf16.mxu0 0
    %1330 = vmatpush1.bf16.msra.mxu0 %v348
    %1331 = vmatprep.subr.bf16.mxu0 0
    %1332 = vmatpush1.bf16.msra.mxu0 %v347
    %1333 = vmatprep.subr.bf16.mxu0 0
    %1334 = vmatpush1.bf16.msra.mxu0 %v346
    %1335 = vmatprep.subr.bf16.mxu0 0
    %1336 = vmatpush1.bf16.msra.mxu0 %v345
    %1337 = vmatprep.subr.bf16.mxu0 0
    %1338 = vmatpush1.bf16.msra.mxu0 %v344
    %1339 = vmatprep.subr.bf16.mxu0 0
    %1340 = vmatpush1.bf16.msra.mxu0 %v343
    %1341 = vmatprep.subr.bf16.mxu0 0
    %1342 = vmatpush1.bf16.msra.mxu0 %v342
    %1343 = vmatprep.subr.bf16.mxu0 0
    %1344 = vmatpush1.bf16.msra.mxu0 %v341
    %1345 = vmatprep.subr.bf16.mxu0 0
    %1346 = vmatpush2.bf16.msra.mxu0 0
    %1347 = vmatprep.subr.bf16.mxu0 0
    %1348 = vmatpush2.bf16.msra.mxu0 0
    %1349 = vmatprep.subr.bf16.mxu0 0
    %1350 = vmatpush2.bf16.msra.mxu0 0
    %1351 = vmatprep.subr.bf16.mxu0 0
    %1352 = vmatpush2.bf16.msra.mxu0 0
    %1353 = vmatprep.subr.bf16.mxu0 0
    %1354 = vmatpush2.bf16.msra.mxu0 0
    %1355 = vmatprep.subr.bf16.mxu0 0
    %1356 = vmatpush2.bf16.msra.mxu0 0
    %1357 = vmatprep.subr.bf16.mxu0 0
    %1358 = vmatpush2.bf16.msra.mxu0 0
    %1359 = vmatprep.subr.bf16.mxu0 0
    %1360 = vmatpush2.bf16.msra.mxu0 0
    %1361 = vmatprep.mubr.bf16.mxu0 0
    %1362 = vmatmul.mubr.bf16.gmra.mxu0 %v1313
    %v1363 = vpop.f32.mrf.mxu0
    %v1364 = vadd.f32 0.0, %v1363
    %v1365 = vpop.f32.mrf.mxu0
    %v1366 = vpop.f32.mrf.mxu0
    %v1367 = vadd.f32 0.0, %v1366
    %v1368 = vpop.f32.mrf.mxu0
    %1369 = vmatprep.mubr.bf16.mxu0 0
    %1370 = vmatmul.mubr.bf16.gmra.mxu0 %v1314
    %v1371 = vpop.f32.mrf.mxu0
    %v1372 = vadd.f32 0.0, %v1371
    %v1373 = vpop.f32.mrf.mxu0
    %v1374 = vpop.f32.mrf.mxu0
    %v1375 = vadd.f32 0.0, %v1374
    %v1376 = vpop.f32.mrf.mxu0
    %1377 = vmatprep.mubr.bf16.mxu0 0
    %1378 = vmatmul.mubr.bf16.gmra.mxu0 %v1315
    %v1379 = vpop.f32.mrf.mxu0
    %v1380 = vadd.f32 0.0, %v1379
    %v1381 = vpop.f32.mrf.mxu0
    %v1382 = vpop.f32.mrf.mxu0
    %v1383 = vadd.f32 0.0, %v1382
    %v1384 = vpop.f32.mrf.mxu0
    %1385 = vmatprep.mubr.bf16.mxu0 0
    %1386 = vmatmul.mubr.bf16.gmra.mxu0 %v1316
    %v1387 = vpop.f32.mrf.mxu0
    %v1388 = vadd.f32 0.0, %v1387
    %v1389 = vpop.f32.mrf.mxu0
    %v1390 = vpop.f32.mrf.mxu0
    %v1391 = vadd.f32 0.0, %v1390
    %v1392 = vpop.f32.mrf.mxu0
    %1393 = vmatprep.mubr.bf16.mxu0 0
    %1394 = vmatmul.mubr.bf16.gmra.mxu0 %v1317
    %v1395 = vpop.f32.mrf.mxu0
    %v1396 = vadd.f32 0.0, %v1395
    %v1397 = vpop.f32.mrf.mxu0
    %v1398 = vpop.f32.mrf.mxu0
    %v1399 = vadd.f32 0.0, %v1398
    %v1400 = vpop.f32.mrf.mxu0
    %1401 = vmatprep.mubr.bf16.mxu0 0
    %1402 = vmatmul.mubr.bf16.gmra.mxu0 %v1318
    %v1403 = vpop.f32.mrf.mxu0
    %v1404 = vadd.f32 0.0, %v1403
    %v1405 = vpop.f32.mrf.mxu0
    %v1406 = vpop.f32.mrf.mxu0
    %v1407 = vadd.f32 0.0, %v1406
    %v1408 = vpop.f32.mrf.mxu0
    %1409 = vmatprep.mubr.bf16.mxu0 0
    %1410 = vmatmul.mubr.bf16.gmra.mxu0 %v1319
    %v1411 = vpop.f32.mrf.mxu0
    %v1412 = vadd.f32 0.0, %v1411
    %v1413 = vpop.f32.mrf.mxu0
    %v1414 = vpop.f32.mrf.mxu0
    %v1415 = vadd.f32 0.0, %v1414
    %v1416 = vpop.f32.mrf.mxu0
    %1417 = vmatprep.mubr.bf16.mxu0 0
    %1418 = vmatmul.mubr.bf16.gmra.mxu0 %v1320
    %v1419 = vpop.f32.mrf.mxu0
    %v1420 = vadd.f32 0.0, %v1419
    %v1421 = vpop.f32.mrf.mxu0
    %v1422 = vpop.f32.mrf.mxu0
    %v1423 = vadd.f32 0.0, %v1422
    %v1424 = vpop.f32.mrf.mxu0
    %1425 = vdwg.mxu0
    %v1426 = vpack.c.bf16 %v1367, %v1364
    %v1427 = vpack.c.bf16 %v1375, %v1372
    %v1428 = vpack.c.bf16 %v1383, %v1380
    %v1429 = vpack.c.bf16 %v1391, %v1388
    %v1430 = vpack.c.bf16 %v1399, %v1396
    %v1431 = vpack.c.bf16 %v1407, %v1404
    %v1432 = vpack.c.bf16 %v1415, %v1412
    %v1433 = vpack.c.bf16 %v1423, %v1420
    %s1434 = scalar_lea.vmem %s3, 24
    %v1435 = vld [vmem:[%s1434] sm:$0xf]
    %v1436 = vld [vmem:[%s1434 + $0x4] sm:$0xf]
    %v1439 = vunpack.c.l.b16 %v1435
    %v1440 = vunpack.c.l.b16 %v1436
    %v1441 = vpack.c.b16 %v1440, %v1439
    %v1444 = vsel %vm699, %v1426, 0
    %v1447 = vsel %vm699, %v1427, 0
    %v1450 = vsel %vm699, %v1428, 0
    %v1453 = vsel %vm699, %v1429, 0
    %v1456 = vsel %vm699, %v1430, 0
    %v1459 = vsel %vm699, %v1431, 0
    %v1462 = vsel %vm699, %v1432, 0
    %v1465 = vsel %vm699, %v1433, 0
    %1467 = vmatprep.subr.bf16.mxu0 0
    %1468 = vmatpush1.bf16.msra.mxu0 0
    %1469 = vmatprep.subr.bf16.mxu0 0
    %1470 = vmatpush1.bf16.msra.mxu0 0
    %1471 = vmatprep.subr.bf16.mxu0 0
    %1472 = vmatpush1.bf16.msra.mxu0 0
    %1473 = vmatprep.subr.bf16.mxu0 0
    %1474 = vmatpush1.bf16.msra.mxu0 0
    %1475 = vmatprep.subr.bf16.mxu0 0
    %1476 = vmatpush1.bf16.msra.mxu0 0
    %1477 = vmatprep.subr.bf16.mxu0 0
    %1478 = vmatpush1.bf16.msra.mxu0 0
    %1479 = vmatprep.subr.bf16.mxu0 0
    %1480 = vmatpush1.bf16.msra.mxu0 0
    %1481 = vmatprep.subr.bf16.mxu0 0
    %1482 = vmatpush1.bf16.msra.mxu0 %v1441
    %1483 = vmatprep.subr.bf16.mxu0 0
    %1484 = vmatpush2.bf16.msra.mxu0 0
    %1485 = vmatprep.subr.bf16.mxu0 0
    %1486 = vmatpush2.bf16.msra.mxu0 0
    %1487 = vmatprep.subr.bf16.mxu0 0
    %1488 = vmatpush2.bf16.msra.mxu0 0
    %1489 = vmatprep.subr.bf16.mxu0 0
    %1490 = vmatpush2.bf16.msra.mxu0 0
    %1491 = vmatprep.subr.bf16.mxu0 0
    %1492 = vmatpush2.bf16.msra.mxu0 0
    %1493 = vmatprep.subr.bf16.mxu0 0
    %1494 = vmatpush2.bf16.msra.mxu0 0
    %1495 = vmatprep.subr.bf16.mxu0 0
    %1496 = vmatpush2.bf16.msra.mxu0 0
    %1497 = vmatprep.subr.bf16.mxu0 0
    %1498 = vmatpush2.bf16.msra.mxu0 0
    %1499 = vmatprep.mubr.bf16.mxu0 0
    %1500 = vmatmul.mubr.bf16.gmra.mxu0 %v1444
    %v1501 = vpop.f32.mrf.mxu0
    %v1502 = vadd.f32 0.0, %v1501
    %v1503 = vpop.f32.mrf.mxu0
    %v1504 = vpop.f32.mrf.mxu0
    %v1505 = vadd.f32 0.0, %v1504
    %v1506 = vpop.f32.mrf.mxu0
    %1507 = vmatprep.mubr.bf16.mxu0 0
    %1508 = vmatmul.mubr.bf16.gmra.mxu0 %v1447
    %v1509 = vpop.f32.mrf.mxu0
    %v1510 = vadd.f32 0.0, %v1509
    %v1511 = vpop.f32.mrf.mxu0
    %v1512 = vpop.f32.mrf.mxu0
    %v1513 = vadd.f32 0.0, %v1512
    %v1514 = vpop.f32.mrf.mxu0
    %1515 = vmatprep.mubr.bf16.mxu0 0
    %1516 = vmatmul.mubr.bf16.gmra.mxu0 %v1450
    %v1517 = vpop.f32.mrf.mxu0
    %v1518 = vadd.f32 0.0, %v1517
    %v1519 = vpop.f32.mrf.mxu0
    %v1520 = vpop.f32.mrf.mxu0
    %v1521 = vadd.f32 0.0, %v1520
    %v1522 = vpop.f32.mrf.mxu0
    %1523 = vmatprep.mubr.bf16.mxu0 0
    %1524 = vmatmul.mubr.bf16.gmra.mxu0 %v1453
    %v1525 = vpop.f32.mrf.mxu0
    %v1526 = vadd.f32 0.0, %v1525
    %v1527 = vpop.f32.mrf.mxu0
    %v1528 = vpop.f32.mrf.mxu0
    %v1529 = vadd.f32 0.0, %v1528
    %v1530 = vpop.f32.mrf.mxu0
    %1531 = vmatprep.mubr.bf16.mxu0 0
    %1532 = vmatmul.mubr.bf16.gmra.mxu0 %v1456
    %v1533 = vpop.f32.mrf.mxu0
    %v1534 = vadd.f32 0.0, %v1533
    %v1535 = vpop.f32.mrf.mxu0
    %v1536 = vpop.f32.mrf.mxu0
    %v1537 = vadd.f32 0.0, %v1536
    %v1538 = vpop.f32.mrf.mxu0
    %1539 = vmatprep.mubr.bf16.mxu0 0
    %1540 = vmatmul.mubr.bf16.gmra.mxu0 %v1459
    %v1541 = vpop.f32.mrf.mxu0
    %v1542 = vadd.f32 0.0, %v1541
    %v1543 = vpop.f32.mrf.mxu0
    %v1544 = vpop.f32.mrf.mxu0
    %v1545 = vadd.f32 0.0, %v1544
    %v1546 = vpop.f32.mrf.mxu0
    %1547 = vmatprep.mubr.bf16.mxu0 0
    %1548 = vmatmul.mubr.bf16.gmra.mxu0 %v1462
    %v1549 = vpop.f32.mrf.mxu0
    %v1550 = vadd.f32 0.0, %v1549
    %v1551 = vpop.f32.mrf.mxu0
    %v1552 = vpop.f32.mrf.mxu0
    %v1553 = vadd.f32 0.0, %v1552
    %v1554 = vpop.f32.mrf.mxu0
    %1555 = vmatprep.mubr.bf16.mxu0 0
    %1556 = vmatmul.mubr.bf16.gmra.mxu0 %v1465
    %v1557 = vpop.f32.mrf.mxu0
    %v1558 = vadd.f32 0.0, %v1557
    %v1559 = vpop.f32.mrf.mxu0
    %v1560 = vpop.f32.mrf.mxu0
    %v1561 = vadd.f32 0.0, %v1560
    %v1562 = vpop.f32.mrf.mxu0
    %1563 = vdwg.mxu0
    %v1564 = vadd.f32 %v1248, %v1502
    %v1565 = vadd.f32 %v1249, %v1505
    %v1566 = vadd.f32 %v1250, %v1510
    %v1567 = vadd.f32 %v1251, %v1513
    %v1568 = vadd.f32 %v1252, %v1518
    %v1569 = vadd.f32 %v1253, %v1521
    %v1570 = vadd.f32 %v1254, %v1526
    %v1571 = vadd.f32 %v1255, %v1529
    %v1572 = vadd.f32 %v1256, %v1534
    %v1573 = vadd.f32 %v1257, %v1537
    %v1574 = vadd.f32 %v1258, %v1542
    %v1575 = vadd.f32 %v1259, %v1545
    %v1576 = vadd.f32 %v1260, %v1550
    %v1577 = vadd.f32 %v1261, %v1553
    %v1578 = vadd.f32 %v1262, %v1558
    %v1579 = vadd.f32 %v1263, %v1561
    %s1580 = scalar_lea.vmem [#allocation2], 256
    %v1581 = vld [vmem:[%s1580] sm:$0xf]
    %v1582 = vld [vmem:[%s1580 + $0x4] sm:$0xf]
    %v1583 = vld [vmem:[%s1580 + $0x8] sm:$0xf]
    %v1584 = vld [vmem:[%s1580 + $0xc] sm:$0xf]
    %v1585 = vld [vmem:[%s1580 + $0x10] sm:$0xf]
    %v1586 = vld [vmem:[%s1580 + $0x14] sm:$0xf]
    %v1587 = vld [vmem:[%s1580 + $0x18] sm:$0xf]
    %v1588 = vld [vmem:[%s1580 + $0x1c] sm:$0xf]
    %v1589 = vld [vmem:[%s1580 + $0x20] sm:$0xf]
    %v1590 = vld [vmem:[%s1580 + $0x24] sm:$0xf]
    %v1591 = vld [vmem:[%s1580 + $0x28] sm:$0xf]
    %v1592 = vld [vmem:[%s1580 + $0x2c] sm:$0xf]
    %v1593 = vld [vmem:[%s1580 + $0x30] sm:$0xf]
    %v1594 = vld [vmem:[%s1580 + $0x34] sm:$0xf]
    %v1595 = vld [vmem:[%s1580 + $0x38] sm:$0xf]
    %v1596 = vld [vmem:[%s1580 + $0x3c] sm:$0xf]
    %v1613 = vunpack.c.l.b16 %v1581
    %v1614 = vunpack.c.l.b16 %v1582
    %v1615 = vunpack.c.l.b16 %v1583
    %v1616 = vunpack.c.l.b16 %v1584
    %v1617 = vunpack.c.l.b16 %v1585
    %v1618 = vunpack.c.l.b16 %v1586
    %v1619 = vunpack.c.l.b16 %v1587
    %v1620 = vunpack.c.l.b16 %v1588
    %v1621 = vunpack.c.l.b16 %v1589
    %v1622 = vunpack.c.l.b16 %v1590
    %v1623 = vunpack.c.l.b16 %v1591
    %v1624 = vunpack.c.l.b16 %v1592
    %v1625 = vunpack.c.l.b16 %v1593
    %v1626 = vunpack.c.l.b16 %v1594
    %v1627 = vunpack.c.l.b16 %v1595
    %v1628 = vunpack.c.l.b16 %v1596
    %v1629 = vpack.c.b16 %v1614, %v1613
    %v1630 = vpack.c.b16 %v1616, %v1615
    %v1631 = vpack.c.b16 %v1618, %v1617
    %v1632 = vpack.c.b16 %v1620, %v1619
    %v1633 = vpack.c.b16 %v1622, %v1621
    %v1634 = vpack.c.b16 %v1624, %v1623
    %v1635 = vpack.c.b16 %v1626, %v1625
    %v1636 = vpack.c.b16 %v1628, %v1627
    %1645 = vmatprep.subr.bf16.mxu0 0
    %1646 = vmatpush1.bf16.msra.mxu0 %v348
    %1647 = vmatprep.subr.bf16.mxu0 0
    %1648 = vmatpush1.bf16.msra.mxu0 %v347
    %1649 = vmatprep.subr.bf16.mxu0 0
    %1650 = vmatpush1.bf16.msra.mxu0 %v346
    %1651 = vmatprep.subr.bf16.mxu0 0
    %1652 = vmatpush1.bf16.msra.mxu0 %v345
    %1653 = vmatprep.subr.bf16.mxu0 0
    %1654 = vmatpush1.bf16.msra.mxu0 %v344
    %1655 = vmatprep.subr.bf16.mxu0 0
    %1656 = vmatpush1.bf16.msra.mxu0 %v343
    %1657 = vmatprep.subr.bf16.mxu0 0
    %1658 = vmatpush1.bf16.msra.mxu0 %v342
    %1659 = vmatprep.subr.bf16.mxu0 0
    %1660 = vmatpush1.bf16.msra.mxu0 %v341
    %1661 = vmatprep.subr.bf16.mxu0 0
    %1662 = vmatpush2.bf16.msra.mxu0 0
    %1663 = vmatprep.subr.bf16.mxu0 0
    %1664 = vmatpush2.bf16.msra.mxu0 0
    %1665 = vmatprep.subr.bf16.mxu0 0
    %1666 = vmatpush2.bf16.msra.mxu0 0
    %1667 = vmatprep.subr.bf16.mxu0 0
    %1668 = vmatpush2.bf16.msra.mxu0 0
    %1669 = vmatprep.subr.bf16.mxu0 0
    %1670 = vmatpush2.bf16.msra.mxu0 0
    %1671 = vmatprep.subr.bf16.mxu0 0
    %1672 = vmatpush2.bf16.msra.mxu0 0
    %1673 = vmatprep.subr.bf16.mxu0 0
    %1674 = vmatpush2.bf16.msra.mxu0 0
    %1675 = vmatprep.subr.bf16.mxu0 0
    %1676 = vmatpush2.bf16.msra.mxu0 0
    %1677 = vmatprep.mubr.bf16.mxu0 0
    %1678 = vmatmul.mubr.bf16.gmra.mxu0 %v1629
    %v1679 = vpop.f32.mrf.mxu0
    %v1680 = vadd.f32 0.0, %v1679
    %v1681 = vpop.f32.mrf.mxu0
    %v1682 = vpop.f32.mrf.mxu0
    %v1683 = vadd.f32 0.0, %v1682
    %v1684 = vpop.f32.mrf.mxu0
    %1685 = vmatprep.mubr.bf16.mxu0 0
    %1686 = vmatmul.mubr.bf16.gmra.mxu0 %v1630
    %v1687 = vpop.f32.mrf.mxu0
    %v1688 = vadd.f32 0.0, %v1687
    %v1689 = vpop.f32.mrf.mxu0
    %v1690 = vpop.f32.mrf.mxu0
    %v1691 = vadd.f32 0.0, %v1690
    %v1692 = vpop.f32.mrf.mxu0
    %1693 = vmatprep.mubr.bf16.mxu0 0
    %1694 = vmatmul.mubr.bf16.gmra.mxu0 %v1631
    %v1695 = vpop.f32.mrf.mxu0
    %v1696 = vadd.f32 0.0, %v1695
    %v1697 = vpop.f32.mrf.mxu0
    %v1698 = vpop.f32.mrf.mxu0
    %v1699 = vadd.f32 0.0, %v1698
    %v1700 = vpop.f32.mrf.mxu0
    %1701 = vmatprep.mubr.bf16.mxu0 0
    %1702 = vmatmul.mubr.bf16.gmra.mxu0 %v1632
    %v1703 = vpop.f32.mrf.mxu0
    %v1704 = vadd.f32 0.0, %v1703
    %v1705 = vpop.f32.mrf.mxu0
    %v1706 = vpop.f32.mrf.mxu0
    %v1707 = vadd.f32 0.0, %v1706
    %v1708 = vpop.f32.mrf.mxu0
    %1709 = vmatprep.mubr.bf16.mxu0 0
    %1710 = vmatmul.mubr.bf16.gmra.mxu0 %v1633
    %v1711 = vpop.f32.mrf.mxu0
    %v1712 = vadd.f32 0.0, %v1711
    %v1713 = vpop.f32.mrf.mxu0
    %v1714 = vpop.f32.mrf.mxu0
    %v1715 = vadd.f32 0.0, %v1714
    %v1716 = vpop.f32.mrf.mxu0
    %1717 = vmatprep.mubr.bf16.mxu0 0
    %1718 = vmatmul.mubr.bf16.gmra.mxu0 %v1634
    %v1719 = vpop.f32.mrf.mxu0
    %v1720 = vadd.f32 0.0, %v1719
    %v1721 = vpop.f32.mrf.mxu0
    %v1722 = vpop.f32.mrf.mxu0
    %v1723 = vadd.f32 0.0, %v1722
    %v1724 = vpop.f32.mrf.mxu0
    %1725 = vmatprep.mubr.bf16.mxu0 0
    %1726 = vmatmul.mubr.bf16.gmra.mxu0 %v1635
    %v1727 = vpop.f32.mrf.mxu0
    %v1728 = vadd.f32 0.0, %v1727
    %v1729 = vpop.f32.mrf.mxu0
    %v1730 = vpop.f32.mrf.mxu0
    %v1731 = vadd.f32 0.0, %v1730
    %v1732 = vpop.f32.mrf.mxu0
    %1733 = vmatprep.mubr.bf16.mxu0 0
    %1734 = vmatmul.mubr.bf16.gmra.mxu0 %v1636
    %v1735 = vpop.f32.mrf.mxu0
    %v1736 = vadd.f32 0.0, %v1735
    %v1737 = vpop.f32.mrf.mxu0
    %v1738 = vpop.f32.mrf.mxu0
    %v1739 = vadd.f32 0.0, %v1738
    %v1740 = vpop.f32.mrf.mxu0
    %1741 = vdwg.mxu0
    %v1742 = vpack.c.bf16 %v1683, %v1680
    %v1743 = vpack.c.bf16 %v1691, %v1688
    %v1744 = vpack.c.bf16 %v1699, %v1696
    %v1745 = vpack.c.bf16 %v1707, %v1704
    %v1746 = vpack.c.bf16 %v1715, %v1712
    %v1747 = vpack.c.bf16 %v1723, %v1720
    %v1748 = vpack.c.bf16 %v1731, %v1728
    %v1749 = vpack.c.bf16 %v1739, %v1736
    %s1750 = scalar_lea.vmem %s3, 32
    %v1751 = vld [vmem:[%s1750] sm:$0xf]
    %v1752 = vld [vmem:[%s1750 + $0x4] sm:$0xf]
    %v1755 = vunpack.c.l.b16 %v1751
    %v1756 = vunpack.c.l.b16 %v1752
    %v1757 = vpack.c.b16 %v1756, %v1755
    %v1760 = vsel %vm699, %v1742, 0
    %v1763 = vsel %vm699, %v1743, 0
    %v1766 = vsel %vm699, %v1744, 0
    %v1769 = vsel %vm699, %v1745, 0
    %v1772 = vsel %vm699, %v1746, 0
    %v1775 = vsel %vm699, %v1747, 0
    %v1778 = vsel %vm699, %v1748, 0
    %v1781 = vsel %vm699, %v1749, 0
    %1783 = vmatprep.subr.bf16.mxu0 0
    %1784 = vmatpush1.bf16.msra.mxu0 0
    %1785 = vmatprep.subr.bf16.mxu0 0
    %1786 = vmatpush1.bf16.msra.mxu0 0
    %1787 = vmatprep.subr.bf16.mxu0 0
    %1788 = vmatpush1.bf16.msra.mxu0 0
    %1789 = vmatprep.subr.bf16.mxu0 0
    %1790 = vmatpush1.bf16.msra.mxu0 0
    %1791 = vmatprep.subr.bf16.mxu0 0
    %1792 = vmatpush1.bf16.msra.mxu0 0
    %1793 = vmatprep.subr.bf16.mxu0 0
    %1794 = vmatpush1.bf16.msra.mxu0 0
    %1795 = vmatprep.subr.bf16.mxu0 0
    %1796 = vmatpush1.bf16.msra.mxu0 0
    %1797 = vmatprep.subr.bf16.mxu0 0
    %1798 = vmatpush1.bf16.msra.mxu0 %v1757
    %1799 = vmatprep.subr.bf16.mxu0 0
    %1800 = vmatpush2.bf16.msra.mxu0 0
    %1801 = vmatprep.subr.bf16.mxu0 0
    %1802 = vmatpush2.bf16.msra.mxu0 0
    %1803 = vmatprep.subr.bf16.mxu0 0
    %1804 = vmatpush2.bf16.msra.mxu0 0
    %1805 = vmatprep.subr.bf16.mxu0 0
    %1806 = vmatpush2.bf16.msra.mxu0 0
    %1807 = vmatprep.subr.bf16.mxu0 0
    %1808 = vmatpush2.bf16.msra.mxu0 0
    %1809 = vmatprep.subr.bf16.mxu0 0
    %1810 = vmatpush2.bf16.msra.mxu0 0
    %1811 = vmatprep.subr.bf16.mxu0 0
    %1812 = vmatpush2.bf16.msra.mxu0 0
    %1813 = vmatprep.subr.bf16.mxu0 0
    %1814 = vmatpush2.bf16.msra.mxu0 0
    %1815 = vmatprep.mubr.bf16.mxu0 0
    %1816 = vmatmul.mubr.bf16.gmra.mxu0 %v1760
    %v1817 = vpop.f32.mrf.mxu0
    %v1818 = vadd.f32 0.0, %v1817
    %v1819 = vpop.f32.mrf.mxu0
    %v1820 = vpop.f32.mrf.mxu0
    %v1821 = vadd.f32 0.0, %v1820
    %v1822 = vpop.f32.mrf.mxu0
    %1823 = vmatprep.mubr.bf16.mxu0 0
    %1824 = vmatmul.mubr.bf16.gmra.mxu0 %v1763
    %v1825 = vpop.f32.mrf.mxu0
    %v1826 = vadd.f32 0.0, %v1825
    %v1827 = vpop.f32.mrf.mxu0
    %v1828 = vpop.f32.mrf.mxu0
    %v1829 = vadd.f32 0.0, %v1828
    %v1830 = vpop.f32.mrf.mxu0
    %1831 = vmatprep.mubr.bf16.mxu0 0
    %1832 = vmatmul.mubr.bf16.gmra.mxu0 %v1766
    %v1833 = vpop.f32.mrf.mxu0
    %v1834 = vadd.f32 0.0, %v1833
    %v1835 = vpop.f32.mrf.mxu0
    %v1836 = vpop.f32.mrf.mxu0
    %v1837 = vadd.f32 0.0, %v1836
    %v1838 = vpop.f32.mrf.mxu0
    %1839 = vmatprep.mubr.bf16.mxu0 0
    %1840 = vmatmul.mubr.bf16.gmra.mxu0 %v1769
    %v1841 = vpop.f32.mrf.mxu0
    %v1842 = vadd.f32 0.0, %v1841
    %v1843 = vpop.f32.mrf.mxu0
    %v1844 = vpop.f32.mrf.mxu0
    %v1845 = vadd.f32 0.0, %v1844
    %v1846 = vpop.f32.mrf.mxu0
    %1847 = vmatprep.mubr.bf16.mxu0 0
    %1848 = vmatmul.mubr.bf16.gmra.mxu0 %v1772
    %v1849 = vpop.f32.mrf.mxu0
    %v1850 = vadd.f32 0.0, %v1849
    %v1851 = vpop.f32.mrf.mxu0
    %v1852 = vpop.f32.mrf.mxu0
    %v1853 = vadd.f32 0.0, %v1852
    %v1854 = vpop.f32.mrf.mxu0
    %1855 = vmatprep.mubr.bf16.mxu0 0
    %1856 = vmatmul.mubr.bf16.gmra.mxu0 %v1775
    %v1857 = vpop.f32.mrf.mxu0
    %v1858 = vadd.f32 0.0, %v1857
    %v1859 = vpop.f32.mrf.mxu0
    %v1860 = vpop.f32.mrf.mxu0
    %v1861 = vadd.f32 0.0, %v1860
    %v1862 = vpop.f32.mrf.mxu0
    %1863 = vmatprep.mubr.bf16.mxu0 0
    %1864 = vmatmul.mubr.bf16.gmra.mxu0 %v1778
    %v1865 = vpop.f32.mrf.mxu0
    %v1866 = vadd.f32 0.0, %v1865
    %v1867 = vpop.f32.mrf.mxu0
    %v1868 = vpop.f32.mrf.mxu0
    %v1869 = vadd.f32 0.0, %v1868
    %v1870 = vpop.f32.mrf.mxu0
    %1871 = vmatprep.mubr.bf16.mxu0 0
    %1872 = vmatmul.mubr.bf16.gmra.mxu0 %v1781
    %v1873 = vpop.f32.mrf.mxu0
    %v1874 = vadd.f32 0.0, %v1873
    %v1875 = vpop.f32.mrf.mxu0
    %v1876 = vpop.f32.mrf.mxu0
    %v1877 = vadd.f32 0.0, %v1876
    %v1878 = vpop.f32.mrf.mxu0
    %1879 = vdwg.mxu0
    %v1880 = vadd.f32 %v1564, %v1818
    %v1881 = vadd.f32 %v1565, %v1821
    %v1882 = vadd.f32 %v1566, %v1826
    %v1883 = vadd.f32 %v1567, %v1829
    %v1884 = vadd.f32 %v1568, %v1834
    %v1885 = vadd.f32 %v1569, %v1837
    %v1886 = vadd.f32 %v1570, %v1842
    %v1887 = vadd.f32 %v1571, %v1845
    %v1888 = vadd.f32 %v1572, %v1850
    %v1889 = vadd.f32 %v1573, %v1853
    %v1890 = vadd.f32 %v1574, %v1858
    %v1891 = vadd.f32 %v1575, %v1861
    %v1892 = vadd.f32 %v1576, %v1866
    %v1893 = vadd.f32 %v1577, %v1869
    %v1894 = vadd.f32 %v1578, %v1874
    %v1895 = vadd.f32 %v1579, %v1877
    %s1896 = scalar_lea.vmem [#allocation2], 320
    %v1897 = vld [vmem:[%s1896] sm:$0xf]
    %v1898 = vld [vmem:[%s1896 + $0x4] sm:$0xf]
    %v1899 = vld [vmem:[%s1896 + $0x8] sm:$0xf]
    %v1900 = vld [vmem:[%s1896 + $0xc] sm:$0xf]
    %v1901 = vld [vmem:[%s1896 + $0x10] sm:$0xf]
    %v1902 = vld [vmem:[%s1896 + $0x14] sm:$0xf]
    %v1903 = vld [vmem:[%s1896 + $0x18] sm:$0xf]
    %v1904 = vld [vmem:[%s1896 + $0x1c] sm:$0xf]
    %v1905 = vld [vmem:[%s1896 + $0x20] sm:$0xf]
    %v1906 = vld [vmem:[%s1896 + $0x24] sm:$0xf]
    %v1907 = vld [vmem:[%s1896 + $0x28] sm:$0xf]
    %v1908 = vld [vmem:[%s1896 + $0x2c] sm:$0xf]
    %v1909 = vld [vmem:[%s1896 + $0x30] sm:$0xf]
    %v1910 = vld [vmem:[%s1896 + $0x34] sm:$0xf]
    %v1911 = vld [vmem:[%s1896 + $0x38] sm:$0xf]
    %v1912 = vld [vmem:[%s1896 + $0x3c] sm:$0xf]
    %v1929 = vunpack.c.l.b16 %v1897
    %v1930 = vunpack.c.l.b16 %v1898
    %v1931 = vunpack.c.l.b16 %v1899
    %v1932 = vunpack.c.l.b16 %v1900
    %v1933 = vunpack.c.l.b16 %v1901
    %v1934 = vunpack.c.l.b16 %v1902
    %v1935 = vunpack.c.l.b16 %v1903
    %v1936 = vunpack.c.l.b16 %v1904
    %v1937 = vunpack.c.l.b16 %v1905
    %v1938 = vunpack.c.l.b16 %v1906
    %v1939 = vunpack.c.l.b16 %v1907
    %v1940 = vunpack.c.l.b16 %v1908
    %v1941 = vunpack.c.l.b16 %v1909
    %v1942 = vunpack.c.l.b16 %v1910
    %v1943 = vunpack.c.l.b16 %v1911
    %v1944 = vunpack.c.l.b16 %v1912
    %v1945 = vpack.c.b16 %v1930, %v1929
    %v1946 = vpack.c.b16 %v1932, %v1931
    %v1947 = vpack.c.b16 %v1934, %v1933
    %v1948 = vpack.c.b16 %v1936, %v1935
    %v1949 = vpack.c.b16 %v1938, %v1937
    %v1950 = vpack.c.b16 %v1940, %v1939
    %v1951 = vpack.c.b16 %v1942, %v1941
    %v1952 = vpack.c.b16 %v1944, %v1943
    %1961 = vmatprep.subr.bf16.mxu0 0
    %1962 = vmatpush1.bf16.msra.mxu0 %v348
    %1963 = vmatprep.subr.bf16.mxu0 0
    %1964 = vmatpush1.bf16.msra.mxu0 %v347
    %1965 = vmatprep.subr.bf16.mxu0 0
    %1966 = vmatpush1.bf16.msra.mxu0 %v346
    %1967 = vmatprep.subr.bf16.mxu0 0
    %1968 = vmatpush1.bf16.msra.mxu0 %v345
    %1969 = vmatprep.subr.bf16.mxu0 0
    %1970 = vmatpush1.bf16.msra.mxu0 %v344
    %1971 = vmatprep.subr.bf16.mxu0 0
    %1972 = vmatpush1.bf16.msra.mxu0 %v343
    %1973 = vmatprep.subr.bf16.mxu0 0
    %1974 = vmatpush1.bf16.msra.mxu0 %v342
    %1975 = vmatprep.subr.bf16.mxu0 0
    %1976 = vmatpush1.bf16.msra.mxu0 %v341
    %1977 = vmatprep.subr.bf16.mxu0 0
    %1978 = vmatpush2.bf16.msra.mxu0 0
    %1979 = vmatprep.subr.bf16.mxu0 0
    %1980 = vmatpush2.bf16.msra.mxu0 0
    %1981 = vmatprep.subr.bf16.mxu0 0
    %1982 = vmatpush2.bf16.msra.mxu0 0
    %1983 = vmatprep.subr.bf16.mxu0 0
    %1984 = vmatpush2.bf16.msra.mxu0 0
    %1985 = vmatprep.subr.bf16.mxu0 0
    %1986 = vmatpush2.bf16.msra.mxu0 0
    %1987 = vmatprep.subr.bf16.mxu0 0
    %1988 = vmatpush2.bf16.msra.mxu0 0
    %1989 = vmatprep.subr.bf16.mxu0 0
    %1990 = vmatpush2.bf16.msra.mxu0 0
    %1991 = vmatprep.subr.bf16.mxu0 0
    %1992 = vmatpush2.bf16.msra.mxu0 0
    %1993 = vmatprep.mubr.bf16.mxu0 0
    %1994 = vmatmul.mubr.bf16.gmra.mxu0 %v1945
    %v1995 = vpop.f32.mrf.mxu0
    %v1996 = vadd.f32 0.0, %v1995
    %v1997 = vpop.f32.mrf.mxu0
    %v1998 = vpop.f32.mrf.mxu0
    %v1999 = vadd.f32 0.0, %v1998
    %v2000 = vpop.f32.mrf.mxu0
    %2001 = vmatprep.mubr.bf16.mxu0 0
    %2002 = vmatmul.mubr.bf16.gmra.mxu0 %v1946
    %v2003 = vpop.f32.mrf.mxu0
    %v2004 = vadd.f32 0.0, %v2003
    %v2005 = vpop.f32.mrf.mxu0
    %v2006 = vpop.f32.mrf.mxu0
    %v2007 = vadd.f32 0.0, %v2006
    %v2008 = vpop.f32.mrf.mxu0
    %2009 = vmatprep.mubr.bf16.mxu0 0
    %2010 = vmatmul.mubr.bf16.gmra.mxu0 %v1947
    %v2011 = vpop.f32.mrf.mxu0
    %v2012 = vadd.f32 0.0, %v2011
    %v2013 = vpop.f32.mrf.mxu0
    %v2014 = vpop.f32.mrf.mxu0
    %v2015 = vadd.f32 0.0, %v2014
    %v2016 = vpop.f32.mrf.mxu0
    %2017 = vmatprep.mubr.bf16.mxu0 0
    %2018 = vmatmul.mubr.bf16.gmra.mxu0 %v1948
    %v2019 = vpop.f32.mrf.mxu0
    %v2020 = vadd.f32 0.0, %v2019
    %v2021 = vpop.f32.mrf.mxu0
    %v2022 = vpop.f32.mrf.mxu0
    %v2023 = vadd.f32 0.0, %v2022
    %v2024 = vpop.f32.mrf.mxu0
    %2025 = vmatprep.mubr.bf16.mxu0 0
    %2026 = vmatmul.mubr.bf16.gmra.mxu0 %v1949
    %v2027 = vpop.f32.mrf.mxu0
    %v2028 = vadd.f32 0.0, %v2027
    %v2029 = vpop.f32.mrf.mxu0
    %v2030 = vpop.f32.mrf.mxu0
    %v2031 = vadd.f32 0.0, %v2030
    %v2032 = vpop.f32.mrf.mxu0
    %2033 = vmatprep.mubr.bf16.mxu0 0
    %2034 = vmatmul.mubr.bf16.gmra.mxu0 %v1950
    %v2035 = vpop.f32.mrf.mxu0
    %v2036 = vadd.f32 0.0, %v2035
    %v2037 = vpop.f32.mrf.mxu0
    %v2038 = vpop.f32.mrf.mxu0
    %v2039 = vadd.f32 0.0, %v2038
    %v2040 = vpop.f32.mrf.mxu0
    %2041 = vmatprep.mubr.bf16.mxu0 0
    %2042 = vmatmul.mubr.bf16.gmra.mxu0 %v1951
    %v2043 = vpop.f32.mrf.mxu0
    %v2044 = vadd.f32 0.0, %v2043
    %v2045 = vpop.f32.mrf.mxu0
    %v2046 = vpop.f32.mrf.mxu0
    %v2047 = vadd.f32 0.0, %v2046
    %v2048 = vpop.f32.mrf.mxu0
    %2049 = vmatprep.mubr.bf16.mxu0 0
    %2050 = vmatmul.mubr.bf16.gmra.mxu0 %v1952
    %v2051 = vpop.f32.mrf.mxu0
    %v2052 = vadd.f32 0.0, %v2051
    %v2053 = vpop.f32.mrf.mxu0
    %v2054 = vpop.f32.mrf.mxu0
    %v2055 = vadd.f32 0.0, %v2054
    %v2056 = vpop.f32.mrf.mxu0
    %2057 = vdwg.mxu0
    %v2058 = vpack.c.bf16 %v1999, %v1996
    %v2059 = vpack.c.bf16 %v2007, %v2004
    %v2060 = vpack.c.bf16 %v2015, %v2012
    %v2061 = vpack.c.bf16 %v2023, %v2020
    %v2062 = vpack.c.bf16 %v2031, %v2028
    %v2063 = vpack.c.bf16 %v2039, %v2036
    %v2064 = vpack.c.bf16 %v2047, %v2044
    %v2065 = vpack.c.bf16 %v2055, %v2052
    %s2066 = scalar_lea.vmem %s3, 40
    %v2067 = vld [vmem:[%s2066] sm:$0xf]
    %v2068 = vld [vmem:[%s2066 + $0x4] sm:$0xf]
    %v2071 = vunpack.c.l.b16 %v2067
    %v2072 = vunpack.c.l.b16 %v2068
    %v2073 = vpack.c.b16 %v2072, %v2071
    %v2076 = vsel %vm699, %v2058, 0
    %v2079 = vsel %vm699, %v2059, 0
    %v2082 = vsel %vm699, %v2060, 0
    %v2085 = vsel %vm699, %v2061, 0
    %v2088 = vsel %vm699, %v2062, 0
    %v2091 = vsel %vm699, %v2063, 0
    %v2094 = vsel %vm699, %v2064, 0
    %v2097 = vsel %vm699, %v2065, 0
    %2099 = vmatprep.subr.bf16.mxu0 0
    %2100 = vmatpush1.bf16.msra.mxu0 0
    %2101 = vmatprep.subr.bf16.mxu0 0
    %2102 = vmatpush1.bf16.msra.mxu0 0
    %2103 = vmatprep.subr.bf16.mxu0 0
    %2104 = vmatpush1.bf16.msra.mxu0 0
    %2105 = vmatprep.subr.bf16.mxu0 0
    %2106 = vmatpush1.bf16.msra.mxu0 0
    %2107 = vmatprep.subr.bf16.mxu0 0
    %2108 = vmatpush1.bf16.msra.mxu0 0
    %2109 = vmatprep.subr.bf16.mxu0 0
    %2110 = vmatpush1.bf16.msra.mxu0 0
    %2111 = vmatprep.subr.bf16.mxu0 0
    %2112 = vmatpush1.bf16.msra.mxu0 0
    %2113 = vmatprep.subr.bf16.mxu0 0
    %2114 = vmatpush1.bf16.msra.mxu0 %v2073
    %2115 = vmatprep.subr.bf16.mxu0 0
    %2116 = vmatpush2.bf16.msra.mxu0 0
    %2117 = vmatprep.subr.bf16.mxu0 0
    %2118 = vmatpush2.bf16.msra.mxu0 0
    %2119 = vmatprep.subr.bf16.mxu0 0
    %2120 = vmatpush2.bf16.msra.mxu0 0
    %2121 = vmatprep.subr.bf16.mxu0 0
    %2122 = vmatpush2.bf16.msra.mxu0 0
    %2123 = vmatprep.subr.bf16.mxu0 0
    %2124 = vmatpush2.bf16.msra.mxu0 0
    %2125 = vmatprep.subr.bf16.mxu0 0
    %2126 = vmatpush2.bf16.msra.mxu0 0
    %2127 = vmatprep.subr.bf16.mxu0 0
    %2128 = vmatpush2.bf16.msra.mxu0 0
    %2129 = vmatprep.subr.bf16.mxu0 0
    %2130 = vmatpush2.bf16.msra.mxu0 0
    %2131 = vmatprep.mubr.bf16.mxu0 0
    %2132 = vmatmul.mubr.bf16.gmra.mxu0 %v2076
    %v2133 = vpop.f32.mrf.mxu0
    %v2134 = vadd.f32 0.0, %v2133
    %v2135 = vpop.f32.mrf.mxu0
    %v2136 = vpop.f32.mrf.mxu0
    %v2137 = vadd.f32 0.0, %v2136
    %v2138 = vpop.f32.mrf.mxu0
    %2139 = vmatprep.mubr.bf16.mxu0 0
    %2140 = vmatmul.mubr.bf16.gmra.mxu0 %v2079
    %v2141 = vpop.f32.mrf.mxu0
    %v2142 = vadd.f32 0.0, %v2141
    %v2143 = vpop.f32.mrf.mxu0
    %v2144 = vpop.f32.mrf.mxu0
    %v2145 = vadd.f32 0.0, %v2144
    %v2146 = vpop.f32.mrf.mxu0
    %2147 = vmatprep.mubr.bf16.mxu0 0
    %2148 = vmatmul.mubr.bf16.gmra.mxu0 %v2082
    %v2149 = vpop.f32.mrf.mxu0
    %v2150 = vadd.f32 0.0, %v2149
    %v2151 = vpop.f32.mrf.mxu0
    %v2152 = vpop.f32.mrf.mxu0
    %v2153 = vadd.f32 0.0, %v2152
    %v2154 = vpop.f32.mrf.mxu0
    %2155 = vmatprep.mubr.bf16.mxu0 0
    %2156 = vmatmul.mubr.bf16.gmra.mxu0 %v2085
    %v2157 = vpop.f32.mrf.mxu0
    %v2158 = vadd.f32 0.0, %v2157
    %v2159 = vpop.f32.mrf.mxu0
    %v2160 = vpop.f32.mrf.mxu0
    %v2161 = vadd.f32 0.0, %v2160
    %v2162 = vpop.f32.mrf.mxu0
    %2163 = vmatprep.mubr.bf16.mxu0 0
    %2164 = vmatmul.mubr.bf16.gmra.mxu0 %v2088
    %v2165 = vpop.f32.mrf.mxu0
    %v2166 = vadd.f32 0.0, %v2165
    %v2167 = vpop.f32.mrf.mxu0
    %v2168 = vpop.f32.mrf.mxu0
    %v2169 = vadd.f32 0.0, %v2168
    %v2170 = vpop.f32.mrf.mxu0
    %2171 = vmatprep.mubr.bf16.mxu0 0
    %2172 = vmatmul.mubr.bf16.gmra.mxu0 %v2091
    %v2173 = vpop.f32.mrf.mxu0
    %v2174 = vadd.f32 0.0, %v2173
    %v2175 = vpop.f32.mrf.mxu0
    %v2176 = vpop.f32.mrf.mxu0
    %v2177 = vadd.f32 0.0, %v2176
    %v2178 = vpop.f32.mrf.mxu0
    %2179 = vmatprep.mubr.bf16.mxu0 0
    %2180 = vmatmul.mubr.bf16.gmra.mxu0 %v2094
    %v2181 = vpop.f32.mrf.mxu0
    %v2182 = vadd.f32 0.0, %v2181
    %v2183 = vpop.f32.mrf.mxu0
    %v2184 = vpop.f32.mrf.mxu0
    %v2185 = vadd.f32 0.0, %v2184
    %v2186 = vpop.f32.mrf.mxu0
    %2187 = vmatprep.mubr.bf16.mxu0 0
    %2188 = vmatmul.mubr.bf16.gmra.mxu0 %v2097
    %v2189 = vpop.f32.mrf.mxu0
    %v2190 = vadd.f32 0.0, %v2189
    %v2191 = vpop.f32.mrf.mxu0
    %v2192 = vpop.f32.mrf.mxu0
    %v2193 = vadd.f32 0.0, %v2192
    %v2194 = vpop.f32.mrf.mxu0
    %2195 = vdwg.mxu0
    %v2196 = vadd.f32 %v1880, %v2134
    %v2197 = vadd.f32 %v1881, %v2137
    %v2198 = vadd.f32 %v1882, %v2142
    %v2199 = vadd.f32 %v1883, %v2145
    %v2200 = vadd.f32 %v1884, %v2150
    %v2201 = vadd.f32 %v1885, %v2153
    %v2202 = vadd.f32 %v1886, %v2158
    %v2203 = vadd.f32 %v1887, %v2161
    %v2204 = vadd.f32 %v1888, %v2166
    %v2205 = vadd.f32 %v1889, %v2169
    %v2206 = vadd.f32 %v1890, %v2174
    %v2207 = vadd.f32 %v1891, %v2177
    %v2208 = vadd.f32 %v1892, %v2182
    %v2209 = vadd.f32 %v1893, %v2185
    %v2210 = vadd.f32 %v1894, %v2190
    %v2211 = vadd.f32 %v1895, %v2193
    %s2212 = scalar_lea.vmem [#allocation2], 384
    %v2213 = vld [vmem:[%s2212] sm:$0xf]
    %v2214 = vld [vmem:[%s2212 + $0x4] sm:$0xf]
    %v2215 = vld [vmem:[%s2212 + $0x8] sm:$0xf]
    %v2216 = vld [vmem:[%s2212 + $0xc] sm:$0xf]
    %v2217 = vld [vmem:[%s2212 + $0x10] sm:$0xf]
    %v2218 = vld [vmem:[%s2212 + $0x14] sm:$0xf]
    %v2219 = vld [vmem:[%s2212 + $0x18] sm:$0xf]
    %v2220 = vld [vmem:[%s2212 + $0x1c] sm:$0xf]
    %v2221 = vld [vmem:[%s2212 + $0x20] sm:$0xf]
    %v2222 = vld [vmem:[%s2212 + $0x24] sm:$0xf]
    %v2223 = vld [vmem:[%s2212 + $0x28] sm:$0xf]
    %v2224 = vld [vmem:[%s2212 + $0x2c] sm:$0xf]
    %v2225 = vld [vmem:[%s2212 + $0x30] sm:$0xf]
    %v2226 = vld [vmem:[%s2212 + $0x34] sm:$0xf]
    %v2227 = vld [vmem:[%s2212 + $0x38] sm:$0xf]
    %v2228 = vld [vmem:[%s2212 + $0x3c] sm:$0xf]
    %v2245 = vunpack.c.l.b16 %v2213
    %v2246 = vunpack.c.l.b16 %v2214
    %v2247 = vunpack.c.l.b16 %v2215
    %v2248 = vunpack.c.l.b16 %v2216
    %v2249 = vunpack.c.l.b16 %v2217
    %v2250 = vunpack.c.l.b16 %v2218
    %v2251 = vunpack.c.l.b16 %v2219
    %v2252 = vunpack.c.l.b16 %v2220
    %v2253 = vunpack.c.l.b16 %v2221
    %v2254 = vunpack.c.l.b16 %v2222
    %v2255 = vunpack.c.l.b16 %v2223
    %v2256 = vunpack.c.l.b16 %v2224
    %v2257 = vunpack.c.l.b16 %v2225
    %v2258 = vunpack.c.l.b16 %v2226
    %v2259 = vunpack.c.l.b16 %v2227
    %v2260 = vunpack.c.l.b16 %v2228
    %v2261 = vpack.c.b16 %v2246, %v2245
    %v2262 = vpack.c.b16 %v2248, %v2247
    %v2263 = vpack.c.b16 %v2250, %v2249
    %v2264 = vpack.c.b16 %v2252, %v2251
    %v2265 = vpack.c.b16 %v2254, %v2253
    %v2266 = vpack.c.b16 %v2256, %v2255
    %v2267 = vpack.c.b16 %v2258, %v2257
    %v2268 = vpack.c.b16 %v2260, %v2259
    %2277 = vmatprep.subr.bf16.mxu0 0
    %2278 = vmatpush1.bf16.msra.mxu0 %v348
    %2279 = vmatprep.subr.bf16.mxu0 0
    %2280 = vmatpush1.bf16.msra.mxu0 %v347
    %2281 = vmatprep.subr.bf16.mxu0 0
    %2282 = vmatpush1.bf16.msra.mxu0 %v346
    %2283 = vmatprep.subr.bf16.mxu0 0
    %2284 = vmatpush1.bf16.msra.mxu0 %v345
    %2285 = vmatprep.subr.bf16.mxu0 0
    %2286 = vmatpush1.bf16.msra.mxu0 %v344
    %2287 = vmatprep.subr.bf16.mxu0 0
    %2288 = vmatpush1.bf16.msra.mxu0 %v343
    %2289 = vmatprep.subr.bf16.mxu0 0
    %2290 = vmatpush1.bf16.msra.mxu0 %v342
    %2291 = vmatprep.subr.bf16.mxu0 0
    %2292 = vmatpush1.bf16.msra.mxu0 %v341
    %2293 = vmatprep.subr.bf16.mxu0 0
    %2294 = vmatpush2.bf16.msra.mxu0 0
    %2295 = vmatprep.subr.bf16.mxu0 0
    %2296 = vmatpush2.bf16.msra.mxu0 0
    %2297 = vmatprep.subr.bf16.mxu0 0
    %2298 = vmatpush2.bf16.msra.mxu0 0
    %2299 = vmatprep.subr.bf16.mxu0 0
    %2300 = vmatpush2.bf16.msra.mxu0 0
    %2301 = vmatprep.subr.bf16.mxu0 0
    %2302 = vmatpush2.bf16.msra.mxu0 0
    %2303 = vmatprep.subr.bf16.mxu0 0
    %2304 = vmatpush2.bf16.msra.mxu0 0
    %2305 = vmatprep.subr.bf16.mxu0 0
    %2306 = vmatpush2.bf16.msra.mxu0 0
    %2307 = vmatprep.subr.bf16.mxu0 0
    %2308 = vmatpush2.bf16.msra.mxu0 0
    %2309 = vmatprep.mubr.bf16.mxu0 0
    %2310 = vmatmul.mubr.bf16.gmra.mxu0 %v2261
    %v2311 = vpop.f32.mrf.mxu0
    %v2312 = vadd.f32 0.0, %v2311
    %v2313 = vpop.f32.mrf.mxu0
    %v2314 = vpop.f32.mrf.mxu0
    %v2315 = vadd.f32 0.0, %v2314
    %v2316 = vpop.f32.mrf.mxu0
    %2317 = vmatprep.mubr.bf16.mxu0 0
    %2318 = vmatmul.mubr.bf16.gmra.mxu0 %v2262
    %v2319 = vpop.f32.mrf.mxu0
    %v2320 = vadd.f32 0.0, %v2319
    %v2321 = vpop.f32.mrf.mxu0
    %v2322 = vpop.f32.mrf.mxu0
    %v2323 = vadd.f32 0.0, %v2322
    %v2324 = vpop.f32.mrf.mxu0
    %2325 = vmatprep.mubr.bf16.mxu0 0
    %2326 = vmatmul.mubr.bf16.gmra.mxu0 %v2263
    %v2327 = vpop.f32.mrf.mxu0
    %v2328 = vadd.f32 0.0, %v2327
    %v2329 = vpop.f32.mrf.mxu0
    %v2330 = vpop.f32.mrf.mxu0
    %v2331 = vadd.f32 0.0, %v2330
    %v2332 = vpop.f32.mrf.mxu0
    %2333 = vmatprep.mubr.bf16.mxu0 0
    %2334 = vmatmul.mubr.bf16.gmra.mxu0 %v2264
    %v2335 = vpop.f32.mrf.mxu0
    %v2336 = vadd.f32 0.0, %v2335
    %v2337 = vpop.f32.mrf.mxu0
    %v2338 = vpop.f32.mrf.mxu0
    %v2339 = vadd.f32 0.0, %v2338
    %v2340 = vpop.f32.mrf.mxu0
    %2341 = vmatprep.mubr.bf16.mxu0 0
    %2342 = vmatmul.mubr.bf16.gmra.mxu0 %v2265
    %v2343 = vpop.f32.mrf.mxu0
    %v2344 = vadd.f32 0.0, %v2343
    %v2345 = vpop.f32.mrf.mxu0
    %v2346 = vpop.f32.mrf.mxu0
    %v2347 = vadd.f32 0.0, %v2346
    %v2348 = vpop.f32.mrf.mxu0
    %2349 = vmatprep.mubr.bf16.mxu0 0
    %2350 = vmatmul.mubr.bf16.gmra.mxu0 %v2266
    %v2351 = vpop.f32.mrf.mxu0
    %v2352 = vadd.f32 0.0, %v2351
    %v2353 = vpop.f32.mrf.mxu0
    %v2354 = vpop.f32.mrf.mxu0
    %v2355 = vadd.f32 0.0, %v2354
    %v2356 = vpop.f32.mrf.mxu0
    %2357 = vmatprep.mubr.bf16.mxu0 0
    %2358 = vmatmul.mubr.bf16.gmra.mxu0 %v2267
    %v2359 = vpop.f32.mrf.mxu0
    %v2360 = vadd.f32 0.0, %v2359
    %v2361 = vpop.f32.mrf.mxu0
    %v2362 = vpop.f32.mrf.mxu0
    %v2363 = vadd.f32 0.0, %v2362
    %v2364 = vpop.f32.mrf.mxu0
    %2365 = vmatprep.mubr.bf16.mxu0 0
    %2366 = vmatmul.mubr.bf16.gmra.mxu0 %v2268
    %v2367 = vpop.f32.mrf.mxu0
    %v2368 = vadd.f32 0.0, %v2367
    %v2369 = vpop.f32.mrf.mxu0
    %v2370 = vpop.f32.mrf.mxu0
    %v2371 = vadd.f32 0.0, %v2370
    %v2372 = vpop.f32.mrf.mxu0
    %2373 = vdwg.mxu0
    %v2374 = vpack.c.bf16 %v2315, %v2312
    %v2375 = vpack.c.bf16 %v2323, %v2320
    %v2376 = vpack.c.bf16 %v2331, %v2328
    %v2377 = vpack.c.bf16 %v2339, %v2336
    %v2378 = vpack.c.bf16 %v2347, %v2344
    %v2379 = vpack.c.bf16 %v2355, %v2352
    %v2380 = vpack.c.bf16 %v2363, %v2360
    %v2381 = vpack.c.bf16 %v2371, %v2368
    %s2382 = scalar_lea.vmem %s3, 48
    %v2383 = vld [vmem:[%s2382] sm:$0xf]
    %v2384 = vld [vmem:[%s2382 + $0x4] sm:$0xf]
    %v2387 = vunpack.c.l.b16 %v2383
    %v2388 = vunpack.c.l.b16 %v2384
    %v2389 = vpack.c.b16 %v2388, %v2387
    %v2392 = vsel %vm699, %v2374, 0
    %v2395 = vsel %vm699, %v2375, 0
    %v2398 = vsel %vm699, %v2376, 0
    %v2401 = vsel %vm699, %v2377, 0
    %v2404 = vsel %vm699, %v2378, 0
    %v2407 = vsel %vm699, %v2379, 0
    %v2410 = vsel %vm699, %v2380, 0
    %v2413 = vsel %vm699, %v2381, 0
    %2415 = vmatprep.subr.bf16.mxu0 0
    %2416 = vmatpush1.bf16.msra.mxu0 0
    %2417 = vmatprep.subr.bf16.mxu0 0
    %2418 = vmatpush1.bf16.msra.mxu0 0
    %2419 = vmatprep.subr.bf16.mxu0 0
    %2420 = vmatpush1.bf16.msra.mxu0 0
    %2421 = vmatprep.subr.bf16.mxu0 0
    %2422 = vmatpush1.bf16.msra.mxu0 0
    %2423 = vmatprep.subr.bf16.mxu0 0
    %2424 = vmatpush1.bf16.msra.mxu0 0
    %2425 = vmatprep.subr.bf16.mxu0 0
    %2426 = vmatpush1.bf16.msra.mxu0 0
    %2427 = vmatprep.subr.bf16.mxu0 0
    %2428 = vmatpush1.bf16.msra.mxu0 0
    %2429 = vmatprep.subr.bf16.mxu0 0
    %2430 = vmatpush1.bf16.msra.mxu0 %v2389
    %2431 = vmatprep.subr.bf16.mxu0 0
    %2432 = vmatpush2.bf16.msra.mxu0 0
    %2433 = vmatprep.subr.bf16.mxu0 0
    %2434 = vmatpush2.bf16.msra.mxu0 0
    %2435 = vmatprep.subr.bf16.mxu0 0
    %2436 = vmatpush2.bf16.msra.mxu0 0
    %2437 = vmatprep.subr.bf16.mxu0 0
    %2438 = vmatpush2.bf16.msra.mxu0 0
    %2439 = vmatprep.subr.bf16.mxu0 0
    %2440 = vmatpush2.bf16.msra.mxu0 0
    %2441 = vmatprep.subr.bf16.mxu0 0
    %2442 = vmatpush2.bf16.msra.mxu0 0
    %2443 = vmatprep.subr.bf16.mxu0 0
    %2444 = vmatpush2.bf16.msra.mxu0 0
    %2445 = vmatprep.subr.bf16.mxu0 0
    %2446 = vmatpush2.bf16.msra.mxu0 0
    %2447 = vmatprep.mubr.bf16.mxu0 0
    %2448 = vmatmul.mubr.bf16.gmra.mxu0 %v2392
    %v2449 = vpop.f32.mrf.mxu0
    %v2450 = vadd.f32 0.0, %v2449
    %v2451 = vpop.f32.mrf.mxu0
    %v2452 = vpop.f32.mrf.mxu0
    %v2453 = vadd.f32 0.0, %v2452
    %v2454 = vpop.f32.mrf.mxu0
    %2455 = vmatprep.mubr.bf16.mxu0 0
    %2456 = vmatmul.mubr.bf16.gmra.mxu0 %v2395
    %v2457 = vpop.f32.mrf.mxu0
    %v2458 = vadd.f32 0.0, %v2457
    %v2459 = vpop.f32.mrf.mxu0
    %v2460 = vpop.f32.mrf.mxu0
    %v2461 = vadd.f32 0.0, %v2460
    %v2462 = vpop.f32.mrf.mxu0
    %2463 = vmatprep.mubr.bf16.mxu0 0
    %2464 = vmatmul.mubr.bf16.gmra.mxu0 %v2398
    %v2465 = vpop.f32.mrf.mxu0
    %v2466 = vadd.f32 0.0, %v2465
    %v2467 = vpop.f32.mrf.mxu0
    %v2468 = vpop.f32.mrf.mxu0
    %v2469 = vadd.f32 0.0, %v2468
    %v2470 = vpop.f32.mrf.mxu0
    %2471 = vmatprep.mubr.bf16.mxu0 0
    %2472 = vmatmul.mubr.bf16.gmra.mxu0 %v2401
    %v2473 = vpop.f32.mrf.mxu0
    %v2474 = vadd.f32 0.0, %v2473
    %v2475 = vpop.f32.mrf.mxu0
    %v2476 = vpop.f32.mrf.mxu0
    %v2477 = vadd.f32 0.0, %v2476
    %v2478 = vpop.f32.mrf.mxu0
    %2479 = vmatprep.mubr.bf16.mxu0 0
    %2480 = vmatmul.mubr.bf16.gmra.mxu0 %v2404
    %v2481 = vpop.f32.mrf.mxu0
    %v2482 = vadd.f32 0.0, %v2481
    %v2483 = vpop.f32.mrf.mxu0
    %v2484 = vpop.f32.mrf.mxu0
    %v2485 = vadd.f32 0.0, %v2484
    %v2486 = vpop.f32.mrf.mxu0
    %2487 = vmatprep.mubr.bf16.mxu0 0
    %2488 = vmatmul.mubr.bf16.gmra.mxu0 %v2407
    %v2489 = vpop.f32.mrf.mxu0
    %v2490 = vadd.f32 0.0, %v2489
    %v2491 = vpop.f32.mrf.mxu0
    %v2492 = vpop.f32.mrf.mxu0
    %v2493 = vadd.f32 0.0, %v2492
    %v2494 = vpop.f32.mrf.mxu0
    %2495 = vmatprep.mubr.bf16.mxu0 0
    %2496 = vmatmul.mubr.bf16.gmra.mxu0 %v2410
    %v2497 = vpop.f32.mrf.mxu0
    %v2498 = vadd.f32 0.0, %v2497
    %v2499 = vpop.f32.mrf.mxu0
    %v2500 = vpop.f32.mrf.mxu0
    %v2501 = vadd.f32 0.0, %v2500
    %v2502 = vpop.f32.mrf.mxu0
    %2503 = vmatprep.mubr.bf16.mxu0 0
    %2504 = vmatmul.mubr.bf16.gmra.mxu0 %v2413
    %v2505 = vpop.f32.mrf.mxu0
    %v2506 = vadd.f32 0.0, %v2505
    %v2507 = vpop.f32.mrf.mxu0
    %v2508 = vpop.f32.mrf.mxu0
    %v2509 = vadd.f32 0.0, %v2508
    %v2510 = vpop.f32.mrf.mxu0
    %2511 = vdwg.mxu0
    %v2512 = vadd.f32 %v2196, %v2450
    %v2513 = vadd.f32 %v2197, %v2453
    %v2514 = vadd.f32 %v2198, %v2458
    %v2515 = vadd.f32 %v2199, %v2461
    %v2516 = vadd.f32 %v2200, %v2466
    %v2517 = vadd.f32 %v2201, %v2469
    %v2518 = vadd.f32 %v2202, %v2474
    %v2519 = vadd.f32 %v2203, %v2477
    %v2520 = vadd.f32 %v2204, %v2482
    %v2521 = vadd.f32 %v2205, %v2485
    %v2522 = vadd.f32 %v2206, %v2490
    %v2523 = vadd.f32 %v2207, %v2493
    %v2524 = vadd.f32 %v2208, %v2498
    %v2525 = vadd.f32 %v2209, %v2501
    %v2526 = vadd.f32 %v2210, %v2506
    %v2527 = vadd.f32 %v2211, %v2509
    %s2528 = scalar_lea.vmem [#allocation2], 448
    %v2529 = vld [vmem:[%s2528] sm:$0xf]
    %v2530 = vld [vmem:[%s2528 + $0x4] sm:$0xf]
    %v2531 = vld [vmem:[%s2528 + $0x8] sm:$0xf]
    %v2532 = vld [vmem:[%s2528 + $0xc] sm:$0xf]
    %v2533 = vld [vmem:[%s2528 + $0x10] sm:$0xf]
    %v2534 = vld [vmem:[%s2528 + $0x14] sm:$0xf]
    %v2535 = vld [vmem:[%s2528 + $0x18] sm:$0xf]
    %v2536 = vld [vmem:[%s2528 + $0x1c] sm:$0xf]
    %v2537 = vld [vmem:[%s2528 + $0x20] sm:$0xf]
    %v2538 = vld [vmem:[%s2528 + $0x24] sm:$0xf]
    %v2539 = vld [vmem:[%s2528 + $0x28] sm:$0xf]
    %v2540 = vld [vmem:[%s2528 + $0x2c] sm:$0xf]
    %v2541 = vld [vmem:[%s2528 + $0x30] sm:$0xf]
    %v2542 = vld [vmem:[%s2528 + $0x34] sm:$0xf]
    %v2543 = vld [vmem:[%s2528 + $0x38] sm:$0xf]
    %v2544 = vld [vmem:[%s2528 + $0x3c] sm:$0xf]
    %v2561 = vunpack.c.l.b16 %v2529
    %v2562 = vunpack.c.l.b16 %v2530
    %v2563 = vunpack.c.l.b16 %v2531
    %v2564 = vunpack.c.l.b16 %v2532
    %v2565 = vunpack.c.l.b16 %v2533
    %v2566 = vunpack.c.l.b16 %v2534
    %v2567 = vunpack.c.l.b16 %v2535
    %v2568 = vunpack.c.l.b16 %v2536
    %v2569 = vunpack.c.l.b16 %v2537
    %v2570 = vunpack.c.l.b16 %v2538
    %v2571 = vunpack.c.l.b16 %v2539
    %v2572 = vunpack.c.l.b16 %v2540
    %v2573 = vunpack.c.l.b16 %v2541
    %v2574 = vunpack.c.l.b16 %v2542
    %v2575 = vunpack.c.l.b16 %v2543
    %v2576 = vunpack.c.l.b16 %v2544
    %v2577 = vpack.c.b16 %v2562, %v2561
    %v2578 = vpack.c.b16 %v2564, %v2563
    %v2579 = vpack.c.b16 %v2566, %v2565
    %v2580 = vpack.c.b16 %v2568, %v2567
    %v2581 = vpack.c.b16 %v2570, %v2569
    %v2582 = vpack.c.b16 %v2572, %v2571
    %v2583 = vpack.c.b16 %v2574, %v2573
    %v2584 = vpack.c.b16 %v2576, %v2575
    %2593 = vmatprep.subr.bf16.mxu0 0
    %2594 = vmatpush1.bf16.msra.mxu0 %v348
    %2595 = vmatprep.subr.bf16.mxu0 0
    %2596 = vmatpush1.bf16.msra.mxu0 %v347
    %2597 = vmatprep.subr.bf16.mxu0 0
    %2598 = vmatpush1.bf16.msra.mxu0 %v346
    %2599 = vmatprep.subr.bf16.mxu0 0
    %2600 = vmatpush1.bf16.msra.mxu0 %v345
    %2601 = vmatprep.subr.bf16.mxu0 0
    %2602 = vmatpush1.bf16.msra.mxu0 %v344
    %2603 = vmatprep.subr.bf16.mxu0 0
    %2604 = vmatpush1.bf16.msra.mxu0 %v343
    %2605 = vmatprep.subr.bf16.mxu0 0
    %2606 = vmatpush1.bf16.msra.mxu0 %v342
    %2607 = vmatprep.subr.bf16.mxu0 0
    %2608 = vmatpush1.bf16.msra.mxu0 %v341
    %2609 = vmatprep.subr.bf16.mxu0 0
    %2610 = vmatpush2.bf16.msra.mxu0 0
    %2611 = vmatprep.subr.bf16.mxu0 0
    %2612 = vmatpush2.bf16.msra.mxu0 0
    %2613 = vmatprep.subr.bf16.mxu0 0
    %2614 = vmatpush2.bf16.msra.mxu0 0
    %2615 = vmatprep.subr.bf16.mxu0 0
    %2616 = vmatpush2.bf16.msra.mxu0 0
    %2617 = vmatprep.subr.bf16.mxu0 0
    %2618 = vmatpush2.bf16.msra.mxu0 0
    %2619 = vmatprep.subr.bf16.mxu0 0
    %2620 = vmatpush2.bf16.msra.mxu0 0
    %2621 = vmatprep.subr.bf16.mxu0 0
    %2622 = vmatpush2.bf16.msra.mxu0 0
    %2623 = vmatprep.subr.bf16.mxu0 0
    %2624 = vmatpush2.bf16.msra.mxu0 0
    %2625 = vmatprep.mubr.bf16.mxu0 0
    %2626 = vmatmul.mubr.bf16.gmra.mxu0 %v2577
    %v2627 = vpop.f32.mrf.mxu0
    %v2628 = vadd.f32 0.0, %v2627
    %v2629 = vpop.f32.mrf.mxu0
    %v2630 = vpop.f32.mrf.mxu0
    %v2631 = vadd.f32 0.0, %v2630
    %v2632 = vpop.f32.mrf.mxu0
    %2633 = vmatprep.mubr.bf16.mxu0 0
    %2634 = vmatmul.mubr.bf16.gmra.mxu0 %v2578
    %v2635 = vpop.f32.mrf.mxu0
    %v2636 = vadd.f32 0.0, %v2635
    %v2637 = vpop.f32.mrf.mxu0
    %v2638 = vpop.f32.mrf.mxu0
    %v2639 = vadd.f32 0.0, %v2638
    %v2640 = vpop.f32.mrf.mxu0
    %2641 = vmatprep.mubr.bf16.mxu0 0
    %2642 = vmatmul.mubr.bf16.gmra.mxu0 %v2579
    %v2643 = vpop.f32.mrf.mxu0
    %v2644 = vadd.f32 0.0, %v2643
    %v2645 = vpop.f32.mrf.mxu0
    %v2646 = vpop.f32.mrf.mxu0
    %v2647 = vadd.f32 0.0, %v2646
    %v2648 = vpop.f32.mrf.mxu0
    %2649 = vmatprep.mubr.bf16.mxu0 0
    %2650 = vmatmul.mubr.bf16.gmra.mxu0 %v2580
    %v2651 = vpop.f32.mrf.mxu0
    %v2652 = vadd.f32 0.0, %v2651
    %v2653 = vpop.f32.mrf.mxu0
    %v2654 = vpop.f32.mrf.mxu0
    %v2655 = vadd.f32 0.0, %v2654
    %v2656 = vpop.f32.mrf.mxu0
    %2657 = vmatprep.mubr.bf16.mxu0 0
    %2658 = vmatmul.mubr.bf16.gmra.mxu0 %v2581
    %v2659 = vpop.f32.mrf.mxu0
    %v2660 = vadd.f32 0.0, %v2659
    %v2661 = vpop.f32.mrf.mxu0
    %v2662 = vpop.f32.mrf.mxu0
    %v2663 = vadd.f32 0.0, %v2662
    %v2664 = vpop.f32.mrf.mxu0
    %2665 = vmatprep.mubr.bf16.mxu0 0
    %2666 = vmatmul.mubr.bf16.gmra.mxu0 %v2582
    %v2667 = vpop.f32.mrf.mxu0
    %v2668 = vadd.f32 0.0, %v2667
    %v2669 = vpop.f32.mrf.mxu0
    %v2670 = vpop.f32.mrf.mxu0
    %v2671 = vadd.f32 0.0, %v2670
    %v2672 = vpop.f32.mrf.mxu0
    %2673 = vmatprep.mubr.bf16.mxu0 0
    %2674 = vmatmul.mubr.bf16.gmra.mxu0 %v2583
    %v2675 = vpop.f32.mrf.mxu0
    %v2676 = vadd.f32 0.0, %v2675
    %v2677 = vpop.f32.mrf.mxu0
    %v2678 = vpop.f32.mrf.mxu0
    %v2679 = vadd.f32 0.0, %v2678
    %v2680 = vpop.f32.mrf.mxu0
    %2681 = vmatprep.mubr.bf16.mxu0 0
    %2682 = vmatmul.mubr.bf16.gmra.mxu0 %v2584
    %v2683 = vpop.f32.mrf.mxu0
    %v2684 = vadd.f32 0.0, %v2683
    %v2685 = vpop.f32.mrf.mxu0
    %v2686 = vpop.f32.mrf.mxu0
    %v2687 = vadd.f32 0.0, %v2686
    %v2688 = vpop.f32.mrf.mxu0
    %2689 = vdwg.mxu0
    %v2690 = vpack.c.bf16 %v2631, %v2628
    %v2691 = vpack.c.bf16 %v2639, %v2636
    %v2692 = vpack.c.bf16 %v2647, %v2644
    %v2693 = vpack.c.bf16 %v2655, %v2652
    %v2694 = vpack.c.bf16 %v2663, %v2660
    %v2695 = vpack.c.bf16 %v2671, %v2668
    %v2696 = vpack.c.bf16 %v2679, %v2676
    %v2697 = vpack.c.bf16 %v2687, %v2684
    %s2698 = scalar_lea.vmem %s3, 56
    %v2699 = vld [vmem:[%s2698] sm:$0xf]
    %v2700 = vld [vmem:[%s2698 + $0x4] sm:$0xf]
    %v2703 = vunpack.c.l.b16 %v2699
    %v2704 = vunpack.c.l.b16 %v2700
    %v2705 = vpack.c.b16 %v2704, %v2703
    %v2708 = vsel %vm699, %v2690, 0
    %v2711 = vsel %vm699, %v2691, 0
    %v2714 = vsel %vm699, %v2692, 0
    %v2717 = vsel %vm699, %v2693, 0
    %v2720 = vsel %vm699, %v2694, 0
    %v2723 = vsel %vm699, %v2695, 0
    %v2726 = vsel %vm699, %v2696, 0
    %v2729 = vsel %vm699, %v2697, 0
    %2731 = vmatprep.subr.bf16.mxu0 0
    %2732 = vmatpush1.bf16.msra.mxu0 0
    %2733 = vmatprep.subr.bf16.mxu0 0
    %2734 = vmatpush1.bf16.msra.mxu0 0
    %2735 = vmatprep.subr.bf16.mxu0 0
    %2736 = vmatpush1.bf16.msra.mxu0 0
    %2737 = vmatprep.subr.bf16.mxu0 0
    %2738 = vmatpush1.bf16.msra.mxu0 0
    %2739 = vmatprep.subr.bf16.mxu0 0
    %2740 = vmatpush1.bf16.msra.mxu0 0
    %2741 = vmatprep.subr.bf16.mxu0 0
    %2742 = vmatpush1.bf16.msra.mxu0 0
    %2743 = vmatprep.subr.bf16.mxu0 0
    %2744 = vmatpush1.bf16.msra.mxu0 0
    %2745 = vmatprep.subr.bf16.mxu0 0
    %2746 = vmatpush1.bf16.msra.mxu0 %v2705
    %2747 = vmatprep.subr.bf16.mxu0 0
    %2748 = vmatpush2.bf16.msra.mxu0 0
    %2749 = vmatprep.subr.bf16.mxu0 0
    %2750 = vmatpush2.bf16.msra.mxu0 0
    %2751 = vmatprep.subr.bf16.mxu0 0
    %2752 = vmatpush2.bf16.msra.mxu0 0
    %2753 = vmatprep.subr.bf16.mxu0 0
    %2754 = vmatpush2.bf16.msra.mxu0 0
    %2755 = vmatprep.subr.bf16.mxu0 0
    %2756 = vmatpush2.bf16.msra.mxu0 0
    %2757 = vmatprep.subr.bf16.mxu0 0
    %2758 = vmatpush2.bf16.msra.mxu0 0
    %2759 = vmatprep.subr.bf16.mxu0 0
    %2760 = vmatpush2.bf16.msra.mxu0 0
    %2761 = vmatprep.subr.bf16.mxu0 0
    %2762 = vmatpush2.bf16.msra.mxu0 0
    %2763 = vmatprep.mubr.bf16.mxu0 0
    %2764 = vmatmul.mubr.bf16.gmra.mxu0 %v2708
    %v2765 = vpop.f32.mrf.mxu0
    %v2766 = vadd.f32 0.0, %v2765
    %v2767 = vpop.f32.mrf.mxu0
    %v2768 = vpop.f32.mrf.mxu0
    %v2769 = vadd.f32 0.0, %v2768
    %v2770 = vpop.f32.mrf.mxu0
    %2771 = vmatprep.mubr.bf16.mxu0 0
    %2772 = vmatmul.mubr.bf16.gmra.mxu0 %v2711
    %v2773 = vpop.f32.mrf.mxu0
    %v2774 = vadd.f32 0.0, %v2773
    %v2775 = vpop.f32.mrf.mxu0
    %v2776 = vpop.f32.mrf.mxu0
    %v2777 = vadd.f32 0.0, %v2776
    %v2778 = vpop.f32.mrf.mxu0
    %2779 = vmatprep.mubr.bf16.mxu0 0
    %2780 = vmatmul.mubr.bf16.gmra.mxu0 %v2714
    %v2781 = vpop.f32.mrf.mxu0
    %v2782 = vadd.f32 0.0, %v2781
    %v2783 = vpop.f32.mrf.mxu0
    %v2784 = vpop.f32.mrf.mxu0
    %v2785 = vadd.f32 0.0, %v2784
    %v2786 = vpop.f32.mrf.mxu0
    %2787 = vmatprep.mubr.bf16.mxu0 0
    %2788 = vmatmul.mubr.bf16.gmra.mxu0 %v2717
    %v2789 = vpop.f32.mrf.mxu0
    %v2790 = vadd.f32 0.0, %v2789
    %v2791 = vpop.f32.mrf.mxu0
    %v2792 = vpop.f32.mrf.mxu0
    %v2793 = vadd.f32 0.0, %v2792
    %v2794 = vpop.f32.mrf.mxu0
    %2795 = vmatprep.mubr.bf16.mxu0 0
    %2796 = vmatmul.mubr.bf16.gmra.mxu0 %v2720
    %v2797 = vpop.f32.mrf.mxu0
    %v2798 = vadd.f32 0.0, %v2797
    %v2799 = vpop.f32.mrf.mxu0
    %v2800 = vpop.f32.mrf.mxu0
    %v2801 = vadd.f32 0.0, %v2800
    %v2802 = vpop.f32.mrf.mxu0
    %2803 = vmatprep.mubr.bf16.mxu0 0
    %2804 = vmatmul.mubr.bf16.gmra.mxu0 %v2723
    %v2805 = vpop.f32.mrf.mxu0
    %v2806 = vadd.f32 0.0, %v2805
    %v2807 = vpop.f32.mrf.mxu0
    %v2808 = vpop.f32.mrf.mxu0
    %v2809 = vadd.f32 0.0, %v2808
    %v2810 = vpop.f32.mrf.mxu0
    %2811 = vmatprep.mubr.bf16.mxu0 0
    %2812 = vmatmul.mubr.bf16.gmra.mxu0 %v2726
    %v2813 = vpop.f32.mrf.mxu0
    %v2814 = vadd.f32 0.0, %v2813
    %v2815 = vpop.f32.mrf.mxu0
    %v2816 = vpop.f32.mrf.mxu0
    %v2817 = vadd.f32 0.0, %v2816
    %v2818 = vpop.f32.mrf.mxu0
    %2819 = vmatprep.mubr.bf16.mxu0 0
    %2820 = vmatmul.mubr.bf16.gmra.mxu0 %v2729
    %v2821 = vpop.f32.mrf.mxu0
    %v2822 = vadd.f32 0.0, %v2821
    %v2823 = vpop.f32.mrf.mxu0
    %v2824 = vpop.f32.mrf.mxu0
    %v2825 = vadd.f32 0.0, %v2824
    %v2826 = vpop.f32.mrf.mxu0
    %2827 = vdwg.mxu0
    %v2828 = vadd.f32 %v2512, %v2766
    %v2829 = vadd.f32 %v2513, %v2769
    %v2830 = vadd.f32 %v2514, %v2774
    %v2831 = vadd.f32 %v2515, %v2777
    %v2832 = vadd.f32 %v2516, %v2782
    %v2833 = vadd.f32 %v2517, %v2785
    %v2834 = vadd.f32 %v2518, %v2790
    %v2835 = vadd.f32 %v2519, %v2793
    %v2836 = vadd.f32 %v2520, %v2798
    %v2837 = vadd.f32 %v2521, %v2801
    %v2838 = vadd.f32 %v2522, %v2806
    %v2839 = vadd.f32 %v2523, %v2809
    %v2840 = vadd.f32 %v2524, %v2814
    %v2841 = vadd.f32 %v2525, %v2817
    %v2842 = vadd.f32 %v2526, %v2822
    %v2843 = vadd.f32 %v2527, %v2825
    %s2844 = scalar_lea.vmem [#allocation2], 512
    %v2845 = vld [vmem:[%s2844] sm:$0xf]
    %v2846 = vld [vmem:[%s2844 + $0x4] sm:$0xf]
    %v2847 = vld [vmem:[%s2844 + $0x8] sm:$0xf]
    %v2848 = vld [vmem:[%s2844 + $0xc] sm:$0xf]
    %v2849 = vld [vmem:[%s2844 + $0x10] sm:$0xf]
    %v2850 = vld [vmem:[%s2844 + $0x14] sm:$0xf]
    %v2851 = vld [vmem:[%s2844 + $0x18] sm:$0xf]
    %v2852 = vld [vmem:[%s2844 + $0x1c] sm:$0xf]
    %v2853 = vld [vmem:[%s2844 + $0x20] sm:$0xf]
    %v2854 = vld [vmem:[%s2844 + $0x24] sm:$0xf]
    %v2855 = vld [vmem:[%s2844 + $0x28] sm:$0xf]
    %v2856 = vld [vmem:[%s2844 + $0x2c] sm:$0xf]
    %v2857 = vld [vmem:[%s2844 + $0x30] sm:$0xf]
    %v2858 = vld [vmem:[%s2844 + $0x34] sm:$0xf]
    %v2859 = vld [vmem:[%s2844 + $0x38] sm:$0xf]
    %v2860 = vld [vmem:[%s2844 + $0x3c] sm:$0xf]
    %v2877 = vunpack.c.l.b16 %v2845
    %v2878 = vunpack.c.l.b16 %v2846
    %v2879 = vunpack.c.l.b16 %v2847
    %v2880 = vunpack.c.l.b16 %v2848
    %v2881 = vunpack.c.l.b16 %v2849
    %v2882 = vunpack.c.l.b16 %v2850
    %v2883 = vunpack.c.l.b16 %v2851
    %v2884 = vunpack.c.l.b16 %v2852
    %v2885 = vunpack.c.l.b16 %v2853
    %v2886 = vunpack.c.l.b16 %v2854
    %v2887 = vunpack.c.l.b16 %v2855
    %v2888 = vunpack.c.l.b16 %v2856
    %v2889 = vunpack.c.l.b16 %v2857
    %v2890 = vunpack.c.l.b16 %v2858
    %v2891 = vunpack.c.l.b16 %v2859
    %v2892 = vunpack.c.l.b16 %v2860
    %v2893 = vpack.c.b16 %v2878, %v2877
    %v2894 = vpack.c.b16 %v2880, %v2879
    %v2895 = vpack.c.b16 %v2882, %v2881
    %v2896 = vpack.c.b16 %v2884, %v2883
    %v2897 = vpack.c.b16 %v2886, %v2885
    %v2898 = vpack.c.b16 %v2888, %v2887
    %v2899 = vpack.c.b16 %v2890, %v2889
    %v2900 = vpack.c.b16 %v2892, %v2891
    %2909 = vmatprep.subr.bf16.mxu0 0
    %2910 = vmatpush1.bf16.msra.mxu0 %v348
    %2911 = vmatprep.subr.bf16.mxu0 0
    %2912 = vmatpush1.bf16.msra.mxu0 %v347
    %2913 = vmatprep.subr.bf16.mxu0 0
    %2914 = vmatpush1.bf16.msra.mxu0 %v346
    %2915 = vmatprep.subr.bf16.mxu0 0
    %2916 = vmatpush1.bf16.msra.mxu0 %v345
    %2917 = vmatprep.subr.bf16.mxu0 0
    %2918 = vmatpush1.bf16.msra.mxu0 %v344
    %2919 = vmatprep.subr.bf16.mxu0 0
    %2920 = vmatpush1.bf16.msra.mxu0 %v343
    %2921 = vmatprep.subr.bf16.mxu0 0
    %2922 = vmatpush1.bf16.msra.mxu0 %v342
    %2923 = vmatprep.subr.bf16.mxu0 0
    %2924 = vmatpush1.bf16.msra.mxu0 %v341
    %2925 = vmatprep.subr.bf16.mxu0 0
    %2926 = vmatpush2.bf16.msra.mxu0 0
    %2927 = vmatprep.subr.bf16.mxu0 0
    %2928 = vmatpush2.bf16.msra.mxu0 0
    %2929 = vmatprep.subr.bf16.mxu0 0
    %2930 = vmatpush2.bf16.msra.mxu0 0
    %2931 = vmatprep.subr.bf16.mxu0 0
    %2932 = vmatpush2.bf16.msra.mxu0 0
    %2933 = vmatprep.subr.bf16.mxu0 0
    %2934 = vmatpush2.bf16.msra.mxu0 0
    %2935 = vmatprep.subr.bf16.mxu0 0
    %2936 = vmatpush2.bf16.msra.mxu0 0
    %2937 = vmatprep.subr.bf16.mxu0 0
    %2938 = vmatpush2.bf16.msra.mxu0 0
    %2939 = vmatprep.subr.bf16.mxu0 0
    %2940 = vmatpush2.bf16.msra.mxu0 0
    %2941 = vmatprep.mubr.bf16.mxu0 0
    %2942 = vmatmul.mubr.bf16.gmra.mxu0 %v2893
    %v2943 = vpop.f32.mrf.mxu0
    %v2944 = vadd.f32 0.0, %v2943
    %v2945 = vpop.f32.mrf.mxu0
    %v2946 = vpop.f32.mrf.mxu0
    %v2947 = vadd.f32 0.0, %v2946
    %v2948 = vpop.f32.mrf.mxu0
    %2949 = vmatprep.mubr.bf16.mxu0 0
    %2950 = vmatmul.mubr.bf16.gmra.mxu0 %v2894
    %v2951 = vpop.f32.mrf.mxu0
    %v2952 = vadd.f32 0.0, %v2951
    %v2953 = vpop.f32.mrf.mxu0
    %v2954 = vpop.f32.mrf.mxu0
    %v2955 = vadd.f32 0.0, %v2954
    %v2956 = vpop.f32.mrf.mxu0
    %2957 = vmatprep.mubr.bf16.mxu0 0
    %2958 = vmatmul.mubr.bf16.gmra.mxu0 %v2895
    %v2959 = vpop.f32.mrf.mxu0
    %v2960 = vadd.f32 0.0, %v2959
    %v2961 = vpop.f32.mrf.mxu0
    %v2962 = vpop.f32.mrf.mxu0
    %v2963 = vadd.f32 0.0, %v2962
    %v2964 = vpop.f32.mrf.mxu0
    %2965 = vmatprep.mubr.bf16.mxu0 0
    %2966 = vmatmul.mubr.bf16.gmra.mxu0 %v2896
    %v2967 = vpop.f32.mrf.mxu0
    %v2968 = vadd.f32 0.0, %v2967
    %v2969 = vpop.f32.mrf.mxu0
    %v2970 = vpop.f32.mrf.mxu0
    %v2971 = vadd.f32 0.0, %v2970
    %v2972 = vpop.f32.mrf.mxu0
    %2973 = vmatprep.mubr.bf16.mxu0 0
    %2974 = vmatmul.mubr.bf16.gmra.mxu0 %v2897
    %v2975 = vpop.f32.mrf.mxu0
    %v2976 = vadd.f32 0.0, %v2975
    %v2977 = vpop.f32.mrf.mxu0
    %v2978 = vpop.f32.mrf.mxu0
    %v2979 = vadd.f32 0.0, %v2978
    %v2980 = vpop.f32.mrf.mxu0
    %2981 = vmatprep.mubr.bf16.mxu0 0
    %2982 = vmatmul.mubr.bf16.gmra.mxu0 %v2898
    %v2983 = vpop.f32.mrf.mxu0
    %v2984 = vadd.f32 0.0, %v2983
    %v2985 = vpop.f32.mrf.mxu0
    %v2986 = vpop.f32.mrf.mxu0
    %v2987 = vadd.f32 0.0, %v2986
    %v2988 = vpop.f32.mrf.mxu0
    %2989 = vmatprep.mubr.bf16.mxu0 0
    %2990 = vmatmul.mubr.bf16.gmra.mxu0 %v2899
    %v2991 = vpop.f32.mrf.mxu0
    %v2992 = vadd.f32 0.0, %v2991
    %v2993 = vpop.f32.mrf.mxu0
    %v2994 = vpop.f32.mrf.mxu0
    %v2995 = vadd.f32 0.0, %v2994
    %v2996 = vpop.f32.mrf.mxu0
    %2997 = vmatprep.mubr.bf16.mxu0 0
    %2998 = vmatmul.mubr.bf16.gmra.mxu0 %v2900
    %v2999 = vpop.f32.mrf.mxu0
    %v3000 = vadd.f32 0.0, %v2999
    %v3001 = vpop.f32.mrf.mxu0
    %v3002 = vpop.f32.mrf.mxu0
    %v3003 = vadd.f32 0.0, %v3002
    %v3004 = vpop.f32.mrf.mxu0
    %3005 = vdwg.mxu0
    %v3006 = vpack.c.bf16 %v2947, %v2944
    %v3007 = vpack.c.bf16 %v2955, %v2952
    %v3008 = vpack.c.bf16 %v2963, %v2960
    %v3009 = vpack.c.bf16 %v2971, %v2968
    %v3010 = vpack.c.bf16 %v2979, %v2976
    %v3011 = vpack.c.bf16 %v2987, %v2984
    %v3012 = vpack.c.bf16 %v2995, %v2992
    %v3013 = vpack.c.bf16 %v3003, %v3000
    %s3014 = scalar_lea.vmem %s3, 64
    %v3015 = vld [vmem:[%s3014] sm:$0xf]
    %v3016 = vld [vmem:[%s3014 + $0x4] sm:$0xf]
    %v3019 = vunpack.c.l.b16 %v3015
    %v3020 = vunpack.c.l.b16 %v3016
    %v3021 = vpack.c.b16 %v3020, %v3019
    %v3024 = vsel %vm699, %v3006, 0
    %v3027 = vsel %vm699, %v3007, 0
    %v3030 = vsel %vm699, %v3008, 0
    %v3033 = vsel %vm699, %v3009, 0
    %v3036 = vsel %vm699, %v3010, 0
    %v3039 = vsel %vm699, %v3011, 0
    %v3042 = vsel %vm699, %v3012, 0
    %v3045 = vsel %vm699, %v3013, 0
    %3047 = vmatprep.subr.bf16.mxu0 0
    %3048 = vmatpush1.bf16.msra.mxu0 0
    %3049 = vmatprep.subr.bf16.mxu0 0
    %3050 = vmatpush1.bf16.msra.mxu0 0
    %3051 = vmatprep.subr.bf16.mxu0 0
    %3052 = vmatpush1.bf16.msra.mxu0 0
    %3053 = vmatprep.subr.bf16.mxu0 0
    %3054 = vmatpush1.bf16.msra.mxu0 0
    %3055 = vmatprep.subr.bf16.mxu0 0
    %3056 = vmatpush1.bf16.msra.mxu0 0
    %3057 = vmatprep.subr.bf16.mxu0 0
    %3058 = vmatpush1.bf16.msra.mxu0 0
    %3059 = vmatprep.subr.bf16.mxu0 0
    %3060 = vmatpush1.bf16.msra.mxu0 0
    %3061 = vmatprep.subr.bf16.mxu0 0
    %3062 = vmatpush1.bf16.msra.mxu0 %v3021
    %3063 = vmatprep.subr.bf16.mxu0 0
    %3064 = vmatpush2.bf16.msra.mxu0 0
    %3065 = vmatprep.subr.bf16.mxu0 0
    %3066 = vmatpush2.bf16.msra.mxu0 0
    %3067 = vmatprep.subr.bf16.mxu0 0
    %3068 = vmatpush2.bf16.msra.mxu0 0
    %3069 = vmatprep.subr.bf16.mxu0 0
    %3070 = vmatpush2.bf16.msra.mxu0 0
    %3071 = vmatprep.subr.bf16.mxu0 0
    %3072 = vmatpush2.bf16.msra.mxu0 0
    %3073 = vmatprep.subr.bf16.mxu0 0
    %3074 = vmatpush2.bf16.msra.mxu0 0
    %3075 = vmatprep.subr.bf16.mxu0 0
    %3076 = vmatpush2.bf16.msra.mxu0 0
    %3077 = vmatprep.subr.bf16.mxu0 0
    %3078 = vmatpush2.bf16.msra.mxu0 0
    %3079 = vmatprep.mubr.bf16.mxu0 0
    %3080 = vmatmul.mubr.bf16.gmra.mxu0 %v3024
    %v3081 = vpop.f32.mrf.mxu0
    %v3082 = vadd.f32 0.0, %v3081
    %v3083 = vpop.f32.mrf.mxu0
    %v3084 = vpop.f32.mrf.mxu0
    %v3085 = vadd.f32 0.0, %v3084
    %v3086 = vpop.f32.mrf.mxu0
    %3087 = vmatprep.mubr.bf16.mxu0 0
    %3088 = vmatmul.mubr.bf16.gmra.mxu0 %v3027
    %v3089 = vpop.f32.mrf.mxu0
    %v3090 = vadd.f32 0.0, %v3089
    %v3091 = vpop.f32.mrf.mxu0
    %v3092 = vpop.f32.mrf.mxu0
    %v3093 = vadd.f32 0.0, %v3092
    %v3094 = vpop.f32.mrf.mxu0
    %3095 = vmatprep.mubr.bf16.mxu0 0
    %3096 = vmatmul.mubr.bf16.gmra.mxu0 %v3030
    %v3097 = vpop.f32.mrf.mxu0
    %v3098 = vadd.f32 0.0, %v3097
    %v3099 = vpop.f32.mrf.mxu0
    %v3100 = vpop.f32.mrf.mxu0
    %v3101 = vadd.f32 0.0, %v3100
    %v3102 = vpop.f32.mrf.mxu0
    %3103 = vmatprep.mubr.bf16.mxu0 0
    %3104 = vmatmul.mubr.bf16.gmra.mxu0 %v3033
    %v3105 = vpop.f32.mrf.mxu0
    %v3106 = vadd.f32 0.0, %v3105
    %v3107 = vpop.f32.mrf.mxu0
    %v3108 = vpop.f32.mrf.mxu0
    %v3109 = vadd.f32 0.0, %v3108
    %v3110 = vpop.f32.mrf.mxu0
    %3111 = vmatprep.mubr.bf16.mxu0 0
    %3112 = vmatmul.mubr.bf16.gmra.mxu0 %v3036
    %v3113 = vpop.f32.mrf.mxu0
    %v3114 = vadd.f32 0.0, %v3113
    %v3115 = vpop.f32.mrf.mxu0
    %v3116 = vpop.f32.mrf.mxu0
    %v3117 = vadd.f32 0.0, %v3116
    %v3118 = vpop.f32.mrf.mxu0
    %3119 = vmatprep.mubr.bf16.mxu0 0
    %3120 = vmatmul.mubr.bf16.gmra.mxu0 %v3039
    %v3121 = vpop.f32.mrf.mxu0
    %v3122 = vadd.f32 0.0, %v3121
    %v3123 = vpop.f32.mrf.mxu0
    %v3124 = vpop.f32.mrf.mxu0
    %v3125 = vadd.f32 0.0, %v3124
    %v3126 = vpop.f32.mrf.mxu0
    %3127 = vmatprep.mubr.bf16.mxu0 0
    %3128 = vmatmul.mubr.bf16.gmra.mxu0 %v3042
    %v3129 = vpop.f32.mrf.mxu0
    %v3130 = vadd.f32 0.0, %v3129
    %v3131 = vpop.f32.mrf.mxu0
    %v3132 = vpop.f32.mrf.mxu0
    %v3133 = vadd.f32 0.0, %v3132
    %v3134 = vpop.f32.mrf.mxu0
    %3135 = vmatprep.mubr.bf16.mxu0 0
    %3136 = vmatmul.mubr.bf16.gmra.mxu0 %v3045
    %v3137 = vpop.f32.mrf.mxu0
    %v3138 = vadd.f32 0.0, %v3137
    %v3139 = vpop.f32.mrf.mxu0
    %v3140 = vpop.f32.mrf.mxu0
    %v3141 = vadd.f32 0.0, %v3140
    %v3142 = vpop.f32.mrf.mxu0
    %3143 = vdwg.mxu0
    %v3144 = vadd.f32 %v2828, %v3082
    %v3145 = vadd.f32 %v2829, %v3085
    %v3146 = vadd.f32 %v2830, %v3090
    %v3147 = vadd.f32 %v2831, %v3093
    %v3148 = vadd.f32 %v2832, %v3098
    %v3149 = vadd.f32 %v2833, %v3101
    %v3150 = vadd.f32 %v2834, %v3106
    %v3151 = vadd.f32 %v2835, %v3109
    %v3152 = vadd.f32 %v2836, %v3114
    %v3153 = vadd.f32 %v2837, %v3117
    %v3154 = vadd.f32 %v2838, %v3122
    %v3155 = vadd.f32 %v2839, %v3125
    %v3156 = vadd.f32 %v2840, %v3130
    %v3157 = vadd.f32 %v2841, %v3133
    %v3158 = vadd.f32 %v2842, %v3138
    %v3159 = vadd.f32 %v2843, %v3141
    %v3160 = vlaneseq
    %v3161 = vshrl.u32 %v3160, 7
    %v3162 = vsub.s32 1, %v3161
    %v3163 = vrot.slane %v158, %v3162
    %v3164 = vadd.f32 %v3144, %v3163
    %v3165 = vadd.f32 %v3145, %v3163
    %v3166 = vadd.f32 %v3146, %v3163
    %v3167 = vadd.f32 %v3147, %v3163
    %v3168 = vadd.f32 %v3148, %v3163
    %v3169 = vadd.f32 %v3149, %v3163
    %v3170 = vadd.f32 %v3150, %v3163
    %v3171 = vadd.f32 %v3151, %v3163
    %v3172 = vadd.f32 %v3152, %v3163
    %v3173 = vadd.f32 %v3153, %v3163
    %v3174 = vadd.f32 %v3154, %v3163
    %v3175 = vadd.f32 %v3155, %v3163
    %v3176 = vadd.f32 %v3156, %v3163
    %v3177 = vadd.f32 %v3157, %v3163
    %v3178 = vadd.f32 %v3158, %v3163
    %v3179 = vadd.f32 %v3159, %v3163
    %v3180 = vmax.f32 %v3164, 0.0
    %v3181 = vmax.f32 %v3165, 0.0
    %v3182 = vmax.f32 %v3166, 0.0
    %v3183 = vmax.f32 %v3167, 0.0
    %v3184 = vmax.f32 %v3168, 0.0
    %v3185 = vmax.f32 %v3169, 0.0
    %v3186 = vmax.f32 %v3170, 0.0
    %v3187 = vmax.f32 %v3171, 0.0
    %v3188 = vmax.f32 %v3172, 0.0
    %v3189 = vmax.f32 %v3173, 0.0
    %v3190 = vmax.f32 %v3174, 0.0
    %v3191 = vmax.f32 %v3175, 0.0
    %v3192 = vmax.f32 %v3176, 0.0
    %v3193 = vmax.f32 %v3177, 0.0
    %v3194 = vmax.f32 %v3178, 0.0
    %v3195 = vmax.f32 %v3179, 0.0
    %v3196 = vpack.c.bf16 %v3181, %v3180
    %v3197 = vpack.c.bf16 %v3183, %v3182
    %v3198 = vpack.c.bf16 %v3185, %v3184
    %v3199 = vpack.c.bf16 %v3187, %v3186
    %v3200 = vpack.c.bf16 %v3189, %v3188
    %v3201 = vpack.c.bf16 %v3191, %v3190
    %v3202 = vpack.c.bf16 %v3193, %v3192
    %v3203 = vpack.c.bf16 %v3195, %v3194
    %v3204 = vld [vmem:[#allocation5] sm:$0xf]
    %v3205 = vld [vmem:[#allocation5 + $0x4] sm:$0xf]
    %v3206 = vlaneseq
    %v3207 = vshrl.u32 %v3206, 7
    %v3208 = vsub.s32 2, %v3207
    %v3209 = vrot.slane %v158, %v3208
    %v3212 = vunpack.c.l.b16 %v3204
    %v3213 = vunpack.c.l.b16 %v3205
    %v3214 = vpack.c.b16 %v3213, %v3212
    %v3217 = vsel %vm699, %v3196, 0
    %v3220 = vsel %vm699, %v3197, 0
    %v3223 = vsel %vm699, %v3198, 0
    %v3226 = vsel %vm699, %v3199, 0
    %v3229 = vsel %vm699, %v3200, 0
    %v3232 = vsel %vm699, %v3201, 0
    %v3235 = vsel %vm699, %v3202, 0
    %v3238 = vsel %vm699, %v3203, 0
    %3240 = vmatprep.subr.bf16.mxu0 0
    %3241 = vmatpush1.bf16.msra.mxu0 0
    %3242 = vmatprep.subr.bf16.mxu0 0
    %3243 = vmatpush1.bf16.msra.mxu0 0
    %3244 = vmatprep.subr.bf16.mxu0 0
    %3245 = vmatpush1.bf16.msra.mxu0 0
    %3246 = vmatprep.subr.bf16.mxu0 0
    %3247 = vmatpush1.bf16.msra.mxu0 0
    %3248 = vmatprep.subr.bf16.mxu0 0
    %3249 = vmatpush1.bf16.msra.mxu0 0
    %3250 = vmatprep.subr.bf16.mxu0 0
    %3251 = vmatpush1.bf16.msra.mxu0 0
    %3252 = vmatprep.subr.bf16.mxu0 0
    %3253 = vmatpush1.bf16.msra.mxu0 0
    %3254 = vmatprep.subr.bf16.mxu0 0
    %3255 = vmatpush1.bf16.msra.mxu0 %v3214
    %3256 = vmatprep.subr.bf16.mxu0 0
    %3257 = vmatpush2.bf16.msra.mxu0 0
    %3258 = vmatprep.subr.bf16.mxu0 0
    %3259 = vmatpush2.bf16.msra.mxu0 0
    %3260 = vmatprep.subr.bf16.mxu0 0
    %3261 = vmatpush2.bf16.msra.mxu0 0
    %3262 = vmatprep.subr.bf16.mxu0 0
    %3263 = vmatpush2.bf16.msra.mxu0 0
    %3264 = vmatprep.subr.bf16.mxu0 0
    %3265 = vmatpush2.bf16.msra.mxu0 0
    %3266 = vmatprep.subr.bf16.mxu0 0
    %3267 = vmatpush2.bf16.msra.mxu0 0
    %3268 = vmatprep.subr.bf16.mxu0 0
    %3269 = vmatpush2.bf16.msra.mxu0 0
    %3270 = vmatprep.subr.bf16.mxu0 0
    %3271 = vmatpush2.bf16.msra.mxu0 0
    %3272 = vmatprep.mubr.bf16.mxu0 0
    %3273 = vmatmul.mubr.bf16.gmra.mxu0 %v3217
    %v3274 = vpop.f32.mrf.mxu0
    %v3275 = vadd.f32 %v3209, %v3274
    %v3276 = vpop.f32.mrf.mxu0
    %v3277 = vpop.f32.mrf.mxu0
    %v3278 = vadd.f32 %v3209, %v3277
    %v3279 = vpop.f32.mrf.mxu0
    %3280 = vmatprep.mubr.bf16.mxu0 0
    %3281 = vmatmul.mubr.bf16.gmra.mxu0 %v3220
    %v3282 = vpop.f32.mrf.mxu0
    %v3283 = vadd.f32 %v3209, %v3282
    %v3284 = vpop.f32.mrf.mxu0
    %v3285 = vpop.f32.mrf.mxu0
    %v3286 = vadd.f32 %v3209, %v3285
    %v3287 = vpop.f32.mrf.mxu0
    %3288 = vmatprep.mubr.bf16.mxu0 0
    %3289 = vmatmul.mubr.bf16.gmra.mxu0 %v3223
    %v3290 = vpop.f32.mrf.mxu0
    %v3291 = vadd.f32 %v3209, %v3290
    %v3292 = vpop.f32.mrf.mxu0
    %v3293 = vpop.f32.mrf.mxu0
    %v3294 = vadd.f32 %v3209, %v3293
    %v3295 = vpop.f32.mrf.mxu0
    %3296 = vmatprep.mubr.bf16.mxu0 0
    %3297 = vmatmul.mubr.bf16.gmra.mxu0 %v3226
    %v3298 = vpop.f32.mrf.mxu0
    %v3299 = vadd.f32 %v3209, %v3298
    %v3300 = vpop.f32.mrf.mxu0
    %v3301 = vpop.f32.mrf.mxu0
    %v3302 = vadd.f32 %v3209, %v3301
    %v3303 = vpop.f32.mrf.mxu0
    %3304 = vmatprep.mubr.bf16.mxu0 0
    %3305 = vmatmul.mubr.bf16.gmra.mxu0 %v3229
    %v3306 = vpop.f32.mrf.mxu0
    %v3307 = vadd.f32 %v3209, %v3306
    %v3308 = vpop.f32.mrf.mxu0
    %v3309 = vpop.f32.mrf.mxu0
    %v3310 = vadd.f32 %v3209, %v3309
    %v3311 = vpop.f32.mrf.mxu0
    %3312 = vmatprep.mubr.bf16.mxu0 0
    %3313 = vmatmul.mubr.bf16.gmra.mxu0 %v3232
    %v3314 = vpop.f32.mrf.mxu0
    %v3315 = vadd.f32 %v3209, %v3314
    %v3316 = vpop.f32.mrf.mxu0
    %v3317 = vpop.f32.mrf.mxu0
    %v3318 = vadd.f32 %v3209, %v3317
    %v3319 = vpop.f32.mrf.mxu0
    %3320 = vmatprep.mubr.bf16.mxu0 0
    %3321 = vmatmul.mubr.bf16.gmra.mxu0 %v3235
    %v3322 = vpop.f32.mrf.mxu0
    %v3323 = vadd.f32 %v3209, %v3322
    %v3324 = vpop.f32.mrf.mxu0
    %v3325 = vpop.f32.mrf.mxu0
    %v3326 = vadd.f32 %v3209, %v3325
    %v3327 = vpop.f32.mrf.mxu0
    %3328 = vmatprep.mubr.bf16.mxu0 0
    %3329 = vmatmul.mubr.bf16.gmra.mxu0 %v3238
    %v3330 = vpop.f32.mrf.mxu0
    %v3331 = vadd.f32 %v3209, %v3330
    %v3332 = vpop.f32.mrf.mxu0
    %v3333 = vpop.f32.mrf.mxu0
    %v3334 = vadd.f32 %v3209, %v3333
    %v3335 = vpop.f32.mrf.mxu0
    %3336 = vdwg.mxu0
    %v3337 = vadd.f32 %v3275, %v142
    %v3338 = vadd.f32 %v3278, %v143
    %v3339 = vadd.f32 %v3283, %v144
    %v3340 = vadd.f32 %v3286, %v145
    %v3341 = vadd.f32 %v3291, %v146
    %v3342 = vadd.f32 %v3294, %v147
    %v3343 = vadd.f32 %v3299, %v148
    %v3344 = vadd.f32 %v3302, %v149
    %v3345 = vadd.f32 %v3307, %v150
    %v3346 = vadd.f32 %v3310, %v151
    %v3347 = vadd.f32 %v3315, %v152
    %v3348 = vadd.f32 %v3318, %v153
    %v3349 = vadd.f32 %v3323, %v154
    %v3350 = vadd.f32 %v3326, %v155
    %v3351 = vadd.f32 %v3331, %v156
    %v3352 = vadd.f32 %v3334, %v157
    %v3353 = vmax.f32 %v3337, 0.0
    %v3354 = vmax.f32 %v3338, 0.0
    %v3355 = vmax.f32 %v3339, 0.0
    %v3356 = vmax.f32 %v3340, 0.0
    %v3357 = vmax.f32 %v3341, 0.0
    %v3358 = vmax.f32 %v3342, 0.0
    %v3359 = vmax.f32 %v3343, 0.0
    %v3360 = vmax.f32 %v3344, 0.0
    %v3361 = vmax.f32 %v3345, 0.0
    %v3362 = vmax.f32 %v3346, 0.0
    %v3363 = vmax.f32 %v3347, 0.0
    %v3364 = vmax.f32 %v3348, 0.0
    %v3365 = vmax.f32 %v3349, 0.0
    %v3366 = vmax.f32 %v3350, 0.0
    %v3367 = vmax.f32 %v3351, 0.0
    %v3368 = vmax.f32 %v3352, 0.0
    %v3369 = vld [vmem:[#allocation7] sm:$0xf]
    %v3370 = vld [vmem:[#allocation7 + $0x4] sm:$0xf]
    %v3371 = vld [vmem:[#allocation7 + $0x8] sm:$0xf]
    %v3372 = vld [vmem:[#allocation7 + $0xc] sm:$0xf]
    %v3373 = vld [vmem:[#allocation7 + $0x10] sm:$0xf]
    %v3374 = vld [vmem:[#allocation7 + $0x14] sm:$0xf]
    %v3375 = vld [vmem:[#allocation7 + $0x18] sm:$0xf]
    %v3376 = vld [vmem:[#allocation7 + $0x1c] sm:$0xf]
    %v3377 = vlaneseq
    %v3378 = vshrl.u32 %v3377, 7
    %v3379 = vsub.s32 3, %v3378
    %v3380 = vrot.slane %v158, %v3379
    %v3389 = vunpack.c.l.b16 %v3369
    %v3390 = vunpack.c.l.b16 %v3370
    %v3391 = vunpack.c.l.b16 %v3371
    %v3392 = vunpack.c.l.b16 %v3372
    %v3393 = vunpack.c.l.b16 %v3373
    %v3394 = vunpack.c.l.b16 %v3374
    %v3395 = vunpack.c.l.b16 %v3375
    %v3396 = vunpack.c.l.b16 %v3376
    %v3397 = vpack.c.b16 %v3390, %v3389
    %v3398 = vpack.c.b16 %v3392, %v3391
    %v3399 = vpack.c.b16 %v3394, %v3393
    %v3400 = vpack.c.b16 %v3396, %v3395
    %3405 = vmatprep.subr.bf16.mxu0 0
    %3406 = vmatpush1.bf16.msra.mxu0 0
    %3407 = vmatprep.subr.bf16.mxu0 0
    %3408 = vmatpush1.bf16.msra.mxu0 0
    %3409 = vmatprep.subr.bf16.mxu0 0
    %3410 = vmatpush1.bf16.msra.mxu0 0
    %3411 = vmatprep.subr.bf16.mxu0 0
    %3412 = vmatpush1.bf16.msra.mxu0 0
    %3413 = vmatprep.subr.bf16.mxu0 0
    %3414 = vmatpush1.bf16.msra.mxu0 %v3400
    %3415 = vmatprep.subr.bf16.mxu0 0
    %3416 = vmatpush1.bf16.msra.mxu0 %v3399
    %3417 = vmatprep.subr.bf16.mxu0 0
    %3418 = vmatpush1.bf16.msra.mxu0 %v3398
    %3419 = vmatprep.subr.bf16.mxu0 0
    %3420 = vmatpush1.bf16.msra.mxu0 %v3397
    %3421 = vmatprep.subr.bf16.mxu0 0
    %3422 = vmatpush2.bf16.msra.mxu0 0
    %3423 = vmatprep.subr.bf16.mxu0 0
    %3424 = vmatpush2.bf16.msra.mxu0 0
    %3425 = vmatprep.subr.bf16.mxu0 0
    %3426 = vmatpush2.bf16.msra.mxu0 0
    %3427 = vmatprep.subr.bf16.mxu0 0
    %3428 = vmatpush2.bf16.msra.mxu0 0
    %3429 = vmatprep.subr.bf16.mxu0 0
    %3430 = vmatpush2.bf16.msra.mxu0 0
    %3431 = vmatprep.subr.bf16.mxu0 0
    %3432 = vmatpush2.bf16.msra.mxu0 0
    %3433 = vmatprep.subr.bf16.mxu0 0
    %3434 = vmatpush2.bf16.msra.mxu0 0
    %3435 = vmatprep.subr.bf16.mxu0 0
    %3436 = vmatpush2.bf16.msra.mxu0 0
    %3437 = vmatprep.mubr.bf16.mxu0 0
    %3438 = vmatmul.mubr.bf16.gmra.mxu0 %v205
    %v3439 = vpop.f32.mrf.mxu0
    %v3440 = vadd.f32 %v3380, %v3439
    %v3441 = vpop.f32.mrf.mxu0
    %v3442 = vpop.f32.mrf.mxu0
    %v3443 = vadd.f32 %v3380, %v3442
    %v3444 = vpop.f32.mrf.mxu0
    %3445 = vmatprep.mubr.bf16.mxu0 0
    %3446 = vmatmul.mubr.bf16.gmra.mxu0 %v208
    %v3447 = vpop.f32.mrf.mxu0
    %v3448 = vadd.f32 %v3380, %v3447
    %v3449 = vpop.f32.mrf.mxu0
    %v3450 = vpop.f32.mrf.mxu0
    %v3451 = vadd.f32 %v3380, %v3450
    %v3452 = vpop.f32.mrf.mxu0
    %3453 = vmatprep.mubr.bf16.mxu0 0
    %3454 = vmatmul.mubr.bf16.gmra.mxu0 %v211
    %v3455 = vpop.f32.mrf.mxu0
    %v3456 = vadd.f32 %v3380, %v3455
    %v3457 = vpop.f32.mrf.mxu0
    %v3458 = vpop.f32.mrf.mxu0
    %v3459 = vadd.f32 %v3380, %v3458
    %v3460 = vpop.f32.mrf.mxu0
    %3461 = vmatprep.mubr.bf16.mxu0 0
    %3462 = vmatmul.mubr.bf16.gmra.mxu0 %v214
    %v3463 = vpop.f32.mrf.mxu0
    %v3464 = vadd.f32 %v3380, %v3463
    %v3465 = vpop.f32.mrf.mxu0
    %v3466 = vpop.f32.mrf.mxu0
    %v3467 = vadd.f32 %v3380, %v3466
    %v3468 = vpop.f32.mrf.mxu0
    %3469 = vmatprep.mubr.bf16.mxu0 0
    %3470 = vmatmul.mubr.bf16.gmra.mxu0 %v217
    %v3471 = vpop.f32.mrf.mxu0
    %v3472 = vadd.f32 %v3380, %v3471
    %v3473 = vpop.f32.mrf.mxu0
    %v3474 = vpop.f32.mrf.mxu0
    %v3475 = vadd.f32 %v3380, %v3474
    %v3476 = vpop.f32.mrf.mxu0
    %3477 = vmatprep.mubr.bf16.mxu0 0
    %3478 = vmatmul.mubr.bf16.gmra.mxu0 %v220
    %v3479 = vpop.f32.mrf.mxu0
    %v3480 = vadd.f32 %v3380, %v3479
    %v3481 = vpop.f32.mrf.mxu0
    %v3482 = vpop.f32.mrf.mxu0
    %v3483 = vadd.f32 %v3380, %v3482
    %v3484 = vpop.f32.mrf.mxu0
    %3485 = vmatprep.mubr.bf16.mxu0 0
    %3486 = vmatmul.mubr.bf16.gmra.mxu0 %v223
    %v3487 = vpop.f32.mrf.mxu0
    %v3488 = vadd.f32 %v3380, %v3487
    %v3489 = vpop.f32.mrf.mxu0
    %v3490 = vpop.f32.mrf.mxu0
    %v3491 = vadd.f32 %v3380, %v3490
    %v3492 = vpop.f32.mrf.mxu0
    %3493 = vmatprep.mubr.bf16.mxu0 0
    %3494 = vmatmul.mubr.bf16.gmra.mxu0 %v226
    %v3495 = vpop.f32.mrf.mxu0
    %v3496 = vadd.f32 %v3380, %v3495
    %v3497 = vpop.f32.mrf.mxu0
    %v3498 = vpop.f32.mrf.mxu0
    %v3499 = vadd.f32 %v3380, %v3498
    %v3500 = vpop.f32.mrf.mxu0
    %3501 = vdwg.mxu0
    %v3502 = vlaneseq
    %v3503 = vshrl.u32 %v3502, 7
    %v3504 = vsub.s32 4, %v3503
    %v3505 = vrot.slane %v158, %v3504
    %v3506 = vmul.f32 %v3353, %v3505
    %v3507 = vmul.f32 %v3354, %v3505
    %v3508 = vmul.f32 %v3355, %v3505
    %v3509 = vmul.f32 %v3356, %v3505
    %v3510 = vmul.f32 %v3357, %v3505
    %v3511 = vmul.f32 %v3358, %v3505
    %v3512 = vmul.f32 %v3359, %v3505
    %v3513 = vmul.f32 %v3360, %v3505
    %v3514 = vmul.f32 %v3361, %v3505
    %v3515 = vmul.f32 %v3362, %v3505
    %v3516 = vmul.f32 %v3363, %v3505
    %v3517 = vmul.f32 %v3364, %v3505
    %v3518 = vmul.f32 %v3365, %v3505
    %v3519 = vmul.f32 %v3366, %v3505
    %v3520 = vmul.f32 %v3367, %v3505
    %v3521 = vmul.f32 %v3368, %v3505
    %v3522 = vadd.f32 %v3440, %v3506
    %v3523 = vadd.f32 %v3443, %v3507
    %v3524 = vadd.f32 %v3448, %v3508
    %v3525 = vadd.f32 %v3451, %v3509
    %v3526 = vadd.f32 %v3456, %v3510
    %v3527 = vadd.f32 %v3459, %v3511
    %v3528 = vadd.f32 %v3464, %v3512
    %v3529 = vadd.f32 %v3467, %v3513
    %v3530 = vadd.f32 %v3472, %v3514
    %v3531 = vadd.f32 %v3475, %v3515
    %v3532 = vadd.f32 %v3480, %v3516
    %v3533 = vadd.f32 %v3483, %v3517
    %v3534 = vadd.f32 %v3488, %v3518
    %v3535 = vadd.f32 %v3491, %v3519
    %v3536 = vadd.f32 %v3496, %v3520
    %v3537 = vadd.f32 %v3499, %v3521
    %v3538 = vlaneseq
    %v3539 = vshrl.u32 %v3538, 7
    %v3540 = vsub.s32 5, %v3539
    %v3541 = vrot.slane %v158, %v3540
    %v3542 = vadd.f32 %v3522, %v3541
    %v3543 = vadd.f32 %v3523, %v3541
    %v3544 = vadd.f32 %v3524, %v3541
    %v3545 = vadd.f32 %v3525, %v3541
    %v3546 = vadd.f32 %v3526, %v3541
    %v3547 = vadd.f32 %v3527, %v3541
    %v3548 = vadd.f32 %v3528, %v3541
    %v3549 = vadd.f32 %v3529, %v3541
    %v3550 = vadd.f32 %v3530, %v3541
    %v3551 = vadd.f32 %v3531, %v3541
    %v3552 = vadd.f32 %v3532, %v3541
    %v3553 = vadd.f32 %v3533, %v3541
    %v3554 = vadd.f32 %v3534, %v3541
    %v3555 = vadd.f32 %v3535, %v3541
    %v3556 = vadd.f32 %v3536, %v3541
    %v3557 = vadd.f32 %v3537, %v3541
    %v3558 = vmax.f32 %v3542, 0.0
    %v3559 = vmax.f32 %v3543, 0.0
    %v3560 = vmax.f32 %v3544, 0.0
    %v3561 = vmax.f32 %v3545, 0.0
    %v3562 = vmax.f32 %v3546, 0.0
    %v3563 = vmax.f32 %v3547, 0.0
    %v3564 = vmax.f32 %v3548, 0.0
    %v3565 = vmax.f32 %v3549, 0.0
    %v3566 = vmax.f32 %v3550, 0.0
    %v3567 = vmax.f32 %v3551, 0.0
    %v3568 = vmax.f32 %v3552, 0.0
    %v3569 = vmax.f32 %v3553, 0.0
    %v3570 = vmax.f32 %v3554, 0.0
    %v3571 = vmax.f32 %v3555, 0.0
    %v3572 = vmax.f32 %v3556, 0.0
    %v3573 = vmax.f32 %v3557, 0.0
    %3590 = vrot.lane.b32.xlu0 %v3558, 64
    %v3591 = vpop.permute.xlu0 %3590
    %3592 = vrot.lane.b32.xlu0 %v3559, 64
    %v3593 = vpop.permute.xlu0 %3592
    %3594 = vrot.lane.b32.xlu0 %v3560, 64
    %v3595 = vpop.permute.xlu0 %3594
    %3596 = vrot.lane.b32.xlu0 %v3561, 64
    %v3597 = vpop.permute.xlu0 %3596
    %3598 = vrot.lane.b32.xlu0 %v3562, 64
    %v3599 = vpop.permute.xlu0 %3598
    %3600 = vrot.lane.b32.xlu0 %v3563, 64
    %v3601 = vpop.permute.xlu0 %3600
    %3602 = vrot.lane.b32.xlu0 %v3564, 64
    %v3603 = vpop.permute.xlu0 %3602
    %3604 = vrot.lane.b32.xlu0 %v3565, 64
    %v3605 = vpop.permute.xlu0 %3604
    %3606 = vrot.lane.b32.xlu0 %v3566, 64
    %v3607 = vpop.permute.xlu0 %3606
    %3608 = vrot.lane.b32.xlu0 %v3567, 64
    %v3609 = vpop.permute.xlu0 %3608
    %3610 = vrot.lane.b32.xlu0 %v3568, 64
    %v3611 = vpop.permute.xlu0 %3610
    %3612 = vrot.lane.b32.xlu0 %v3569, 64
    %v3613 = vpop.permute.xlu0 %3612
    %3614 = vrot.lane.b32.xlu0 %v3570, 64
    %v3615 = vpop.permute.xlu0 %3614
    %3616 = vrot.lane.b32.xlu0 %v3571, 64
    %v3617 = vpop.permute.xlu0 %3616
    %3618 = vrot.lane.b32.xlu0 %v3572, 64
    %v3619 = vpop.permute.xlu0 %3618
    %3620 = vrot.lane.b32.xlu0 %v3573, 64
    %v3621 = vpop.permute.xlu0 %3620
    %v3638 = vsel %vm203, %v3558, %v3591
    %v3639 = vsel %vm203, %v3559, %v3593
    %v3640 = vsel %vm203, %v3560, %v3595
    %v3641 = vsel %vm203, %v3561, %v3597
    %v3642 = vsel %vm203, %v3562, %v3599
    %v3643 = vsel %vm203, %v3563, %v3601
    %v3644 = vsel %vm203, %v3564, %v3603
    %v3645 = vsel %vm203, %v3565, %v3605
    %v3646 = vsel %vm203, %v3566, %v3607
    %v3647 = vsel %vm203, %v3567, %v3609
    %v3648 = vsel %vm203, %v3568, %v3611
    %v3649 = vsel %vm203, %v3569, %v3613
    %v3650 = vsel %vm203, %v3570, %v3615
    %v3651 = vsel %vm203, %v3571, %v3617
    %v3652 = vsel %vm203, %v3572, %v3619
    %v3653 = vsel %vm203, %v3573, %v3621
    %v3654 = vld [vmem:[%s11] sm:$0xff]
    %v3655 = vld [vmem:[%s11 + $0x8] sm:$0xff]
    %v3656 = vpack.c.bf16 %v3559, %v3558
    %v3657 = vpack.c.bf16 %v3561, %v3560
    %v3658 = vpack.c.bf16 %v3563, %v3562
    %v3659 = vpack.c.bf16 %v3565, %v3564
    %v3660 = vpack.c.bf16 %v3567, %v3566
    %v3661 = vpack.c.bf16 %v3569, %v3568
    %v3662 = vpack.c.bf16 %v3571, %v3570
    %v3663 = vpack.c.bf16 %v3573, %v3572
    %v3664 = vld [vmem:[%s7] sm:$0xf]
    %v3665 = vld [vmem:[%s7 + $0x4] sm:$0xf]
    %v3666 = vld [vmem:[%s7 + $0x8] sm:$0xf]
    %v3667 = vld [vmem:[%s7 + $0xc] sm:$0xf]
    %v3668 = vld [vmem:[%s7 + $0x10] sm:$0xf]
    %v3669 = vld [vmem:[%s7 + $0x14] sm:$0xf]
    %v3670 = vld [vmem:[%s7 + $0x18] sm:$0xf]
    %v3671 = vld [vmem:[%s7 + $0x1c] sm:$0xf]
    %v3672 = vlaneseq
    %v3673 = vshrl.u32 %v3672, 7
    %v3674 = vsub.s32 0, %v3673
    %v3675 = vrot.slane %v3654, %v3674
    %v3684 = vunpack.c.l.b16 %v3664
    %v3685 = vunpack.c.l.b16 %v3665
    %v3686 = vunpack.c.l.b16 %v3666
    %v3687 = vunpack.c.l.b16 %v3667
    %v3688 = vunpack.c.l.b16 %v3668
    %v3689 = vunpack.c.l.b16 %v3669
    %v3690 = vunpack.c.l.b16 %v3670
    %v3691 = vunpack.c.l.b16 %v3671
    %v3692 = vpack.c.b16 %v3685, %v3684
    %v3693 = vpack.c.b16 %v3687, %v3686
    %v3694 = vpack.c.b16 %v3689, %v3688
    %v3695 = vpack.c.b16 %v3691, %v3690
    %v3701 = vsel %vm203, %v3656, 0
    %v3704 = vsel %vm203, %v3657, 0
    %v3707 = vsel %vm203, %v3658, 0
    %v3710 = vsel %vm203, %v3659, 0
    %v3713 = vsel %vm203, %v3660, 0
    %v3716 = vsel %vm203, %v3661, 0
    %v3719 = vsel %vm203, %v3662, 0
    %v3722 = vsel %vm203, %v3663, 0
    %3724 = vmatprep.subr.bf16.mxu0 0
    %3725 = vmatpush1.bf16.msra.mxu0 0
    %3726 = vmatprep.subr.bf16.mxu0 0
    %3727 = vmatpush1.bf16.msra.mxu0 0
    %3728 = vmatprep.subr.bf16.mxu0 0
    %3729 = vmatpush1.bf16.msra.mxu0 0
    %3730 = vmatprep.subr.bf16.mxu0 0
    %3731 = vmatpush1.bf16.msra.mxu0 0
    %3732 = vmatprep.subr.bf16.mxu0 0
    %3733 = vmatpush1.bf16.msra.mxu0 %v3695
    %3734 = vmatprep.subr.bf16.mxu0 0
    %3735 = vmatpush1.bf16.msra.mxu0 %v3694
    %3736 = vmatprep.subr.bf16.mxu0 0
    %3737 = vmatpush1.bf16.msra.mxu0 %v3693
    %3738 = vmatprep.subr.bf16.mxu0 0
    %3739 = vmatpush1.bf16.msra.mxu0 %v3692
    %3740 = vmatprep.subr.bf16.mxu0 0
    %3741 = vmatpush2.bf16.msra.mxu0 0
    %3742 = vmatprep.subr.bf16.mxu0 0
    %3743 = vmatpush2.bf16.msra.mxu0 0
    %3744 = vmatprep.subr.bf16.mxu0 0
    %3745 = vmatpush2.bf16.msra.mxu0 0
    %3746 = vmatprep.subr.bf16.mxu0 0
    %3747 = vmatpush2.bf16.msra.mxu0 0
    %3748 = vmatprep.subr.bf16.mxu0 0
    %3749 = vmatpush2.bf16.msra.mxu0 0
    %3750 = vmatprep.subr.bf16.mxu0 0
    %3751 = vmatpush2.bf16.msra.mxu0 0
    %3752 = vmatprep.subr.bf16.mxu0 0
    %3753 = vmatpush2.bf16.msra.mxu0 0
    %3754 = vmatprep.subr.bf16.mxu0 0
    %3755 = vmatpush2.bf16.msra.mxu0 0
    %3756 = vmatprep.mubr.bf16.mxu0 0
    %3757 = vmatmul.mubr.bf16.gmra.mxu0 %v3701
    %v3758 = vpop.f32.mrf.mxu0
    %v3759 = vadd.f32 %v3675, %v3758
    %v3760 = vpop.f32.mrf.mxu0
    %v3761 = vpop.f32.mrf.mxu0
    %v3762 = vadd.f32 %v3675, %v3761
    %v3763 = vpop.f32.mrf.mxu0
    %3764 = vmatprep.mubr.bf16.mxu0 0
    %3765 = vmatmul.mubr.bf16.gmra.mxu0 %v3704
    %v3766 = vpop.f32.mrf.mxu0
    %v3767 = vadd.f32 %v3675, %v3766
    %v3768 = vpop.f32.mrf.mxu0
    %v3769 = vpop.f32.mrf.mxu0
    %v3770 = vadd.f32 %v3675, %v3769
    %v3771 = vpop.f32.mrf.mxu0
    %3772 = vmatprep.mubr.bf16.mxu0 0
    %3773 = vmatmul.mubr.bf16.gmra.mxu0 %v3707
    %v3774 = vpop.f32.mrf.mxu0
    %v3775 = vadd.f32 %v3675, %v3774
    %v3776 = vpop.f32.mrf.mxu0
    %v3777 = vpop.f32.mrf.mxu0
    %v3778 = vadd.f32 %v3675, %v3777
    %v3779 = vpop.f32.mrf.mxu0
    %3780 = vmatprep.mubr.bf16.mxu0 0
    %3781 = vmatmul.mubr.bf16.gmra.mxu0 %v3710
    %v3782 = vpop.f32.mrf.mxu0
    %v3783 = vadd.f32 %v3675, %v3782
    %v3784 = vpop.f32.mrf.mxu0
    %v3785 = vpop.f32.mrf.mxu0
    %v3786 = vadd.f32 %v3675, %v3785
    %v3787 = vpop.f32.mrf.mxu0
    %3788 = vmatprep.mubr.bf16.mxu0 0
    %3789 = vmatmul.mubr.bf16.gmra.mxu0 %v3713
    %v3790 = vpop.f32.mrf.mxu0
    %v3791 = vadd.f32 %v3675, %v3790
    %v3792 = vpop.f32.mrf.mxu0
    %v3793 = vpop.f32.mrf.mxu0
    %v3794 = vadd.f32 %v3675, %v3793
    %v3795 = vpop.f32.mrf.mxu0
    %3796 = vmatprep.mubr.bf16.mxu0 0
    %3797 = vmatmul.mubr.bf16.gmra.mxu0 %v3716
    %v3798 = vpop.f32.mrf.mxu0
    %v3799 = vadd.f32 %v3675, %v3798
    %v3800 = vpop.f32.mrf.mxu0
    %v3801 = vpop.f32.mrf.mxu0
    %v3802 = vadd.f32 %v3675, %v3801
    %v3803 = vpop.f32.mrf.mxu0
    %3804 = vmatprep.mubr.bf16.mxu0 0
    %3805 = vmatmul.mubr.bf16.gmra.mxu0 %v3719
    %v3806 = vpop.f32.mrf.mxu0
    %v3807 = vadd.f32 %v3675, %v3806
    %v3808 = vpop.f32.mrf.mxu0
    %v3809 = vpop.f32.mrf.mxu0
    %v3810 = vadd.f32 %v3675, %v3809
    %v3811 = vpop.f32.mrf.mxu0
    %3812 = vmatprep.mubr.bf16.mxu0 0
    %3813 = vmatmul.mubr.bf16.gmra.mxu0 %v3722
    %v3814 = vpop.f32.mrf.mxu0
    %v3815 = vadd.f32 %v3675, %v3814
    %v3816 = vpop.f32.mrf.mxu0
    %v3817 = vpop.f32.mrf.mxu0
    %v3818 = vadd.f32 %v3675, %v3817
    %v3819 = vpop.f32.mrf.mxu0
    %3820 = vdwg.mxu0
    %v3821 = vmax.f32 %v3759, 0.0
    %v3822 = vmax.f32 %v3762, 0.0
    %v3823 = vmax.f32 %v3767, 0.0
    %v3824 = vmax.f32 %v3770, 0.0
    %v3825 = vmax.f32 %v3775, 0.0
    %v3826 = vmax.f32 %v3778, 0.0
    %v3827 = vmax.f32 %v3783, 0.0
    %v3828 = vmax.f32 %v3786, 0.0
    %v3829 = vmax.f32 %v3791, 0.0
    %v3830 = vmax.f32 %v3794, 0.0
    %v3831 = vmax.f32 %v3799, 0.0
    %v3832 = vmax.f32 %v3802, 0.0
    %v3833 = vmax.f32 %v3807, 0.0
    %v3834 = vmax.f32 %v3810, 0.0
    %v3835 = vmax.f32 %v3815, 0.0
    %v3836 = vmax.f32 %v3818, 0.0
    %v3837 = vpack.c.bf16 %v3822, %v3821
    %v3838 = vpack.c.bf16 %v3824, %v3823
    %v3839 = vpack.c.bf16 %v3826, %v3825
    %v3840 = vpack.c.bf16 %v3828, %v3827
    %v3841 = vpack.c.bf16 %v3830, %v3829
    %v3842 = vpack.c.bf16 %v3832, %v3831
    %v3843 = vpack.c.bf16 %v3834, %v3833
    %v3844 = vpack.c.bf16 %v3836, %v3835
    %3845 = vmatprep.subr.bf16.mxu0 0
    %3846 = vmatpush1.bf16.msra.mxu0 %v3844
    %3847 = vmatprep.subr.bf16.mxu0 0
    %3848 = vmatpush1.bf16.msra.mxu0 %v3843
    %3849 = vmatprep.subr.bf16.mxu0 0
    %3850 = vmatpush1.bf16.msra.mxu0 %v3842
    %3851 = vmatprep.subr.bf16.mxu0 0
    %3852 = vmatpush1.bf16.msra.mxu0 %v3841
    %3853 = vmatprep.subr.bf16.mxu0 0
    %3854 = vmatpush1.bf16.msra.mxu0 %v3840
    %3855 = vmatprep.subr.bf16.mxu0 0
    %3856 = vmatpush1.bf16.msra.mxu0 %v3839
    %3857 = vmatprep.subr.bf16.mxu0 0
    %3858 = vmatpush1.bf16.msra.mxu0 %v3838
    %3859 = vmatprep.subr.bf16.mxu0 0
    %3860 = vmatpush1.bf16.msra.mxu0 %v3837
    %3861 = vmatprep.subr.bf16.mxu0 0
    %3862 = vmatpush2.bf16.msra.mxu0 0
    %3863 = vmatprep.subr.bf16.mxu0 0
    %3864 = vmatpush2.bf16.msra.mxu0 0
    %3865 = vmatprep.subr.bf16.mxu0 0
    %3866 = vmatpush2.bf16.msra.mxu0 0
    %3867 = vmatprep.subr.bf16.mxu0 0
    %3868 = vmatpush2.bf16.msra.mxu0 0
    %3869 = vmatprep.subr.bf16.mxu0 0
    %3870 = vmatpush2.bf16.msra.mxu0 0
    %3871 = vmatprep.subr.bf16.mxu0 0
    %3872 = vmatpush2.bf16.msra.mxu0 0
    %3873 = vmatprep.subr.bf16.mxu0 0
    %3874 = vmatpush2.bf16.msra.mxu0 0
    %3875 = vmatprep.subr.bf16.mxu0 0
    %3876 = vmatpush2.bf16.msra.mxu0 0
    %3877 = vmatprep.mubr.bf16.mxu0 0
    %3878 = vmatmul.mubr.bf16.gmra.mxu0 %v397
    %v3879 = vpop.f32.mrf.mxu0
    %v3880 = vadd.f32 0.0, %v3879
    %v3881 = vpop.f32.mrf.mxu0
    %v3882 = vpop.f32.mrf.mxu0
    %v3883 = vadd.f32 0.0, %v3882
    %v3884 = vpop.f32.mrf.mxu0
    %3885 = vmatprep.mubr.bf16.mxu0 0
    %3886 = vmatmul.mubr.bf16.gmra.mxu0 %v398
    %v3887 = vpop.f32.mrf.mxu0
    %v3888 = vadd.f32 0.0, %v3887
    %v3889 = vpop.f32.mrf.mxu0
    %v3890 = vpop.f32.mrf.mxu0
    %v3891 = vadd.f32 0.0, %v3890
    %v3892 = vpop.f32.mrf.mxu0
    %3893 = vmatprep.mubr.bf16.mxu0 0
    %3894 = vmatmul.mubr.bf16.gmra.mxu0 %v399
    %v3895 = vpop.f32.mrf.mxu0
    %v3896 = vadd.f32 0.0, %v3895
    %v3897 = vpop.f32.mrf.mxu0
    %v3898 = vpop.f32.mrf.mxu0
    %v3899 = vadd.f32 0.0, %v3898
    %v3900 = vpop.f32.mrf.mxu0
    %3901 = vmatprep.mubr.bf16.mxu0 0
    %3902 = vmatmul.mubr.bf16.gmra.mxu0 %v400
    %v3903 = vpop.f32.mrf.mxu0
    %v3904 = vadd.f32 0.0, %v3903
    %v3905 = vpop.f32.mrf.mxu0
    %v3906 = vpop.f32.mrf.mxu0
    %v3907 = vadd.f32 0.0, %v3906
    %v3908 = vpop.f32.mrf.mxu0
    %3909 = vmatprep.mubr.bf16.mxu0 0
    %3910 = vmatmul.mubr.bf16.gmra.mxu0 %v401
    %v3911 = vpop.f32.mrf.mxu0
    %v3912 = vadd.f32 0.0, %v3911
    %v3913 = vpop.f32.mrf.mxu0
    %v3914 = vpop.f32.mrf.mxu0
    %v3915 = vadd.f32 0.0, %v3914
    %v3916 = vpop.f32.mrf.mxu0
    %3917 = vmatprep.mubr.bf16.mxu0 0
    %3918 = vmatmul.mubr.bf16.gmra.mxu0 %v402
    %v3919 = vpop.f32.mrf.mxu0
    %v3920 = vadd.f32 0.0, %v3919
    %v3921 = vpop.f32.mrf.mxu0
    %v3922 = vpop.f32.mrf.mxu0
    %v3923 = vadd.f32 0.0, %v3922
    %v3924 = vpop.f32.mrf.mxu0
    %3925 = vmatprep.mubr.bf16.mxu0 0
    %3926 = vmatmul.mubr.bf16.gmra.mxu0 %v403
    %v3927 = vpop.f32.mrf.mxu0
    %v3928 = vadd.f32 0.0, %v3927
    %v3929 = vpop.f32.mrf.mxu0
    %v3930 = vpop.f32.mrf.mxu0
    %v3931 = vadd.f32 0.0, %v3930
    %v3932 = vpop.f32.mrf.mxu0
    %3933 = vmatprep.mubr.bf16.mxu0 0
    %3934 = vmatmul.mubr.bf16.gmra.mxu0 %v404
    %v3935 = vpop.f32.mrf.mxu0
    %v3936 = vadd.f32 0.0, %v3935
    %v3937 = vpop.f32.mrf.mxu0
    %v3938 = vpop.f32.mrf.mxu0
    %v3939 = vadd.f32 0.0, %v3938
    %v3940 = vpop.f32.mrf.mxu0
    %3941 = vdwg.mxu0
    %v3942 = vpack.c.bf16 %v3883, %v3880
    %v3943 = vpack.c.bf16 %v3891, %v3888
    %v3944 = vpack.c.bf16 %v3899, %v3896
    %v3945 = vpack.c.bf16 %v3907, %v3904
    %v3946 = vpack.c.bf16 %v3915, %v3912
    %v3947 = vpack.c.bf16 %v3923, %v3920
    %v3948 = vpack.c.bf16 %v3931, %v3928
    %v3949 = vpack.c.bf16 %v3939, %v3936
    %v3950 = vld [vmem:[%s8] sm:$0xf]
    %v3951 = vld [vmem:[%s8 + $0x4] sm:$0xf]
    %v3952 = vld [vmem:[%s8 + $0x8] sm:$0xf]
    %v3953 = vld [vmem:[%s8 + $0xc] sm:$0xf]
    %v3954 = vld [vmem:[%s8 + $0x10] sm:$0xf]
    %v3955 = vld [vmem:[%s8 + $0x14] sm:$0xf]
    %3956 = vmatprep.subr.bf16.mxu0 0
    %3957 = vmatpush1.bf16.msra.mxu0 %v3844
    %3958 = vmatprep.subr.bf16.mxu0 0
    %3959 = vmatpush1.bf16.msra.mxu0 %v3843
    %3960 = vmatprep.subr.bf16.mxu0 0
    %3961 = vmatpush1.bf16.msra.mxu0 %v3842
    %3962 = vmatprep.subr.bf16.mxu0 0
    %3963 = vmatpush1.bf16.msra.mxu0 %v3841
    %3964 = vmatprep.subr.bf16.mxu0 0
    %3965 = vmatpush1.bf16.msra.mxu0 %v3840
    %3966 = vmatprep.subr.bf16.mxu0 0
    %3967 = vmatpush1.bf16.msra.mxu0 %v3839
    %3968 = vmatprep.subr.bf16.mxu0 0
    %3969 = vmatpush1.bf16.msra.mxu0 %v3838
    %3970 = vmatprep.subr.bf16.mxu0 0
    %3971 = vmatpush1.bf16.msra.mxu0 %v3837
    %3972 = vmatprep.subr.bf16.mxu0 0
    %3973 = vmatpush2.bf16.msra.mxu0 0
    %3974 = vmatprep.subr.bf16.mxu0 0
    %3975 = vmatpush2.bf16.msra.mxu0 0
    %3976 = vmatprep.subr.bf16.mxu0 0
    %3977 = vmatpush2.bf16.msra.mxu0 0
    %3978 = vmatprep.subr.bf16.mxu0 0
    %3979 = vmatpush2.bf16.msra.mxu0 0
    %3980 = vmatprep.subr.bf16.mxu0 0
    %3981 = vmatpush2.bf16.msra.mxu0 0
    %3982 = vmatprep.subr.bf16.mxu0 0
    %3983 = vmatpush2.bf16.msra.mxu0 0
    %3984 = vmatprep.subr.bf16.mxu0 0
    %3985 = vmatpush2.bf16.msra.mxu0 0
    %3986 = vmatprep.subr.bf16.mxu0 0
    %3987 = vmatpush2.bf16.msra.mxu0 0
    %3988 = vmatprep.mubr.bf16.mxu0 0
    %3989 = vmatmul.mubr.bf16.gmra.mxu0 %v569
    %v3990 = vpop.f32.mrf.mxu0
    %v3991 = vadd.f32 0.0, %v3990
    %v3992 = vpop.f32.mrf.mxu0
    %v3993 = vpop.f32.mrf.mxu0
    %v3994 = vadd.f32 0.0, %v3993
    %v3995 = vpop.f32.mrf.mxu0
    %3996 = vmatprep.mubr.bf16.mxu0 0
    %3997 = vmatmul.mubr.bf16.gmra.mxu0 %v570
    %v3998 = vpop.f32.mrf.mxu0
    %v3999 = vadd.f32 0.0, %v3998
    %v4000 = vpop.f32.mrf.mxu0
    %v4001 = vpop.f32.mrf.mxu0
    %v4002 = vadd.f32 0.0, %v4001
    %v4003 = vpop.f32.mrf.mxu0
    %4004 = vmatprep.mubr.bf16.mxu0 0
    %4005 = vmatmul.mubr.bf16.gmra.mxu0 %v571
    %v4006 = vpop.f32.mrf.mxu0
    %v4007 = vadd.f32 0.0, %v4006
    %v4008 = vpop.f32.mrf.mxu0
    %v4009 = vpop.f32.mrf.mxu0
    %v4010 = vadd.f32 0.0, %v4009
    %v4011 = vpop.f32.mrf.mxu0
    %4012 = vmatprep.mubr.bf16.mxu0 0
    %4013 = vmatmul.mubr.bf16.gmra.mxu0 %v572
    %v4014 = vpop.f32.mrf.mxu0
    %v4015 = vadd.f32 0.0, %v4014
    %v4016 = vpop.f32.mrf.mxu0
    %v4017 = vpop.f32.mrf.mxu0
    %v4018 = vadd.f32 0.0, %v4017
    %v4019 = vpop.f32.mrf.mxu0
    %4020 = vmatprep.mubr.bf16.mxu0 0
    %4021 = vmatmul.mubr.bf16.gmra.mxu0 %v573
    %v4022 = vpop.f32.mrf.mxu0
    %v4023 = vadd.f32 0.0, %v4022
    %v4024 = vpop.f32.mrf.mxu0
    %v4025 = vpop.f32.mrf.mxu0
    %v4026 = vadd.f32 0.0, %v4025
    %v4027 = vpop.f32.mrf.mxu0
    %4028 = vmatprep.mubr.bf16.mxu0 0
    %4029 = vmatmul.mubr.bf16.gmra.mxu0 %v574
    %v4030 = vpop.f32.mrf.mxu0
    %v4031 = vadd.f32 0.0, %v4030
    %v4032 = vpop.f32.mrf.mxu0
    %v4033 = vpop.f32.mrf.mxu0
    %v4034 = vadd.f32 0.0, %v4033
    %v4035 = vpop.f32.mrf.mxu0
    %4036 = vmatprep.mubr.bf16.mxu0 0
    %4037 = vmatmul.mubr.bf16.gmra.mxu0 %v575
    %v4038 = vpop.f32.mrf.mxu0
    %v4039 = vadd.f32 0.0, %v4038
    %v4040 = vpop.f32.mrf.mxu0
    %v4041 = vpop.f32.mrf.mxu0
    %v4042 = vadd.f32 0.0, %v4041
    %v4043 = vpop.f32.mrf.mxu0
    %4044 = vmatprep.mubr.bf16.mxu0 0
    %4045 = vmatmul.mubr.bf16.gmra.mxu0 %v576
    %v4046 = vpop.f32.mrf.mxu0
    %v4047 = vadd.f32 0.0, %v4046
    %v4048 = vpop.f32.mrf.mxu0
    %v4049 = vpop.f32.mrf.mxu0
    %v4050 = vadd.f32 0.0, %v4049
    %v4051 = vpop.f32.mrf.mxu0
    %4052 = vdwg.mxu0
    %v4053 = vpack.c.bf16 %v3994, %v3991
    %v4054 = vpack.c.bf16 %v4002, %v3999
    %v4055 = vpack.c.bf16 %v4010, %v4007
    %v4056 = vpack.c.bf16 %v4018, %v4015
    %v4057 = vpack.c.bf16 %v4026, %v4023
    %v4058 = vpack.c.bf16 %v4034, %v4031
    %v4059 = vpack.c.bf16 %v4042, %v4039
    %v4060 = vpack.c.bf16 %v4050, %v4047
    %s4061 = scalar_lea.vmem %s8, 24
    %v4062 = vld [vmem:[%s4061] sm:$0xf]
    %v4063 = vld [vmem:[%s4061 + $0x4] sm:$0xf]
    %v4064 = vld [vmem:[%s4061 + $0x8] sm:$0xf]
    %v4065 = vld [vmem:[%s4061 + $0xc] sm:$0xf]
    %v4066 = vld [vmem:[%s4061 + $0x10] sm:$0xf]
    %v4067 = vld [vmem:[%s4061 + $0x14] sm:$0xf]
    %v4074 = vunpack.c.l.b16 %v4062
    %v4075 = vunpack.c.l.b16 %v4063
    %v4076 = vunpack.c.l.b16 %v4064
    %v4077 = vunpack.c.l.b16 %v4065
    %v4078 = vunpack.c.l.b16 %v4066
    %v4079 = vunpack.c.l.b16 %v4067
    %v4080 = vpack.c.b16 %v4075, %v4074
    %v4081 = vpack.c.b16 %v4077, %v4076
    %v4082 = vpack.c.b16 %v4079, %v4078
    %vm4086 = vcmask 392192
    %v4088 = vsel %vm4086, %v4053, 0
    %v4091 = vsel %vm4086, %v4054, 0
    %v4094 = vsel %vm4086, %v4055, 0
    %v4097 = vsel %vm4086, %v4056, 0
    %v4100 = vsel %vm4086, %v4057, 0
    %v4103 = vsel %vm4086, %v4058, 0
    %v4106 = vsel %vm4086, %v4059, 0
    %v4109 = vsel %vm4086, %v4060, 0
    %4111 = vmatprep.subr.bf16.mxu0 0
    %4112 = vmatpush1.bf16.msra.mxu0 0
    %4113 = vmatprep.subr.bf16.mxu0 0
    %4114 = vmatpush1.bf16.msra.mxu0 0
    %4115 = vmatprep.subr.bf16.mxu0 0
    %4116 = vmatpush1.bf16.msra.mxu0 0
    %4117 = vmatprep.subr.bf16.mxu0 0
    %4118 = vmatpush1.bf16.msra.mxu0 0
    %4119 = vmatprep.subr.bf16.mxu0 0
    %4120 = vmatpush1.bf16.msra.mxu0 0
    %4121 = vmatprep.subr.bf16.mxu0 0
    %4122 = vmatpush1.bf16.msra.mxu0 %v4082
    %4123 = vmatprep.subr.bf16.mxu0 0
    %4124 = vmatpush1.bf16.msra.mxu0 %v4081
    %4125 = vmatprep.subr.bf16.mxu0 0
    %4126 = vmatpush1.bf16.msra.mxu0 %v4080
    %4127 = vmatprep.subr.bf16.mxu0 0
    %4128 = vmatpush2.bf16.msra.mxu0 0
    %4129 = vmatprep.subr.bf16.mxu0 0
    %4130 = vmatpush2.bf16.msra.mxu0 0
    %4131 = vmatprep.subr.bf16.mxu0 0
    %4132 = vmatpush2.bf16.msra.mxu0 0
    %4133 = vmatprep.subr.bf16.mxu0 0
    %4134 = vmatpush2.bf16.msra.mxu0 0
    %4135 = vmatprep.subr.bf16.mxu0 0
    %4136 = vmatpush2.bf16.msra.mxu0 0
    %4137 = vmatprep.subr.bf16.mxu0 0
    %4138 = vmatpush2.bf16.msra.mxu0 0
    %4139 = vmatprep.subr.bf16.mxu0 0
    %4140 = vmatpush2.bf16.msra.mxu0 0
    %4141 = vmatprep.subr.bf16.mxu0 0
    %4142 = vmatpush2.bf16.msra.mxu0 0
    %4143 = vmatprep.mubr.bf16.mxu0 0
    %4144 = vmatmul.mubr.bf16.gmra.mxu0 %v4088
    %v4145 = vpop.f32.mrf.mxu0
    %v4146 = vadd.f32 0.0, %v4145
    %v4147 = vpop.f32.mrf.mxu0
    %v4148 = vpop.f32.mrf.mxu0
    %v4149 = vadd.f32 0.0, %v4148
    %v4150 = vpop.f32.mrf.mxu0
    %4151 = vmatprep.mubr.bf16.mxu0 0
    %4152 = vmatmul.mubr.bf16.gmra.mxu0 %v4091
    %v4153 = vpop.f32.mrf.mxu0
    %v4154 = vadd.f32 0.0, %v4153
    %v4155 = vpop.f32.mrf.mxu0
    %v4156 = vpop.f32.mrf.mxu0
    %v4157 = vadd.f32 0.0, %v4156
    %v4158 = vpop.f32.mrf.mxu0
    %4159 = vmatprep.mubr.bf16.mxu0 0
    %4160 = vmatmul.mubr.bf16.gmra.mxu0 %v4094
    %v4161 = vpop.f32.mrf.mxu0
    %v4162 = vadd.f32 0.0, %v4161
    %v4163 = vpop.f32.mrf.mxu0
    %v4164 = vpop.f32.mrf.mxu0
    %v4165 = vadd.f32 0.0, %v4164
    %v4166 = vpop.f32.mrf.mxu0
    %4167 = vmatprep.mubr.bf16.mxu0 0
    %4168 = vmatmul.mubr.bf16.gmra.mxu0 %v4097
    %v4169 = vpop.f32.mrf.mxu0
    %v4170 = vadd.f32 0.0, %v4169
    %v4171 = vpop.f32.mrf.mxu0
    %v4172 = vpop.f32.mrf.mxu0
    %v4173 = vadd.f32 0.0, %v4172
    %v4174 = vpop.f32.mrf.mxu0
    %4175 = vmatprep.mubr.bf16.mxu0 0
    %4176 = vmatmul.mubr.bf16.gmra.mxu0 %v4100
    %v4177 = vpop.f32.mrf.mxu0
    %v4178 = vadd.f32 0.0, %v4177
    %v4179 = vpop.f32.mrf.mxu0
    %v4180 = vpop.f32.mrf.mxu0
    %v4181 = vadd.f32 0.0, %v4180
    %v4182 = vpop.f32.mrf.mxu0
    %4183 = vmatprep.mubr.bf16.mxu0 0
    %4184 = vmatmul.mubr.bf16.gmra.mxu0 %v4103
    %v4185 = vpop.f32.mrf.mxu0
    %v4186 = vadd.f32 0.0, %v4185
    %v4187 = vpop.f32.mrf.mxu0
    %v4188 = vpop.f32.mrf.mxu0
    %v4189 = vadd.f32 0.0, %v4188
    %v4190 = vpop.f32.mrf.mxu0
    %4191 = vmatprep.mubr.bf16.mxu0 0
    %4192 = vmatmul.mubr.bf16.gmra.mxu0 %v4106
    %v4193 = vpop.f32.mrf.mxu0
    %v4194 = vadd.f32 0.0, %v4193
    %v4195 = vpop.f32.mrf.mxu0
    %v4196 = vpop.f32.mrf.mxu0
    %v4197 = vadd.f32 0.0, %v4196
    %v4198 = vpop.f32.mrf.mxu0
    %4199 = vmatprep.mubr.bf16.mxu0 0
    %4200 = vmatmul.mubr.bf16.gmra.mxu0 %v4109
    %v4201 = vpop.f32.mrf.mxu0
    %v4202 = vadd.f32 0.0, %v4201
    %v4203 = vpop.f32.mrf.mxu0
    %v4204 = vpop.f32.mrf.mxu0
    %v4205 = vadd.f32 0.0, %v4204
    %v4206 = vpop.f32.mrf.mxu0
    %4207 = vdwg.mxu0
    %v4214 = vunpack.c.l.b16 %v3950
    %v4215 = vunpack.c.l.b16 %v3951
    %v4216 = vunpack.c.l.b16 %v3952
    %v4217 = vunpack.c.l.b16 %v3953
    %v4218 = vunpack.c.l.b16 %v3954
    %v4219 = vunpack.c.l.b16 %v3955
    %v4220 = vpack.c.b16 %v4215, %v4214
    %v4221 = vpack.c.b16 %v4217, %v4216
    %v4222 = vpack.c.b16 %v4219, %v4218
    %v4227 = vsel %vm4086, %v3942, 0
    %v4230 = vsel %vm4086, %v3943, 0
    %v4233 = vsel %vm4086, %v3944, 0
    %v4236 = vsel %vm4086, %v3945, 0
    %v4239 = vsel %vm4086, %v3946, 0
    %v4242 = vsel %vm4086, %v3947, 0
    %v4245 = vsel %vm4086, %v3948, 0
    %v4248 = vsel %vm4086, %v3949, 0
    %4250 = vmatprep.subr.bf16.mxu0 0
    %4251 = vmatpush1.bf16.msra.mxu0 0
    %4252 = vmatprep.subr.bf16.mxu0 0
    %4253 = vmatpush1.bf16.msra.mxu0 0
    %4254 = vmatprep.subr.bf16.mxu0 0
    %4255 = vmatpush1.bf16.msra.mxu0 0
    %4256 = vmatprep.subr.bf16.mxu0 0
    %4257 = vmatpush1.bf16.msra.mxu0 0
    %4258 = vmatprep.subr.bf16.mxu0 0
    %4259 = vmatpush1.bf16.msra.mxu0 0
    %4260 = vmatprep.subr.bf16.mxu0 0
    %4261 = vmatpush1.bf16.msra.mxu0 %v4222
    %4262 = vmatprep.subr.bf16.mxu0 0
    %4263 = vmatpush1.bf16.msra.mxu0 %v4221
    %4264 = vmatprep.subr.bf16.mxu0 0
    %4265 = vmatpush1.bf16.msra.mxu0 %v4220
    %4266 = vmatprep.subr.bf16.mxu0 0
    %4267 = vmatpush2.bf16.msra.mxu0 0
    %4268 = vmatprep.subr.bf16.mxu0 0
    %4269 = vmatpush2.bf16.msra.mxu0 0
    %4270 = vmatprep.subr.bf16.mxu0 0
    %4271 = vmatpush2.bf16.msra.mxu0 0
    %4272 = vmatprep.subr.bf16.mxu0 0
    %4273 = vmatpush2.bf16.msra.mxu0 0
    %4274 = vmatprep.subr.bf16.mxu0 0
    %4275 = vmatpush2.bf16.msra.mxu0 0
    %4276 = vmatprep.subr.bf16.mxu0 0
    %4277 = vmatpush2.bf16.msra.mxu0 0
    %4278 = vmatprep.subr.bf16.mxu0 0
    %4279 = vmatpush2.bf16.msra.mxu0 0
    %4280 = vmatprep.subr.bf16.mxu0 0
    %4281 = vmatpush2.bf16.msra.mxu0 0
    %4282 = vmatprep.mubr.bf16.mxu0 0
    %4283 = vmatmul.mubr.bf16.gmra.mxu0 %v4227
    %v4284 = vpop.f32.mrf.mxu0
    %v4285 = vadd.f32 %v4146, %v4284
    %v4286 = vpop.f32.mrf.mxu0
    %v4287 = vpop.f32.mrf.mxu0
    %v4288 = vadd.f32 %v4149, %v4287
    %v4289 = vpop.f32.mrf.mxu0
    %4290 = vmatprep.mubr.bf16.mxu0 0
    %4291 = vmatmul.mubr.bf16.gmra.mxu0 %v4230
    %v4292 = vpop.f32.mrf.mxu0
    %v4293 = vadd.f32 %v4154, %v4292
    %v4294 = vpop.f32.mrf.mxu0
    %v4295 = vpop.f32.mrf.mxu0
    %v4296 = vadd.f32 %v4157, %v4295
    %v4297 = vpop.f32.mrf.mxu0
    %4298 = vmatprep.mubr.bf16.mxu0 0
    %4299 = vmatmul.mubr.bf16.gmra.mxu0 %v4233
    %v4300 = vpop.f32.mrf.mxu0
    %v4301 = vadd.f32 %v4162, %v4300
    %v4302 = vpop.f32.mrf.mxu0
    %v4303 = vpop.f32.mrf.mxu0
    %v4304 = vadd.f32 %v4165, %v4303
    %v4305 = vpop.f32.mrf.mxu0
    %4306 = vmatprep.mubr.bf16.mxu0 0
    %4307 = vmatmul.mubr.bf16.gmra.mxu0 %v4236
    %v4308 = vpop.f32.mrf.mxu0
    %v4309 = vadd.f32 %v4170, %v4308
    %v4310 = vpop.f32.mrf.mxu0
    %v4311 = vpop.f32.mrf.mxu0
    %v4312 = vadd.f32 %v4173, %v4311
    %v4313 = vpop.f32.mrf.mxu0
    %4314 = vmatprep.mubr.bf16.mxu0 0
    %4315 = vmatmul.mubr.bf16.gmra.mxu0 %v4239
    %v4316 = vpop.f32.mrf.mxu0
    %v4317 = vadd.f32 %v4178, %v4316
    %v4318 = vpop.f32.mrf.mxu0
    %v4319 = vpop.f32.mrf.mxu0
    %v4320 = vadd.f32 %v4181, %v4319
    %v4321 = vpop.f32.mrf.mxu0
    %4322 = vmatprep.mubr.bf16.mxu0 0
    %4323 = vmatmul.mubr.bf16.gmra.mxu0 %v4242
    %v4324 = vpop.f32.mrf.mxu0
    %v4325 = vadd.f32 %v4186, %v4324
    %v4326 = vpop.f32.mrf.mxu0
    %v4327 = vpop.f32.mrf.mxu0
    %v4328 = vadd.f32 %v4189, %v4327
    %v4329 = vpop.f32.mrf.mxu0
    %4330 = vmatprep.mubr.bf16.mxu0 0
    %4331 = vmatmul.mubr.bf16.gmra.mxu0 %v4245
    %v4332 = vpop.f32.mrf.mxu0
    %v4333 = vadd.f32 %v4194, %v4332
    %v4334 = vpop.f32.mrf.mxu0
    %v4335 = vpop.f32.mrf.mxu0
    %v4336 = vadd.f32 %v4197, %v4335
    %v4337 = vpop.f32.mrf.mxu0
    %4338 = vmatprep.mubr.bf16.mxu0 0
    %4339 = vmatmul.mubr.bf16.gmra.mxu0 %v4248
    %v4340 = vpop.f32.mrf.mxu0
    %v4341 = vadd.f32 %v4202, %v4340
    %v4342 = vpop.f32.mrf.mxu0
    %v4343 = vpop.f32.mrf.mxu0
    %v4344 = vadd.f32 %v4205, %v4343
    %v4345 = vpop.f32.mrf.mxu0
    %4346 = vdwg.mxu0
    %4347 = vmatprep.subr.bf16.mxu0 0
    %4348 = vmatpush1.bf16.msra.mxu0 %v3844
    %4349 = vmatprep.subr.bf16.mxu0 0
    %4350 = vmatpush1.bf16.msra.mxu0 %v3843
    %4351 = vmatprep.subr.bf16.mxu0 0
    %4352 = vmatpush1.bf16.msra.mxu0 %v3842
    %4353 = vmatprep.subr.bf16.mxu0 0
    %4354 = vmatpush1.bf16.msra.mxu0 %v3841
    %4355 = vmatprep.subr.bf16.mxu0 0
    %4356 = vmatpush1.bf16.msra.mxu0 %v3840
    %4357 = vmatprep.subr.bf16.mxu0 0
    %4358 = vmatpush1.bf16.msra.mxu0 %v3839
    %4359 = vmatprep.subr.bf16.mxu0 0
    %4360 = vmatpush1.bf16.msra.mxu0 %v3838
    %4361 = vmatprep.subr.bf16.mxu0 0
    %4362 = vmatpush1.bf16.msra.mxu0 %v3837
    %4363 = vmatprep.subr.bf16.mxu0 0
    %4364 = vmatpush2.bf16.msra.mxu0 0
    %4365 = vmatprep.subr.bf16.mxu0 0
    %4366 = vmatpush2.bf16.msra.mxu0 0
    %4367 = vmatprep.subr.bf16.mxu0 0
    %4368 = vmatpush2.bf16.msra.mxu0 0
    %4369 = vmatprep.subr.bf16.mxu0 0
    %4370 = vmatpush2.bf16.msra.mxu0 0
    %4371 = vmatprep.subr.bf16.mxu0 0
    %4372 = vmatpush2.bf16.msra.mxu0 0
    %4373 = vmatprep.subr.bf16.mxu0 0
    %4374 = vmatpush2.bf16.msra.mxu0 0
    %4375 = vmatprep.subr.bf16.mxu0 0
    %4376 = vmatpush2.bf16.msra.mxu0 0
    %4377 = vmatprep.subr.bf16.mxu0 0
    %4378 = vmatpush2.bf16.msra.mxu0 0
    %4379 = vmatprep.mubr.bf16.mxu0 0
    %4380 = vmatmul.mubr.bf16.gmra.mxu0 %v997
    %v4381 = vpop.f32.mrf.mxu0
    %v4382 = vadd.f32 0.0, %v4381
    %v4383 = vpop.f32.mrf.mxu0
    %v4384 = vpop.f32.mrf.mxu0
    %v4385 = vadd.f32 0.0, %v4384
    %v4386 = vpop.f32.mrf.mxu0
    %4387 = vmatprep.mubr.bf16.mxu0 0
    %4388 = vmatmul.mubr.bf16.gmra.mxu0 %v998
    %v4389 = vpop.f32.mrf.mxu0
    %v4390 = vadd.f32 0.0, %v4389
    %v4391 = vpop.f32.mrf.mxu0
    %v4392 = vpop.f32.mrf.mxu0
    %v4393 = vadd.f32 0.0, %v4392
    %v4394 = vpop.f32.mrf.mxu0
    %4395 = vmatprep.mubr.bf16.mxu0 0
    %4396 = vmatmul.mubr.bf16.gmra.mxu0 %v999
    %v4397 = vpop.f32.mrf.mxu0
    %v4398 = vadd.f32 0.0, %v4397
    %v4399 = vpop.f32.mrf.mxu0
    %v4400 = vpop.f32.mrf.mxu0
    %v4401 = vadd.f32 0.0, %v4400
    %v4402 = vpop.f32.mrf.mxu0
    %4403 = vmatprep.mubr.bf16.mxu0 0
    %4404 = vmatmul.mubr.bf16.gmra.mxu0 %v1000
    %v4405 = vpop.f32.mrf.mxu0
    %v4406 = vadd.f32 0.0, %v4405
    %v4407 = vpop.f32.mrf.mxu0
    %v4408 = vpop.f32.mrf.mxu0
    %v4409 = vadd.f32 0.0, %v4408
    %v4410 = vpop.f32.mrf.mxu0
    %4411 = vmatprep.mubr.bf16.mxu0 0
    %4412 = vmatmul.mubr.bf16.gmra.mxu0 %v1001
    %v4413 = vpop.f32.mrf.mxu0
    %v4414 = vadd.f32 0.0, %v4413
    %v4415 = vpop.f32.mrf.mxu0
    %v4416 = vpop.f32.mrf.mxu0
    %v4417 = vadd.f32 0.0, %v4416
    %v4418 = vpop.f32.mrf.mxu0
    %4419 = vmatprep.mubr.bf16.mxu0 0
    %4420 = vmatmul.mubr.bf16.gmra.mxu0 %v1002
    %v4421 = vpop.f32.mrf.mxu0
    %v4422 = vadd.f32 0.0, %v4421
    %v4423 = vpop.f32.mrf.mxu0
    %v4424 = vpop.f32.mrf.mxu0
    %v4425 = vadd.f32 0.0, %v4424
    %v4426 = vpop.f32.mrf.mxu0
    %4427 = vmatprep.mubr.bf16.mxu0 0
    %4428 = vmatmul.mubr.bf16.gmra.mxu0 %v1003
    %v4429 = vpop.f32.mrf.mxu0
    %v4430 = vadd.f32 0.0, %v4429
    %v4431 = vpop.f32.mrf.mxu0
    %v4432 = vpop.f32.mrf.mxu0
    %v4433 = vadd.f32 0.0, %v4432
    %v4434 = vpop.f32.mrf.mxu0
    %4435 = vmatprep.mubr.bf16.mxu0 0
    %4436 = vmatmul.mubr.bf16.gmra.mxu0 %v1004
    %v4437 = vpop.f32.mrf.mxu0
    %v4438 = vadd.f32 0.0, %v4437
    %v4439 = vpop.f32.mrf.mxu0
    %v4440 = vpop.f32.mrf.mxu0
    %v4441 = vadd.f32 0.0, %v4440
    %v4442 = vpop.f32.mrf.mxu0
    %4443 = vdwg.mxu0
    %v4444 = vpack.c.bf16 %v4385, %v4382
    %v4445 = vpack.c.bf16 %v4393, %v4390
    %v4446 = vpack.c.bf16 %v4401, %v4398
    %v4447 = vpack.c.bf16 %v4409, %v4406
    %v4448 = vpack.c.bf16 %v4417, %v4414
    %v4449 = vpack.c.bf16 %v4425, %v4422
    %v4450 = vpack.c.bf16 %v4433, %v4430
    %v4451 = vpack.c.bf16 %v4441, %v4438
    %s4452 = scalar_lea.vmem %s8, 48
    %v4453 = vld [vmem:[%s4452] sm:$0xf]
    %v4454 = vld [vmem:[%s4452 + $0x4] sm:$0xf]
    %v4455 = vld [vmem:[%s4452 + $0x8] sm:$0xf]
    %v4456 = vld [vmem:[%s4452 + $0xc] sm:$0xf]
    %v4457 = vld [vmem:[%s4452 + $0x10] sm:$0xf]
    %v4458 = vld [vmem:[%s4452 + $0x14] sm:$0xf]
    %v4465 = vunpack.c.l.b16 %v4453
    %v4466 = vunpack.c.l.b16 %v4454
    %v4467 = vunpack.c.l.b16 %v4455
    %v4468 = vunpack.c.l.b16 %v4456
    %v4469 = vunpack.c.l.b16 %v4457
    %v4470 = vunpack.c.l.b16 %v4458
    %v4471 = vpack.c.b16 %v4466, %v4465
    %v4472 = vpack.c.b16 %v4468, %v4467
    %v4473 = vpack.c.b16 %v4470, %v4469
    %v4478 = vsel %vm4086, %v4444, 0
    %v4481 = vsel %vm4086, %v4445, 0
    %v4484 = vsel %vm4086, %v4446, 0
    %v4487 = vsel %vm4086, %v4447, 0
    %v4490 = vsel %vm4086, %v4448, 0
    %v4493 = vsel %vm4086, %v4449, 0
    %v4496 = vsel %vm4086, %v4450, 0
    %v4499 = vsel %vm4086, %v4451, 0
    %4501 = vmatprep.subr.bf16.mxu0 0
    %4502 = vmatpush1.bf16.msra.mxu0 0
    %4503 = vmatprep.subr.bf16.mxu0 0
    %4504 = vmatpush1.bf16.msra.mxu0 0
    %4505 = vmatprep.subr.bf16.mxu0 0
    %4506 = vmatpush1.bf16.msra.mxu0 0
    %4507 = vmatprep.subr.bf16.mxu0 0
    %4508 = vmatpush1.bf16.msra.mxu0 0
    %4509 = vmatprep.subr.bf16.mxu0 0
    %4510 = vmatpush1.bf16.msra.mxu0 0
    %4511 = vmatprep.subr.bf16.mxu0 0
    %4512 = vmatpush1.bf16.msra.mxu0 %v4473
    %4513 = vmatprep.subr.bf16.mxu0 0
    %4514 = vmatpush1.bf16.msra.mxu0 %v4472
    %4515 = vmatprep.subr.bf16.mxu0 0
    %4516 = vmatpush1.bf16.msra.mxu0 %v4471
    %4517 = vmatprep.subr.bf16.mxu0 0
    %4518 = vmatpush2.bf16.msra.mxu0 0
    %4519 = vmatprep.subr.bf16.mxu0 0
    %4520 = vmatpush2.bf16.msra.mxu0 0
    %4521 = vmatprep.subr.bf16.mxu0 0
    %4522 = vmatpush2.bf16.msra.mxu0 0
    %4523 = vmatprep.subr.bf16.mxu0 0
    %4524 = vmatpush2.bf16.msra.mxu0 0
    %4525 = vmatprep.subr.bf16.mxu0 0
    %4526 = vmatpush2.bf16.msra.mxu0 0
    %4527 = vmatprep.subr.bf16.mxu0 0
    %4528 = vmatpush2.bf16.msra.mxu0 0
    %4529 = vmatprep.subr.bf16.mxu0 0
    %4530 = vmatpush2.bf16.msra.mxu0 0
    %4531 = vmatprep.subr.bf16.mxu0 0
    %4532 = vmatpush2.bf16.msra.mxu0 0
    %4533 = vmatprep.mubr.bf16.mxu0 0
    %4534 = vmatmul.mubr.bf16.gmra.mxu0 %v4478
    %v4535 = vpop.f32.mrf.mxu0
    %v4536 = vadd.f32 0.0, %v4535
    %v4537 = vpop.f32.mrf.mxu0
    %v4538 = vpop.f32.mrf.mxu0
    %v4539 = vadd.f32 0.0, %v4538
    %v4540 = vpop.f32.mrf.mxu0
    %4541 = vmatprep.mubr.bf16.mxu0 0
    %4542 = vmatmul.mubr.bf16.gmra.mxu0 %v4481
    %v4543 = vpop.f32.mrf.mxu0
    %v4544 = vadd.f32 0.0, %v4543
    %v4545 = vpop.f32.mrf.mxu0
    %v4546 = vpop.f32.mrf.mxu0
    %v4547 = vadd.f32 0.0, %v4546
    %v4548 = vpop.f32.mrf.mxu0
    %4549 = vmatprep.mubr.bf16.mxu0 0
    %4550 = vmatmul.mubr.bf16.gmra.mxu0 %v4484
    %v4551 = vpop.f32.mrf.mxu0
    %v4552 = vadd.f32 0.0, %v4551
    %v4553 = vpop.f32.mrf.mxu0
    %v4554 = vpop.f32.mrf.mxu0
    %v4555 = vadd.f32 0.0, %v4554
    %v4556 = vpop.f32.mrf.mxu0
    %4557 = vmatprep.mubr.bf16.mxu0 0
    %4558 = vmatmul.mubr.bf16.gmra.mxu0 %v4487
    %v4559 = vpop.f32.mrf.mxu0
    %v4560 = vadd.f32 0.0, %v4559
    %v4561 = vpop.f32.mrf.mxu0
    %v4562 = vpop.f32.mrf.mxu0
    %v4563 = vadd.f32 0.0, %v4562
    %v4564 = vpop.f32.mrf.mxu0
    %4565 = vmatprep.mubr.bf16.mxu0 0
    %4566 = vmatmul.mubr.bf16.gmra.mxu0 %v4490
    %v4567 = vpop.f32.mrf.mxu0
    %v4568 = vadd.f32 0.0, %v4567
    %v4569 = vpop.f32.mrf.mxu0
    %v4570 = vpop.f32.mrf.mxu0
    %v4571 = vadd.f32 0.0, %v4570
    %v4572 = vpop.f32.mrf.mxu0
    %4573 = vmatprep.mubr.bf16.mxu0 0
    %4574 = vmatmul.mubr.bf16.gmra.mxu0 %v4493
    %v4575 = vpop.f32.mrf.mxu0
    %v4576 = vadd.f32 0.0, %v4575
    %v4577 = vpop.f32.mrf.mxu0
    %v4578 = vpop.f32.mrf.mxu0
    %v4579 = vadd.f32 0.0, %v4578
    %v4580 = vpop.f32.mrf.mxu0
    %4581 = vmatprep.mubr.bf16.mxu0 0
    %4582 = vmatmul.mubr.bf16.gmra.mxu0 %v4496
    %v4583 = vpop.f32.mrf.mxu0
    %v4584 = vadd.f32 0.0, %v4583
    %v4585 = vpop.f32.mrf.mxu0
    %v4586 = vpop.f32.mrf.mxu0
    %v4587 = vadd.f32 0.0, %v4586
    %v4588 = vpop.f32.mrf.mxu0
    %4589 = vmatprep.mubr.bf16.mxu0 0
    %4590 = vmatmul.mubr.bf16.gmra.mxu0 %v4499
    %v4591 = vpop.f32.mrf.mxu0
    %v4592 = vadd.f32 0.0, %v4591
    %v4593 = vpop.f32.mrf.mxu0
    %v4594 = vpop.f32.mrf.mxu0
    %v4595 = vadd.f32 0.0, %v4594
    %v4596 = vpop.f32.mrf.mxu0
    %4597 = vdwg.mxu0
    %v4598 = vadd.f32 %v4285, %v4536
    %v4599 = vadd.f32 %v4288, %v4539
    %v4600 = vadd.f32 %v4293, %v4544
    %v4601 = vadd.f32 %v4296, %v4547
    %v4602 = vadd.f32 %v4301, %v4552
    %v4603 = vadd.f32 %v4304, %v4555
    %v4604 = vadd.f32 %v4309, %v4560
    %v4605 = vadd.f32 %v4312, %v4563
    %v4606 = vadd.f32 %v4317, %v4568
    %v4607 = vadd.f32 %v4320, %v4571
    %v4608 = vadd.f32 %v4325, %v4576
    %v4609 = vadd.f32 %v4328, %v4579
    %v4610 = vadd.f32 %v4333, %v4584
    %v4611 = vadd.f32 %v4336, %v4587
    %v4612 = vadd.f32 %v4341, %v4592
    %v4613 = vadd.f32 %v4344, %v4595
    %4614 = vmatprep.subr.bf16.mxu0 0
    %4615 = vmatpush1.bf16.msra.mxu0 %v3844
    %4616 = vmatprep.subr.bf16.mxu0 0
    %4617 = vmatpush1.bf16.msra.mxu0 %v3843
    %4618 = vmatprep.subr.bf16.mxu0 0
    %4619 = vmatpush1.bf16.msra.mxu0 %v3842
    %4620 = vmatprep.subr.bf16.mxu0 0
    %4621 = vmatpush1.bf16.msra.mxu0 %v3841
    %4622 = vmatprep.subr.bf16.mxu0 0
    %4623 = vmatpush1.bf16.msra.mxu0 %v3840
    %4624 = vmatprep.subr.bf16.mxu0 0
    %4625 = vmatpush1.bf16.msra.mxu0 %v3839
    %4626 = vmatprep.subr.bf16.mxu0 0
    %4627 = vmatpush1.bf16.msra.mxu0 %v3838
    %4628 = vmatprep.subr.bf16.mxu0 0
    %4629 = vmatpush1.bf16.msra.mxu0 %v3837
    %4630 = vmatprep.subr.bf16.mxu0 0
    %4631 = vmatpush2.bf16.msra.mxu0 0
    %4632 = vmatprep.subr.bf16.mxu0 0
    %4633 = vmatpush2.bf16.msra.mxu0 0
    %4634 = vmatprep.subr.bf16.mxu0 0
    %4635 = vmatpush2.bf16.msra.mxu0 0
    %4636 = vmatprep.subr.bf16.mxu0 0
    %4637 = vmatpush2.bf16.msra.mxu0 0
    %4638 = vmatprep.subr.bf16.mxu0 0
    %4639 = vmatpush2.bf16.msra.mxu0 0
    %4640 = vmatprep.subr.bf16.mxu0 0
    %4641 = vmatpush2.bf16.msra.mxu0 0
    %4642 = vmatprep.subr.bf16.mxu0 0
    %4643 = vmatpush2.bf16.msra.mxu0 0
    %4644 = vmatprep.subr.bf16.mxu0 0
    %4645 = vmatpush2.bf16.msra.mxu0 0
    %4646 = vmatprep.mubr.bf16.mxu0 0
    %4647 = vmatmul.mubr.bf16.gmra.mxu0 %v1313
    %v4648 = vpop.f32.mrf.mxu0
    %v4649 = vadd.f32 0.0, %v4648
    %v4650 = vpop.f32.mrf.mxu0
    %v4651 = vpop.f32.mrf.mxu0
    %v4652 = vadd.f32 0.0, %v4651
    %v4653 = vpop.f32.mrf.mxu0
    %4654 = vmatprep.mubr.bf16.mxu0 0
    %4655 = vmatmul.mubr.bf16.gmra.mxu0 %v1314
    %v4656 = vpop.f32.mrf.mxu0
    %v4657 = vadd.f32 0.0, %v4656
    %v4658 = vpop.f32.mrf.mxu0
    %v4659 = vpop.f32.mrf.mxu0
    %v4660 = vadd.f32 0.0, %v4659
    %v4661 = vpop.f32.mrf.mxu0
    %4662 = vmatprep.mubr.bf16.mxu0 0
    %4663 = vmatmul.mubr.bf16.gmra.mxu0 %v1315
    %v4664 = vpop.f32.mrf.mxu0
    %v4665 = vadd.f32 0.0, %v4664
    %v4666 = vpop.f32.mrf.mxu0
    %v4667 = vpop.f32.mrf.mxu0
    %v4668 = vadd.f32 0.0, %v4667
    %v4669 = vpop.f32.mrf.mxu0
    %4670 = vmatprep.mubr.bf16.mxu0 0
    %4671 = vmatmul.mubr.bf16.gmra.mxu0 %v1316
    %v4672 = vpop.f32.mrf.mxu0
    %v4673 = vadd.f32 0.0, %v4672
    %v4674 = vpop.f32.mrf.mxu0
    %v4675 = vpop.f32.mrf.mxu0
    %v4676 = vadd.f32 0.0, %v4675
    %v4677 = vpop.f32.mrf.mxu0
    %4678 = vmatprep.mubr.bf16.mxu0 0
    %4679 = vmatmul.mubr.bf16.gmra.mxu0 %v1317
    %v4680 = vpop.f32.mrf.mxu0
    %v4681 = vadd.f32 0.0, %v4680
    %v4682 = vpop.f32.mrf.mxu0
    %v4683 = vpop.f32.mrf.mxu0
    %v4684 = vadd.f32 0.0, %v4683
    %v4685 = vpop.f32.mrf.mxu0
    %4686 = vmatprep.mubr.bf16.mxu0 0
    %4687 = vmatmul.mubr.bf16.gmra.mxu0 %v1318
    %v4688 = vpop.f32.mrf.mxu0
    %v4689 = vadd.f32 0.0, %v4688
    %v4690 = vpop.f32.mrf.mxu0
    %v4691 = vpop.f32.mrf.mxu0
    %v4692 = vadd.f32 0.0, %v4691
    %v4693 = vpop.f32.mrf.mxu0
    %4694 = vmatprep.mubr.bf16.mxu0 0
    %4695 = vmatmul.mubr.bf16.gmra.mxu0 %v1319
    %v4696 = vpop.f32.mrf.mxu0
    %v4697 = vadd.f32 0.0, %v4696
    %v4698 = vpop.f32.mrf.mxu0
    %v4699 = vpop.f32.mrf.mxu0
    %v4700 = vadd.f32 0.0, %v4699
    %v4701 = vpop.f32.mrf.mxu0
    %4702 = vmatprep.mubr.bf16.mxu0 0
    %4703 = vmatmul.mubr.bf16.gmra.mxu0 %v1320
    %v4704 = vpop.f32.mrf.mxu0
    %v4705 = vadd.f32 0.0, %v4704
    %v4706 = vpop.f32.mrf.mxu0
    %v4707 = vpop.f32.mrf.mxu0
    %v4708 = vadd.f32 0.0, %v4707
    %v4709 = vpop.f32.mrf.mxu0
    %4710 = vdwg.mxu0
    %v4711 = vpack.c.bf16 %v4652, %v4649
    %v4712 = vpack.c.bf16 %v4660, %v4657
    %v4713 = vpack.c.bf16 %v4668, %v4665
    %v4714 = vpack.c.bf16 %v4676, %v4673
    %v4715 = vpack.c.bf16 %v4684, %v4681
    %v4716 = vpack.c.bf16 %v4692, %v4689
    %v4717 = vpack.c.bf16 %v4700, %v4697
    %v4718 = vpack.c.bf16 %v4708, %v4705
    %s4719 = scalar_lea.vmem %s8, 72
    %v4720 = vld [vmem:[%s4719] sm:$0xf]
    %v4721 = vld [vmem:[%s4719 + $0x4] sm:$0xf]
    %v4722 = vld [vmem:[%s4719 + $0x8] sm:$0xf]
    %v4723 = vld [vmem:[%s4719 + $0xc] sm:$0xf]
    %v4724 = vld [vmem:[%s4719 + $0x10] sm:$0xf]
    %v4725 = vld [vmem:[%s4719 + $0x14] sm:$0xf]
    %v4732 = vunpack.c.l.b16 %v4720
    %v4733 = vunpack.c.l.b16 %v4721
    %v4734 = vunpack.c.l.b16 %v4722
    %v4735 = vunpack.c.l.b16 %v4723
    %v4736 = vunpack.c.l.b16 %v4724
    %v4737 = vunpack.c.l.b16 %v4725
    %v4738 = vpack.c.b16 %v4733, %v4732
    %v4739 = vpack.c.b16 %v4735, %v4734
    %v4740 = vpack.c.b16 %v4737, %v4736
    %v4745 = vsel %vm4086, %v4711, 0
    %v4748 = vsel %vm4086, %v4712, 0
    %v4751 = vsel %vm4086, %v4713, 0
    %v4754 = vsel %vm4086, %v4714, 0
    %v4757 = vsel %vm4086, %v4715, 0
    %v4760 = vsel %vm4086, %v4716, 0
    %v4763 = vsel %vm4086, %v4717, 0
    %v4766 = vsel %vm4086, %v4718, 0
    %4768 = vmatprep.subr.bf16.mxu0 0
    %4769 = vmatpush1.bf16.msra.mxu0 0
    %4770 = vmatprep.subr.bf16.mxu0 0
    %4771 = vmatpush1.bf16.msra.mxu0 0
    %4772 = vmatprep.subr.bf16.mxu0 0
    %4773 = vmatpush1.bf16.msra.mxu0 0
    %4774 = vmatprep.subr.bf16.mxu0 0
    %4775 = vmatpush1.bf16.msra.mxu0 0
    %4776 = vmatprep.subr.bf16.mxu0 0
    %4777 = vmatpush1.bf16.msra.mxu0 0
    %4778 = vmatprep.subr.bf16.mxu0 0
    %4779 = vmatpush1.bf16.msra.mxu0 %v4740
    %4780 = vmatprep.subr.bf16.mxu0 0
    %4781 = vmatpush1.bf16.msra.mxu0 %v4739
    %4782 = vmatprep.subr.bf16.mxu0 0
    %4783 = vmatpush1.bf16.msra.mxu0 %v4738
    %4784 = vmatprep.subr.bf16.mxu0 0
    %4785 = vmatpush2.bf16.msra.mxu0 0
    %4786 = vmatprep.subr.bf16.mxu0 0
    %4787 = vmatpush2.bf16.msra.mxu0 0
    %4788 = vmatprep.subr.bf16.mxu0 0
    %4789 = vmatpush2.bf16.msra.mxu0 0
    %4790 = vmatprep.subr.bf16.mxu0 0
    %4791 = vmatpush2.bf16.msra.mxu0 0
    %4792 = vmatprep.subr.bf16.mxu0 0
    %4793 = vmatpush2.bf16.msra.mxu0 0
    %4794 = vmatprep.subr.bf16.mxu0 0
    %4795 = vmatpush2.bf16.msra.mxu0 0
    %4796 = vmatprep.subr.bf16.mxu0 0
    %4797 = vmatpush2.bf16.msra.mxu0 0
    %4798 = vmatprep.subr.bf16.mxu0 0
    %4799 = vmatpush2.bf16.msra.mxu0 0
    %4800 = vmatprep.mubr.bf16.mxu0 0
    %4801 = vmatmul.mubr.bf16.gmra.mxu0 %v4745
    %v4802 = vpop.f32.mrf.mxu0
    %v4803 = vadd.f32 0.0, %v4802
    %v4804 = vpop.f32.mrf.mxu0
    %v4805 = vpop.f32.mrf.mxu0
    %v4806 = vadd.f32 0.0, %v4805
    %v4807 = vpop.f32.mrf.mxu0
    %4808 = vmatprep.mubr.bf16.mxu0 0
    %4809 = vmatmul.mubr.bf16.gmra.mxu0 %v4748
    %v4810 = vpop.f32.mrf.mxu0
    %v4811 = vadd.f32 0.0, %v4810
    %v4812 = vpop.f32.mrf.mxu0
    %v4813 = vpop.f32.mrf.mxu0
    %v4814 = vadd.f32 0.0, %v4813
    %v4815 = vpop.f32.mrf.mxu0
    %4816 = vmatprep.mubr.bf16.mxu0 0
    %4817 = vmatmul.mubr.bf16.gmra.mxu0 %v4751
    %v4818 = vpop.f32.mrf.mxu0
    %v4819 = vadd.f32 0.0, %v4818
    %v4820 = vpop.f32.mrf.mxu0
    %v4821 = vpop.f32.mrf.mxu0
    %v4822 = vadd.f32 0.0, %v4821
    %v4823 = vpop.f32.mrf.mxu0
    %4824 = vmatprep.mubr.bf16.mxu0 0
    %4825 = vmatmul.mubr.bf16.gmra.mxu0 %v4754
    %v4826 = vpop.f32.mrf.mxu0
    %v4827 = vadd.f32 0.0, %v4826
    %v4828 = vpop.f32.mrf.mxu0
    %v4829 = vpop.f32.mrf.mxu0
    %v4830 = vadd.f32 0.0, %v4829
    %v4831 = vpop.f32.mrf.mxu0
    %4832 = vmatprep.mubr.bf16.mxu0 0
    %4833 = vmatmul.mubr.bf16.gmra.mxu0 %v4757
    %v4834 = vpop.f32.mrf.mxu0
    %v4835 = vadd.f32 0.0, %v4834
    %v4836 = vpop.f32.mrf.mxu0
    %v4837 = vpop.f32.mrf.mxu0
    %v4838 = vadd.f32 0.0, %v4837
    %v4839 = vpop.f32.mrf.mxu0
    %4840 = vmatprep.mubr.bf16.mxu0 0
    %4841 = vmatmul.mubr.bf16.gmra.mxu0 %v4760
    %v4842 = vpop.f32.mrf.mxu0
    %v4843 = vadd.f32 0.0, %v4842
    %v4844 = vpop.f32.mrf.mxu0
    %v4845 = vpop.f32.mrf.mxu0
    %v4846 = vadd.f32 0.0, %v4845
    %v4847 = vpop.f32.mrf.mxu0
    %4848 = vmatprep.mubr.bf16.mxu0 0
    %4849 = vmatmul.mubr.bf16.gmra.mxu0 %v4763
    %v4850 = vpop.f32.mrf.mxu0
    %v4851 = vadd.f32 0.0, %v4850
    %v4852 = vpop.f32.mrf.mxu0
    %v4853 = vpop.f32.mrf.mxu0
    %v4854 = vadd.f32 0.0, %v4853
    %v4855 = vpop.f32.mrf.mxu0
    %4856 = vmatprep.mubr.bf16.mxu0 0
    %4857 = vmatmul.mubr.bf16.gmra.mxu0 %v4766
    %v4858 = vpop.f32.mrf.mxu0
    %v4859 = vadd.f32 0.0, %v4858
    %v4860 = vpop.f32.mrf.mxu0
    %v4861 = vpop.f32.mrf.mxu0
    %v4862 = vadd.f32 0.0, %v4861
    %v4863 = vpop.f32.mrf.mxu0
    %4864 = vdwg.mxu0
    %v4865 = vadd.f32 %v4598, %v4803
    %v4866 = vadd.f32 %v4599, %v4806
    %v4867 = vadd.f32 %v4600, %v4811
    %v4868 = vadd.f32 %v4601, %v4814
    %v4869 = vadd.f32 %v4602, %v4819
    %v4870 = vadd.f32 %v4603, %v4822
    %v4871 = vadd.f32 %v4604, %v4827
    %v4872 = vadd.f32 %v4605, %v4830
    %v4873 = vadd.f32 %v4606, %v4835
    %v4874 = vadd.f32 %v4607, %v4838
    %v4875 = vadd.f32 %v4608, %v4843
    %v4876 = vadd.f32 %v4609, %v4846
    %v4877 = vadd.f32 %v4610, %v4851
    %v4878 = vadd.f32 %v4611, %v4854
    %v4879 = vadd.f32 %v4612, %v4859
    %v4880 = vadd.f32 %v4613, %v4862
    %4881 = vmatprep.subr.bf16.mxu0 0
    %4882 = vmatpush1.bf16.msra.mxu0 %v3844
    %4883 = vmatprep.subr.bf16.mxu0 0
    %4884 = vmatpush1.bf16.msra.mxu0 %v3843
    %4885 = vmatprep.subr.bf16.mxu0 0
    %4886 = vmatpush1.bf16.msra.mxu0 %v3842
    %4887 = vmatprep.subr.bf16.mxu0 0
    %4888 = vmatpush1.bf16.msra.mxu0 %v3841
    %4889 = vmatprep.subr.bf16.mxu0 0
    %4890 = vmatpush1.bf16.msra.mxu0 %v3840
    %4891 = vmatprep.subr.bf16.mxu0 0
    %4892 = vmatpush1.bf16.msra.mxu0 %v3839
    %4893 = vmatprep.subr.bf16.mxu0 0
    %4894 = vmatpush1.bf16.msra.mxu0 %v3838
    %4895 = vmatprep.subr.bf16.mxu0 0
    %4896 = vmatpush1.bf16.msra.mxu0 %v3837
    %4897 = vmatprep.subr.bf16.mxu0 0
    %4898 = vmatpush2.bf16.msra.mxu0 0
    %4899 = vmatprep.subr.bf16.mxu0 0
    %4900 = vmatpush2.bf16.msra.mxu0 0
    %4901 = vmatprep.subr.bf16.mxu0 0
    %4902 = vmatpush2.bf16.msra.mxu0 0
    %4903 = vmatprep.subr.bf16.mxu0 0
    %4904 = vmatpush2.bf16.msra.mxu0 0
    %4905 = vmatprep.subr.bf16.mxu0 0
    %4906 = vmatpush2.bf16.msra.mxu0 0
    %4907 = vmatprep.subr.bf16.mxu0 0
    %4908 = vmatpush2.bf16.msra.mxu0 0
    %4909 = vmatprep.subr.bf16.mxu0 0
    %4910 = vmatpush2.bf16.msra.mxu0 0
    %4911 = vmatprep.subr.bf16.mxu0 0
    %4912 = vmatpush2.bf16.msra.mxu0 0
    %4913 = vmatprep.mubr.bf16.mxu0 0
    %4914 = vmatmul.mubr.bf16.gmra.mxu0 %v1629
    %v4915 = vpop.f32.mrf.mxu0
    %v4916 = vadd.f32 0.0, %v4915
    %v4917 = vpop.f32.mrf.mxu0
    %v4918 = vpop.f32.mrf.mxu0
    %v4919 = vadd.f32 0.0, %v4918
    %v4920 = vpop.f32.mrf.mxu0
    %4921 = vmatprep.mubr.bf16.mxu0 0
    %4922 = vmatmul.mubr.bf16.gmra.mxu0 %v1630
    %v4923 = vpop.f32.mrf.mxu0
    %v4924 = vadd.f32 0.0, %v4923
    %v4925 = vpop.f32.mrf.mxu0
    %v4926 = vpop.f32.mrf.mxu0
    %v4927 = vadd.f32 0.0, %v4926
    %v4928 = vpop.f32.mrf.mxu0
    %4929 = vmatprep.mubr.bf16.mxu0 0
    %4930 = vmatmul.mubr.bf16.gmra.mxu0 %v1631
    %v4931 = vpop.f32.mrf.mxu0
    %v4932 = vadd.f32 0.0, %v4931
    %v4933 = vpop.f32.mrf.mxu0
    %v4934 = vpop.f32.mrf.mxu0
    %v4935 = vadd.f32 0.0, %v4934
    %v4936 = vpop.f32.mrf.mxu0
    %4937 = vmatprep.mubr.bf16.mxu0 0
    %4938 = vmatmul.mubr.bf16.gmra.mxu0 %v1632
    %v4939 = vpop.f32.mrf.mxu0
    %v4940 = vadd.f32 0.0, %v4939
    %v4941 = vpop.f32.mrf.mxu0
    %v4942 = vpop.f32.mrf.mxu0
    %v4943 = vadd.f32 0.0, %v4942
    %v4944 = vpop.f32.mrf.mxu0
    %4945 = vmatprep.mubr.bf16.mxu0 0
    %4946 = vmatmul.mubr.bf16.gmra.mxu0 %v1633
    %v4947 = vpop.f32.mrf.mxu0
    %v4948 = vadd.f32 0.0, %v4947
    %v4949 = vpop.f32.mrf.mxu0
    %v4950 = vpop.f32.mrf.mxu0
    %v4951 = vadd.f32 0.0, %v4950
    %v4952 = vpop.f32.mrf.mxu0
    %4953 = vmatprep.mubr.bf16.mxu0 0
    %4954 = vmatmul.mubr.bf16.gmra.mxu0 %v1634
    %v4955 = vpop.f32.mrf.mxu0
    %v4956 = vadd.f32 0.0, %v4955
    %v4957 = vpop.f32.mrf.mxu0
    %v4958 = vpop.f32.mrf.mxu0
    %v4959 = vadd.f32 0.0, %v4958
    %v4960 = vpop.f32.mrf.mxu0
    %4961 = vmatprep.mubr.bf16.mxu0 0
    %4962 = vmatmul.mubr.bf16.gmra.mxu0 %v1635
    %v4963 = vpop.f32.mrf.mxu0
    %v4964 = vadd.f32 0.0, %v4963
    %v4965 = vpop.f32.mrf.mxu0
    %v4966 = vpop.f32.mrf.mxu0
    %v4967 = vadd.f32 0.0, %v4966
    %v4968 = vpop.f32.mrf.mxu0
    %4969 = vmatprep.mubr.bf16.mxu0 0
    %4970 = vmatmul.mubr.bf16.gmra.mxu0 %v1636
    %v4971 = vpop.f32.mrf.mxu0
    %v4972 = vadd.f32 0.0, %v4971
    %v4973 = vpop.f32.mrf.mxu0
    %v4974 = vpop.f32.mrf.mxu0
    %v4975 = vadd.f32 0.0, %v4974
    %v4976 = vpop.f32.mrf.mxu0
    %4977 = vdwg.mxu0
    %v4978 = vpack.c.bf16 %v4919, %v4916
    %v4979 = vpack.c.bf16 %v4927, %v4924
    %v4980 = vpack.c.bf16 %v4935, %v4932
    %v4981 = vpack.c.bf16 %v4943, %v4940
    %v4982 = vpack.c.bf16 %v4951, %v4948
    %v4983 = vpack.c.bf16 %v4959, %v4956
    %v4984 = vpack.c.bf16 %v4967, %v4964
    %v4985 = vpack.c.bf16 %v4975, %v4972
    %s4986 = scalar_lea.vmem %s8, 96
    %v4987 = vld [vmem:[%s4986] sm:$0xf]
    %v4988 = vld [vmem:[%s4986 + $0x4] sm:$0xf]
    %v4989 = vld [vmem:[%s4986 + $0x8] sm:$0xf]
    %v4990 = vld [vmem:[%s4986 + $0xc] sm:$0xf]
    %v4991 = vld [vmem:[%s4986 + $0x10] sm:$0xf]
    %v4992 = vld [vmem:[%s4986 + $0x14] sm:$0xf]
    %v4999 = vunpack.c.l.b16 %v4987
    %v5000 = vunpack.c.l.b16 %v4988
    %v5001 = vunpack.c.l.b16 %v4989
    %v5002 = vunpack.c.l.b16 %v4990
    %v5003 = vunpack.c.l.b16 %v4991
    %v5004 = vunpack.c.l.b16 %v4992
    %v5005 = vpack.c.b16 %v5000, %v4999
    %v5006 = vpack.c.b16 %v5002, %v5001
    %v5007 = vpack.c.b16 %v5004, %v5003
    %v5012 = vsel %vm4086, %v4978, 0
    %v5015 = vsel %vm4086, %v4979, 0
    %v5018 = vsel %vm4086, %v4980, 0
    %v5021 = vsel %vm4086, %v4981, 0
    %v5024 = vsel %vm4086, %v4982, 0
    %v5027 = vsel %vm4086, %v4983, 0
    %v5030 = vsel %vm4086, %v4984, 0
    %v5033 = vsel %vm4086, %v4985, 0
    %5035 = vmatprep.subr.bf16.mxu0 0
    %5036 = vmatpush1.bf16.msra.mxu0 0
    %5037 = vmatprep.subr.bf16.mxu0 0
    %5038 = vmatpush1.bf16.msra.mxu0 0
    %5039 = vmatprep.subr.bf16.mxu0 0
    %5040 = vmatpush1.bf16.msra.mxu0 0
    %5041 = vmatprep.subr.bf16.mxu0 0
    %5042 = vmatpush1.bf16.msra.mxu0 0
    %5043 = vmatprep.subr.bf16.mxu0 0
    %5044 = vmatpush1.bf16.msra.mxu0 0
    %5045 = vmatprep.subr.bf16.mxu0 0
    %5046 = vmatpush1.bf16.msra.mxu0 %v5007
    %5047 = vmatprep.subr.bf16.mxu0 0
    %5048 = vmatpush1.bf16.msra.mxu0 %v5006
    %5049 = vmatprep.subr.bf16.mxu0 0
    %5050 = vmatpush1.bf16.msra.mxu0 %v5005
    %5051 = vmatprep.subr.bf16.mxu0 0
    %5052 = vmatpush2.bf16.msra.mxu0 0
    %5053 = vmatprep.subr.bf16.mxu0 0
    %5054 = vmatpush2.bf16.msra.mxu0 0
    %5055 = vmatprep.subr.bf16.mxu0 0
    %5056 = vmatpush2.bf16.msra.mxu0 0
    %5057 = vmatprep.subr.bf16.mxu0 0
    %5058 = vmatpush2.bf16.msra.mxu0 0
    %5059 = vmatprep.subr.bf16.mxu0 0
    %5060 = vmatpush2.bf16.msra.mxu0 0
    %5061 = vmatprep.subr.bf16.mxu0 0
    %5062 = vmatpush2.bf16.msra.mxu0 0
    %5063 = vmatprep.subr.bf16.mxu0 0
    %5064 = vmatpush2.bf16.msra.mxu0 0
    %5065 = vmatprep.subr.bf16.mxu0 0
    %5066 = vmatpush2.bf16.msra.mxu0 0
    %5067 = vmatprep.mubr.bf16.mxu0 0
    %5068 = vmatmul.mubr.bf16.gmra.mxu0 %v5012
    %v5069 = vpop.f32.mrf.mxu0
    %v5070 = vadd.f32 0.0, %v5069
    %v5071 = vpop.f32.mrf.mxu0
    %v5072 = vpop.f32.mrf.mxu0
    %v5073 = vadd.f32 0.0, %v5072
    %v5074 = vpop.f32.mrf.mxu0
    %5075 = vmatprep.mubr.bf16.mxu0 0
    %5076 = vmatmul.mubr.bf16.gmra.mxu0 %v5015
    %v5077 = vpop.f32.mrf.mxu0
    %v5078 = vadd.f32 0.0, %v5077
    %v5079 = vpop.f32.mrf.mxu0
    %v5080 = vpop.f32.mrf.mxu0
    %v5081 = vadd.f32 0.0, %v5080
    %v5082 = vpop.f32.mrf.mxu0
    %5083 = vmatprep.mubr.bf16.mxu0 0
    %5084 = vmatmul.mubr.bf16.gmra.mxu0 %v5018
    %v5085 = vpop.f32.mrf.mxu0
    %v5086 = vadd.f32 0.0, %v5085
    %v5087 = vpop.f32.mrf.mxu0
    %v5088 = vpop.f32.mrf.mxu0
    %v5089 = vadd.f32 0.0, %v5088
    %v5090 = vpop.f32.mrf.mxu0
    %5091 = vmatprep.mubr.bf16.mxu0 0
    %5092 = vmatmul.mubr.bf16.gmra.mxu0 %v5021
    %v5093 = vpop.f32.mrf.mxu0
    %v5094 = vadd.f32 0.0, %v5093
    %v5095 = vpop.f32.mrf.mxu0
    %v5096 = vpop.f32.mrf.mxu0
    %v5097 = vadd.f32 0.0, %v5096
    %v5098 = vpop.f32.mrf.mxu0
    %5099 = vmatprep.mubr.bf16.mxu0 0
    %5100 = vmatmul.mubr.bf16.gmra.mxu0 %v5024
    %v5101 = vpop.f32.mrf.mxu0
    %v5102 = vadd.f32 0.0, %v5101
    %v5103 = vpop.f32.mrf.mxu0
    %v5104 = vpop.f32.mrf.mxu0
    %v5105 = vadd.f32 0.0, %v5104
    %v5106 = vpop.f32.mrf.mxu0
    %5107 = vmatprep.mubr.bf16.mxu0 0
    %5108 = vmatmul.mubr.bf16.gmra.mxu0 %v5027
    %v5109 = vpop.f32.mrf.mxu0
    %v5110 = vadd.f32 0.0, %v5109
    %v5111 = vpop.f32.mrf.mxu0
    %v5112 = vpop.f32.mrf.mxu0
    %v5113 = vadd.f32 0.0, %v5112
    %v5114 = vpop.f32.mrf.mxu0
    %5115 = vmatprep.mubr.bf16.mxu0 0
    %5116 = vmatmul.mubr.bf16.gmra.mxu0 %v5030
    %v5117 = vpop.f32.mrf.mxu0
    %v5118 = vadd.f32 0.0, %v5117
    %v5119 = vpop.f32.mrf.mxu0
    %v5120 = vpop.f32.mrf.mxu0
    %v5121 = vadd.f32 0.0, %v5120
    %v5122 = vpop.f32.mrf.mxu0
    %5123 = vmatprep.mubr.bf16.mxu0 0
    %5124 = vmatmul.mubr.bf16.gmra.mxu0 %v5033
    %v5125 = vpop.f32.mrf.mxu0
    %v5126 = vadd.f32 0.0, %v5125
    %v5127 = vpop.f32.mrf.mxu0
    %v5128 = vpop.f32.mrf.mxu0
    %v5129 = vadd.f32 0.0, %v5128
    %v5130 = vpop.f32.mrf.mxu0
    %5131 = vdwg.mxu0
    %v5132 = vadd.f32 %v4865, %v5070
    %v5133 = vadd.f32 %v4866, %v5073
    %v5134 = vadd.f32 %v4867, %v5078
    %v5135 = vadd.f32 %v4868, %v5081
    %v5136 = vadd.f32 %v4869, %v5086
    %v5137 = vadd.f32 %v4870, %v5089
    %v5138 = vadd.f32 %v4871, %v5094
    %v5139 = vadd.f32 %v4872, %v5097
    %v5140 = vadd.f32 %v4873, %v5102
    %v5141 = vadd.f32 %v4874, %v5105
    %v5142 = vadd.f32 %v4875, %v5110
    %v5143 = vadd.f32 %v4876, %v5113
    %v5144 = vadd.f32 %v4877, %v5118
    %v5145 = vadd.f32 %v4878, %v5121
    %v5146 = vadd.f32 %v4879, %v5126
    %v5147 = vadd.f32 %v4880, %v5129
    %5148 = vmatprep.subr.bf16.mxu0 0
    %5149 = vmatpush1.bf16.msra.mxu0 %v3844
    %5150 = vmatprep.subr.bf16.mxu0 0
    %5151 = vmatpush1.bf16.msra.mxu0 %v3843
    %5152 = vmatprep.subr.bf16.mxu0 0
    %5153 = vmatpush1.bf16.msra.mxu0 %v3842
    %5154 = vmatprep.subr.bf16.mxu0 0
    %5155 = vmatpush1.bf16.msra.mxu0 %v3841
    %5156 = vmatprep.subr.bf16.mxu0 0
    %5157 = vmatpush1.bf16.msra.mxu0 %v3840
    %5158 = vmatprep.subr.bf16.mxu0 0
    %5159 = vmatpush1.bf16.msra.mxu0 %v3839
    %5160 = vmatprep.subr.bf16.mxu0 0
    %5161 = vmatpush1.bf16.msra.mxu0 %v3838
    %5162 = vmatprep.subr.bf16.mxu0 0
    %5163 = vmatpush1.bf16.msra.mxu0 %v3837
    %5164 = vmatprep.subr.bf16.mxu0 0
    %5165 = vmatpush2.bf16.msra.mxu0 0
    %5166 = vmatprep.subr.bf16.mxu0 0
    %5167 = vmatpush2.bf16.msra.mxu0 0
    %5168 = vmatprep.subr.bf16.mxu0 0
    %5169 = vmatpush2.bf16.msra.mxu0 0
    %5170 = vmatprep.subr.bf16.mxu0 0
    %5171 = vmatpush2.bf16.msra.mxu0 0
    %5172 = vmatprep.subr.bf16.mxu0 0
    %5173 = vmatpush2.bf16.msra.mxu0 0
    %5174 = vmatprep.subr.bf16.mxu0 0
    %5175 = vmatpush2.bf16.msra.mxu0 0
    %5176 = vmatprep.subr.bf16.mxu0 0
    %5177 = vmatpush2.bf16.msra.mxu0 0
    %5178 = vmatprep.subr.bf16.mxu0 0
    %5179 = vmatpush2.bf16.msra.mxu0 0
    %5180 = vmatprep.mubr.bf16.mxu0 0
    %5181 = vmatmul.mubr.bf16.gmra.mxu0 %v1945
    %v5182 = vpop.f32.mrf.mxu0
    %v5183 = vadd.f32 0.0, %v5182
    %v5184 = vpop.f32.mrf.mxu0
    %v5185 = vpop.f32.mrf.mxu0
    %v5186 = vadd.f32 0.0, %v5185
    %v5187 = vpop.f32.mrf.mxu0
    %5188 = vmatprep.mubr.bf16.mxu0 0
    %5189 = vmatmul.mubr.bf16.gmra.mxu0 %v1946
    %v5190 = vpop.f32.mrf.mxu0
    %v5191 = vadd.f32 0.0, %v5190
    %v5192 = vpop.f32.mrf.mxu0
    %v5193 = vpop.f32.mrf.mxu0
    %v5194 = vadd.f32 0.0, %v5193
    %v5195 = vpop.f32.mrf.mxu0
    %5196 = vmatprep.mubr.bf16.mxu0 0
    %5197 = vmatmul.mubr.bf16.gmra.mxu0 %v1947
    %v5198 = vpop.f32.mrf.mxu0
    %v5199 = vadd.f32 0.0, %v5198
    %v5200 = vpop.f32.mrf.mxu0
    %v5201 = vpop.f32.mrf.mxu0
    %v5202 = vadd.f32 0.0, %v5201
    %v5203 = vpop.f32.mrf.mxu0
    %5204 = vmatprep.mubr.bf16.mxu0 0
    %5205 = vmatmul.mubr.bf16.gmra.mxu0 %v1948
    %v5206 = vpop.f32.mrf.mxu0
    %v5207 = vadd.f32 0.0, %v5206
    %v5208 = vpop.f32.mrf.mxu0
    %v5209 = vpop.f32.mrf.mxu0
    %v5210 = vadd.f32 0.0, %v5209
    %v5211 = vpop.f32.mrf.mxu0
    %5212 = vmatprep.mubr.bf16.mxu0 0
    %5213 = vmatmul.mubr.bf16.gmra.mxu0 %v1949
    %v5214 = vpop.f32.mrf.mxu0
    %v5215 = vadd.f32 0.0, %v5214
    %v5216 = vpop.f32.mrf.mxu0
    %v5217 = vpop.f32.mrf.mxu0
    %v5218 = vadd.f32 0.0, %v5217
    %v5219 = vpop.f32.mrf.mxu0
    %5220 = vmatprep.mubr.bf16.mxu0 0
    %5221 = vmatmul.mubr.bf16.gmra.mxu0 %v1950
    %v5222 = vpop.f32.mrf.mxu0
    %v5223 = vadd.f32 0.0, %v5222
    %v5224 = vpop.f32.mrf.mxu0
    %v5225 = vpop.f32.mrf.mxu0
    %v5226 = vadd.f32 0.0, %v5225
    %v5227 = vpop.f32.mrf.mxu0
    %5228 = vmatprep.mubr.bf16.mxu0 0
    %5229 = vmatmul.mubr.bf16.gmra.mxu0 %v1951
    %v5230 = vpop.f32.mrf.mxu0
    %v5231 = vadd.f32 0.0, %v5230
    %v5232 = vpop.f32.mrf.mxu0
    %v5233 = vpop.f32.mrf.mxu0
    %v5234 = vadd.f32 0.0, %v5233
    %v5235 = vpop.f32.mrf.mxu0
    %5236 = vmatprep.mubr.bf16.mxu0 0
    %5237 = vmatmul.mubr.bf16.gmra.mxu0 %v1952
    %v5238 = vpop.f32.mrf.mxu0
    %v5239 = vadd.f32 0.0, %v5238
    %v5240 = vpop.f32.mrf.mxu0
    %v5241 = vpop.f32.mrf.mxu0
    %v5242 = vadd.f32 0.0, %v5241
    %v5243 = vpop.f32.mrf.mxu0
    %5244 = vdwg.mxu0
    %v5245 = vpack.c.bf16 %v5186, %v5183
    %v5246 = vpack.c.bf16 %v5194, %v5191
    %v5247 = vpack.c.bf16 %v5202, %v5199
    %v5248 = vpack.c.bf16 %v5210, %v5207
    %v5249 = vpack.c.bf16 %v5218, %v5215
    %v5250 = vpack.c.bf16 %v5226, %v5223
    %v5251 = vpack.c.bf16 %v5234, %v5231
    %v5252 = vpack.c.bf16 %v5242, %v5239
    %s5253 = scalar_lea.vmem %s8, 120
    %v5254 = vld [vmem:[%s5253] sm:$0xf]
    %v5255 = vld [vmem:[%s5253 + $0x4] sm:$0xf]
    %v5256 = vld [vmem:[%s5253 + $0x8] sm:$0xf]
    %v5257 = vld [vmem:[%s5253 + $0xc] sm:$0xf]
    %v5258 = vld [vmem:[%s5253 + $0x10] sm:$0xf]
    %v5259 = vld [vmem:[%s5253 + $0x14] sm:$0xf]
    %v5266 = vunpack.c.l.b16 %v5254
    %v5267 = vunpack.c.l.b16 %v5255
    %v5268 = vunpack.c.l.b16 %v5256
    %v5269 = vunpack.c.l.b16 %v5257
    %v5270 = vunpack.c.l.b16 %v5258
    %v5271 = vunpack.c.l.b16 %v5259
    %v5272 = vpack.c.b16 %v5267, %v5266
    %v5273 = vpack.c.b16 %v5269, %v5268
    %v5274 = vpack.c.b16 %v5271, %v5270
    %v5279 = vsel %vm4086, %v5245, 0
    %v5282 = vsel %vm4086, %v5246, 0
    %v5285 = vsel %vm4086, %v5247, 0
    %v5288 = vsel %vm4086, %v5248, 0
    %v5291 = vsel %vm4086, %v5249, 0
    %v5294 = vsel %vm4086, %v5250, 0
    %v5297 = vsel %vm4086, %v5251, 0
    %v5300 = vsel %vm4086, %v5252, 0
    %5302 = vmatprep.subr.bf16.mxu0 0
    %5303 = vmatpush1.bf16.msra.mxu0 0
    %5304 = vmatprep.subr.bf16.mxu0 0
    %5305 = vmatpush1.bf16.msra.mxu0 0
    %5306 = vmatprep.subr.bf16.mxu0 0
    %5307 = vmatpush1.bf16.msra.mxu0 0
    %5308 = vmatprep.subr.bf16.mxu0 0
    %5309 = vmatpush1.bf16.msra.mxu0 0
    %5310 = vmatprep.subr.bf16.mxu0 0
    %5311 = vmatpush1.bf16.msra.mxu0 0
    %5312 = vmatprep.subr.bf16.mxu0 0
    %5313 = vmatpush1.bf16.msra.mxu0 %v5274
    %5314 = vmatprep.subr.bf16.mxu0 0
    %5315 = vmatpush1.bf16.msra.mxu0 %v5273
    %5316 = vmatprep.subr.bf16.mxu0 0
    %5317 = vmatpush1.bf16.msra.mxu0 %v5272
    %5318 = vmatprep.subr.bf16.mxu0 0
    %5319 = vmatpush2.bf16.msra.mxu0 0
    %5320 = vmatprep.subr.bf16.mxu0 0
    %5321 = vmatpush2.bf16.msra.mxu0 0
    %5322 = vmatprep.subr.bf16.mxu0 0
    %5323 = vmatpush2.bf16.msra.mxu0 0
    %5324 = vmatprep.subr.bf16.mxu0 0
    %5325 = vmatpush2.bf16.msra.mxu0 0
    %5326 = vmatprep.subr.bf16.mxu0 0
    %5327 = vmatpush2.bf16.msra.mxu0 0
    %5328 = vmatprep.subr.bf16.mxu0 0
    %5329 = vmatpush2.bf16.msra.mxu0 0
    %5330 = vmatprep.subr.bf16.mxu0 0
    %5331 = vmatpush2.bf16.msra.mxu0 0
    %5332 = vmatprep.subr.bf16.mxu0 0
    %5333 = vmatpush2.bf16.msra.mxu0 0
    %5334 = vmatprep.mubr.bf16.mxu0 0
    %5335 = vmatmul.mubr.bf16.gmra.mxu0 %v5279
    %v5336 = vpop.f32.mrf.mxu0
    %v5337 = vadd.f32 0.0, %v5336
    %v5338 = vpop.f32.mrf.mxu0
    %v5339 = vpop.f32.mrf.mxu0
    %v5340 = vadd.f32 0.0, %v5339
    %v5341 = vpop.f32.mrf.mxu0
    %5342 = vmatprep.mubr.bf16.mxu0 0
    %5343 = vmatmul.mubr.bf16.gmra.mxu0 %v5282
    %v5344 = vpop.f32.mrf.mxu0
    %v5345 = vadd.f32 0.0, %v5344
    %v5346 = vpop.f32.mrf.mxu0
    %v5347 = vpop.f32.mrf.mxu0
    %v5348 = vadd.f32 0.0, %v5347
    %v5349 = vpop.f32.mrf.mxu0
    %5350 = vmatprep.mubr.bf16.mxu0 0
    %5351 = vmatmul.mubr.bf16.gmra.mxu0 %v5285
    %v5352 = vpop.f32.mrf.mxu0
    %v5353 = vadd.f32 0.0, %v5352
    %v5354 = vpop.f32.mrf.mxu0
    %v5355 = vpop.f32.mrf.mxu0
    %v5356 = vadd.f32 0.0, %v5355
    %v5357 = vpop.f32.mrf.mxu0
    %5358 = vmatprep.mubr.bf16.mxu0 0
    %5359 = vmatmul.mubr.bf16.gmra.mxu0 %v5288
    %v5360 = vpop.f32.mrf.mxu0
    %v5361 = vadd.f32 0.0, %v5360
    %v5362 = vpop.f32.mrf.mxu0
    %v5363 = vpop.f32.mrf.mxu0
    %v5364 = vadd.f32 0.0, %v5363
    %v5365 = vpop.f32.mrf.mxu0
    %5366 = vmatprep.mubr.bf16.mxu0 0
    %5367 = vmatmul.mubr.bf16.gmra.mxu0 %v5291
    %v5368 = vpop.f32.mrf.mxu0
    %v5369 = vadd.f32 0.0, %v5368
    %v5370 = vpop.f32.mrf.mxu0
    %v5371 = vpop.f32.mrf.mxu0
    %v5372 = vadd.f32 0.0, %v5371
    %v5373 = vpop.f32.mrf.mxu0
    %5374 = vmatprep.mubr.bf16.mxu0 0
    %5375 = vmatmul.mubr.bf16.gmra.mxu0 %v5294
    %v5376 = vpop.f32.mrf.mxu0
    %v5377 = vadd.f32 0.0, %v5376
    %v5378 = vpop.f32.mrf.mxu0
    %v5379 = vpop.f32.mrf.mxu0
    %v5380 = vadd.f32 0.0, %v5379
    %v5381 = vpop.f32.mrf.mxu0
    %5382 = vmatprep.mubr.bf16.mxu0 0
    %5383 = vmatmul.mubr.bf16.gmra.mxu0 %v5297
    %v5384 = vpop.f32.mrf.mxu0
    %v5385 = vadd.f32 0.0, %v5384
    %v5386 = vpop.f32.mrf.mxu0
    %v5387 = vpop.f32.mrf.mxu0
    %v5388 = vadd.f32 0.0, %v5387
    %v5389 = vpop.f32.mrf.mxu0
    %5390 = vmatprep.mubr.bf16.mxu0 0
    %5391 = vmatmul.mubr.bf16.gmra.mxu0 %v5300
    %v5392 = vpop.f32.mrf.mxu0
    %v5393 = vadd.f32 0.0, %v5392
    %v5394 = vpop.f32.mrf.mxu0
    %v5395 = vpop.f32.mrf.mxu0
    %v5396 = vadd.f32 0.0, %v5395
    %v5397 = vpop.f32.mrf.mxu0
    %5398 = vdwg.mxu0
    %v5399 = vadd.f32 %v5132, %v5337
    %v5400 = vadd.f32 %v5133, %v5340
    %v5401 = vadd.f32 %v5134, %v5345
    %v5402 = vadd.f32 %v5135, %v5348
    %v5403 = vadd.f32 %v5136, %v5353
    %v5404 = vadd.f32 %v5137, %v5356
    %v5405 = vadd.f32 %v5138, %v5361
    %v5406 = vadd.f32 %v5139, %v5364
    %v5407 = vadd.f32 %v5140, %v5369
    %v5408 = vadd.f32 %v5141, %v5372
    %v5409 = vadd.f32 %v5142, %v5377
    %v5410 = vadd.f32 %v5143, %v5380
    %v5411 = vadd.f32 %v5144, %v5385
    %v5412 = vadd.f32 %v5145, %v5388
    %v5413 = vadd.f32 %v5146, %v5393
    %v5414 = vadd.f32 %v5147, %v5396
    %5415 = vmatprep.subr.bf16.mxu0 0
    %5416 = vmatpush1.bf16.msra.mxu0 %v3844
    %5417 = vmatprep.subr.bf16.mxu0 0
    %5418 = vmatpush1.bf16.msra.mxu0 %v3843
    %5419 = vmatprep.subr.bf16.mxu0 0
    %5420 = vmatpush1.bf16.msra.mxu0 %v3842
    %5421 = vmatprep.subr.bf16.mxu0 0
    %5422 = vmatpush1.bf16.msra.mxu0 %v3841
    %5423 = vmatprep.subr.bf16.mxu0 0
    %5424 = vmatpush1.bf16.msra.mxu0 %v3840
    %5425 = vmatprep.subr.bf16.mxu0 0
    %5426 = vmatpush1.bf16.msra.mxu0 %v3839
    %5427 = vmatprep.subr.bf16.mxu0 0
    %5428 = vmatpush1.bf16.msra.mxu0 %v3838
    %5429 = vmatprep.subr.bf16.mxu0 0
    %5430 = vmatpush1.bf16.msra.mxu0 %v3837
    %5431 = vmatprep.subr.bf16.mxu0 0
    %5432 = vmatpush2.bf16.msra.mxu0 0
    %5433 = vmatprep.subr.bf16.mxu0 0
    %5434 = vmatpush2.bf16.msra.mxu0 0
    %5435 = vmatprep.subr.bf16.mxu0 0
    %5436 = vmatpush2.bf16.msra.mxu0 0
    %5437 = vmatprep.subr.bf16.mxu0 0
    %5438 = vmatpush2.bf16.msra.mxu0 0
    %5439 = vmatprep.subr.bf16.mxu0 0
    %5440 = vmatpush2.bf16.msra.mxu0 0
    %5441 = vmatprep.subr.bf16.mxu0 0
    %5442 = vmatpush2.bf16.msra.mxu0 0
    %5443 = vmatprep.subr.bf16.mxu0 0
    %5444 = vmatpush2.bf16.msra.mxu0 0
    %5445 = vmatprep.subr.bf16.mxu0 0
    %5446 = vmatpush2.bf16.msra.mxu0 0
    %5447 = vmatprep.mubr.bf16.mxu0 0
    %5448 = vmatmul.mubr.bf16.gmra.mxu0 %v2261
    %v5449 = vpop.f32.mrf.mxu0
    %v5450 = vadd.f32 0.0, %v5449
    %v5451 = vpop.f32.mrf.mxu0
    %v5452 = vpop.f32.mrf.mxu0
    %v5453 = vadd.f32 0.0, %v5452
    %v5454 = vpop.f32.mrf.mxu0
    %5455 = vmatprep.mubr.bf16.mxu0 0
    %5456 = vmatmul.mubr.bf16.gmra.mxu0 %v2262
    %v5457 = vpop.f32.mrf.mxu0
    %v5458 = vadd.f32 0.0, %v5457
    %v5459 = vpop.f32.mrf.mxu0
    %v5460 = vpop.f32.mrf.mxu0
    %v5461 = vadd.f32 0.0, %v5460
    %v5462 = vpop.f32.mrf.mxu0
    %5463 = vmatprep.mubr.bf16.mxu0 0
    %5464 = vmatmul.mubr.bf16.gmra.mxu0 %v2263
    %v5465 = vpop.f32.mrf.mxu0
    %v5466 = vadd.f32 0.0, %v5465
    %v5467 = vpop.f32.mrf.mxu0
    %v5468 = vpop.f32.mrf.mxu0
    %v5469 = vadd.f32 0.0, %v5468
    %v5470 = vpop.f32.mrf.mxu0
    %5471 = vmatprep.mubr.bf16.mxu0 0
    %5472 = vmatmul.mubr.bf16.gmra.mxu0 %v2264
    %v5473 = vpop.f32.mrf.mxu0
    %v5474 = vadd.f32 0.0, %v5473
    %v5475 = vpop.f32.mrf.mxu0
    %v5476 = vpop.f32.mrf.mxu0
    %v5477 = vadd.f32 0.0, %v5476
    %v5478 = vpop.f32.mrf.mxu0
    %5479 = vmatprep.mubr.bf16.mxu0 0
    %5480 = vmatmul.mubr.bf16.gmra.mxu0 %v2265
    %v5481 = vpop.f32.mrf.mxu0
    %v5482 = vadd.f32 0.0, %v5481
    %v5483 = vpop.f32.mrf.mxu0
    %v5484 = vpop.f32.mrf.mxu0
    %v5485 = vadd.f32 0.0, %v5484
    %v5486 = vpop.f32.mrf.mxu0
    %5487 = vmatprep.mubr.bf16.mxu0 0
    %5488 = vmatmul.mubr.bf16.gmra.mxu0 %v2266
    %v5489 = vpop.f32.mrf.mxu0
    %v5490 = vadd.f32 0.0, %v5489
    %v5491 = vpop.f32.mrf.mxu0
    %v5492 = vpop.f32.mrf.mxu0
    %v5493 = vadd.f32 0.0, %v5492
    %v5494 = vpop.f32.mrf.mxu0
    %5495 = vmatprep.mubr.bf16.mxu0 0
    %5496 = vmatmul.mubr.bf16.gmra.mxu0 %v2267
    %v5497 = vpop.f32.mrf.mxu0
    %v5498 = vadd.f32 0.0, %v5497
    %v5499 = vpop.f32.mrf.mxu0
    %v5500 = vpop.f32.mrf.mxu0
    %v5501 = vadd.f32 0.0, %v5500
    %v5502 = vpop.f32.mrf.mxu0
    %5503 = vmatprep.mubr.bf16.mxu0 0
    %5504 = vmatmul.mubr.bf16.gmra.mxu0 %v2268
    %v5505 = vpop.f32.mrf.mxu0
    %v5506 = vadd.f32 0.0, %v5505
    %v5507 = vpop.f32.mrf.mxu0
    %v5508 = vpop.f32.mrf.mxu0
    %v5509 = vadd.f32 0.0, %v5508
    %v5510 = vpop.f32.mrf.mxu0
    %5511 = vdwg.mxu0
    %v5512 = vpack.c.bf16 %v5453, %v5450
    %v5513 = vpack.c.bf16 %v5461, %v5458
    %v5514 = vpack.c.bf16 %v5469, %v5466
    %v5515 = vpack.c.bf16 %v5477, %v5474
    %v5516 = vpack.c.bf16 %v5485, %v5482
    %v5517 = vpack.c.bf16 %v5493, %v5490
    %v5518 = vpack.c.bf16 %v5501, %v5498
    %v5519 = vpack.c.bf16 %v5509, %v5506
    %s5520 = scalar_lea.vmem %s8, 144
    %v5521 = vld [vmem:[%s5520] sm:$0xf]
    %v5522 = vld [vmem:[%s5520 + $0x4] sm:$0xf]
    %v5523 = vld [vmem:[%s5520 + $0x8] sm:$0xf]
    %v5524 = vld [vmem:[%s5520 + $0xc] sm:$0xf]
    %v5525 = vld [vmem:[%s5520 + $0x10] sm:$0xf]
    %v5526 = vld [vmem:[%s5520 + $0x14] sm:$0xf]
    %v5533 = vunpack.c.l.b16 %v5521
    %v5534 = vunpack.c.l.b16 %v5522
    %v5535 = vunpack.c.l.b16 %v5523
    %v5536 = vunpack.c.l.b16 %v5524
    %v5537 = vunpack.c.l.b16 %v5525
    %v5538 = vunpack.c.l.b16 %v5526
    %v5539 = vpack.c.b16 %v5534, %v5533
    %v5540 = vpack.c.b16 %v5536, %v5535
    %v5541 = vpack.c.b16 %v5538, %v5537
    %v5546 = vsel %vm4086, %v5512, 0
    %v5549 = vsel %vm4086, %v5513, 0
    %v5552 = vsel %vm4086, %v5514, 0
    %v5555 = vsel %vm4086, %v5515, 0
    %v5558 = vsel %vm4086, %v5516, 0
    %v5561 = vsel %vm4086, %v5517, 0
    %v5564 = vsel %vm4086, %v5518, 0
    %v5567 = vsel %vm4086, %v5519, 0
    %5569 = vmatprep.subr.bf16.mxu0 0
    %5570 = vmatpush1.bf16.msra.mxu0 0
    %5571 = vmatprep.subr.bf16.mxu0 0
    %5572 = vmatpush1.bf16.msra.mxu0 0
    %5573 = vmatprep.subr.bf16.mxu0 0
    %5574 = vmatpush1.bf16.msra.mxu0 0
    %5575 = vmatprep.subr.bf16.mxu0 0
    %5576 = vmatpush1.bf16.msra.mxu0 0
    %5577 = vmatprep.subr.bf16.mxu0 0
    %5578 = vmatpush1.bf16.msra.mxu0 0
    %5579 = vmatprep.subr.bf16.mxu0 0
    %5580 = vmatpush1.bf16.msra.mxu0 %v5541
    %5581 = vmatprep.subr.bf16.mxu0 0
    %5582 = vmatpush1.bf16.msra.mxu0 %v5540
    %5583 = vmatprep.subr.bf16.mxu0 0
    %5584 = vmatpush1.bf16.msra.mxu0 %v5539
    %5585 = vmatprep.subr.bf16.mxu0 0
    %5586 = vmatpush2.bf16.msra.mxu0 0
    %5587 = vmatprep.subr.bf16.mxu0 0
    %5588 = vmatpush2.bf16.msra.mxu0 0
    %5589 = vmatprep.subr.bf16.mxu0 0
    %5590 = vmatpush2.bf16.msra.mxu0 0
    %5591 = vmatprep.subr.bf16.mxu0 0
    %5592 = vmatpush2.bf16.msra.mxu0 0
    %5593 = vmatprep.subr.bf16.mxu0 0
    %5594 = vmatpush2.bf16.msra.mxu0 0
    %5595 = vmatprep.subr.bf16.mxu0 0
    %5596 = vmatpush2.bf16.msra.mxu0 0
    %5597 = vmatprep.subr.bf16.mxu0 0
    %5598 = vmatpush2.bf16.msra.mxu0 0
    %5599 = vmatprep.subr.bf16.mxu0 0
    %5600 = vmatpush2.bf16.msra.mxu0 0
    %5601 = vmatprep.mubr.bf16.mxu0 0
    %5602 = vmatmul.mubr.bf16.gmra.mxu0 %v5546
    %v5603 = vpop.f32.mrf.mxu0
    %v5604 = vadd.f32 0.0, %v5603
    %v5605 = vpop.f32.mrf.mxu0
    %v5606 = vpop.f32.mrf.mxu0
    %v5607 = vadd.f32 0.0, %v5606
    %v5608 = vpop.f32.mrf.mxu0
    %5609 = vmatprep.mubr.bf16.mxu0 0
    %5610 = vmatmul.mubr.bf16.gmra.mxu0 %v5549
    %v5611 = vpop.f32.mrf.mxu0
    %v5612 = vadd.f32 0.0, %v5611
    %v5613 = vpop.f32.mrf.mxu0
    %v5614 = vpop.f32.mrf.mxu0
    %v5615 = vadd.f32 0.0, %v5614
    %v5616 = vpop.f32.mrf.mxu0
    %5617 = vmatprep.mubr.bf16.mxu0 0
    %5618 = vmatmul.mubr.bf16.gmra.mxu0 %v5552
    %v5619 = vpop.f32.mrf.mxu0
    %v5620 = vadd.f32 0.0, %v5619
    %v5621 = vpop.f32.mrf.mxu0
    %v5622 = vpop.f32.mrf.mxu0
    %v5623 = vadd.f32 0.0, %v5622
    %v5624 = vpop.f32.mrf.mxu0
    %5625 = vmatprep.mubr.bf16.mxu0 0
    %5626 = vmatmul.mubr.bf16.gmra.mxu0 %v5555
    %v5627 = vpop.f32.mrf.mxu0
    %v5628 = vadd.f32 0.0, %v5627
    %v5629 = vpop.f32.mrf.mxu0
    %v5630 = vpop.f32.mrf.mxu0
    %v5631 = vadd.f32 0.0, %v5630
    %v5632 = vpop.f32.mrf.mxu0
    %5633 = vmatprep.mubr.bf16.mxu0 0
    %5634 = vmatmul.mubr.bf16.gmra.mxu0 %v5558
    %v5635 = vpop.f32.mrf.mxu0
    %v5636 = vadd.f32 0.0, %v5635
    %v5637 = vpop.f32.mrf.mxu0
    %v5638 = vpop.f32.mrf.mxu0
    %v5639 = vadd.f32 0.0, %v5638
    %v5640 = vpop.f32.mrf.mxu0
    %5641 = vmatprep.mubr.bf16.mxu0 0
    %5642 = vmatmul.mubr.bf16.gmra.mxu0 %v5561
    %v5643 = vpop.f32.mrf.mxu0
    %v5644 = vadd.f32 0.0, %v5643
    %v5645 = vpop.f32.mrf.mxu0
    %v5646 = vpop.f32.mrf.mxu0
    %v5647 = vadd.f32 0.0, %v5646
    %v5648 = vpop.f32.mrf.mxu0
    %5649 = vmatprep.mubr.bf16.mxu0 0
    %5650 = vmatmul.mubr.bf16.gmra.mxu0 %v5564
    %v5651 = vpop.f32.mrf.mxu0
    %v5652 = vadd.f32 0.0, %v5651
    %v5653 = vpop.f32.mrf.mxu0
    %v5654 = vpop.f32.mrf.mxu0
    %v5655 = vadd.f32 0.0, %v5654
    %v5656 = vpop.f32.mrf.mxu0
    %5657 = vmatprep.mubr.bf16.mxu0 0
    %5658 = vmatmul.mubr.bf16.gmra.mxu0 %v5567
    %v5659 = vpop.f32.mrf.mxu0
    %v5660 = vadd.f32 0.0, %v5659
    %v5661 = vpop.f32.mrf.mxu0
    %v5662 = vpop.f32.mrf.mxu0
    %v5663 = vadd.f32 0.0, %v5662
    %v5664 = vpop.f32.mrf.mxu0
    %5665 = vdwg.mxu0
    %v5666 = vadd.f32 %v5399, %v5604
    %v5667 = vadd.f32 %v5400, %v5607
    %v5668 = vadd.f32 %v5401, %v5612
    %v5669 = vadd.f32 %v5402, %v5615
    %v5670 = vadd.f32 %v5403, %v5620
    %v5671 = vadd.f32 %v5404, %v5623
    %v5672 = vadd.f32 %v5405, %v5628
    %v5673 = vadd.f32 %v5406, %v5631
    %v5674 = vadd.f32 %v5407, %v5636
    %v5675 = vadd.f32 %v5408, %v5639
    %v5676 = vadd.f32 %v5409, %v5644
    %v5677 = vadd.f32 %v5410, %v5647
    %v5678 = vadd.f32 %v5411, %v5652
    %v5679 = vadd.f32 %v5412, %v5655
    %v5680 = vadd.f32 %v5413, %v5660
    %v5681 = vadd.f32 %v5414, %v5663
    %5682 = vmatprep.subr.bf16.mxu0 0
    %5683 = vmatpush1.bf16.msra.mxu0 %v3844
    %5684 = vmatprep.subr.bf16.mxu0 0
    %5685 = vmatpush1.bf16.msra.mxu0 %v3843
    %5686 = vmatprep.subr.bf16.mxu0 0
    %5687 = vmatpush1.bf16.msra.mxu0 %v3842
    %5688 = vmatprep.subr.bf16.mxu0 0
    %5689 = vmatpush1.bf16.msra.mxu0 %v3841
    %5690 = vmatprep.subr.bf16.mxu0 0
    %5691 = vmatpush1.bf16.msra.mxu0 %v3840
    %5692 = vmatprep.subr.bf16.mxu0 0
    %5693 = vmatpush1.bf16.msra.mxu0 %v3839
    %5694 = vmatprep.subr.bf16.mxu0 0
    %5695 = vmatpush1.bf16.msra.mxu0 %v3838
    %5696 = vmatprep.subr.bf16.mxu0 0
    %5697 = vmatpush1.bf16.msra.mxu0 %v3837
    %5698 = vmatprep.subr.bf16.mxu0 0
    %5699 = vmatpush2.bf16.msra.mxu0 0
    %5700 = vmatprep.subr.bf16.mxu0 0
    %5701 = vmatpush2.bf16.msra.mxu0 0
    %5702 = vmatprep.subr.bf16.mxu0 0
    %5703 = vmatpush2.bf16.msra.mxu0 0
    %5704 = vmatprep.subr.bf16.mxu0 0
    %5705 = vmatpush2.bf16.msra.mxu0 0
    %5706 = vmatprep.subr.bf16.mxu0 0
    %5707 = vmatpush2.bf16.msra.mxu0 0
    %5708 = vmatprep.subr.bf16.mxu0 0
    %5709 = vmatpush2.bf16.msra.mxu0 0
    %5710 = vmatprep.subr.bf16.mxu0 0
    %5711 = vmatpush2.bf16.msra.mxu0 0
    %5712 = vmatprep.subr.bf16.mxu0 0
    %5713 = vmatpush2.bf16.msra.mxu0 0
    %5714 = vmatprep.mubr.bf16.mxu0 0
    %5715 = vmatmul.mubr.bf16.gmra.mxu0 %v2577
    %v5716 = vpop.f32.mrf.mxu0
    %v5717 = vadd.f32 0.0, %v5716
    %v5718 = vpop.f32.mrf.mxu0
    %v5719 = vpop.f32.mrf.mxu0
    %v5720 = vadd.f32 0.0, %v5719
    %v5721 = vpop.f32.mrf.mxu0
    %5722 = vmatprep.mubr.bf16.mxu0 0
    %5723 = vmatmul.mubr.bf16.gmra.mxu0 %v2578
    %v5724 = vpop.f32.mrf.mxu0
    %v5725 = vadd.f32 0.0, %v5724
    %v5726 = vpop.f32.mrf.mxu0
    %v5727 = vpop.f32.mrf.mxu0
    %v5728 = vadd.f32 0.0, %v5727
    %v5729 = vpop.f32.mrf.mxu0
    %5730 = vmatprep.mubr.bf16.mxu0 0
    %5731 = vmatmul.mubr.bf16.gmra.mxu0 %v2579
    %v5732 = vpop.f32.mrf.mxu0
    %v5733 = vadd.f32 0.0, %v5732
    %v5734 = vpop.f32.mrf.mxu0
    %v5735 = vpop.f32.mrf.mxu0
    %v5736 = vadd.f32 0.0, %v5735
    %v5737 = vpop.f32.mrf.mxu0
    %5738 = vmatprep.mubr.bf16.mxu0 0
    %5739 = vmatmul.mubr.bf16.gmra.mxu0 %v2580
    %v5740 = vpop.f32.mrf.mxu0
    %v5741 = vadd.f32 0.0, %v5740
    %v5742 = vpop.f32.mrf.mxu0
    %v5743 = vpop.f32.mrf.mxu0
    %v5744 = vadd.f32 0.0, %v5743
    %v5745 = vpop.f32.mrf.mxu0
    %5746 = vmatprep.mubr.bf16.mxu0 0
    %5747 = vmatmul.mubr.bf16.gmra.mxu0 %v2581
    %v5748 = vpop.f32.mrf.mxu0
    %v5749 = vadd.f32 0.0, %v5748
    %v5750 = vpop.f32.mrf.mxu0
    %v5751 = vpop.f32.mrf.mxu0
    %v5752 = vadd.f32 0.0, %v5751
    %v5753 = vpop.f32.mrf.mxu0
    %5754 = vmatprep.mubr.bf16.mxu0 0
    %5755 = vmatmul.mubr.bf16.gmra.mxu0 %v2582
    %v5756 = vpop.f32.mrf.mxu0
    %v5757 = vadd.f32 0.0, %v5756
    %v5758 = vpop.f32.mrf.mxu0
    %v5759 = vpop.f32.mrf.mxu0
    %v5760 = vadd.f32 0.0, %v5759
    %v5761 = vpop.f32.mrf.mxu0
    %5762 = vmatprep.mubr.bf16.mxu0 0
    %5763 = vmatmul.mubr.bf16.gmra.mxu0 %v2583
    %v5764 = vpop.f32.mrf.mxu0
    %v5765 = vadd.f32 0.0, %v5764
    %v5766 = vpop.f32.mrf.mxu0
    %v5767 = vpop.f32.mrf.mxu0
    %v5768 = vadd.f32 0.0, %v5767
    %v5769 = vpop.f32.mrf.mxu0
    %5770 = vmatprep.mubr.bf16.mxu0 0
    %5771 = vmatmul.mubr.bf16.gmra.mxu0 %v2584
    %v5772 = vpop.f32.mrf.mxu0
    %v5773 = vadd.f32 0.0, %v5772
    %v5774 = vpop.f32.mrf.mxu0
    %v5775 = vpop.f32.mrf.mxu0
    %v5776 = vadd.f32 0.0, %v5775
    %v5777 = vpop.f32.mrf.mxu0
    %5778 = vdwg.mxu0
    %v5779 = vpack.c.bf16 %v5720, %v5717
    %v5780 = vpack.c.bf16 %v5728, %v5725
    %v5781 = vpack.c.bf16 %v5736, %v5733
    %v5782 = vpack.c.bf16 %v5744, %v5741
    %v5783 = vpack.c.bf16 %v5752, %v5749
    %v5784 = vpack.c.bf16 %v5760, %v5757
    %v5785 = vpack.c.bf16 %v5768, %v5765
    %v5786 = vpack.c.bf16 %v5776, %v5773
    %s5787 = scalar_lea.vmem %s8, 168
    %v5788 = vld [vmem:[%s5787] sm:$0xf]
    %v5789 = vld [vmem:[%s5787 + $0x4] sm:$0xf]
    %v5790 = vld [vmem:[%s5787 + $0x8] sm:$0xf]
    %v5791 = vld [vmem:[%s5787 + $0xc] sm:$0xf]
    %v5792 = vld [vmem:[%s5787 + $0x10] sm:$0xf]
    %v5793 = vld [vmem:[%s5787 + $0x14] sm:$0xf]
    %v5800 = vunpack.c.l.b16 %v5788
    %v5801 = vunpack.c.l.b16 %v5789
    %v5802 = vunpack.c.l.b16 %v5790
    %v5803 = vunpack.c.l.b16 %v5791
    %v5804 = vunpack.c.l.b16 %v5792
    %v5805 = vunpack.c.l.b16 %v5793
    %v5806 = vpack.c.b16 %v5801, %v5800
    %v5807 = vpack.c.b16 %v5803, %v5802
    %v5808 = vpack.c.b16 %v5805, %v5804
    %v5813 = vsel %vm4086, %v5779, 0
    %v5816 = vsel %vm4086, %v5780, 0
    %v5819 = vsel %vm4086, %v5781, 0
    %v5822 = vsel %vm4086, %v5782, 0
    %v5825 = vsel %vm4086, %v5783, 0
    %v5828 = vsel %vm4086, %v5784, 0
    %v5831 = vsel %vm4086, %v5785, 0
    %v5834 = vsel %vm4086, %v5786, 0
    %5836 = vmatprep.subr.bf16.mxu0 0
    %5837 = vmatpush1.bf16.msra.mxu0 0
    %5838 = vmatprep.subr.bf16.mxu0 0
    %5839 = vmatpush1.bf16.msra.mxu0 0
    %5840 = vmatprep.subr.bf16.mxu0 0
    %5841 = vmatpush1.bf16.msra.mxu0 0
    %5842 = vmatprep.subr.bf16.mxu0 0
    %5843 = vmatpush1.bf16.msra.mxu0 0
    %5844 = vmatprep.subr.bf16.mxu0 0
    %5845 = vmatpush1.bf16.msra.mxu0 0
    %5846 = vmatprep.subr.bf16.mxu0 0
    %5847 = vmatpush1.bf16.msra.mxu0 %v5808
    %5848 = vmatprep.subr.bf16.mxu0 0
    %5849 = vmatpush1.bf16.msra.mxu0 %v5807
    %5850 = vmatprep.subr.bf16.mxu0 0
    %5851 = vmatpush1.bf16.msra.mxu0 %v5806
    %5852 = vmatprep.subr.bf16.mxu0 0
    %5853 = vmatpush2.bf16.msra.mxu0 0
    %5854 = vmatprep.subr.bf16.mxu0 0
    %5855 = vmatpush2.bf16.msra.mxu0 0
    %5856 = vmatprep.subr.bf16.mxu0 0
    %5857 = vmatpush2.bf16.msra.mxu0 0
    %5858 = vmatprep.subr.bf16.mxu0 0
    %5859 = vmatpush2.bf16.msra.mxu0 0
    %5860 = vmatprep.subr.bf16.mxu0 0
    %5861 = vmatpush2.bf16.msra.mxu0 0
    %5862 = vmatprep.subr.bf16.mxu0 0
    %5863 = vmatpush2.bf16.msra.mxu0 0
    %5864 = vmatprep.subr.bf16.mxu0 0
    %5865 = vmatpush2.bf16.msra.mxu0 0
    %5866 = vmatprep.subr.bf16.mxu0 0
    %5867 = vmatpush2.bf16.msra.mxu0 0
    %5868 = vmatprep.mubr.bf16.mxu0 0
    %5869 = vmatmul.mubr.bf16.gmra.mxu0 %v5813
    %v5870 = vpop.f32.mrf.mxu0
    %v5871 = vadd.f32 0.0, %v5870
    %v5872 = vpop.f32.mrf.mxu0
    %v5873 = vpop.f32.mrf.mxu0
    %v5874 = vadd.f32 0.0, %v5873
    %v5875 = vpop.f32.mrf.mxu0
    %5876 = vmatprep.mubr.bf16.mxu0 0
    %5877 = vmatmul.mubr.bf16.gmra.mxu0 %v5816
    %v5878 = vpop.f32.mrf.mxu0
    %v5879 = vadd.f32 0.0, %v5878
    %v5880 = vpop.f32.mrf.mxu0
    %v5881 = vpop.f32.mrf.mxu0
    %v5882 = vadd.f32 0.0, %v5881
    %v5883 = vpop.f32.mrf.mxu0
    %5884 = vmatprep.mubr.bf16.mxu0 0
    %5885 = vmatmul.mubr.bf16.gmra.mxu0 %v5819
    %v5886 = vpop.f32.mrf.mxu0
    %v5887 = vadd.f32 0.0, %v5886
    %v5888 = vpop.f32.mrf.mxu0
    %v5889 = vpop.f32.mrf.mxu0
    %v5890 = vadd.f32 0.0, %v5889
    %v5891 = vpop.f32.mrf.mxu0
    %5892 = vmatprep.mubr.bf16.mxu0 0
    %5893 = vmatmul.mubr.bf16.gmra.mxu0 %v5822
    %v5894 = vpop.f32.mrf.mxu0
    %v5895 = vadd.f32 0.0, %v5894
    %v5896 = vpop.f32.mrf.mxu0
    %v5897 = vpop.f32.mrf.mxu0
    %v5898 = vadd.f32 0.0, %v5897
    %v5899 = vpop.f32.mrf.mxu0
    %5900 = vmatprep.mubr.bf16.mxu0 0
    %5901 = vmatmul.mubr.bf16.gmra.mxu0 %v5825
    %v5902 = vpop.f32.mrf.mxu0
    %v5903 = vadd.f32 0.0, %v5902
    %v5904 = vpop.f32.mrf.mxu0
    %v5905 = vpop.f32.mrf.mxu0
    %v5906 = vadd.f32 0.0, %v5905
    %v5907 = vpop.f32.mrf.mxu0
    %5908 = vmatprep.mubr.bf16.mxu0 0
    %5909 = vmatmul.mubr.bf16.gmra.mxu0 %v5828
    %v5910 = vpop.f32.mrf.mxu0
    %v5911 = vadd.f32 0.0, %v5910
    %v5912 = vpop.f32.mrf.mxu0
    %v5913 = vpop.f32.mrf.mxu0
    %v5914 = vadd.f32 0.0, %v5913
    %v5915 = vpop.f32.mrf.mxu0
    %5916 = vmatprep.mubr.bf16.mxu0 0
    %5917 = vmatmul.mubr.bf16.gmra.mxu0 %v5831
    %v5918 = vpop.f32.mrf.mxu0
    %v5919 = vadd.f32 0.0, %v5918
    %v5920 = vpop.f32.mrf.mxu0
    %v5921 = vpop.f32.mrf.mxu0
    %v5922 = vadd.f32 0.0, %v5921
    %v5923 = vpop.f32.mrf.mxu0
    %5924 = vmatprep.mubr.bf16.mxu0 0
    %5925 = vmatmul.mubr.bf16.gmra.mxu0 %v5834
    %v5926 = vpop.f32.mrf.mxu0
    %v5927 = vadd.f32 0.0, %v5926
    %v5928 = vpop.f32.mrf.mxu0
    %v5929 = vpop.f32.mrf.mxu0
    %v5930 = vadd.f32 0.0, %v5929
    %v5931 = vpop.f32.mrf.mxu0
    %5932 = vdwg.mxu0
    %v5933 = vadd.f32 %v5666, %v5871
    %v5934 = vadd.f32 %v5667, %v5874
    %v5935 = vadd.f32 %v5668, %v5879
    %v5936 = vadd.f32 %v5669, %v5882
    %v5937 = vadd.f32 %v5670, %v5887
    %v5938 = vadd.f32 %v5671, %v5890
    %v5939 = vadd.f32 %v5672, %v5895
    %v5940 = vadd.f32 %v5673, %v5898
    %v5941 = vadd.f32 %v5674, %v5903
    %v5942 = vadd.f32 %v5675, %v5906
    %v5943 = vadd.f32 %v5676, %v5911
    %v5944 = vadd.f32 %v5677, %v5914
    %v5945 = vadd.f32 %v5678, %v5919
    %v5946 = vadd.f32 %v5679, %v5922
    %v5947 = vadd.f32 %v5680, %v5927
    %v5948 = vadd.f32 %v5681, %v5930
    %5949 = vmatprep.subr.bf16.mxu0 0
    %5950 = vmatpush1.bf16.msra.mxu0 %v3844
    %5951 = vmatprep.subr.bf16.mxu0 0
    %5952 = vmatpush1.bf16.msra.mxu0 %v3843
    %5953 = vmatprep.subr.bf16.mxu0 0
    %5954 = vmatpush1.bf16.msra.mxu0 %v3842
    %5955 = vmatprep.subr.bf16.mxu0 0
    %5956 = vmatpush1.bf16.msra.mxu0 %v3841
    %5957 = vmatprep.subr.bf16.mxu0 0
    %5958 = vmatpush1.bf16.msra.mxu0 %v3840
    %5959 = vmatprep.subr.bf16.mxu0 0
    %5960 = vmatpush1.bf16.msra.mxu0 %v3839
    %5961 = vmatprep.subr.bf16.mxu0 0
    %5962 = vmatpush1.bf16.msra.mxu0 %v3838
    %5963 = vmatprep.subr.bf16.mxu0 0
    %5964 = vmatpush1.bf16.msra.mxu0 %v3837
    %5965 = vmatprep.subr.bf16.mxu0 0
    %5966 = vmatpush2.bf16.msra.mxu0 0
    %5967 = vmatprep.subr.bf16.mxu0 0
    %5968 = vmatpush2.bf16.msra.mxu0 0
    %5969 = vmatprep.subr.bf16.mxu0 0
    %5970 = vmatpush2.bf16.msra.mxu0 0
    %5971 = vmatprep.subr.bf16.mxu0 0
    %5972 = vmatpush2.bf16.msra.mxu0 0
    %5973 = vmatprep.subr.bf16.mxu0 0
    %5974 = vmatpush2.bf16.msra.mxu0 0
    %5975 = vmatprep.subr.bf16.mxu0 0
    %5976 = vmatpush2.bf16.msra.mxu0 0
    %5977 = vmatprep.subr.bf16.mxu0 0
    %5978 = vmatpush2.bf16.msra.mxu0 0
    %5979 = vmatprep.subr.bf16.mxu0 0
    %5980 = vmatpush2.bf16.msra.mxu0 0
    %5981 = vmatprep.mubr.bf16.mxu0 0
    %5982 = vmatmul.mubr.bf16.gmra.mxu0 %v2893
    %v5983 = vpop.f32.mrf.mxu0
    %v5984 = vadd.f32 0.0, %v5983
    %v5985 = vpop.f32.mrf.mxu0
    %v5986 = vpop.f32.mrf.mxu0
    %v5987 = vadd.f32 0.0, %v5986
    %v5988 = vpop.f32.mrf.mxu0
    %5989 = vmatprep.mubr.bf16.mxu0 0
    %5990 = vmatmul.mubr.bf16.gmra.mxu0 %v2894
    %v5991 = vpop.f32.mrf.mxu0
    %v5992 = vadd.f32 0.0, %v5991
    %v5993 = vpop.f32.mrf.mxu0
    %v5994 = vpop.f32.mrf.mxu0
    %v5995 = vadd.f32 0.0, %v5994
    %v5996 = vpop.f32.mrf.mxu0
    %5997 = vmatprep.mubr.bf16.mxu0 0
    %5998 = vmatmul.mubr.bf16.gmra.mxu0 %v2895
    %v5999 = vpop.f32.mrf.mxu0
    %v6000 = vadd.f32 0.0, %v5999
    %v6001 = vpop.f32.mrf.mxu0
    %v6002 = vpop.f32.mrf.mxu0
    %v6003 = vadd.f32 0.0, %v6002
    %v6004 = vpop.f32.mrf.mxu0
    %6005 = vmatprep.mubr.bf16.mxu0 0
    %6006 = vmatmul.mubr.bf16.gmra.mxu0 %v2896
    %v6007 = vpop.f32.mrf.mxu0
    %v6008 = vadd.f32 0.0, %v6007
    %v6009 = vpop.f32.mrf.mxu0
    %v6010 = vpop.f32.mrf.mxu0
    %v6011 = vadd.f32 0.0, %v6010
    %v6012 = vpop.f32.mrf.mxu0
    %6013 = vmatprep.mubr.bf16.mxu0 0
    %6014 = vmatmul.mubr.bf16.gmra.mxu0 %v2897
    %v6015 = vpop.f32.mrf.mxu0
    %v6016 = vadd.f32 0.0, %v6015
    %v6017 = vpop.f32.mrf.mxu0
    %v6018 = vpop.f32.mrf.mxu0
    %v6019 = vadd.f32 0.0, %v6018
    %v6020 = vpop.f32.mrf.mxu0
    %6021 = vmatprep.mubr.bf16.mxu0 0
    %6022 = vmatmul.mubr.bf16.gmra.mxu0 %v2898
    %v6023 = vpop.f32.mrf.mxu0
    %v6024 = vadd.f32 0.0, %v6023
    %v6025 = vpop.f32.mrf.mxu0
    %v6026 = vpop.f32.mrf.mxu0
    %v6027 = vadd.f32 0.0, %v6026
    %v6028 = vpop.f32.mrf.mxu0
    %6029 = vmatprep.mubr.bf16.mxu0 0
    %6030 = vmatmul.mubr.bf16.gmra.mxu0 %v2899
    %v6031 = vpop.f32.mrf.mxu0
    %v6032 = vadd.f32 0.0, %v6031
    %v6033 = vpop.f32.mrf.mxu0
    %v6034 = vpop.f32.mrf.mxu0
    %v6035 = vadd.f32 0.0, %v6034
    %v6036 = vpop.f32.mrf.mxu0
    %6037 = vmatprep.mubr.bf16.mxu0 0
    %6038 = vmatmul.mubr.bf16.gmra.mxu0 %v2900
    %v6039 = vpop.f32.mrf.mxu0
    %v6040 = vadd.f32 0.0, %v6039
    %v6041 = vpop.f32.mrf.mxu0
    %v6042 = vpop.f32.mrf.mxu0
    %v6043 = vadd.f32 0.0, %v6042
    %v6044 = vpop.f32.mrf.mxu0
    %6045 = vdwg.mxu0
    %v6046 = vpack.c.bf16 %v5987, %v5984
    %v6047 = vpack.c.bf16 %v5995, %v5992
    %v6048 = vpack.c.bf16 %v6003, %v6000
    %v6049 = vpack.c.bf16 %v6011, %v6008
    %v6050 = vpack.c.bf16 %v6019, %v6016
    %v6051 = vpack.c.bf16 %v6027, %v6024
    %v6052 = vpack.c.bf16 %v6035, %v6032
    %v6053 = vpack.c.bf16 %v6043, %v6040
    %s6054 = scalar_lea.vmem %s8, 192
    %v6055 = vld [vmem:[%s6054] sm:$0xf]
    %v6056 = vld [vmem:[%s6054 + $0x4] sm:$0xf]
    %v6057 = vld [vmem:[%s6054 + $0x8] sm:$0xf]
    %v6058 = vld [vmem:[%s6054 + $0xc] sm:$0xf]
    %v6059 = vld [vmem:[%s6054 + $0x10] sm:$0xf]
    %v6060 = vld [vmem:[%s6054 + $0x14] sm:$0xf]
    %v6067 = vunpack.c.l.b16 %v6055
    %v6068 = vunpack.c.l.b16 %v6056
    %v6069 = vunpack.c.l.b16 %v6057
    %v6070 = vunpack.c.l.b16 %v6058
    %v6071 = vunpack.c.l.b16 %v6059
    %v6072 = vunpack.c.l.b16 %v6060
    %v6073 = vpack.c.b16 %v6068, %v6067
    %v6074 = vpack.c.b16 %v6070, %v6069
    %v6075 = vpack.c.b16 %v6072, %v6071
    %v6080 = vsel %vm4086, %v6046, 0
    %v6083 = vsel %vm4086, %v6047, 0
    %v6086 = vsel %vm4086, %v6048, 0
    %v6089 = vsel %vm4086, %v6049, 0
    %v6092 = vsel %vm4086, %v6050, 0
    %v6095 = vsel %vm4086, %v6051, 0
    %v6098 = vsel %vm4086, %v6052, 0
    %v6101 = vsel %vm4086, %v6053, 0
    %6103 = vmatprep.subr.bf16.mxu0 0
    %6104 = vmatpush1.bf16.msra.mxu0 0
    %6105 = vmatprep.subr.bf16.mxu0 0
    %6106 = vmatpush1.bf16.msra.mxu0 0
    %6107 = vmatprep.subr.bf16.mxu0 0
    %6108 = vmatpush1.bf16.msra.mxu0 0
    %6109 = vmatprep.subr.bf16.mxu0 0
    %6110 = vmatpush1.bf16.msra.mxu0 0
    %6111 = vmatprep.subr.bf16.mxu0 0
    %6112 = vmatpush1.bf16.msra.mxu0 0
    %6113 = vmatprep.subr.bf16.mxu0 0
    %6114 = vmatpush1.bf16.msra.mxu0 %v6075
    %6115 = vmatprep.subr.bf16.mxu0 0
    %6116 = vmatpush1.bf16.msra.mxu0 %v6074
    %6117 = vmatprep.subr.bf16.mxu0 0
    %6118 = vmatpush1.bf16.msra.mxu0 %v6073
    %6119 = vmatprep.subr.bf16.mxu0 0
    %6120 = vmatpush2.bf16.msra.mxu0 0
    %6121 = vmatprep.subr.bf16.mxu0 0
    %6122 = vmatpush2.bf16.msra.mxu0 0
    %6123 = vmatprep.subr.bf16.mxu0 0
    %6124 = vmatpush2.bf16.msra.mxu0 0
    %6125 = vmatprep.subr.bf16.mxu0 0
    %6126 = vmatpush2.bf16.msra.mxu0 0
    %6127 = vmatprep.subr.bf16.mxu0 0
    %6128 = vmatpush2.bf16.msra.mxu0 0
    %6129 = vmatprep.subr.bf16.mxu0 0
    %6130 = vmatpush2.bf16.msra.mxu0 0
    %6131 = vmatprep.subr.bf16.mxu0 0
    %6132 = vmatpush2.bf16.msra.mxu0 0
    %6133 = vmatprep.subr.bf16.mxu0 0
    %6134 = vmatpush2.bf16.msra.mxu0 0
    %6135 = vmatprep.mubr.bf16.mxu0 0
    %6136 = vmatmul.mubr.bf16.gmra.mxu0 %v6080
    %v6137 = vpop.f32.mrf.mxu0
    %v6138 = vadd.f32 0.0, %v6137
    %v6139 = vpop.f32.mrf.mxu0
    %v6140 = vpop.f32.mrf.mxu0
    %v6141 = vadd.f32 0.0, %v6140
    %v6142 = vpop.f32.mrf.mxu0
    %6143 = vmatprep.mubr.bf16.mxu0 0
    %6144 = vmatmul.mubr.bf16.gmra.mxu0 %v6083
    %v6145 = vpop.f32.mrf.mxu0
    %v6146 = vadd.f32 0.0, %v6145
    %v6147 = vpop.f32.mrf.mxu0
    %v6148 = vpop.f32.mrf.mxu0
    %v6149 = vadd.f32 0.0, %v6148
    %v6150 = vpop.f32.mrf.mxu0
    %6151 = vmatprep.mubr.bf16.mxu0 0
    %6152 = vmatmul.mubr.bf16.gmra.mxu0 %v6086
    %v6153 = vpop.f32.mrf.mxu0
    %v6154 = vadd.f32 0.0, %v6153
    %v6155 = vpop.f32.mrf.mxu0
    %v6156 = vpop.f32.mrf.mxu0
    %v6157 = vadd.f32 0.0, %v6156
    %v6158 = vpop.f32.mrf.mxu0
    %6159 = vmatprep.mubr.bf16.mxu0 0
    %6160 = vmatmul.mubr.bf16.gmra.mxu0 %v6089
    %v6161 = vpop.f32.mrf.mxu0
    %v6162 = vadd.f32 0.0, %v6161
    %v6163 = vpop.f32.mrf.mxu0
    %v6164 = vpop.f32.mrf.mxu0
    %v6165 = vadd.f32 0.0, %v6164
    %v6166 = vpop.f32.mrf.mxu0
    %6167 = vmatprep.mubr.bf16.mxu0 0
    %6168 = vmatmul.mubr.bf16.gmra.mxu0 %v6092
    %v6169 = vpop.f32.mrf.mxu0
    %v6170 = vadd.f32 0.0, %v6169
    %v6171 = vpop.f32.mrf.mxu0
    %v6172 = vpop.f32.mrf.mxu0
    %v6173 = vadd.f32 0.0, %v6172
    %v6174 = vpop.f32.mrf.mxu0
    %6175 = vmatprep.mubr.bf16.mxu0 0
    %6176 = vmatmul.mubr.bf16.gmra.mxu0 %v6095
    %v6177 = vpop.f32.mrf.mxu0
    %v6178 = vadd.f32 0.0, %v6177
    %v6179 = vpop.f32.mrf.mxu0
    %v6180 = vpop.f32.mrf.mxu0
    %v6181 = vadd.f32 0.0, %v6180
    %v6182 = vpop.f32.mrf.mxu0
    %6183 = vmatprep.mubr.bf16.mxu0 0
    %6184 = vmatmul.mubr.bf16.gmra.mxu0 %v6098
    %v6185 = vpop.f32.mrf.mxu0
    %v6186 = vadd.f32 0.0, %v6185
    %v6187 = vpop.f32.mrf.mxu0
    %v6188 = vpop.f32.mrf.mxu0
    %v6189 = vadd.f32 0.0, %v6188
    %v6190 = vpop.f32.mrf.mxu0
    %6191 = vmatprep.mubr.bf16.mxu0 0
    %6192 = vmatmul.mubr.bf16.gmra.mxu0 %v6101
    %v6193 = vpop.f32.mrf.mxu0
    %v6194 = vadd.f32 0.0, %v6193
    %v6195 = vpop.f32.mrf.mxu0
    %v6196 = vpop.f32.mrf.mxu0
    %v6197 = vadd.f32 0.0, %v6196
    %v6198 = vpop.f32.mrf.mxu0
    %6199 = vdwg.mxu0
    %v6200 = vadd.f32 %v5933, %v6138
    %v6201 = vadd.f32 %v5934, %v6141
    %v6202 = vadd.f32 %v5935, %v6146
    %v6203 = vadd.f32 %v5936, %v6149
    %v6204 = vadd.f32 %v5937, %v6154
    %v6205 = vadd.f32 %v5938, %v6157
    %v6206 = vadd.f32 %v5939, %v6162
    %v6207 = vadd.f32 %v5940, %v6165
    %v6208 = vadd.f32 %v5941, %v6170
    %v6209 = vadd.f32 %v5942, %v6173
    %v6210 = vadd.f32 %v5943, %v6178
    %v6211 = vadd.f32 %v5944, %v6181
    %v6212 = vadd.f32 %v5945, %v6186
    %v6213 = vadd.f32 %v5946, %v6189
    %v6214 = vadd.f32 %v5947, %v6194
    %v6215 = vadd.f32 %v5948, %v6197
    %v6216 = vlaneseq
    %v6217 = vshrl.u32 %v6216, 7
    %v6218 = vsub.s32 1, %v6217
    %v6219 = vrot.slane %v3654, %v6218
    %v6220 = vadd.f32 %v6200, %v6219
    %v6221 = vadd.f32 %v6201, %v6219
    %v6222 = vadd.f32 %v6202, %v6219
    %v6223 = vadd.f32 %v6203, %v6219
    %v6224 = vadd.f32 %v6204, %v6219
    %v6225 = vadd.f32 %v6205, %v6219
    %v6226 = vadd.f32 %v6206, %v6219
    %v6227 = vadd.f32 %v6207, %v6219
    %v6228 = vadd.f32 %v6208, %v6219
    %v6229 = vadd.f32 %v6209, %v6219
    %v6230 = vadd.f32 %v6210, %v6219
    %v6231 = vadd.f32 %v6211, %v6219
    %v6232 = vadd.f32 %v6212, %v6219
    %v6233 = vadd.f32 %v6213, %v6219
    %v6234 = vadd.f32 %v6214, %v6219
    %v6235 = vadd.f32 %v6215, %v6219
    %v6236 = vmax.f32 %v6220, 0.0
    %v6237 = vmax.f32 %v6221, 0.0
    %v6238 = vmax.f32 %v6222, 0.0
    %v6239 = vmax.f32 %v6223, 0.0
    %v6240 = vmax.f32 %v6224, 0.0
    %v6241 = vmax.f32 %v6225, 0.0
    %v6242 = vmax.f32 %v6226, 0.0
    %v6243 = vmax.f32 %v6227, 0.0
    %v6244 = vmax.f32 %v6228, 0.0
    %v6245 = vmax.f32 %v6229, 0.0
    %v6246 = vmax.f32 %v6230, 0.0
    %v6247 = vmax.f32 %v6231, 0.0
    %v6248 = vmax.f32 %v6232, 0.0
    %v6249 = vmax.f32 %v6233, 0.0
    %v6250 = vmax.f32 %v6234, 0.0
    %v6251 = vmax.f32 %v6235, 0.0
    %v6252 = vpack.c.bf16 %v6237, %v6236
    %v6253 = vpack.c.bf16 %v6239, %v6238
    %v6254 = vpack.c.bf16 %v6241, %v6240
    %v6255 = vpack.c.bf16 %v6243, %v6242
    %v6256 = vpack.c.bf16 %v6245, %v6244
    %v6257 = vpack.c.bf16 %v6247, %v6246
    %v6258 = vpack.c.bf16 %v6249, %v6248
    %v6259 = vpack.c.bf16 %v6251, %v6250
    %v6260 = vld [vmem:[#allocation10] sm:$0xff]
    %v6261 = vld [vmem:[#allocation10 + $0x8] sm:$0xff]
    %v6262 = vld [vmem:[#allocation10 + $0x10] sm:$0xff]
    %v6263 = vld [vmem:[#allocation10 + $0x18] sm:$0xff]
    %v6264 = vld [vmem:[#allocation10 + $0x20] sm:$0xff]
    %v6265 = vld [vmem:[#allocation10 + $0x28] sm:$0xff]
    %v6266 = vlaneseq
    %v6267 = vshrl.u32 %v6266, 7
    %v6268 = vsub.s32 2, %v6267
    %v6269 = vrot.slane %v3654, %v6268
    %v6270 = vlaneseq
    %v6271 = vshrl.u32 %v6270, 7
    %v6272 = vsub.s32 2, %v6271
    %v6273 = vrot.slane %v3655, %v6272
    %v6280 = vunpack.c.l.b16 %v6260
    %v6281 = vunpack.c.h.b16 %v6260
    %v6282 = vunpack.c.l.b16 %v6261
    %v6283 = vunpack.c.h.b16 %v6261
    %v6284 = vunpack.c.l.b16 %v6262
    %v6285 = vunpack.c.h.b16 %v6262
    %v6286 = vunpack.c.l.b16 %v6263
    %v6287 = vunpack.c.h.b16 %v6263
    %v6288 = vunpack.c.l.b16 %v6264
    %v6289 = vunpack.c.h.b16 %v6264
    %v6290 = vunpack.c.l.b16 %v6265
    %v6291 = vunpack.c.h.b16 %v6265
    %v6292 = vpack.c.b16 %v6282, %v6280
    %v6293 = vpack.c.b16 %v6283, %v6281
    %v6294 = vpack.c.b16 %v6286, %v6284
    %v6295 = vpack.c.b16 %v6287, %v6285
    %v6296 = vpack.c.b16 %v6290, %v6288
    %v6297 = vpack.c.b16 %v6291, %v6289
    %v6305 = vsel %vm4086, %v6252, 0
    %v6308 = vsel %vm4086, %v6253, 0
    %v6311 = vsel %vm4086, %v6254, 0
    %v6314 = vsel %vm4086, %v6255, 0
    %v6317 = vsel %vm4086, %v6256, 0
    %v6320 = vsel %vm4086, %v6257, 0
    %v6323 = vsel %vm4086, %v6258, 0
    %v6326 = vsel %vm4086, %v6259, 0
    %6328 = vmatprep.subr.bf16.mxu0 0
    %6329 = vmatpush1.bf16.msra.mxu0 0
    %6330 = vmatprep.subr.bf16.mxu0 0
    %6331 = vmatpush1.bf16.msra.mxu0 0
    %6332 = vmatprep.subr.bf16.mxu0 0
    %6333 = vmatpush1.bf16.msra.mxu0 0
    %6334 = vmatprep.subr.bf16.mxu0 0
    %6335 = vmatpush1.bf16.msra.mxu0 0
    %6336 = vmatprep.subr.bf16.mxu0 0
    %6337 = vmatpush1.bf16.msra.mxu0 0
    %6338 = vmatprep.subr.bf16.mxu0 %v6297
    %6339 = vmatpush1.bf16.msra.mxu0 %v6296
    %6340 = vmatprep.subr.bf16.mxu0 %v6295
    %6341 = vmatpush1.bf16.msra.mxu0 %v6294
    %6342 = vmatprep.subr.bf16.mxu0 %v6293
    %6343 = vmatpush1.bf16.msra.mxu0 %v6292
    %6344 = vmatprep.subr.bf16.mxu0 0
    %6345 = vmatpush2.bf16.msra.mxu0 0
    %6346 = vmatprep.subr.bf16.mxu0 0
    %6347 = vmatpush2.bf16.msra.mxu0 0
    %6348 = vmatprep.subr.bf16.mxu0 0
    %6349 = vmatpush2.bf16.msra.mxu0 0
    %6350 = vmatprep.subr.bf16.mxu0 0
    %6351 = vmatpush2.bf16.msra.mxu0 0
    %6352 = vmatprep.subr.bf16.mxu0 0
    %6353 = vmatpush2.bf16.msra.mxu0 0
    %6354 = vmatprep.subr.bf16.mxu0 0
    %6355 = vmatpush2.bf16.msra.mxu0 0
    %6356 = vmatprep.subr.bf16.mxu0 0
    %6357 = vmatpush2.bf16.msra.mxu0 0
    %6358 = vmatprep.subr.bf16.mxu0 0
    %6359 = vmatpush2.bf16.msra.mxu0 0
    %6360 = vmatprep.mubr.bf16.mxu0 0
    %6361 = vmatmul.mubr.bf16.gmra.mxu0 %v6305
    %v6362 = vpop.f32.mrf.mxu0
    %v6363 = vadd.f32 %v6269, %v6362
    %v6364 = vpop.f32.mrf.mxu0
    %v6365 = vadd.f32 %v6273, %v6364
    %v6366 = vpop.f32.mrf.mxu0
    %v6367 = vadd.f32 %v6269, %v6366
    %v6368 = vpop.f32.mrf.mxu0
    %v6369 = vadd.f32 %v6273, %v6368
    %6370 = vmatprep.mubr.bf16.mxu0 0
    %6371 = vmatmul.mubr.bf16.gmra.mxu0 %v6308
    %v6372 = vpop.f32.mrf.mxu0
    %v6373 = vadd.f32 %v6269, %v6372
    %v6374 = vpop.f32.mrf.mxu0
    %v6375 = vadd.f32 %v6273, %v6374
    %v6376 = vpop.f32.mrf.mxu0
    %v6377 = vadd.f32 %v6269, %v6376
    %v6378 = vpop.f32.mrf.mxu0
    %v6379 = vadd.f32 %v6273, %v6378
    %6380 = vmatprep.mubr.bf16.mxu0 0
    %6381 = vmatmul.mubr.bf16.gmra.mxu0 %v6311
    %v6382 = vpop.f32.mrf.mxu0
    %v6383 = vadd.f32 %v6269, %v6382
    %v6384 = vpop.f32.mrf.mxu0
    %v6385 = vadd.f32 %v6273, %v6384
    %v6386 = vpop.f32.mrf.mxu0
    %v6387 = vadd.f32 %v6269, %v6386
    %v6388 = vpop.f32.mrf.mxu0
    %v6389 = vadd.f32 %v6273, %v6388
    %6390 = vmatprep.mubr.bf16.mxu0 0
    %6391 = vmatmul.mubr.bf16.gmra.mxu0 %v6314
    %v6392 = vpop.f32.mrf.mxu0
    %v6393 = vadd.f32 %v6269, %v6392
    %v6394 = vpop.f32.mrf.mxu0
    %v6395 = vadd.f32 %v6273, %v6394
    %v6396 = vpop.f32.mrf.mxu0
    %v6397 = vadd.f32 %v6269, %v6396
    %v6398 = vpop.f32.mrf.mxu0
    %v6399 = vadd.f32 %v6273, %v6398
    %6400 = vmatprep.mubr.bf16.mxu0 0
    %6401 = vmatmul.mubr.bf16.gmra.mxu0 %v6317
    %v6402 = vpop.f32.mrf.mxu0
    %v6403 = vadd.f32 %v6269, %v6402
    %v6404 = vpop.f32.mrf.mxu0
    %v6405 = vadd.f32 %v6273, %v6404
    %v6406 = vpop.f32.mrf.mxu0
    %v6407 = vadd.f32 %v6269, %v6406
    %v6408 = vpop.f32.mrf.mxu0
    %v6409 = vadd.f32 %v6273, %v6408
    %6410 = vmatprep.mubr.bf16.mxu0 0
    %6411 = vmatmul.mubr.bf16.gmra.mxu0 %v6320
    %v6412 = vpop.f32.mrf.mxu0
    %v6413 = vadd.f32 %v6269, %v6412
    %v6414 = vpop.f32.mrf.mxu0
    %v6415 = vadd.f32 %v6273, %v6414
    %v6416 = vpop.f32.mrf.mxu0
    %v6417 = vadd.f32 %v6269, %v6416
    %v6418 = vpop.f32.mrf.mxu0
    %v6419 = vadd.f32 %v6273, %v6418
    %6420 = vmatprep.mubr.bf16.mxu0 0
    %6421 = vmatmul.mubr.bf16.gmra.mxu0 %v6323
    %v6422 = vpop.f32.mrf.mxu0
    %v6423 = vadd.f32 %v6269, %v6422
    %v6424 = vpop.f32.mrf.mxu0
    %v6425 = vadd.f32 %v6273, %v6424
    %v6426 = vpop.f32.mrf.mxu0
    %v6427 = vadd.f32 %v6269, %v6426
    %v6428 = vpop.f32.mrf.mxu0
    %v6429 = vadd.f32 %v6273, %v6428
    %6430 = vmatprep.mubr.bf16.mxu0 0
    %6431 = vmatmul.mubr.bf16.gmra.mxu0 %v6326
    %v6432 = vpop.f32.mrf.mxu0
    %v6433 = vadd.f32 %v6269, %v6432
    %v6434 = vpop.f32.mrf.mxu0
    %v6435 = vadd.f32 %v6273, %v6434
    %v6436 = vpop.f32.mrf.mxu0
    %v6437 = vadd.f32 %v6269, %v6436
    %v6438 = vpop.f32.mrf.mxu0
    %v6439 = vadd.f32 %v6273, %v6438
    %6440 = vdwg.mxu0
    %v6441 = vadd.f32 %v6363, %v3638
    %v6442 = vadd.f32 %v6365, %v3558
    %v6443 = vadd.f32 %v6367, %v3639
    %v6444 = vadd.f32 %v6369, %v3559
    %v6445 = vadd.f32 %v6373, %v3640
    %v6446 = vadd.f32 %v6375, %v3560
    %v6447 = vadd.f32 %v6377, %v3641
    %v6448 = vadd.f32 %v6379, %v3561
    %v6449 = vadd.f32 %v6383, %v3642
    %v6450 = vadd.f32 %v6385, %v3562
    %v6451 = vadd.f32 %v6387, %v3643
    %v6452 = vadd.f32 %v6389, %v3563
    %v6453 = vadd.f32 %v6393, %v3644
    %v6454 = vadd.f32 %v6395, %v3564
    %v6455 = vadd.f32 %v6397, %v3645
    %v6456 = vadd.f32 %v6399, %v3565
    %v6457 = vadd.f32 %v6403, %v3646
    %v6458 = vadd.f32 %v6405, %v3566
    %v6459 = vadd.f32 %v6407, %v3647
    %v6460 = vadd.f32 %v6409, %v3567
    %v6461 = vadd.f32 %v6413, %v3648
    %v6462 = vadd.f32 %v6415, %v3568
    %v6463 = vadd.f32 %v6417, %v3649
    %v6464 = vadd.f32 %v6419, %v3569
    %v6465 = vadd.f32 %v6423, %v3650
    %v6466 = vadd.f32 %v6425, %v3570
    %v6467 = vadd.f32 %v6427, %v3651
    %v6468 = vadd.f32 %v6429, %v3571
    %v6469 = vadd.f32 %v6433, %v3652
    %v6470 = vadd.f32 %v6435, %v3572
    %v6471 = vadd.f32 %v6437, %v3653
    %v6472 = vadd.f32 %v6439, %v3573
    %v6473 = vmax.f32 %v6441, 0.0
    %v6474 = vmax.f32 %v6442, 0.0
    %v6475 = vmax.f32 %v6443, 0.0
    %v6476 = vmax.f32 %v6444, 0.0
    %v6477 = vmax.f32 %v6445, 0.0
    %v6478 = vmax.f32 %v6446, 0.0
    %v6479 = vmax.f32 %v6447, 0.0
    %v6480 = vmax.f32 %v6448, 0.0
    %v6481 = vmax.f32 %v6449, 0.0
    %v6482 = vmax.f32 %v6450, 0.0
    %v6483 = vmax.f32 %v6451, 0.0
    %v6484 = vmax.f32 %v6452, 0.0
    %v6485 = vmax.f32 %v6453, 0.0
    %v6486 = vmax.f32 %v6454, 0.0
    %v6487 = vmax.f32 %v6455, 0.0
    %v6488 = vmax.f32 %v6456, 0.0
    %v6489 = vmax.f32 %v6457, 0.0
    %v6490 = vmax.f32 %v6458, 0.0
    %v6491 = vmax.f32 %v6459, 0.0
    %v6492 = vmax.f32 %v6460, 0.0
    %v6493 = vmax.f32 %v6461, 0.0
    %v6494 = vmax.f32 %v6462, 0.0
    %v6495 = vmax.f32 %v6463, 0.0
    %v6496 = vmax.f32 %v6464, 0.0
    %v6497 = vmax.f32 %v6465, 0.0
    %v6498 = vmax.f32 %v6466, 0.0
    %v6499 = vmax.f32 %v6467, 0.0
    %v6500 = vmax.f32 %v6468, 0.0
    %v6501 = vmax.f32 %v6469, 0.0
    %v6502 = vmax.f32 %v6470, 0.0
    %v6503 = vmax.f32 %v6471, 0.0
    %v6504 = vmax.f32 %v6472, 0.0
    %v6505 = vld [vmem:[#allocation11] sm:$0xff]
    %v6506 = vld [vmem:[#allocation11 + $0x8] sm:$0xff]
    %v6507 = vld [vmem:[#allocation11 + $0x10] sm:$0xff]
    %v6508 = vld [vmem:[#allocation11 + $0x18] sm:$0xff]
    %v6509 = vld [vmem:[#allocation11 + $0x20] sm:$0xff]
    %v6510 = vld [vmem:[#allocation11 + $0x28] sm:$0xff]
    %v6511 = vld [vmem:[#allocation11 + $0x30] sm:$0xff]
    %v6512 = vld [vmem:[#allocation11 + $0x38] sm:$0xff]
    %v6513 = vlaneseq
    %v6514 = vshrl.u32 %v6513, 7
    %v6515 = vsub.s32 3, %v6514
    %v6516 = vrot.slane %v3654, %v6515
    %v6517 = vlaneseq
    %v6518 = vshrl.u32 %v6517, 7
    %v6519 = vsub.s32 3, %v6518
    %v6520 = vrot.slane %v3655, %v6519
    %v6529 = vunpack.c.l.b16 %v6505
    %v6530 = vunpack.c.h.b16 %v6505
    %v6531 = vunpack.c.l.b16 %v6506
    %v6532 = vunpack.c.h.b16 %v6506
    %v6533 = vunpack.c.l.b16 %v6507
    %v6534 = vunpack.c.h.b16 %v6507
    %v6535 = vunpack.c.l.b16 %v6508
    %v6536 = vunpack.c.h.b16 %v6508
    %v6537 = vunpack.c.l.b16 %v6509
    %v6538 = vunpack.c.h.b16 %v6509
    %v6539 = vunpack.c.l.b16 %v6510
    %v6540 = vunpack.c.h.b16 %v6510
    %v6541 = vunpack.c.l.b16 %v6511
    %v6542 = vunpack.c.h.b16 %v6511
    %v6543 = vunpack.c.l.b16 %v6512
    %v6544 = vunpack.c.h.b16 %v6512
    %v6545 = vpack.c.b16 %v6531, %v6529
    %v6546 = vpack.c.b16 %v6532, %v6530
    %v6547 = vpack.c.b16 %v6535, %v6533
    %v6548 = vpack.c.b16 %v6536, %v6534
    %v6549 = vpack.c.b16 %v6539, %v6537
    %v6550 = vpack.c.b16 %v6540, %v6538
    %v6551 = vpack.c.b16 %v6543, %v6541
    %v6552 = vpack.c.b16 %v6544, %v6542
    %6561 = vmatprep.subr.bf16.mxu0 0
    %6562 = vmatpush1.bf16.msra.mxu0 0
    %6563 = vmatprep.subr.bf16.mxu0 0
    %6564 = vmatpush1.bf16.msra.mxu0 0
    %6565 = vmatprep.subr.bf16.mxu0 0
    %6566 = vmatpush1.bf16.msra.mxu0 0
    %6567 = vmatprep.subr.bf16.mxu0 0
    %6568 = vmatpush1.bf16.msra.mxu0 0
    %6569 = vmatprep.subr.bf16.mxu0 %v6552
    %6570 = vmatpush1.bf16.msra.mxu0 %v6551
    %6571 = vmatprep.subr.bf16.mxu0 %v6550
    %6572 = vmatpush1.bf16.msra.mxu0 %v6549
    %6573 = vmatprep.subr.bf16.mxu0 %v6548
    %6574 = vmatpush1.bf16.msra.mxu0 %v6547
    %6575 = vmatprep.subr.bf16.mxu0 %v6546
    %6576 = vmatpush1.bf16.msra.mxu0 %v6545
    %6577 = vmatprep.subr.bf16.mxu0 0
    %6578 = vmatpush2.bf16.msra.mxu0 0
    %6579 = vmatprep.subr.bf16.mxu0 0
    %6580 = vmatpush2.bf16.msra.mxu0 0
    %6581 = vmatprep.subr.bf16.mxu0 0
    %6582 = vmatpush2.bf16.msra.mxu0 0
    %6583 = vmatprep.subr.bf16.mxu0 0
    %6584 = vmatpush2.bf16.msra.mxu0 0
    %6585 = vmatprep.subr.bf16.mxu0 0
    %6586 = vmatpush2.bf16.msra.mxu0 0
    %6587 = vmatprep.subr.bf16.mxu0 0
    %6588 = vmatpush2.bf16.msra.mxu0 0
    %6589 = vmatprep.subr.bf16.mxu0 0
    %6590 = vmatpush2.bf16.msra.mxu0 0
    %6591 = vmatprep.subr.bf16.mxu0 0
    %6592 = vmatpush2.bf16.msra.mxu0 0
    %6593 = vmatprep.mubr.bf16.mxu0 0
    %6594 = vmatmul.mubr.bf16.gmra.mxu0 %v3701
    %v6595 = vpop.f32.mrf.mxu0
    %v6596 = vadd.f32 %v6516, %v6595
    %v6597 = vpop.f32.mrf.mxu0
    %v6598 = vadd.f32 %v6520, %v6597
    %v6599 = vpop.f32.mrf.mxu0
    %v6600 = vadd.f32 %v6516, %v6599
    %v6601 = vpop.f32.mrf.mxu0
    %v6602 = vadd.f32 %v6520, %v6601
    %6603 = vmatprep.mubr.bf16.mxu0 0
    %6604 = vmatmul.mubr.bf16.gmra.mxu0 %v3704
    %v6605 = vpop.f32.mrf.mxu0
    %v6606 = vadd.f32 %v6516, %v6605
    %v6607 = vpop.f32.mrf.mxu0
    %v6608 = vadd.f32 %v6520, %v6607
    %v6609 = vpop.f32.mrf.mxu0
    %v6610 = vadd.f32 %v6516, %v6609
    %v6611 = vpop.f32.mrf.mxu0
    %v6612 = vadd.f32 %v6520, %v6611
    %6613 = vmatprep.mubr.bf16.mxu0 0
    %6614 = vmatmul.mubr.bf16.gmra.mxu0 %v3707
    %v6615 = vpop.f32.mrf.mxu0
    %v6616 = vadd.f32 %v6516, %v6615
    %v6617 = vpop.f32.mrf.mxu0
    %v6618 = vadd.f32 %v6520, %v6617
    %v6619 = vpop.f32.mrf.mxu0
    %v6620 = vadd.f32 %v6516, %v6619
    %v6621 = vpop.f32.mrf.mxu0
    %v6622 = vadd.f32 %v6520, %v6621
    %6623 = vmatprep.mubr.bf16.mxu0 0
    %6624 = vmatmul.mubr.bf16.gmra.mxu0 %v3710
    %v6625 = vpop.f32.mrf.mxu0
    %v6626 = vadd.f32 %v6516, %v6625
    %v6627 = vpop.f32.mrf.mxu0
    %v6628 = vadd.f32 %v6520, %v6627
    %v6629 = vpop.f32.mrf.mxu0
    %v6630 = vadd.f32 %v6516, %v6629
    %v6631 = vpop.f32.mrf.mxu0
    %v6632 = vadd.f32 %v6520, %v6631
    %6633 = vmatprep.mubr.bf16.mxu0 0
    %6634 = vmatmul.mubr.bf16.gmra.mxu0 %v3713
    %v6635 = vpop.f32.mrf.mxu0
    %v6636 = vadd.f32 %v6516, %v6635
    %v6637 = vpop.f32.mrf.mxu0
    %v6638 = vadd.f32 %v6520, %v6637
    %v6639 = vpop.f32.mrf.mxu0
    %v6640 = vadd.f32 %v6516, %v6639
    %v6641 = vpop.f32.mrf.mxu0
    %v6642 = vadd.f32 %v6520, %v6641
    %6643 = vmatprep.mubr.bf16.mxu0 0
    %6644 = vmatmul.mubr.bf16.gmra.mxu0 %v3716
    %v6645 = vpop.f32.mrf.mxu0
    %v6646 = vadd.f32 %v6516, %v6645
    %v6647 = vpop.f32.mrf.mxu0
    %v6648 = vadd.f32 %v6520, %v6647
    %v6649 = vpop.f32.mrf.mxu0
    %v6650 = vadd.f32 %v6516, %v6649
    %v6651 = vpop.f32.mrf.mxu0
    %v6652 = vadd.f32 %v6520, %v6651
    %6653 = vmatprep.mubr.bf16.mxu0 0
    %6654 = vmatmul.mubr.bf16.gmra.mxu0 %v3719
    %v6655 = vpop.f32.mrf.mxu0
    %v6656 = vadd.f32 %v6516, %v6655
    %v6657 = vpop.f32.mrf.mxu0
    %v6658 = vadd.f32 %v6520, %v6657
    %v6659 = vpop.f32.mrf.mxu0
    %v6660 = vadd.f32 %v6516, %v6659
    %v6661 = vpop.f32.mrf.mxu0
    %v6662 = vadd.f32 %v6520, %v6661
    %6663 = vmatprep.mubr.bf16.mxu0 0
    %6664 = vmatmul.mubr.bf16.gmra.mxu0 %v3722
    %v6665 = vpop.f32.mrf.mxu0
    %v6666 = vadd.f32 %v6516, %v6665
    %v6667 = vpop.f32.mrf.mxu0
    %v6668 = vadd.f32 %v6520, %v6667
    %v6669 = vpop.f32.mrf.mxu0
    %v6670 = vadd.f32 %v6516, %v6669
    %v6671 = vpop.f32.mrf.mxu0
    %v6672 = vadd.f32 %v6520, %v6671
    %6673 = vdwg.mxu0
    %v6674 = vlaneseq
    %v6675 = vshrl.u32 %v6674, 7
    %v6676 = vsub.s32 4, %v6675
    %v6677 = vrot.slane %v3654, %v6676
    %v6678 = vlaneseq
    %v6679 = vshrl.u32 %v6678, 7
    %v6680 = vsub.s32 4, %v6679
    %v6681 = vrot.slane %v3655, %v6680
    %v6682 = vmul.f32 %v6473, %v6677
    %v6683 = vmul.f32 %v6474, %v6681
    %v6684 = vmul.f32 %v6475, %v6677
    %v6685 = vmul.f32 %v6476, %v6681
    %v6686 = vmul.f32 %v6477, %v6677
    %v6687 = vmul.f32 %v6478, %v6681
    %v6688 = vmul.f32 %v6479, %v6677
    %v6689 = vmul.f32 %v6480, %v6681
    %v6690 = vmul.f32 %v6481, %v6677
    %v6691 = vmul.f32 %v6482, %v6681
    %v6692 = vmul.f32 %v6483, %v6677
    %v6693 = vmul.f32 %v6484, %v6681
    %v6694 = vmul.f32 %v6485, %v6677
    %v6695 = vmul.f32 %v6486, %v6681
    %v6696 = vmul.f32 %v6487, %v6677
    %v6697 = vmul.f32 %v6488, %v6681
    %v6698 = vmul.f32 %v6489, %v6677
    %v6699 = vmul.f32 %v6490, %v6681
    %v6700 = vmul.f32 %v6491, %v6677
    %v6701 = vmul.f32 %v6492, %v6681
    %v6702 = vmul.f32 %v6493, %v6677
    %v6703 = vmul.f32 %v6494, %v6681
    %v6704 = vmul.f32 %v6495, %v6677
    %v6705 = vmul.f32 %v6496, %v6681
    %v6706 = vmul.f32 %v6497, %v6677
    %v6707 = vmul.f32 %v6498, %v6681
    %v6708 = vmul.f32 %v6499, %v6677
    %v6709 = vmul.f32 %v6500, %v6681
    %v6710 = vmul.f32 %v6501, %v6677
    %v6711 = vmul.f32 %v6502, %v6681
    %v6712 = vmul.f32 %v6503, %v6677
    %v6713 = vmul.f32 %v6504, %v6681
    %v6714 = vadd.f32 %v6596, %v6682
    %v6715 = vadd.f32 %v6598, %v6683
    %v6716 = vadd.f32 %v6600, %v6684
    %v6717 = vadd.f32 %v6602, %v6685
    %v6718 = vadd.f32 %v6606, %v6686
    %v6719 = vadd.f32 %v6608, %v6687
    %v6720 = vadd.f32 %v6610, %v6688
    %v6721 = vadd.f32 %v6612, %v6689
    %v6722 = vadd.f32 %v6616, %v6690
    %v6723 = vadd.f32 %v6618, %v6691
    %v6724 = vadd.f32 %v6620, %v6692
    %v6725 = vadd.f32 %v6622, %v6693
    %v6726 = vadd.f32 %v6626, %v6694
    %v6727 = vadd.f32 %v6628, %v6695
    %v6728 = vadd.f32 %v6630, %v6696
    %v6729 = vadd.f32 %v6632, %v6697
    %v6730 = vadd.f32 %v6636, %v6698
    %v6731 = vadd.f32 %v6638, %v6699
    %v6732 = vadd.f32 %v6640, %v6700
    %v6733 = vadd.f32 %v6642, %v6701
    %v6734 = vadd.f32 %v6646, %v6702
    %v6735 = vadd.f32 %v6648, %v6703
    %v6736 = vadd.f32 %v6650, %v6704
    %v6737 = vadd.f32 %v6652, %v6705
    %v6738 = vadd.f32 %v6656, %v6706
    %v6739 = vadd.f32 %v6658, %v6707
    %v6740 = vadd.f32 %v6660, %v6708
    %v6741 = vadd.f32 %v6662, %v6709
    %v6742 = vadd.f32 %v6666, %v6710
    %v6743 = vadd.f32 %v6668, %v6711
    %v6744 = vadd.f32 %v6670, %v6712
    %v6745 = vadd.f32 %v6672, %v6713
    %v6746 = vlaneseq
    %v6747 = vshrl.u32 %v6746, 7
    %v6748 = vsub.s32 5, %v6747
    %v6749 = vrot.slane %v3654, %v6748
    %v6750 = vlaneseq
    %v6751 = vshrl.u32 %v6750, 7
    %v6752 = vsub.s32 5, %v6751
    %v6753 = vrot.slane %v3655, %v6752
    %v6754 = vadd.f32 %v6714, %v6749
    %v6755 = vadd.f32 %v6715, %v6753
    %v6756 = vadd.f32 %v6716, %v6749
    %v6757 = vadd.f32 %v6717, %v6753
    %v6758 = vadd.f32 %v6718, %v6749
    %v6759 = vadd.f32 %v6719, %v6753
    %v6760 = vadd.f32 %v6720, %v6749
    %v6761 = vadd.f32 %v6721, %v6753
    %v6762 = vadd.f32 %v6722, %v6749
    %v6763 = vadd.f32 %v6723, %v6753
    %v6764 = vadd.f32 %v6724, %v6749
    %v6765 = vadd.f32 %v6725, %v6753
    %v6766 = vadd.f32 %v6726, %v6749
    %v6767 = vadd.f32 %v6727, %v6753
    %v6768 = vadd.f32 %v6728, %v6749
    %v6769 = vadd.f32 %v6729, %v6753
    %v6770 = vadd.f32 %v6730, %v6749
    %v6771 = vadd.f32 %v6731, %v6753
    %v6772 = vadd.f32 %v6732, %v6749
    %v6773 = vadd.f32 %v6733, %v6753
    %v6774 = vadd.f32 %v6734, %v6749
    %v6775 = vadd.f32 %v6735, %v6753
    %v6776 = vadd.f32 %v6736, %v6749
    %v6777 = vadd.f32 %v6737, %v6753
    %v6778 = vadd.f32 %v6738, %v6749
    %v6779 = vadd.f32 %v6739, %v6753
    %v6780 = vadd.f32 %v6740, %v6749
    %v6781 = vadd.f32 %v6741, %v6753
    %v6782 = vadd.f32 %v6742, %v6749
    %v6783 = vadd.f32 %v6743, %v6753
    %v6784 = vadd.f32 %v6744, %v6749
    %v6785 = vadd.f32 %v6745, %v6753
    %v6786 = vmax.f32 %v6754, 0.0
    %v6787 = vmax.f32 %v6755, 0.0
    %v6788 = vmax.f32 %v6756, 0.0
    %v6789 = vmax.f32 %v6757, 0.0
    %v6790 = vmax.f32 %v6758, 0.0
    %v6791 = vmax.f32 %v6759, 0.0
    %v6792 = vmax.f32 %v6760, 0.0
    %v6793 = vmax.f32 %v6761, 0.0
    %v6794 = vmax.f32 %v6762, 0.0
    %v6795 = vmax.f32 %v6763, 0.0
    %v6796 = vmax.f32 %v6764, 0.0
    %v6797 = vmax.f32 %v6765, 0.0
    %v6798 = vmax.f32 %v6766, 0.0
    %v6799 = vmax.f32 %v6767, 0.0
    %v6800 = vmax.f32 %v6768, 0.0
    %v6801 = vmax.f32 %v6769, 0.0
    %v6802 = vmax.f32 %v6770, 0.0
    %v6803 = vmax.f32 %v6771, 0.0
    %v6804 = vmax.f32 %v6772, 0.0
    %v6805 = vmax.f32 %v6773, 0.0
    %v6806 = vmax.f32 %v6774, 0.0
    %v6807 = vmax.f32 %v6775, 0.0
    %v6808 = vmax.f32 %v6776, 0.0
    %v6809 = vmax.f32 %v6777, 0.0
    %v6810 = vmax.f32 %v6778, 0.0
    %v6811 = vmax.f32 %v6779, 0.0
    %v6812 = vmax.f32 %v6780, 0.0
    %v6813 = vmax.f32 %v6781, 0.0
    %v6814 = vmax.f32 %v6782, 0.0
    %v6815 = vmax.f32 %v6783, 0.0
    %v6816 = vmax.f32 %v6784, 0.0
    %v6817 = vmax.f32 %v6785, 0.0
    %v6818 = vpack.c.bf16 %v6788, %v6786
    %v6819 = vpack.c.bf16 %v6789, %v6787
    %v6820 = vpack.c.bf16 %v6792, %v6790
    %v6821 = vpack.c.bf16 %v6793, %v6791
    %v6822 = vpack.c.bf16 %v6796, %v6794
    %v6823 = vpack.c.bf16 %v6797, %v6795
    %v6824 = vpack.c.bf16 %v6800, %v6798
    %v6825 = vpack.c.bf16 %v6801, %v6799
    %v6826 = vpack.c.bf16 %v6804, %v6802
    %v6827 = vpack.c.bf16 %v6805, %v6803
    %v6828 = vpack.c.bf16 %v6808, %v6806
    %v6829 = vpack.c.bf16 %v6809, %v6807
    %v6830 = vpack.c.bf16 %v6812, %v6810
    %v6831 = vpack.c.bf16 %v6813, %v6811
    %v6832 = vpack.c.bf16 %v6816, %v6814
    %v6833 = vpack.c.bf16 %v6817, %v6815
    %6834 = vmatprep.subr.bf16.mxu0 %v6833
    %6835 = vmatpush1.bf16.msra.mxu0 %v6832
    %6836 = vmatprep.subr.bf16.mxu0 %v6831
    %6837 = vmatpush1.bf16.msra.mxu0 %v6830
    %6838 = vmatprep.subr.bf16.mxu0 %v6829
    %6839 = vmatpush1.bf16.msra.mxu0 %v6828
    %6840 = vmatprep.subr.bf16.mxu0 %v6827
    %6841 = vmatpush1.bf16.msra.mxu0 %v6826
    %6842 = vmatprep.subr.bf16.mxu0 %v6825
    %6843 = vmatpush1.bf16.msra.mxu0 %v6824
    %6844 = vmatprep.subr.bf16.mxu0 %v6823
    %6845 = vmatpush1.bf16.msra.mxu0 %v6822
    %6846 = vmatprep.subr.bf16.mxu0 %v6821
    %6847 = vmatpush1.bf16.msra.mxu0 %v6820
    %6848 = vmatprep.subr.bf16.mxu0 %v6819
    %6849 = vmatpush1.bf16.msra.mxu0 %v6818
    %6850 = vmatprep.subr.bf16.mxu0 0
    %6851 = vmatpush2.bf16.msra.mxu0 0
    %6852 = vmatprep.subr.bf16.mxu0 0
    %6853 = vmatpush2.bf16.msra.mxu0 0
    %6854 = vmatprep.subr.bf16.mxu0 0
    %6855 = vmatpush2.bf16.msra.mxu0 0
    %6856 = vmatprep.subr.bf16.mxu0 0
    %6857 = vmatpush2.bf16.msra.mxu0 0
    %6858 = vmatprep.subr.bf16.mxu0 0
    %6859 = vmatpush2.bf16.msra.mxu0 0
    %6860 = vmatprep.subr.bf16.mxu0 0
    %6861 = vmatpush2.bf16.msra.mxu0 0
    %6862 = vmatprep.subr.bf16.mxu0 0
    %6863 = vmatpush2.bf16.msra.mxu0 0
    %6864 = vmatprep.subr.bf16.mxu0 0
    %6865 = vmatpush2.bf16.msra.mxu0 0
    %6866 = vmatprep.mubr.bf16.mxu0 0
    %6867 = vmatmul.mubr.bf16.gmra.mxu0 %v397
    %v6868 = vpop.f32.mrf.mxu0
    %v6869 = vadd.f32 0.0, %v6868
    %v6870 = vpop.f32.mrf.mxu0
    %v6871 = vadd.f32 0.0, %v6870
    %v6872 = vpop.f32.mrf.mxu0
    %v6873 = vadd.f32 0.0, %v6872
    %v6874 = vpop.f32.mrf.mxu0
    %v6875 = vadd.f32 0.0, %v6874
    %6876 = vmatprep.mubr.bf16.mxu0 0
    %6877 = vmatmul.mubr.bf16.gmra.mxu0 %v398
    %v6878 = vpop.f32.mrf.mxu0
    %v6879 = vadd.f32 0.0, %v6878
    %v6880 = vpop.f32.mrf.mxu0
    %v6881 = vadd.f32 0.0, %v6880
    %v6882 = vpop.f32.mrf.mxu0
    %v6883 = vadd.f32 0.0, %v6882
    %v6884 = vpop.f32.mrf.mxu0
    %v6885 = vadd.f32 0.0, %v6884
    %6886 = vmatprep.mubr.bf16.mxu0 0
    %6887 = vmatmul.mubr.bf16.gmra.mxu0 %v399
    %v6888 = vpop.f32.mrf.mxu0
    %v6889 = vadd.f32 0.0, %v6888
    %v6890 = vpop.f32.mrf.mxu0
    %v6891 = vadd.f32 0.0, %v6890
    %v6892 = vpop.f32.mrf.mxu0
    %v6893 = vadd.f32 0.0, %v6892
    %v6894 = vpop.f32.mrf.mxu0
    %v6895 = vadd.f32 0.0, %v6894
    %6896 = vmatprep.mubr.bf16.mxu0 0
    %6897 = vmatmul.mubr.bf16.gmra.mxu0 %v400
    %v6898 = vpop.f32.mrf.mxu0
    %v6899 = vadd.f32 0.0, %v6898
    %v6900 = vpop.f32.mrf.mxu0
    %v6901 = vadd.f32 0.0, %v6900
    %v6902 = vpop.f32.mrf.mxu0
    %v6903 = vadd.f32 0.0, %v6902
    %v6904 = vpop.f32.mrf.mxu0
    %v6905 = vadd.f32 0.0, %v6904
    %6906 = vmatprep.mubr.bf16.mxu0 0
    %6907 = vmatmul.mubr.bf16.gmra.mxu0 %v401
    %v6908 = vpop.f32.mrf.mxu0
    %v6909 = vadd.f32 0.0, %v6908
    %v6910 = vpop.f32.mrf.mxu0
    %v6911 = vadd.f32 0.0, %v6910
    %v6912 = vpop.f32.mrf.mxu0
    %v6913 = vadd.f32 0.0, %v6912
    %v6914 = vpop.f32.mrf.mxu0
    %v6915 = vadd.f32 0.0, %v6914
    %6916 = vmatprep.mubr.bf16.mxu0 0
    %6917 = vmatmul.mubr.bf16.gmra.mxu0 %v402
    %v6918 = vpop.f32.mrf.mxu0
    %v6919 = vadd.f32 0.0, %v6918
    %v6920 = vpop.f32.mrf.mxu0
    %v6921 = vadd.f32 0.0, %v6920
    %v6922 = vpop.f32.mrf.mxu0
    %v6923 = vadd.f32 0.0, %v6922
    %v6924 = vpop.f32.mrf.mxu0
    %v6925 = vadd.f32 0.0, %v6924
    %6926 = vmatprep.mubr.bf16.mxu0 0
    %6927 = vmatmul.mubr.bf16.gmra.mxu0 %v403
    %v6928 = vpop.f32.mrf.mxu0
    %v6929 = vadd.f32 0.0, %v6928
    %v6930 = vpop.f32.mrf.mxu0
    %v6931 = vadd.f32 0.0, %v6930
    %v6932 = vpop.f32.mrf.mxu0
    %v6933 = vadd.f32 0.0, %v6932
    %v6934 = vpop.f32.mrf.mxu0
    %v6935 = vadd.f32 0.0, %v6934
    %6936 = vmatprep.mubr.bf16.mxu0 0
    %6937 = vmatmul.mubr.bf16.gmra.mxu0 %v404
    %v6938 = vpop.f32.mrf.mxu0
    %v6939 = vadd.f32 0.0, %v6938
    %v6940 = vpop.f32.mrf.mxu0
    %v6941 = vadd.f32 0.0, %v6940
    %v6942 = vpop.f32.mrf.mxu0
    %v6943 = vadd.f32 0.0, %v6942
    %v6944 = vpop.f32.mrf.mxu0
    %v6945 = vadd.f32 0.0, %v6944
    %6946 = vdwg.mxu0
    %v6947 = vpack.c.bf16 %v6873, %v6869
    %v6948 = vpack.c.bf16 %v6875, %v6871
    %v6949 = vpack.c.bf16 %v6883, %v6879
    %v6950 = vpack.c.bf16 %v6885, %v6881
    %v6951 = vpack.c.bf16 %v6893, %v6889
    %v6952 = vpack.c.bf16 %v6895, %v6891
    %v6953 = vpack.c.bf16 %v6903, %v6899
    %v6954 = vpack.c.bf16 %v6905, %v6901
    %v6955 = vpack.c.bf16 %v6913, %v6909
    %v6956 = vpack.c.bf16 %v6915, %v6911
    %v6957 = vpack.c.bf16 %v6923, %v6919
    %v6958 = vpack.c.bf16 %v6925, %v6921
    %v6959 = vpack.c.bf16 %v6933, %v6929
    %v6960 = vpack.c.bf16 %v6935, %v6931
    %v6961 = vpack.c.bf16 %v6943, %v6939
    %v6962 = vpack.c.bf16 %v6945, %v6941
    %v6963 = vld [vmem:[#allocation13] sm:$0xf]
    %v6964 = vld [vmem:[#allocation13 + $0x4] sm:$0xf]
    %v6965 = vld [vmem:[#allocation13 + $0x8] sm:$0xf]
    %v6966 = vld [vmem:[#allocation13 + $0xc] sm:$0xf]
    %v6967 = vld [vmem:[#allocation13 + $0x10] sm:$0xf]
    %v6968 = vld [vmem:[#allocation13 + $0x14] sm:$0xf]
    %v6969 = vld [vmem:[#allocation13 + $0x18] sm:$0xf]
    %v6970 = vld [vmem:[#allocation13 + $0x1c] sm:$0xf]
    %v6971 = vld [vmem:[#allocation13 + $0x20] sm:$0xf]
    %v6972 = vld [vmem:[#allocation13 + $0x24] sm:$0xf]
    %v6973 = vld [vmem:[#allocation13 + $0x28] sm:$0xf]
    %v6974 = vld [vmem:[#allocation13 + $0x2c] sm:$0xf]
    %v6975 = vld [vmem:[#allocation13 + $0x30] sm:$0xf]
    %v6976 = vld [vmem:[#allocation13 + $0x34] sm:$0xf]
    %v6977 = vld [vmem:[#allocation13 + $0x38] sm:$0xf]
    %v6978 = vld [vmem:[#allocation13 + $0x3c] sm:$0xf]
    %v6979 = vld [vmem:[#allocation13 + $0x40] sm:$0xf]
    %v6980 = vld [vmem:[#allocation13 + $0x44] sm:$0xf]
    %v6981 = vld [vmem:[#allocation13 + $0x48] sm:$0xf]
    %v6982 = vld [vmem:[#allocation13 + $0x4c] sm:$0xf]
    %v6983 = vld [vmem:[#allocation13 + $0x50] sm:$0xf]
    %v6984 = vld [vmem:[#allocation13 + $0x54] sm:$0xf]
    %v6985 = vld [vmem:[#allocation13 + $0x58] sm:$0xf]
    %v6986 = vld [vmem:[#allocation13 + $0x5c] sm:$0xf]
    %6987 = vmatprep.subr.bf16.mxu0 %v6833
    %6988 = vmatpush1.bf16.msra.mxu0 %v6832
    %6989 = vmatprep.subr.bf16.mxu0 %v6831
    %6990 = vmatpush1.bf16.msra.mxu0 %v6830
    %6991 = vmatprep.subr.bf16.mxu0 %v6829
    %6992 = vmatpush1.bf16.msra.mxu0 %v6828
    %6993 = vmatprep.subr.bf16.mxu0 %v6827
    %6994 = vmatpush1.bf16.msra.mxu0 %v6826
    %6995 = vmatprep.subr.bf16.mxu0 %v6825
    %6996 = vmatpush1.bf16.msra.mxu0 %v6824
    %6997 = vmatprep.subr.bf16.mxu0 %v6823
    %6998 = vmatpush1.bf16.msra.mxu0 %v6822
    %6999 = vmatprep.subr.bf16.mxu0 %v6821
    %7000 = vmatpush1.bf16.msra.mxu0 %v6820
    %7001 = vmatprep.subr.bf16.mxu0 %v6819
    %7002 = vmatpush1.bf16.msra.mxu0 %v6818
    %7003 = vmatprep.subr.bf16.mxu0 0
    %7004 = vmatpush2.bf16.msra.mxu0 0
    %7005 = vmatprep.subr.bf16.mxu0 0
    %7006 = vmatpush2.bf16.msra.mxu0 0
    %7007 = vmatprep.subr.bf16.mxu0 0
    %7008 = vmatpush2.bf16.msra.mxu0 0
    %7009 = vmatprep.subr.bf16.mxu0 0
    %7010 = vmatpush2.bf16.msra.mxu0 0
    %7011 = vmatprep.subr.bf16.mxu0 0
    %7012 = vmatpush2.bf16.msra.mxu0 0
    %7013 = vmatprep.subr.bf16.mxu0 0
    %7014 = vmatpush2.bf16.msra.mxu0 0
    %7015 = vmatprep.subr.bf16.mxu0 0
    %7016 = vmatpush2.bf16.msra.mxu0 0
    %7017 = vmatprep.subr.bf16.mxu0 0
    %7018 = vmatpush2.bf16.msra.mxu0 0
    %7019 = vmatprep.mubr.bf16.mxu0 0
    %7020 = vmatmul.mubr.bf16.gmra.mxu0 %v569
    %v7021 = vpop.f32.mrf.mxu0
    %v7022 = vadd.f32 0.0, %v7021
    %v7023 = vpop.f32.mrf.mxu0
    %v7024 = vadd.f32 0.0, %v7023
    %v7025 = vpop.f32.mrf.mxu0
    %v7026 = vadd.f32 0.0, %v7025
    %v7027 = vpop.f32.mrf.mxu0
    %v7028 = vadd.f32 0.0, %v7027
    %7029 = vmatprep.mubr.bf16.mxu0 0
    %7030 = vmatmul.mubr.bf16.gmra.mxu0 %v570
    %v7031 = vpop.f32.mrf.mxu0
    %v7032 = vadd.f32 0.0, %v7031
    %v7033 = vpop.f32.mrf.mxu0
    %v7034 = vadd.f32 0.0, %v7033
    %v7035 = vpop.f32.mrf.mxu0
    %v7036 = vadd.f32 0.0, %v7035
    %v7037 = vpop.f32.mrf.mxu0
    %v7038 = vadd.f32 0.0, %v7037
    %7039 = vmatprep.mubr.bf16.mxu0 0
    %7040 = vmatmul.mubr.bf16.gmra.mxu0 %v571
    %v7041 = vpop.f32.mrf.mxu0
    %v7042 = vadd.f32 0.0, %v7041
    %v7043 = vpop.f32.mrf.mxu0
    %v7044 = vadd.f32 0.0, %v7043
    %v7045 = vpop.f32.mrf.mxu0
    %v7046 = vadd.f32 0.0, %v7045
    %v7047 = vpop.f32.mrf.mxu0
    %v7048 = vadd.f32 0.0, %v7047
    %7049 = vmatprep.mubr.bf16.mxu0 0
    %7050 = vmatmul.mubr.bf16.gmra.mxu0 %v572
    %v7051 = vpop.f32.mrf.mxu0
    %v7052 = vadd.f32 0.0, %v7051
    %v7053 = vpop.f32.mrf.mxu0
    %v7054 = vadd.f32 0.0, %v7053
    %v7055 = vpop.f32.mrf.mxu0
    %v7056 = vadd.f32 0.0, %v7055
    %v7057 = vpop.f32.mrf.mxu0
    %v7058 = vadd.f32 0.0, %v7057
    %7059 = vmatprep.mubr.bf16.mxu0 0
    %7060 = vmatmul.mubr.bf16.gmra.mxu0 %v573
    %v7061 = vpop.f32.mrf.mxu0
    %v7062 = vadd.f32 0.0, %v7061
    %v7063 = vpop.f32.mrf.mxu0
    %v7064 = vadd.f32 0.0, %v7063
    %v7065 = vpop.f32.mrf.mxu0
    %v7066 = vadd.f32 0.0, %v7065
    %v7067 = vpop.f32.mrf.mxu0
    %v7068 = vadd.f32 0.0, %v7067
    %7069 = vmatprep.mubr.bf16.mxu0 0
    %7070 = vmatmul.mubr.bf16.gmra.mxu0 %v574
    %v7071 = vpop.f32.mrf.mxu0
    %v7072 = vadd.f32 0.0, %v7071
    %v7073 = vpop.f32.mrf.mxu0
    %v7074 = vadd.f32 0.0, %v7073
    %v7075 = vpop.f32.mrf.mxu0
    %v7076 = vadd.f32 0.0, %v7075
    %v7077 = vpop.f32.mrf.mxu0
    %v7078 = vadd.f32 0.0, %v7077
    %7079 = vmatprep.mubr.bf16.mxu0 0
    %7080 = vmatmul.mubr.bf16.gmra.mxu0 %v575
    %v7081 = vpop.f32.mrf.mxu0
    %v7082 = vadd.f32 0.0, %v7081
    %v7083 = vpop.f32.mrf.mxu0
    %v7084 = vadd.f32 0.0, %v7083
    %v7085 = vpop.f32.mrf.mxu0
    %v7086 = vadd.f32 0.0, %v7085
    %v7087 = vpop.f32.mrf.mxu0
    %v7088 = vadd.f32 0.0, %v7087
    %7089 = vmatprep.mubr.bf16.mxu0 0
    %7090 = vmatmul.mubr.bf16.gmra.mxu0 %v576
    %v7091 = vpop.f32.mrf.mxu0
    %v7092 = vadd.f32 0.0, %v7091
    %v7093 = vpop.f32.mrf.mxu0
    %v7094 = vadd.f32 0.0, %v7093
    %v7095 = vpop.f32.mrf.mxu0
    %v7096 = vadd.f32 0.0, %v7095
    %v7097 = vpop.f32.mrf.mxu0
    %v7098 = vadd.f32 0.0, %v7097
    %7099 = vdwg.mxu0
    %v7100 = vpack.c.bf16 %v7026, %v7022
    %v7101 = vpack.c.bf16 %v7028, %v7024
    %v7102 = vpack.c.bf16 %v7036, %v7032
    %v7103 = vpack.c.bf16 %v7038, %v7034
    %v7104 = vpack.c.bf16 %v7046, %v7042
    %v7105 = vpack.c.bf16 %v7048, %v7044
    %v7106 = vpack.c.bf16 %v7056, %v7052
    %v7107 = vpack.c.bf16 %v7058, %v7054
    %v7108 = vpack.c.bf16 %v7066, %v7062
    %v7109 = vpack.c.bf16 %v7068, %v7064
    %v7110 = vpack.c.bf16 %v7076, %v7072
    %v7111 = vpack.c.bf16 %v7078, %v7074
    %v7112 = vpack.c.bf16 %v7086, %v7082
    %v7113 = vpack.c.bf16 %v7088, %v7084
    %v7114 = vpack.c.bf16 %v7096, %v7092
    %v7115 = vpack.c.bf16 %v7098, %v7094
    %s7116 = scalar_lea.vmem [#allocation13], 96
    %v7117 = vld [vmem:[%s7116] sm:$0xf]
    %v7118 = vld [vmem:[%s7116 + $0x4] sm:$0xf]
    %v7119 = vld [vmem:[%s7116 + $0x8] sm:$0xf]
    %v7120 = vld [vmem:[%s7116 + $0xc] sm:$0xf]
    %v7121 = vld [vmem:[%s7116 + $0x10] sm:$0xf]
    %v7122 = vld [vmem:[%s7116 + $0x14] sm:$0xf]
    %v7123 = vld [vmem:[%s7116 + $0x18] sm:$0xf]
    %v7124 = vld [vmem:[%s7116 + $0x1c] sm:$0xf]
    %v7125 = vld [vmem:[%s7116 + $0x20] sm:$0xf]
    %v7126 = vld [vmem:[%s7116 + $0x24] sm:$0xf]
    %v7127 = vld [vmem:[%s7116 + $0x28] sm:$0xf]
    %v7128 = vld [vmem:[%s7116 + $0x2c] sm:$0xf]
    %v7129 = vld [vmem:[%s7116 + $0x30] sm:$0xf]
    %v7130 = vld [vmem:[%s7116 + $0x34] sm:$0xf]
    %v7131 = vld [vmem:[%s7116 + $0x38] sm:$0xf]
    %v7132 = vld [vmem:[%s7116 + $0x3c] sm:$0xf]
    %v7133 = vld [vmem:[%s7116 + $0x40] sm:$0xf]
    %v7134 = vld [vmem:[%s7116 + $0x44] sm:$0xf]
    %v7135 = vld [vmem:[%s7116 + $0x48] sm:$0xf]
    %v7136 = vld [vmem:[%s7116 + $0x4c] sm:$0xf]
    %v7137 = vld [vmem:[%s7116 + $0x50] sm:$0xf]
    %v7138 = vld [vmem:[%s7116 + $0x54] sm:$0xf]
    %v7139 = vld [vmem:[%s7116 + $0x58] sm:$0xf]
    %v7140 = vld [vmem:[%s7116 + $0x5c] sm:$0xf]
    %v7165 = vunpack.c.l.b16 %v7117
    %v7166 = vunpack.c.l.b16 %v7118
    %v7167 = vunpack.c.l.b16 %v7119
    %v7168 = vunpack.c.l.b16 %v7120
    %v7169 = vunpack.c.l.b16 %v7121
    %v7170 = vunpack.c.l.b16 %v7122
    %v7171 = vunpack.c.l.b16 %v7123
    %v7172 = vunpack.c.l.b16 %v7124
    %v7173 = vunpack.c.l.b16 %v7125
    %v7174 = vunpack.c.l.b16 %v7126
    %v7175 = vunpack.c.l.b16 %v7127
    %v7176 = vunpack.c.l.b16 %v7128
    %v7177 = vunpack.c.l.b16 %v7129
    %v7178 = vunpack.c.l.b16 %v7130
    %v7179 = vunpack.c.l.b16 %v7131
    %v7180 = vunpack.c.l.b16 %v7132
    %v7181 = vunpack.c.l.b16 %v7133
    %v7182 = vunpack.c.l.b16 %v7134
    %v7183 = vunpack.c.l.b16 %v7135
    %v7184 = vunpack.c.l.b16 %v7136
    %v7185 = vunpack.c.l.b16 %v7137
    %v7186 = vunpack.c.l.b16 %v7138
    %v7187 = vunpack.c.l.b16 %v7139
    %v7188 = vunpack.c.l.b16 %v7140
    %v7189 = vpack.c.b16 %v7166, %v7165
    %v7190 = vpack.c.b16 %v7168, %v7167
    %v7191 = vpack.c.b16 %v7170, %v7169
    %v7192 = vpack.c.b16 %v7172, %v7171
    %v7193 = vpack.c.b16 %v7174, %v7173
    %v7194 = vpack.c.b16 %v7176, %v7175
    %v7195 = vpack.c.b16 %v7178, %v7177
    %v7196 = vpack.c.b16 %v7180, %v7179
    %v7197 = vpack.c.b16 %v7182, %v7181
    %v7198 = vpack.c.b16 %v7184, %v7183
    %v7199 = vpack.c.b16 %v7186, %v7185
    %v7200 = vpack.c.b16 %v7188, %v7187
    %v7214 = vsel %vm203, %v7101, 0
    %v7217 = vsel %vm203, %v7103, 0
    %v7220 = vsel %vm203, %v7105, 0
    %v7223 = vsel %vm203, %v7107, 0
    %v7226 = vsel %vm203, %v7109, 0
    %v7229 = vsel %vm203, %v7111, 0
    %v7232 = vsel %vm203, %v7113, 0
    %v7235 = vsel %vm203, %v7115, 0
    %7237 = vmatprep.subr.bf16.mxu0 0
    %7238 = vmatpush1.bf16.msra.mxu0 %v7196
    %7239 = vmatprep.subr.bf16.mxu0 0
    %7240 = vmatpush1.bf16.msra.mxu0 %v7195
    %7241 = vmatprep.subr.bf16.mxu0 0
    %7242 = vmatpush1.bf16.msra.mxu0 %v7194
    %7243 = vmatprep.subr.bf16.mxu0 0
    %7244 = vmatpush1.bf16.msra.mxu0 %v7193
    %7245 = vmatprep.subr.bf16.mxu0 0
    %7246 = vmatpush1.bf16.msra.mxu0 %v7192
    %7247 = vmatprep.subr.bf16.mxu0 0
    %7248 = vmatpush1.bf16.msra.mxu0 %v7191
    %7249 = vmatprep.subr.bf16.mxu0 0
    %7250 = vmatpush1.bf16.msra.mxu0 %v7190
    %7251 = vmatprep.subr.bf16.mxu0 0
    %7252 = vmatpush1.bf16.msra.mxu0 %v7189
    %7253 = vmatprep.subr.bf16.mxu0 0
    %7254 = vmatpush2.bf16.msra.mxu0 0
    %7255 = vmatprep.subr.bf16.mxu0 0
    %7256 = vmatpush2.bf16.msra.mxu0 0
    %7257 = vmatprep.subr.bf16.mxu0 0
    %7258 = vmatpush2.bf16.msra.mxu0 0
    %7259 = vmatprep.subr.bf16.mxu0 0
    %7260 = vmatpush2.bf16.msra.mxu0 0
    %7261 = vmatprep.subr.bf16.mxu0 0
    %7262 = vmatpush2.bf16.msra.mxu0 %v7200
    %7263 = vmatprep.subr.bf16.mxu0 0
    %7264 = vmatpush2.bf16.msra.mxu0 %v7199
    %7265 = vmatprep.subr.bf16.mxu0 0
    %7266 = vmatpush2.bf16.msra.mxu0 %v7198
    %7267 = vmatprep.subr.bf16.mxu0 0
    %7268 = vmatpush2.bf16.msra.mxu0 %v7197
    %7269 = vmatprep.mubr.bf16.mxu0 %v7214
    %7270 = vmatmul.mubr.bf16.gmra.mxu0 %v7100
    %v7271 = vpop.f32.mrf.mxu0
    %v7272 = vadd.f32 0.0, %v7271
    %v7273 = vpop.f32.mrf.mxu0
    %v7274 = vpop.f32.mrf.mxu0
    %v7275 = vadd.f32 0.0, %v7274
    %v7276 = vpop.f32.mrf.mxu0
    %7277 = vmatprep.mubr.bf16.mxu0 %v7217
    %7278 = vmatmul.mubr.bf16.gmra.mxu0 %v7102
    %v7279 = vpop.f32.mrf.mxu0
    %v7280 = vadd.f32 0.0, %v7279
    %v7281 = vpop.f32.mrf.mxu0
    %v7282 = vpop.f32.mrf.mxu0
    %v7283 = vadd.f32 0.0, %v7282
    %v7284 = vpop.f32.mrf.mxu0
    %7285 = vmatprep.mubr.bf16.mxu0 %v7220
    %7286 = vmatmul.mubr.bf16.gmra.mxu0 %v7104
    %v7287 = vpop.f32.mrf.mxu0
    %v7288 = vadd.f32 0.0, %v7287
    %v7289 = vpop.f32.mrf.mxu0
    %v7290 = vpop.f32.mrf.mxu0
    %v7291 = vadd.f32 0.0, %v7290
    %v7292 = vpop.f32.mrf.mxu0
    %7293 = vmatprep.mubr.bf16.mxu0 %v7223
    %7294 = vmatmul.mubr.bf16.gmra.mxu0 %v7106
    %v7295 = vpop.f32.mrf.mxu0
    %v7296 = vadd.f32 0.0, %v7295
    %v7297 = vpop.f32.mrf.mxu0
    %v7298 = vpop.f32.mrf.mxu0
    %v7299 = vadd.f32 0.0, %v7298
    %v7300 = vpop.f32.mrf.mxu0
    %7301 = vmatprep.mubr.bf16.mxu0 %v7226
    %7302 = vmatmul.mubr.bf16.gmra.mxu0 %v7108
    %v7303 = vpop.f32.mrf.mxu0
    %v7304 = vadd.f32 0.0, %v7303
    %v7305 = vpop.f32.mrf.mxu0
    %v7306 = vpop.f32.mrf.mxu0
    %v7307 = vadd.f32 0.0, %v7306
    %v7308 = vpop.f32.mrf.mxu0
    %7309 = vmatprep.mubr.bf16.mxu0 %v7229
    %7310 = vmatmul.mubr.bf16.gmra.mxu0 %v7110
    %v7311 = vpop.f32.mrf.mxu0
    %v7312 = vadd.f32 0.0, %v7311
    %v7313 = vpop.f32.mrf.mxu0
    %v7314 = vpop.f32.mrf.mxu0
    %v7315 = vadd.f32 0.0, %v7314
    %v7316 = vpop.f32.mrf.mxu0
    %7317 = vmatprep.mubr.bf16.mxu0 %v7232
    %7318 = vmatmul.mubr.bf16.gmra.mxu0 %v7112
    %v7319 = vpop.f32.mrf.mxu0
    %v7320 = vadd.f32 0.0, %v7319
    %v7321 = vpop.f32.mrf.mxu0
    %v7322 = vpop.f32.mrf.mxu0
    %v7323 = vadd.f32 0.0, %v7322
    %v7324 = vpop.f32.mrf.mxu0
    %7325 = vmatprep.mubr.bf16.mxu0 %v7235
    %7326 = vmatmul.mubr.bf16.gmra.mxu0 %v7114
    %v7327 = vpop.f32.mrf.mxu0
    %v7328 = vadd.f32 0.0, %v7327
    %v7329 = vpop.f32.mrf.mxu0
    %v7330 = vpop.f32.mrf.mxu0
    %v7331 = vadd.f32 0.0, %v7330
    %v7332 = vpop.f32.mrf.mxu0
    %7333 = vdwg.mxu0
    %v7358 = vunpack.c.l.b16 %v6963
    %v7359 = vunpack.c.l.b16 %v6964
    %v7360 = vunpack.c.l.b16 %v6965
    %v7361 = vunpack.c.l.b16 %v6966
    %v7362 = vunpack.c.l.b16 %v6967
    %v7363 = vunpack.c.l.b16 %v6968
    %v7364 = vunpack.c.l.b16 %v6969
    %v7365 = vunpack.c.l.b16 %v6970
    %v7366 = vunpack.c.l.b16 %v6971
    %v7367 = vunpack.c.l.b16 %v6972
    %v7368 = vunpack.c.l.b16 %v6973
    %v7369 = vunpack.c.l.b16 %v6974
    %v7370 = vunpack.c.l.b16 %v6975
    %v7371 = vunpack.c.l.b16 %v6976
    %v7372 = vunpack.c.l.b16 %v6977
    %v7373 = vunpack.c.l.b16 %v6978
    %v7374 = vunpack.c.l.b16 %v6979
    %v7375 = vunpack.c.l.b16 %v6980
    %v7376 = vunpack.c.l.b16 %v6981
    %v7377 = vunpack.c.l.b16 %v6982
    %v7378 = vunpack.c.l.b16 %v6983
    %v7379 = vunpack.c.l.b16 %v6984
    %v7380 = vunpack.c.l.b16 %v6985
    %v7381 = vunpack.c.l.b16 %v6986
    %v7382 = vpack.c.b16 %v7359, %v7358
    %v7383 = vpack.c.b16 %v7361, %v7360
    %v7384 = vpack.c.b16 %v7363, %v7362
    %v7385 = vpack.c.b16 %v7365, %v7364
    %v7386 = vpack.c.b16 %v7367, %v7366
    %v7387 = vpack.c.b16 %v7369, %v7368
    %v7388 = vpack.c.b16 %v7371, %v7370
    %v7389 = vpack.c.b16 %v7373, %v7372
    %v7390 = vpack.c.b16 %v7375, %v7374
    %v7391 = vpack.c.b16 %v7377, %v7376
    %v7392 = vpack.c.b16 %v7379, %v7378
    %v7393 = vpack.c.b16 %v7381, %v7380
    %v7407 = vsel %vm203, %v6948, 0
    %v7410 = vsel %vm203, %v6950, 0
    %v7413 = vsel %vm203, %v6952, 0
    %v7416 = vsel %vm203, %v6954, 0
    %v7419 = vsel %vm203, %v6956, 0
    %v7422 = vsel %vm203, %v6958, 0
    %v7425 = vsel %vm203, %v6960, 0
    %v7428 = vsel %vm203, %v6962, 0
    %7430 = vmatprep.subr.bf16.mxu0 0
    %7431 = vmatpush1.bf16.msra.mxu0 %v7389
    %7432 = vmatprep.subr.bf16.mxu0 0
    %7433 = vmatpush1.bf16.msra.mxu0 %v7388
    %7434 = vmatprep.subr.bf16.mxu0 0
    %7435 = vmatpush1.bf16.msra.mxu0 %v7387
    %7436 = vmatprep.subr.bf16.mxu0 0
    %7437 = vmatpush1.bf16.msra.mxu0 %v7386
    %7438 = vmatprep.subr.bf16.mxu0 0
    %7439 = vmatpush1.bf16.msra.mxu0 %v7385
    %7440 = vmatprep.subr.bf16.mxu0 0
    %7441 = vmatpush1.bf16.msra.mxu0 %v7384
    %7442 = vmatprep.subr.bf16.mxu0 0
    %7443 = vmatpush1.bf16.msra.mxu0 %v7383
    %7444 = vmatprep.subr.bf16.mxu0 0
    %7445 = vmatpush1.bf16.msra.mxu0 %v7382
    %7446 = vmatprep.subr.bf16.mxu0 0
    %7447 = vmatpush2.bf16.msra.mxu0 0
    %7448 = vmatprep.subr.bf16.mxu0 0
    %7449 = vmatpush2.bf16.msra.mxu0 0
    %7450 = vmatprep.subr.bf16.mxu0 0
    %7451 = vmatpush2.bf16.msra.mxu0 0
    %7452 = vmatprep.subr.bf16.mxu0 0
    %7453 = vmatpush2.bf16.msra.mxu0 0
    %7454 = vmatprep.subr.bf16.mxu0 0
    %7455 = vmatpush2.bf16.msra.mxu0 %v7393
    %7456 = vmatprep.subr.bf16.mxu0 0
    %7457 = vmatpush2.bf16.msra.mxu0 %v7392
    %7458 = vmatprep.subr.bf16.mxu0 0
    %7459 = vmatpush2.bf16.msra.mxu0 %v7391
    %7460 = vmatprep.subr.bf16.mxu0 0
    %7461 = vmatpush2.bf16.msra.mxu0 %v7390
    %7462 = vmatprep.mubr.bf16.mxu0 %v7407
    %7463 = vmatmul.mubr.bf16.gmra.mxu0 %v6947
    %v7464 = vpop.f32.mrf.mxu0
    %v7465 = vadd.f32 %v7272, %v7464
    %v7466 = vpop.f32.mrf.mxu0
    %v7467 = vpop.f32.mrf.mxu0
    %v7468 = vadd.f32 %v7275, %v7467
    %v7469 = vpop.f32.mrf.mxu0
    %7470 = vmatprep.mubr.bf16.mxu0 %v7410
    %7471 = vmatmul.mubr.bf16.gmra.mxu0 %v6949
    %v7472 = vpop.f32.mrf.mxu0
    %v7473 = vadd.f32 %v7280, %v7472
    %v7474 = vpop.f32.mrf.mxu0
    %v7475 = vpop.f32.mrf.mxu0
    %v7476 = vadd.f32 %v7283, %v7475
    %v7477 = vpop.f32.mrf.mxu0
    %7478 = vmatprep.mubr.bf16.mxu0 %v7413
    %7479 = vmatmul.mubr.bf16.gmra.mxu0 %v6951
    %v7480 = vpop.f32.mrf.mxu0
    %v7481 = vadd.f32 %v7288, %v7480
    %v7482 = vpop.f32.mrf.mxu0
    %v7483 = vpop.f32.mrf.mxu0
    %v7484 = vadd.f32 %v7291, %v7483
    %v7485 = vpop.f32.mrf.mxu0
    %7486 = vmatprep.mubr.bf16.mxu0 %v7416
    %7487 = vmatmul.mubr.bf16.gmra.mxu0 %v6953
    %v7488 = vpop.f32.mrf.mxu0
    %v7489 = vadd.f32 %v7296, %v7488
    %v7490 = vpop.f32.mrf.mxu0
    %v7491 = vpop.f32.mrf.mxu0
    %v7492 = vadd.f32 %v7299, %v7491
    %v7493 = vpop.f32.mrf.mxu0
    %7494 = vmatprep.mubr.bf16.mxu0 %v7419
    %7495 = vmatmul.mubr.bf16.gmra.mxu0 %v6955
    %v7496 = vpop.f32.mrf.mxu0
    %v7497 = vadd.f32 %v7304, %v7496
    %v7498 = vpop.f32.mrf.mxu0
    %v7499 = vpop.f32.mrf.mxu0
    %v7500 = vadd.f32 %v7307, %v7499
    %v7501 = vpop.f32.mrf.mxu0
    %7502 = vmatprep.mubr.bf16.mxu0 %v7422
    %7503 = vmatmul.mubr.bf16.gmra.mxu0 %v6957
    %v7504 = vpop.f32.mrf.mxu0
    %v7505 = vadd.f32 %v7312, %v7504
    %v7506 = vpop.f32.mrf.mxu0
    %v7507 = vpop.f32.mrf.mxu0
    %v7508 = vadd.f32 %v7315, %v7507
    %v7509 = vpop.f32.mrf.mxu0
    %7510 = vmatprep.mubr.bf16.mxu0 %v7425
    %7511 = vmatmul.mubr.bf16.gmra.mxu0 %v6959
    %v7512 = vpop.f32.mrf.mxu0
    %v7513 = vadd.f32 %v7320, %v7512
    %v7514 = vpop.f32.mrf.mxu0
    %v7515 = vpop.f32.mrf.mxu0
    %v7516 = vadd.f32 %v7323, %v7515
    %v7517 = vpop.f32.mrf.mxu0
    %7518 = vmatprep.mubr.bf16.mxu0 %v7428
    %7519 = vmatmul.mubr.bf16.gmra.mxu0 %v6961
    %v7520 = vpop.f32.mrf.mxu0
    %v7521 = vadd.f32 %v7328, %v7520
    %v7522 = vpop.f32.mrf.mxu0
    %v7523 = vpop.f32.mrf.mxu0
    %v7524 = vadd.f32 %v7331, %v7523
    %v7525 = vpop.f32.mrf.mxu0
    %7526 = vdwg.mxu0
    %7527 = vmatprep.subr.bf16.mxu0 %v6833
    %7528 = vmatpush1.bf16.msra.mxu0 %v6832
    %7529 = vmatprep.subr.bf16.mxu0 %v6831
    %7530 = vmatpush1.bf16.msra.mxu0 %v6830
    %7531 = vmatprep.subr.bf16.mxu0 %v6829
    %7532 = vmatpush1.bf16.msra.mxu0 %v6828
    %7533 = vmatprep.subr.bf16.mxu0 %v6827
    %7534 = vmatpush1.bf16.msra.mxu0 %v6826
    %7535 = vmatprep.subr.bf16.mxu0 %v6825
    %7536 = vmatpush1.bf16.msra.mxu0 %v6824
    %7537 = vmatprep.subr.bf16.mxu0 %v6823
    %7538 = vmatpush1.bf16.msra.mxu0 %v6822
    %7539 = vmatprep.subr.bf16.mxu0 %v6821
    %7540 = vmatpush1.bf16.msra.mxu0 %v6820
    %7541 = vmatprep.subr.bf16.mxu0 %v6819
    %7542 = vmatpush1.bf16.msra.mxu0 %v6818
    %7543 = vmatprep.subr.bf16.mxu0 0
    %7544 = vmatpush2.bf16.msra.mxu0 0
    %7545 = vmatprep.subr.bf16.mxu0 0
    %7546 = vmatpush2.bf16.msra.mxu0 0
    %7547 = vmatprep.subr.bf16.mxu0 0
    %7548 = vmatpush2.bf16.msra.mxu0 0
    %7549 = vmatprep.subr.bf16.mxu0 0
    %7550 = vmatpush2.bf16.msra.mxu0 0
    %7551 = vmatprep.subr.bf16.mxu0 0
    %7552 = vmatpush2.bf16.msra.mxu0 0
    %7553 = vmatprep.subr.bf16.mxu0 0
    %7554 = vmatpush2.bf16.msra.mxu0 0
    %7555 = vmatprep.subr.bf16.mxu0 0
    %7556 = vmatpush2.bf16.msra.mxu0 0
    %7557 = vmatprep.subr.bf16.mxu0 0
    %7558 = vmatpush2.bf16.msra.mxu0 0
    %7559 = vmatprep.mubr.bf16.mxu0 0
    %7560 = vmatmul.mubr.bf16.gmra.mxu0 %v997
    %v7561 = vpop.f32.mrf.mxu0
    %v7562 = vadd.f32 0.0, %v7561
    %v7563 = vpop.f32.mrf.mxu0
    %v7564 = vadd.f32 0.0, %v7563
    %v7565 = vpop.f32.mrf.mxu0
    %v7566 = vadd.f32 0.0, %v7565
    %v7567 = vpop.f32.mrf.mxu0
    %v7568 = vadd.f32 0.0, %v7567
    %7569 = vmatprep.mubr.bf16.mxu0 0
    %7570 = vmatmul.mubr.bf16.gmra.mxu0 %v998
    %v7571 = vpop.f32.mrf.mxu0
    %v7572 = vadd.f32 0.0, %v7571
    %v7573 = vpop.f32.mrf.mxu0
    %v7574 = vadd.f32 0.0, %v7573
    %v7575 = vpop.f32.mrf.mxu0
    %v7576 = vadd.f32 0.0, %v7575
    %v7577 = vpop.f32.mrf.mxu0
    %v7578 = vadd.f32 0.0, %v7577
    %7579 = vmatprep.mubr.bf16.mxu0 0
    %7580 = vmatmul.mubr.bf16.gmra.mxu0 %v999
    %v7581 = vpop.f32.mrf.mxu0
    %v7582 = vadd.f32 0.0, %v7581
    %v7583 = vpop.f32.mrf.mxu0
    %v7584 = vadd.f32 0.0, %v7583
    %v7585 = vpop.f32.mrf.mxu0
    %v7586 = vadd.f32 0.0, %v7585
    %v7587 = vpop.f32.mrf.mxu0
    %v7588 = vadd.f32 0.0, %v7587
    %7589 = vmatprep.mubr.bf16.mxu0 0
    %7590 = vmatmul.mubr.bf16.gmra.mxu0 %v1000
    %v7591 = vpop.f32.mrf.mxu0
    %v7592 = vadd.f32 0.0, %v7591
    %v7593 = vpop.f32.mrf.mxu0
    %v7594 = vadd.f32 0.0, %v7593
    %v7595 = vpop.f32.mrf.mxu0
    %v7596 = vadd.f32 0.0, %v7595
    %v7597 = vpop.f32.mrf.mxu0
    %v7598 = vadd.f32 0.0, %v7597
    %7599 = vmatprep.mubr.bf16.mxu0 0
    %7600 = vmatmul.mubr.bf16.gmra.mxu0 %v1001
    %v7601 = vpop.f32.mrf.mxu0
    %v7602 = vadd.f32 0.0, %v7601
    %v7603 = vpop.f32.mrf.mxu0
    %v7604 = vadd.f32 0.0, %v7603
    %v7605 = vpop.f32.mrf.mxu0
    %v7606 = vadd.f32 0.0, %v7605
    %v7607 = vpop.f32.mrf.mxu0
    %v7608 = vadd.f32 0.0, %v7607
    %7609 = vmatprep.mubr.bf16.mxu0 0
    %7610 = vmatmul.mubr.bf16.gmra.mxu0 %v1002
    %v7611 = vpop.f32.mrf.mxu0
    %v7612 = vadd.f32 0.0, %v7611
    %v7613 = vpop.f32.mrf.mxu0
    %v7614 = vadd.f32 0.0, %v7613
    %v7615 = vpop.f32.mrf.mxu0
    %v7616 = vadd.f32 0.0, %v7615
    %v7617 = vpop.f32.mrf.mxu0
    %v7618 = vadd.f32 0.0, %v7617
    %7619 = vmatprep.mubr.bf16.mxu0 0
    %7620 = vmatmul.mubr.bf16.gmra.mxu0 %v1003
    %v7621 = vpop.f32.mrf.mxu0
    %v7622 = vadd.f32 0.0, %v7621
    %v7623 = vpop.f32.mrf.mxu0
    %v7624 = vadd.f32 0.0, %v7623
    %v7625 = vpop.f32.mrf.mxu0
    %v7626 = vadd.f32 0.0, %v7625
    %v7627 = vpop.f32.mrf.mxu0
    %v7628 = vadd.f32 0.0, %v7627
    %7629 = vmatprep.mubr.bf16.mxu0 0
    %7630 = vmatmul.mubr.bf16.gmra.mxu0 %v1004
    %v7631 = vpop.f32.mrf.mxu0
    %v7632 = vadd.f32 0.0, %v7631
    %v7633 = vpop.f32.mrf.mxu0
    %v7634 = vadd.f32 0.0, %v7633
    %v7635 = vpop.f32.mrf.mxu0
    %v7636 = vadd.f32 0.0, %v7635
    %v7637 = vpop.f32.mrf.mxu0
    %v7638 = vadd.f32 0.0, %v7637
    %7639 = vdwg.mxu0
    %v7640 = vpack.c.bf16 %v7566, %v7562
    %v7641 = vpack.c.bf16 %v7568, %v7564
    %v7642 = vpack.c.bf16 %v7576, %v7572
    %v7643 = vpack.c.bf16 %v7578, %v7574
    %v7644 = vpack.c.bf16 %v7586, %v7582
    %v7645 = vpack.c.bf16 %v7588, %v7584
    %v7646 = vpack.c.bf16 %v7596, %v7592
    %v7647 = vpack.c.bf16 %v7598, %v7594
    %v7648 = vpack.c.bf16 %v7606, %v7602
    %v7649 = vpack.c.bf16 %v7608, %v7604
    %v7650 = vpack.c.bf16 %v7616, %v7612
    %v7651 = vpack.c.bf16 %v7618, %v7614
    %v7652 = vpack.c.bf16 %v7626, %v7622
    %v7653 = vpack.c.bf16 %v7628, %v7624
    %v7654 = vpack.c.bf16 %v7636, %v7632
    %v7655 = vpack.c.bf16 %v7638, %v7634
    %s7656 = scalar_lea.vmem [#allocation13], 192
    %v7657 = vld [vmem:[%s7656] sm:$0xf]
    %v7658 = vld [vmem:[%s7656 + $0x4] sm:$0xf]
    %v7659 = vld [vmem:[%s7656 + $0x8] sm:$0xf]
    %v7660 = vld [vmem:[%s7656 + $0xc] sm:$0xf]
    %v7661 = vld [vmem:[%s7656 + $0x10] sm:$0xf]
    %v7662 = vld [vmem:[%s7656 + $0x14] sm:$0xf]
    %v7663 = vld [vmem:[%s7656 + $0x18] sm:$0xf]
    %v7664 = vld [vmem:[%s7656 + $0x1c] sm:$0xf]
    %v7665 = vld [vmem:[%s7656 + $0x20] sm:$0xf]
    %v7666 = vld [vmem:[%s7656 + $0x24] sm:$0xf]
    %v7667 = vld [vmem:[%s7656 + $0x28] sm:$0xf]
    %v7668 = vld [vmem:[%s7656 + $0x2c] sm:$0xf]
    %v7669 = vld [vmem:[%s7656 + $0x30] sm:$0xf]
    %v7670 = vld [vmem:[%s7656 + $0x34] sm:$0xf]
    %v7671 = vld [vmem:[%s7656 + $0x38] sm:$0xf]
    %v7672 = vld [vmem:[%s7656 + $0x3c] sm:$0xf]
    %v7673 = vld [vmem:[%s7656 + $0x40] sm:$0xf]
    %v7674 = vld [vmem:[%s7656 + $0x44] sm:$0xf]
    %v7675 = vld [vmem:[%s7656 + $0x48] sm:$0xf]
    %v7676 = vld [vmem:[%s7656 + $0x4c] sm:$0xf]
    %v7677 = vld [vmem:[%s7656 + $0x50] sm:$0xf]
    %v7678 = vld [vmem:[%s7656 + $0x54] sm:$0xf]
    %v7679 = vld [vmem:[%s7656 + $0x58] sm:$0xf]
    %v7680 = vld [vmem:[%s7656 + $0x5c] sm:$0xf]
    %v7705 = vunpack.c.l.b16 %v7657
    %v7706 = vunpack.c.l.b16 %v7658
    %v7707 = vunpack.c.l.b16 %v7659
    %v7708 = vunpack.c.l.b16 %v7660
    %v7709 = vunpack.c.l.b16 %v7661
    %v7710 = vunpack.c.l.b16 %v7662
    %v7711 = vunpack.c.l.b16 %v7663
    %v7712 = vunpack.c.l.b16 %v7664
    %v7713 = vunpack.c.l.b16 %v7665
    %v7714 = vunpack.c.l.b16 %v7666
    %v7715 = vunpack.c.l.b16 %v7667
    %v7716 = vunpack.c.l.b16 %v7668
    %v7717 = vunpack.c.l.b16 %v7669
    %v7718 = vunpack.c.l.b16 %v7670
    %v7719 = vunpack.c.l.b16 %v7671
    %v7720 = vunpack.c.l.b16 %v7672
    %v7721 = vunpack.c.l.b16 %v7673
    %v7722 = vunpack.c.l.b16 %v7674
    %v7723 = vunpack.c.l.b16 %v7675
    %v7724 = vunpack.c.l.b16 %v7676
    %v7725 = vunpack.c.l.b16 %v7677
    %v7726 = vunpack.c.l.b16 %v7678
    %v7727 = vunpack.c.l.b16 %v7679
    %v7728 = vunpack.c.l.b16 %v7680
    %v7729 = vpack.c.b16 %v7706, %v7705
    %v7730 = vpack.c.b16 %v7708, %v7707
    %v7731 = vpack.c.b16 %v7710, %v7709
    %v7732 = vpack.c.b16 %v7712, %v7711
    %v7733 = vpack.c.b16 %v7714, %v7713
    %v7734 = vpack.c.b16 %v7716, %v7715
    %v7735 = vpack.c.b16 %v7718, %v7717
    %v7736 = vpack.c.b16 %v7720, %v7719
    %v7737 = vpack.c.b16 %v7722, %v7721
    %v7738 = vpack.c.b16 %v7724, %v7723
    %v7739 = vpack.c.b16 %v7726, %v7725
    %v7740 = vpack.c.b16 %v7728, %v7727
    %v7754 = vsel %vm203, %v7641, 0
    %v7757 = vsel %vm203, %v7643, 0
    %v7760 = vsel %vm203, %v7645, 0
    %v7763 = vsel %vm203, %v7647, 0
    %v7766 = vsel %vm203, %v7649, 0
    %v7769 = vsel %vm203, %v7651, 0
    %v7772 = vsel %vm203, %v7653, 0
    %v7775 = vsel %vm203, %v7655, 0
    %7777 = vmatprep.subr.bf16.mxu0 0
    %7778 = vmatpush1.bf16.msra.mxu0 %v7736
    %7779 = vmatprep.subr.bf16.mxu0 0
    %7780 = vmatpush1.bf16.msra.mxu0 %v7735
    %7781 = vmatprep.subr.bf16.mxu0 0
    %7782 = vmatpush1.bf16.msra.mxu0 %v7734
    %7783 = vmatprep.subr.bf16.mxu0 0
    %7784 = vmatpush1.bf16.msra.mxu0 %v7733
    %7785 = vmatprep.subr.bf16.mxu0 0
    %7786 = vmatpush1.bf16.msra.mxu0 %v7732
    %7787 = vmatprep.subr.bf16.mxu0 0
    %7788 = vmatpush1.bf16.msra.mxu0 %v7731
    %7789 = vmatprep.subr.bf16.mxu0 0
    %7790 = vmatpush1.bf16.msra.mxu0 %v7730
    %7791 = vmatprep.subr.bf16.mxu0 0
    %7792 = vmatpush1.bf16.msra.mxu0 %v7729
    %7793 = vmatprep.subr.bf16.mxu0 0
    %7794 = vmatpush2.bf16.msra.mxu0 0
    %7795 = vmatprep.subr.bf16.mxu0 0
    %7796 = vmatpush2.bf16.msra.mxu0 0
    %7797 = vmatprep.subr.bf16.mxu0 0
    %7798 = vmatpush2.bf16.msra.mxu0 0
    %7799 = vmatprep.subr.bf16.mxu0 0
    %7800 = vmatpush2.bf16.msra.mxu0 0
    %7801 = vmatprep.subr.bf16.mxu0 0
    %7802 = vmatpush2.bf16.msra.mxu0 %v7740
    %7803 = vmatprep.subr.bf16.mxu0 0
    %7804 = vmatpush2.bf16.msra.mxu0 %v7739
    %7805 = vmatprep.subr.bf16.mxu0 0
    %7806 = vmatpush2.bf16.msra.mxu0 %v7738
    %7807 = vmatprep.subr.bf16.mxu0 0
    %7808 = vmatpush2.bf16.msra.mxu0 %v7737
    %7809 = vmatprep.mubr.bf16.mxu0 %v7754
    %7810 = vmatmul.mubr.bf16.gmra.mxu0 %v7640
    %v7811 = vpop.f32.mrf.mxu0
    %v7812 = vadd.f32 0.0, %v7811
    %v7813 = vpop.f32.mrf.mxu0
    %v7814 = vpop.f32.mrf.mxu0
    %v7815 = vadd.f32 0.0, %v7814
    %v7816 = vpop.f32.mrf.mxu0
    %7817 = vmatprep.mubr.bf16.mxu0 %v7757
    %7818 = vmatmul.mubr.bf16.gmra.mxu0 %v7642
    %v7819 = vpop.f32.mrf.mxu0
    %v7820 = vadd.f32 0.0, %v7819
    %v7821 = vpop.f32.mrf.mxu0
    %v7822 = vpop.f32.mrf.mxu0
    %v7823 = vadd.f32 0.0, %v7822
    %v7824 = vpop.f32.mrf.mxu0
    %7825 = vmatprep.mubr.bf16.mxu0 %v7760
    %7826 = vmatmul.mubr.bf16.gmra.mxu0 %v7644
    %v7827 = vpop.f32.mrf.mxu0
    %v7828 = vadd.f32 0.0, %v7827
    %v7829 = vpop.f32.mrf.mxu0
    %v7830 = vpop.f32.mrf.mxu0
    %v7831 = vadd.f32 0.0, %v7830
    %v7832 = vpop.f32.mrf.mxu0
    %7833 = vmatprep.mubr.bf16.mxu0 %v7763
    %7834 = vmatmul.mubr.bf16.gmra.mxu0 %v7646
    %v7835 = vpop.f32.mrf.mxu0
    %v7836 = vadd.f32 0.0, %v7835
    %v7837 = vpop.f32.mrf.mxu0
    %v7838 = vpop.f32.mrf.mxu0
    %v7839 = vadd.f32 0.0, %v7838
    %v7840 = vpop.f32.mrf.mxu0
    %7841 = vmatprep.mubr.bf16.mxu0 %v7766
    %7842 = vmatmul.mubr.bf16.gmra.mxu0 %v7648
    %v7843 = vpop.f32.mrf.mxu0
    %v7844 = vadd.f32 0.0, %v7843
    %v7845 = vpop.f32.mrf.mxu0
    %v7846 = vpop.f32.mrf.mxu0
    %v7847 = vadd.f32 0.0, %v7846
    %v7848 = vpop.f32.mrf.mxu0
    %7849 = vmatprep.mubr.bf16.mxu0 %v7769
    %7850 = vmatmul.mubr.bf16.gmra.mxu0 %v7650
    %v7851 = vpop.f32.mrf.mxu0
    %v7852 = vadd.f32 0.0, %v7851
    %v7853 = vpop.f32.mrf.mxu0
    %v7854 = vpop.f32.mrf.mxu0
    %v7855 = vadd.f32 0.0, %v7854
    %v7856 = vpop.f32.mrf.mxu0
    %7857 = vmatprep.mubr.bf16.mxu0 %v7772
    %7858 = vmatmul.mubr.bf16.gmra.mxu0 %v7652
    %v7859 = vpop.f32.mrf.mxu0
    %v7860 = vadd.f32 0.0, %v7859
    %v7861 = vpop.f32.mrf.mxu0
    %v7862 = vpop.f32.mrf.mxu0
    %v7863 = vadd.f32 0.0, %v7862
    %v7864 = vpop.f32.mrf.mxu0
    %7865 = vmatprep.mubr.bf16.mxu0 %v7775
    %7866 = vmatmul.mubr.bf16.gmra.mxu0 %v7654
    %v7867 = vpop.f32.mrf.mxu0
    %v7868 = vadd.f32 0.0, %v7867
    %v7869 = vpop.f32.mrf.mxu0
    %v7870 = vpop.f32.mrf.mxu0
    %v7871 = vadd.f32 0.0, %v7870
    %v7872 = vpop.f32.mrf.mxu0
    %7873 = vdwg.mxu0
    %v7874 = vadd.f32 %v7465, %v7812
    %v7875 = vadd.f32 %v7468, %v7815
    %v7876 = vadd.f32 %v7473, %v7820
    %v7877 = vadd.f32 %v7476, %v7823
    %v7878 = vadd.f32 %v7481, %v7828
    %v7879 = vadd.f32 %v7484, %v7831
    %v7880 = vadd.f32 %v7489, %v7836
    %v7881 = vadd.f32 %v7492, %v7839
    %v7882 = vadd.f32 %v7497, %v7844
    %v7883 = vadd.f32 %v7500, %v7847
    %v7884 = vadd.f32 %v7505, %v7852
    %v7885 = vadd.f32 %v7508, %v7855
    %v7886 = vadd.f32 %v7513, %v7860
    %v7887 = vadd.f32 %v7516, %v7863
    %v7888 = vadd.f32 %v7521, %v7868
    %v7889 = vadd.f32 %v7524, %v7871
    %7890 = vmatprep.subr.bf16.mxu0 %v6833
    %7891 = vmatpush1.bf16.msra.mxu0 %v6832
    %7892 = vmatprep.subr.bf16.mxu0 %v6831
    %7893 = vmatpush1.bf16.msra.mxu0 %v6830
    %7894 = vmatprep.subr.bf16.mxu0 %v6829
    %7895 = vmatpush1.bf16.msra.mxu0 %v6828
    %7896 = vmatprep.subr.bf16.mxu0 %v6827
    %7897 = vmatpush1.bf16.msra.mxu0 %v6826
    %7898 = vmatprep.subr.bf16.mxu0 %v6825
    %7899 = vmatpush1.bf16.msra.mxu0 %v6824
    %7900 = vmatprep.subr.bf16.mxu0 %v6823
    %7901 = vmatpush1.bf16.msra.mxu0 %v6822
    %7902 = vmatprep.subr.bf16.mxu0 %v6821
    %7903 = vmatpush1.bf16.msra.mxu0 %v6820
    %7904 = vmatprep.subr.bf16.mxu0 %v6819
    %7905 = vmatpush1.bf16.msra.mxu0 %v6818
    %7906 = vmatprep.subr.bf16.mxu0 0
    %7907 = vmatpush2.bf16.msra.mxu0 0
    %7908 = vmatprep.subr.bf16.mxu0 0
    %7909 = vmatpush2.bf16.msra.mxu0 0
    %7910 = vmatprep.subr.bf16.mxu0 0
    %7911 = vmatpush2.bf16.msra.mxu0 0
    %7912 = vmatprep.subr.bf16.mxu0 0
    %7913 = vmatpush2.bf16.msra.mxu0 0
    %7914 = vmatprep.subr.bf16.mxu0 0
    %7915 = vmatpush2.bf16.msra.mxu0 0
    %7916 = vmatprep.subr.bf16.mxu0 0
    %7917 = vmatpush2.bf16.msra.mxu0 0
    %7918 = vmatprep.subr.bf16.mxu0 0
    %7919 = vmatpush2.bf16.msra.mxu0 0
    %7920 = vmatprep.subr.bf16.mxu0 0
    %7921 = vmatpush2.bf16.msra.mxu0 0
    %7922 = vmatprep.mubr.bf16.mxu0 0
    %7923 = vmatmul.mubr.bf16.gmra.mxu0 %v1313
    %v7924 = vpop.f32.mrf.mxu0
    %v7925 = vadd.f32 0.0, %v7924
    %v7926 = vpop.f32.mrf.mxu0
    %v7927 = vadd.f32 0.0, %v7926
    %v7928 = vpop.f32.mrf.mxu0
    %v7929 = vadd.f32 0.0, %v7928
    %v7930 = vpop.f32.mrf.mxu0
    %v7931 = vadd.f32 0.0, %v7930
    %7932 = vmatprep.mubr.bf16.mxu0 0
    %7933 = vmatmul.mubr.bf16.gmra.mxu0 %v1314
    %v7934 = vpop.f32.mrf.mxu0
    %v7935 = vadd.f32 0.0, %v7934
    %v7936 = vpop.f32.mrf.mxu0
    %v7937 = vadd.f32 0.0, %v7936
    %v7938 = vpop.f32.mrf.mxu0
    %v7939 = vadd.f32 0.0, %v7938
    %v7940 = vpop.f32.mrf.mxu0
    %v7941 = vadd.f32 0.0, %v7940
    %7942 = vmatprep.mubr.bf16.mxu0 0
    %7943 = vmatmul.mubr.bf16.gmra.mxu0 %v1315
    %v7944 = vpop.f32.mrf.mxu0
    %v7945 = vadd.f32 0.0, %v7944
    %v7946 = vpop.f32.mrf.mxu0
    %v7947 = vadd.f32 0.0, %v7946
    %v7948 = vpop.f32.mrf.mxu0
    %v7949 = vadd.f32 0.0, %v7948
    %v7950 = vpop.f32.mrf.mxu0
    %v7951 = vadd.f32 0.0, %v7950
    %7952 = vmatprep.mubr.bf16.mxu0 0
    %7953 = vmatmul.mubr.bf16.gmra.mxu0 %v1316
    %v7954 = vpop.f32.mrf.mxu0
    %v7955 = vadd.f32 0.0, %v7954
    %v7956 = vpop.f32.mrf.mxu0
    %v7957 = vadd.f32 0.0, %v7956
    %v7958 = vpop.f32.mrf.mxu0
    %v7959 = vadd.f32 0.0, %v7958
    %v7960 = vpop.f32.mrf.mxu0
    %v7961 = vadd.f32 0.0, %v7960
    %7962 = vmatprep.mubr.bf16.mxu0 0
    %7963 = vmatmul.mubr.bf16.gmra.mxu0 %v1317
    %v7964 = vpop.f32.mrf.mxu0
    %v7965 = vadd.f32 0.0, %v7964
    %v7966 = vpop.f32.mrf.mxu0
    %v7967 = vadd.f32 0.0, %v7966
    %v7968 = vpop.f32.mrf.mxu0
    %v7969 = vadd.f32 0.0, %v7968
    %v7970 = vpop.f32.mrf.mxu0
    %v7971 = vadd.f32 0.0, %v7970
    %7972 = vmatprep.mubr.bf16.mxu0 0
    %7973 = vmatmul.mubr.bf16.gmra.mxu0 %v1318
    %v7974 = vpop.f32.mrf.mxu0
    %v7975 = vadd.f32 0.0, %v7974
    %v7976 = vpop.f32.mrf.mxu0
    %v7977 = vadd.f32 0.0, %v7976
    %v7978 = vpop.f32.mrf.mxu0
    %v7979 = vadd.f32 0.0, %v7978
    %v7980 = vpop.f32.mrf.mxu0
    %v7981 = vadd.f32 0.0, %v7980
    %7982 = vmatprep.mubr.bf16.mxu0 0
    %7983 = vmatmul.mubr.bf16.gmra.mxu0 %v1319
    %v7984 = vpop.f32.mrf.mxu0
    %v7985 = vadd.f32 0.0, %v7984
    %v7986 = vpop.f32.mrf.mxu0
    %v7987 = vadd.f32 0.0, %v7986
    %v7988 = vpop.f32.mrf.mxu0
    %v7989 = vadd.f32 0.0, %v7988
    %v7990 = vpop.f32.mrf.mxu0
    %v7991 = vadd.f32 0.0, %v7990
    %7992 = vmatprep.mubr.bf16.mxu0 0
    %7993 = vmatmul.mubr.bf16.gmra.mxu0 %v1320
    %v7994 = vpop.f32.mrf.mxu0
    %v7995 = vadd.f32 0.0, %v7994
    %v7996 = vpop.f32.mrf.mxu0
    %v7997 = vadd.f32 0.0, %v7996
    %v7998 = vpop.f32.mrf.mxu0
    %v7999 = vadd.f32 0.0, %v7998
    %v8000 = vpop.f32.mrf.mxu0
    %v8001 = vadd.f32 0.0, %v8000
    %8002 = vdwg.mxu0
    %v8003 = vpack.c.bf16 %v7929, %v7925
    %v8004 = vpack.c.bf16 %v7931, %v7927
    %v8005 = vpack.c.bf16 %v7939, %v7935
    %v8006 = vpack.c.bf16 %v7941, %v7937
    %v8007 = vpack.c.bf16 %v7949, %v7945
    %v8008 = vpack.c.bf16 %v7951, %v7947
    %v8009 = vpack.c.bf16 %v7959, %v7955
    %v8010 = vpack.c.bf16 %v7961, %v7957
    %v8011 = vpack.c.bf16 %v7969, %v7965
    %v8012 = vpack.c.bf16 %v7971, %v7967
    %v8013 = vpack.c.bf16 %v7979, %v7975
    %v8014 = vpack.c.bf16 %v7981, %v7977
    %v8015 = vpack.c.bf16 %v7989, %v7985
    %v8016 = vpack.c.bf16 %v7991, %v7987
    %v8017 = vpack.c.bf16 %v7999, %v7995
    %v8018 = vpack.c.bf16 %v8001, %v7997
    %s8019 = scalar_lea.vmem [#allocation13], 288
    %v8020 = vld [vmem:[%s8019] sm:$0xf]
    %v8021 = vld [vmem:[%s8019 + $0x4] sm:$0xf]
    %v8022 = vld [vmem:[%s8019 + $0x8] sm:$0xf]
    %v8023 = vld [vmem:[%s8019 + $0xc] sm:$0xf]
    %v8024 = vld [vmem:[%s8019 + $0x10] sm:$0xf]
    %v8025 = vld [vmem:[%s8019 + $0x14] sm:$0xf]
    %v8026 = vld [vmem:[%s8019 + $0x18] sm:$0xf]
    %v8027 = vld [vmem:[%s8019 + $0x1c] sm:$0xf]
    %v8028 = vld [vmem:[%s8019 + $0x20] sm:$0xf]
    %v8029 = vld [vmem:[%s8019 + $0x24] sm:$0xf]
    %v8030 = vld [vmem:[%s8019 + $0x28] sm:$0xf]
    %v8031 = vld [vmem:[%s8019 + $0x2c] sm:$0xf]
    %v8032 = vld [vmem:[%s8019 + $0x30] sm:$0xf]
    %v8033 = vld [vmem:[%s8019 + $0x34] sm:$0xf]
    %v8034 = vld [vmem:[%s8019 + $0x38] sm:$0xf]
    %v8035 = vld [vmem:[%s8019 + $0x3c] sm:$0xf]
    %v8036 = vld [vmem:[%s8019 + $0x40] sm:$0xf]
    %v8037 = vld [vmem:[%s8019 + $0x44] sm:$0xf]
    %v8038 = vld [vmem:[%s8019 + $0x48] sm:$0xf]
    %v8039 = vld [vmem:[%s8019 + $0x4c] sm:$0xf]
    %v8040 = vld [vmem:[%s8019 + $0x50] sm:$0xf]
    %v8041 = vld [vmem:[%s8019 + $0x54] sm:$0xf]
    %v8042 = vld [vmem:[%s8019 + $0x58] sm:$0xf]
    %v8043 = vld [vmem:[%s8019 + $0x5c] sm:$0xf]
    %v8068 = vunpack.c.l.b16 %v8020
    %v8069 = vunpack.c.l.b16 %v8021
    %v8070 = vunpack.c.l.b16 %v8022
    %v8071 = vunpack.c.l.b16 %v8023
    %v8072 = vunpack.c.l.b16 %v8024
    %v8073 = vunpack.c.l.b16 %v8025
    %v8074 = vunpack.c.l.b16 %v8026
    %v8075 = vunpack.c.l.b16 %v8027
    %v8076 = vunpack.c.l.b16 %v8028
    %v8077 = vunpack.c.l.b16 %v8029
    %v8078 = vunpack.c.l.b16 %v8030
    %v8079 = vunpack.c.l.b16 %v8031
    %v8080 = vunpack.c.l.b16 %v8032
    %v8081 = vunpack.c.l.b16 %v8033
    %v8082 = vunpack.c.l.b16 %v8034
    %v8083 = vunpack.c.l.b16 %v8035
    %v8084 = vunpack.c.l.b16 %v8036
    %v8085 = vunpack.c.l.b16 %v8037
    %v8086 = vunpack.c.l.b16 %v8038
    %v8087 = vunpack.c.l.b16 %v8039
    %v8088 = vunpack.c.l.b16 %v8040
    %v8089 = vunpack.c.l.b16 %v8041
    %v8090 = vunpack.c.l.b16 %v8042
    %v8091 = vunpack.c.l.b16 %v8043
    %v8092 = vpack.c.b16 %v8069, %v8068
    %v8093 = vpack.c.b16 %v8071, %v8070
    %v8094 = vpack.c.b16 %v8073, %v8072
    %v8095 = vpack.c.b16 %v8075, %v8074
    %v8096 = vpack.c.b16 %v8077, %v8076
    %v8097 = vpack.c.b16 %v8079, %v8078
    %v8098 = vpack.c.b16 %v8081, %v8080
    %v8099 = vpack.c.b16 %v8083, %v8082
    %v8100 = vpack.c.b16 %v8085, %v8084
    %v8101 = vpack.c.b16 %v8087, %v8086
    %v8102 = vpack.c.b16 %v8089, %v8088
    %v8103 = vpack.c.b16 %v8091, %v8090
    %v8117 = vsel %vm203, %v8004, 0
    %v8120 = vsel %vm203, %v8006, 0
    %v8123 = vsel %vm203, %v8008, 0
    %v8126 = vsel %vm203, %v8010, 0
    %v8129 = vsel %vm203, %v8012, 0
    %v8132 = vsel %vm203, %v8014, 0
    %v8135 = vsel %vm203, %v8016, 0
    %v8138 = vsel %vm203, %v8018, 0
    %8140 = vmatprep.subr.bf16.mxu0 0
    %8141 = vmatpush1.bf16.msra.mxu0 %v8099
    %8142 = vmatprep.subr.bf16.mxu0 0
    %8143 = vmatpush1.bf16.msra.mxu0 %v8098
    %8144 = vmatprep.subr.bf16.mxu0 0
    %8145 = vmatpush1.bf16.msra.mxu0 %v8097
    %8146 = vmatprep.subr.bf16.mxu0 0
    %8147 = vmatpush1.bf16.msra.mxu0 %v8096
    %8148 = vmatprep.subr.bf16.mxu0 0
    %8149 = vmatpush1.bf16.msra.mxu0 %v8095
    %8150 = vmatprep.subr.bf16.mxu0 0
    %8151 = vmatpush1.bf16.msra.mxu0 %v8094
    %8152 = vmatprep.subr.bf16.mxu0 0
    %8153 = vmatpush1.bf16.msra.mxu0 %v8093
    %8154 = vmatprep.subr.bf16.mxu0 0
    %8155 = vmatpush1.bf16.msra.mxu0 %v8092
    %8156 = vmatprep.subr.bf16.mxu0 0
    %8157 = vmatpush2.bf16.msra.mxu0 0
    %8158 = vmatprep.subr.bf16.mxu0 0
    %8159 = vmatpush2.bf16.msra.mxu0 0
    %8160 = vmatprep.subr.bf16.mxu0 0
    %8161 = vmatpush2.bf16.msra.mxu0 0
    %8162 = vmatprep.subr.bf16.mxu0 0
    %8163 = vmatpush2.bf16.msra.mxu0 0
    %8164 = vmatprep.subr.bf16.mxu0 0
    %8165 = vmatpush2.bf16.msra.mxu0 %v8103
    %8166 = vmatprep.subr.bf16.mxu0 0
    %8167 = vmatpush2.bf16.msra.mxu0 %v8102
    %8168 = vmatprep.subr.bf16.mxu0 0
    %8169 = vmatpush2.bf16.msra.mxu0 %v8101
    %8170 = vmatprep.subr.bf16.mxu0 0
    %8171 = vmatpush2.bf16.msra.mxu0 %v8100
    %8172 = vmatprep.mubr.bf16.mxu0 %v8117
    %8173 = vmatmul.mubr.bf16.gmra.mxu0 %v8003
    %v8174 = vpop.f32.mrf.mxu0
    %v8175 = vadd.f32 0.0, %v8174
    %v8176 = vpop.f32.mrf.mxu0
    %v8177 = vpop.f32.mrf.mxu0
    %v8178 = vadd.f32 0.0, %v8177
    %v8179 = vpop.f32.mrf.mxu0
    %8180 = vmatprep.mubr.bf16.mxu0 %v8120
    %8181 = vmatmul.mubr.bf16.gmra.mxu0 %v8005
    %v8182 = vpop.f32.mrf.mxu0
    %v8183 = vadd.f32 0.0, %v8182
    %v8184 = vpop.f32.mrf.mxu0
    %v8185 = vpop.f32.mrf.mxu0
    %v8186 = vadd.f32 0.0, %v8185
    %v8187 = vpop.f32.mrf.mxu0
    %8188 = vmatprep.mubr.bf16.mxu0 %v8123
    %8189 = vmatmul.mubr.bf16.gmra.mxu0 %v8007
    %v8190 = vpop.f32.mrf.mxu0
    %v8191 = vadd.f32 0.0, %v8190
    %v8192 = vpop.f32.mrf.mxu0
    %v8193 = vpop.f32.mrf.mxu0
    %v8194 = vadd.f32 0.0, %v8193
    %v8195 = vpop.f32.mrf.mxu0
    %8196 = vmatprep.mubr.bf16.mxu0 %v8126
    %8197 = vmatmul.mubr.bf16.gmra.mxu0 %v8009
    %v8198 = vpop.f32.mrf.mxu0
    %v8199 = vadd.f32 0.0, %v8198
    %v8200 = vpop.f32.mrf.mxu0
    %v8201 = vpop.f32.mrf.mxu0
    %v8202 = vadd.f32 0.0, %v8201
    %v8203 = vpop.f32.mrf.mxu0
    %8204 = vmatprep.mubr.bf16.mxu0 %v8129
    %8205 = vmatmul.mubr.bf16.gmra.mxu0 %v8011
    %v8206 = vpop.f32.mrf.mxu0
    %v8207 = vadd.f32 0.0, %v8206
    %v8208 = vpop.f32.mrf.mxu0
    %v8209 = vpop.f32.mrf.mxu0
    %v8210 = vadd.f32 0.0, %v8209
    %v8211 = vpop.f32.mrf.mxu0
    %8212 = vmatprep.mubr.bf16.mxu0 %v8132
    %8213 = vmatmul.mubr.bf16.gmra.mxu0 %v8013
    %v8214 = vpop.f32.mrf.mxu0
    %v8215 = vadd.f32 0.0, %v8214
    %v8216 = vpop.f32.mrf.mxu0
    %v8217 = vpop.f32.mrf.mxu0
    %v8218 = vadd.f32 0.0, %v8217
    %v8219 = vpop.f32.mrf.mxu0
    %8220 = vmatprep.mubr.bf16.mxu0 %v8135
    %8221 = vmatmul.mubr.bf16.gmra.mxu0 %v8015
    %v8222 = vpop.f32.mrf.mxu0
    %v8223 = vadd.f32 0.0, %v8222
    %v8224 = vpop.f32.mrf.mxu0
    %v8225 = vpop.f32.mrf.mxu0
    %v8226 = vadd.f32 0.0, %v8225
    %v8227 = vpop.f32.mrf.mxu0
    %8228 = vmatprep.mubr.bf16.mxu0 %v8138
    %8229 = vmatmul.mubr.bf16.gmra.mxu0 %v8017
    %v8230 = vpop.f32.mrf.mxu0
    %v8231 = vadd.f32 0.0, %v8230
    %v8232 = vpop.f32.mrf.mxu0
    %v8233 = vpop.f32.mrf.mxu0
    %v8234 = vadd.f32 0.0, %v8233
    %v8235 = vpop.f32.mrf.mxu0
    %8236 = vdwg.mxu0
    %v8237 = vadd.f32 %v7874, %v8175
    %v8238 = vadd.f32 %v7875, %v8178
    %v8239 = vadd.f32 %v7876, %v8183
    %v8240 = vadd.f32 %v7877, %v8186
    %v8241 = vadd.f32 %v7878, %v8191
    %v8242 = vadd.f32 %v7879, %v8194
    %v8243 = vadd.f32 %v7880, %v8199
    %v8244 = vadd.f32 %v7881, %v8202
    %v8245 = vadd.f32 %v7882, %v8207
    %v8246 = vadd.f32 %v7883, %v8210
    %v8247 = vadd.f32 %v7884, %v8215
    %v8248 = vadd.f32 %v7885, %v8218
    %v8249 = vadd.f32 %v7886, %v8223
    %v8250 = vadd.f32 %v7887, %v8226
    %v8251 = vadd.f32 %v7888, %v8231
    %v8252 = vadd.f32 %v7889, %v8234
    %8253 = vmatprep.subr.bf16.mxu0 %v6833
    %8254 = vmatpush1.bf16.msra.mxu0 %v6832
    %8255 = vmatprep.subr.bf16.mxu0 %v6831
    %8256 = vmatpush1.bf16.msra.mxu0 %v6830
    %8257 = vmatprep.subr.bf16.mxu0 %v6829
    %8258 = vmatpush1.bf16.msra.mxu0 %v6828
    %8259 = vmatprep.subr.bf16.mxu0 %v6827
    %8260 = vmatpush1.bf16.msra.mxu0 %v6826
    %8261 = vmatprep.subr.bf16.mxu0 %v6825
    %8262 = vmatpush1.bf16.msra.mxu0 %v6824
    %8263 = vmatprep.subr.bf16.mxu0 %v6823
    %8264 = vmatpush1.bf16.msra.mxu0 %v6822
    %8265 = vmatprep.subr.bf16.mxu0 %v6821
    %8266 = vmatpush1.bf16.msra.mxu0 %v6820
    %8267 = vmatprep.subr.bf16.mxu0 %v6819
    %8268 = vmatpush1.bf16.msra.mxu0 %v6818
    %8269 = vmatprep.subr.bf16.mxu0 0
    %8270 = vmatpush2.bf16.msra.mxu0 0
    %8271 = vmatprep.subr.bf16.mxu0 0
    %8272 = vmatpush2.bf16.msra.mxu0 0
    %8273 = vmatprep.subr.bf16.mxu0 0
    %8274 = vmatpush2.bf16.msra.mxu0 0
    %8275 = vmatprep.subr.bf16.mxu0 0
    %8276 = vmatpush2.bf16.msra.mxu0 0
    %8277 = vmatprep.subr.bf16.mxu0 0
    %8278 = vmatpush2.bf16.msra.mxu0 0
    %8279 = vmatprep.subr.bf16.mxu0 0
    %8280 = vmatpush2.bf16.msra.mxu0 0
    %8281 = vmatprep.subr.bf16.mxu0 0
    %8282 = vmatpush2.bf16.msra.mxu0 0
    %8283 = vmatprep.subr.bf16.mxu0 0
    %8284 = vmatpush2.bf16.msra.mxu0 0
    %8285 = vmatprep.mubr.bf16.mxu0 0
    %8286 = vmatmul.mubr.bf16.gmra.mxu0 %v1629
    %v8287 = vpop.f32.mrf.mxu0
    %v8288 = vadd.f32 0.0, %v8287
    %v8289 = vpop.f32.mrf.mxu0
    %v8290 = vadd.f32 0.0, %v8289
    %v8291 = vpop.f32.mrf.mxu0
    %v8292 = vadd.f32 0.0, %v8291
    %v8293 = vpop.f32.mrf.mxu0
    %v8294 = vadd.f32 0.0, %v8293
    %8295 = vmatprep.mubr.bf16.mxu0 0
    %8296 = vmatmul.mubr.bf16.gmra.mxu0 %v1630
    %v8297 = vpop.f32.mrf.mxu0
    %v8298 = vadd.f32 0.0, %v8297
    %v8299 = vpop.f32.mrf.mxu0
    %v8300 = vadd.f32 0.0, %v8299
    %v8301 = vpop.f32.mrf.mxu0
    %v8302 = vadd.f32 0.0, %v8301
    %v8303 = vpop.f32.mrf.mxu0
    %v8304 = vadd.f32 0.0, %v8303
    %8305 = vmatprep.mubr.bf16.mxu0 0
    %8306 = vmatmul.mubr.bf16.gmra.mxu0 %v1631
    %v8307 = vpop.f32.mrf.mxu0
    %v8308 = vadd.f32 0.0, %v8307
    %v8309 = vpop.f32.mrf.mxu0
    %v8310 = vadd.f32 0.0, %v8309
    %v8311 = vpop.f32.mrf.mxu0
    %v8312 = vadd.f32 0.0, %v8311
    %v8313 = vpop.f32.mrf.mxu0
    %v8314 = vadd.f32 0.0, %v8313
    %8315 = vmatprep.mubr.bf16.mxu0 0
    %8316 = vmatmul.mubr.bf16.gmra.mxu0 %v1632
    %v8317 = vpop.f32.mrf.mxu0
    %v8318 = vadd.f32 0.0, %v8317
    %v8319 = vpop.f32.mrf.mxu0
    %v8320 = vadd.f32 0.0, %v8319
    %v8321 = vpop.f32.mrf.mxu0
    %v8322 = vadd.f32 0.0, %v8321
    %v8323 = vpop.f32.mrf.mxu0
    %v8324 = vadd.f32 0.0, %v8323
    %8325 = vmatprep.mubr.bf16.mxu0 0
    %8326 = vmatmul.mubr.bf16.gmra.mxu0 %v1633
    %v8327 = vpop.f32.mrf.mxu0
    %v8328 = vadd.f32 0.0, %v8327
    %v8329 = vpop.f32.mrf.mxu0
    %v8330 = vadd.f32 0.0, %v8329
    %v8331 = vpop.f32.mrf.mxu0
    %v8332 = vadd.f32 0.0, %v8331
    %v8333 = vpop.f32.mrf.mxu0
    %v8334 = vadd.f32 0.0, %v8333
    %8335 = vmatprep.mubr.bf16.mxu0 0
    %8336 = vmatmul.mubr.bf16.gmra.mxu0 %v1634
    %v8337 = vpop.f32.mrf.mxu0
    %v8338 = vadd.f32 0.0, %v8337
    %v8339 = vpop.f32.mrf.mxu0
    %v8340 = vadd.f32 0.0, %v8339
    %v8341 = vpop.f32.mrf.mxu0
    %v8342 = vadd.f32 0.0, %v8341
    %v8343 = vpop.f32.mrf.mxu0
    %v8344 = vadd.f32 0.0, %v8343
    %8345 = vmatprep.mubr.bf16.mxu0 0
    %8346 = vmatmul.mubr.bf16.gmra.mxu0 %v1635
    %v8347 = vpop.f32.mrf.mxu0
    %v8348 = vadd.f32 0.0, %v8347
    %v8349 = vpop.f32.mrf.mxu0
    %v8350 = vadd.f32 0.0, %v8349
    %v8351 = vpop.f32.mrf.mxu0
    %v8352 = vadd.f32 0.0, %v8351
    %v8353 = vpop.f32.mrf.mxu0
    %v8354 = vadd.f32 0.0, %v8353
    %8355 = vmatprep.mubr.bf16.mxu0 0
    %8356 = vmatmul.mubr.bf16.gmra.mxu0 %v1636
    %v8357 = vpop.f32.mrf.mxu0
    %v8358 = vadd.f32 0.0, %v8357
    %v8359 = vpop.f32.mrf.mxu0
    %v8360 = vadd.f32 0.0, %v8359
    %v8361 = vpop.f32.mrf.mxu0
    %v8362 = vadd.f32 0.0, %v8361
    %v8363 = vpop.f32.mrf.mxu0
    %v8364 = vadd.f32 0.0, %v8363
    %8365 = vdwg.mxu0
    %v8366 = vpack.c.bf16 %v8292, %v8288
    %v8367 = vpack.c.bf16 %v8294, %v8290
    %v8368 = vpack.c.bf16 %v8302, %v8298
    %v8369 = vpack.c.bf16 %v8304, %v8300
    %v8370 = vpack.c.bf16 %v8312, %v8308
    %v8371 = vpack.c.bf16 %v8314, %v8310
    %v8372 = vpack.c.bf16 %v8322, %v8318
    %v8373 = vpack.c.bf16 %v8324, %v8320
    %v8374 = vpack.c.bf16 %v8332, %v8328
    %v8375 = vpack.c.bf16 %v8334, %v8330
    %v8376 = vpack.c.bf16 %v8342, %v8338
    %v8377 = vpack.c.bf16 %v8344, %v8340
    %v8378 = vpack.c.bf16 %v8352, %v8348
    %v8379 = vpack.c.bf16 %v8354, %v8350
    %v8380 = vpack.c.bf16 %v8362, %v8358
    %v8381 = vpack.c.bf16 %v8364, %v8360
    %s8382 = scalar_lea.vmem [#allocation13], 384
    %v8383 = vld [vmem:[%s8382] sm:$0xf]
    %v8384 = vld [vmem:[%s8382 + $0x4] sm:$0xf]
    %v8385 = vld [vmem:[%s8382 + $0x8] sm:$0xf]
    %v8386 = vld [vmem:[%s8382 + $0xc] sm:$0xf]
    %v8387 = vld [vmem:[%s8382 + $0x10] sm:$0xf]
    %v8388 = vld [vmem:[%s8382 + $0x14] sm:$0xf]
    %v8389 = vld [vmem:[%s8382 + $0x18] sm:$0xf]
    %v8390 = vld [vmem:[%s8382 + $0x1c] sm:$0xf]
    %v8391 = vld [vmem:[%s8382 + $0x20] sm:$0xf]
    %v8392 = vld [vmem:[%s8382 + $0x24] sm:$0xf]
    %v8393 = vld [vmem:[%s8382 + $0x28] sm:$0xf]
    %v8394 = vld [vmem:[%s8382 + $0x2c] sm:$0xf]
    %v8395 = vld [vmem:[%s8382 + $0x30] sm:$0xf]
    %v8396 = vld [vmem:[%s8382 + $0x34] sm:$0xf]
    %v8397 = vld [vmem:[%s8382 + $0x38] sm:$0xf]
    %v8398 = vld [vmem:[%s8382 + $0x3c] sm:$0xf]
    %v8399 = vld [vmem:[%s8382 + $0x40] sm:$0xf]
    %v8400 = vld [vmem:[%s8382 + $0x44] sm:$0xf]
    %v8401 = vld [vmem:[%s8382 + $0x48] sm:$0xf]
    %v8402 = vld [vmem:[%s8382 + $0x4c] sm:$0xf]
    %v8403 = vld [vmem:[%s8382 + $0x50] sm:$0xf]
    %v8404 = vld [vmem:[%s8382 + $0x54] sm:$0xf]
    %v8405 = vld [vmem:[%s8382 + $0x58] sm:$0xf]
    %v8406 = vld [vmem:[%s8382 + $0x5c] sm:$0xf]
    %v8431 = vunpack.c.l.b16 %v8383
    %v8432 = vunpack.c.l.b16 %v8384
    %v8433 = vunpack.c.l.b16 %v8385
    %v8434 = vunpack.c.l.b16 %v8386
    %v8435 = vunpack.c.l.b16 %v8387
    %v8436 = vunpack.c.l.b16 %v8388
    %v8437 = vunpack.c.l.b16 %v8389
    %v8438 = vunpack.c.l.b16 %v8390
    %v8439 = vunpack.c.l.b16 %v8391
    %v8440 = vunpack.c.l.b16 %v8392
    %v8441 = vunpack.c.l.b16 %v8393
    %v8442 = vunpack.c.l.b16 %v8394
    %v8443 = vunpack.c.l.b16 %v8395
    %v8444 = vunpack.c.l.b16 %v8396
    %v8445 = vunpack.c.l.b16 %v8397
    %v8446 = vunpack.c.l.b16 %v8398
    %v8447 = vunpack.c.l.b16 %v8399
    %v8448 = vunpack.c.l.b16 %v8400
    %v8449 = vunpack.c.l.b16 %v8401
    %v8450 = vunpack.c.l.b16 %v8402
    %v8451 = vunpack.c.l.b16 %v8403
    %v8452 = vunpack.c.l.b16 %v8404
    %v8453 = vunpack.c.l.b16 %v8405
    %v8454 = vunpack.c.l.b16 %v8406
    %v8455 = vpack.c.b16 %v8432, %v8431
    %v8456 = vpack.c.b16 %v8434, %v8433
    %v8457 = vpack.c.b16 %v8436, %v8435
    %v8458 = vpack.c.b16 %v8438, %v8437
    %v8459 = vpack.c.b16 %v8440, %v8439
    %v8460 = vpack.c.b16 %v8442, %v8441
    %v8461 = vpack.c.b16 %v8444, %v8443
    %v8462 = vpack.c.b16 %v8446, %v8445
    %v8463 = vpack.c.b16 %v8448, %v8447
    %v8464 = vpack.c.b16 %v8450, %v8449
    %v8465 = vpack.c.b16 %v8452, %v8451
    %v8466 = vpack.c.b16 %v8454, %v8453
    %v8480 = vsel %vm203, %v8367, 0
    %v8483 = vsel %vm203, %v8369, 0
    %v8486 = vsel %vm203, %v8371, 0
    %v8489 = vsel %vm203, %v8373, 0
    %v8492 = vsel %vm203, %v8375, 0
    %v8495 = vsel %vm203, %v8377, 0
    %v8498 = vsel %vm203, %v8379, 0
    %v8501 = vsel %vm203, %v8381, 0
    %8503 = vmatprep.subr.bf16.mxu0 0
    %8504 = vmatpush1.bf16.msra.mxu0 %v8462
    %8505 = vmatprep.subr.bf16.mxu0 0
    %8506 = vmatpush1.bf16.msra.mxu0 %v8461
    %8507 = vmatprep.subr.bf16.mxu0 0
    %8508 = vmatpush1.bf16.msra.mxu0 %v8460
    %8509 = vmatprep.subr.bf16.mxu0 0
    %8510 = vmatpush1.bf16.msra.mxu0 %v8459
    %8511 = vmatprep.subr.bf16.mxu0 0
    %8512 = vmatpush1.bf16.msra.mxu0 %v8458
    %8513 = vmatprep.subr.bf16.mxu0 0
    %8514 = vmatpush1.bf16.msra.mxu0 %v8457
    %8515 = vmatprep.subr.bf16.mxu0 0
    %8516 = vmatpush1.bf16.msra.mxu0 %v8456
    %8517 = vmatprep.subr.bf16.mxu0 0
    %8518 = vmatpush1.bf16.msra.mxu0 %v8455
    %8519 = vmatprep.subr.bf16.mxu0 0
    %8520 = vmatpush2.bf16.msra.mxu0 0
    %8521 = vmatprep.subr.bf16.mxu0 0
    %8522 = vmatpush2.bf16.msra.mxu0 0
    %8523 = vmatprep.subr.bf16.mxu0 0
    %8524 = vmatpush2.bf16.msra.mxu0 0
    %8525 = vmatprep.subr.bf16.mxu0 0
    %8526 = vmatpush2.bf16.msra.mxu0 0
    %8527 = vmatprep.subr.bf16.mxu0 0
    %8528 = vmatpush2.bf16.msra.mxu0 %v8466
    %8529 = vmatprep.subr.bf16.mxu0 0
    %8530 = vmatpush2.bf16.msra.mxu0 %v8465
    %8531 = vmatprep.subr.bf16.mxu0 0
    %8532 = vmatpush2.bf16.msra.mxu0 %v8464
    %8533 = vmatprep.subr.bf16.mxu0 0
    %8534 = vmatpush2.bf16.msra.mxu0 %v8463
    %8535 = vmatprep.mubr.bf16.mxu0 %v8480
    %8536 = vmatmul.mubr.bf16.gmra.mxu0 %v8366
    %v8537 = vpop.f32.mrf.mxu0
    %v8538 = vadd.f32 0.0, %v8537
    %v8539 = vpop.f32.mrf.mxu0
    %v8540 = vpop.f32.mrf.mxu0
    %v8541 = vadd.f32 0.0, %v8540
    %v8542 = vpop.f32.mrf.mxu0
    %8543 = vmatprep.mubr.bf16.mxu0 %v8483
    %8544 = vmatmul.mubr.bf16.gmra.mxu0 %v8368
    %v8545 = vpop.f32.mrf.mxu0
    %v8546 = vadd.f32 0.0, %v8545
    %v8547 = vpop.f32.mrf.mxu0
    %v8548 = vpop.f32.mrf.mxu0
    %v8549 = vadd.f32 0.0, %v8548
    %v8550 = vpop.f32.mrf.mxu0
    %8551 = vmatprep.mubr.bf16.mxu0 %v8486
    %8552 = vmatmul.mubr.bf16.gmra.mxu0 %v8370
    %v8553 = vpop.f32.mrf.mxu0
    %v8554 = vadd.f32 0.0, %v8553
    %v8555 = vpop.f32.mrf.mxu0
    %v8556 = vpop.f32.mrf.mxu0
    %v8557 = vadd.f32 0.0, %v8556
    %v8558 = vpop.f32.mrf.mxu0
    %8559 = vmatprep.mubr.bf16.mxu0 %v8489
    %8560 = vmatmul.mubr.bf16.gmra.mxu0 %v8372
    %v8561 = vpop.f32.mrf.mxu0
    %v8562 = vadd.f32 0.0, %v8561
    %v8563 = vpop.f32.mrf.mxu0
    %v8564 = vpop.f32.mrf.mxu0
    %v8565 = vadd.f32 0.0, %v8564
    %v8566 = vpop.f32.mrf.mxu0
    %8567 = vmatprep.mubr.bf16.mxu0 %v8492
    %8568 = vmatmul.mubr.bf16.gmra.mxu0 %v8374
    %v8569 = vpop.f32.mrf.mxu0
    %v8570 = vadd.f32 0.0, %v8569
    %v8571 = vpop.f32.mrf.mxu0
    %v8572 = vpop.f32.mrf.mxu0
    %v8573 = vadd.f32 0.0, %v8572
    %v8574 = vpop.f32.mrf.mxu0
    %8575 = vmatprep.mubr.bf16.mxu0 %v8495
    %8576 = vmatmul.mubr.bf16.gmra.mxu0 %v8376
    %v8577 = vpop.f32.mrf.mxu0
    %v8578 = vadd.f32 0.0, %v8577
    %v8579 = vpop.f32.mrf.mxu0
    %v8580 = vpop.f32.mrf.mxu0
    %v8581 = vadd.f32 0.0, %v8580
    %v8582 = vpop.f32.mrf.mxu0
    %8583 = vmatprep.mubr.bf16.mxu0 %v8498
    %8584 = vmatmul.mubr.bf16.gmra.mxu0 %v8378
    %v8585 = vpop.f32.mrf.mxu0
    %v8586 = vadd.f32 0.0, %v8585
    %v8587 = vpop.f32.mrf.mxu0
    %v8588 = vpop.f32.mrf.mxu0
    %v8589 = vadd.f32 0.0, %v8588
    %v8590 = vpop.f32.mrf.mxu0
    %8591 = vmatprep.mubr.bf16.mxu0 %v8501
    %8592 = vmatmul.mubr.bf16.gmra.mxu0 %v8380
    %v8593 = vpop.f32.mrf.mxu0
    %v8594 = vadd.f32 0.0, %v8593
    %v8595 = vpop.f32.mrf.mxu0
    %v8596 = vpop.f32.mrf.mxu0
    %v8597 = vadd.f32 0.0, %v8596
    %v8598 = vpop.f32.mrf.mxu0
    %8599 = vdwg.mxu0
    %v8600 = vadd.f32 %v8237, %v8538
    %v8601 = vadd.f32 %v8238, %v8541
    %v8602 = vadd.f32 %v8239, %v8546
    %v8603 = vadd.f32 %v8240, %v8549
    %v8604 = vadd.f32 %v8241, %v8554
    %v8605 = vadd.f32 %v8242, %v8557
    %v8606 = vadd.f32 %v8243, %v8562
    %v8607 = vadd.f32 %v8244, %v8565
    %v8608 = vadd.f32 %v8245, %v8570
    %v8609 = vadd.f32 %v8246, %v8573
    %v8610 = vadd.f32 %v8247, %v8578
    %v8611 = vadd.f32 %v8248, %v8581
    %v8612 = vadd.f32 %v8249, %v8586
    %v8613 = vadd.f32 %v8250, %v8589
    %v8614 = vadd.f32 %v8251, %v8594
    %v8615 = vadd.f32 %v8252, %v8597
    %8616 = vmatprep.subr.bf16.mxu0 %v6833
    %8617 = vmatpush1.bf16.msra.mxu0 %v6832
    %8618 = vmatprep.subr.bf16.mxu0 %v6831
    %8619 = vmatpush1.bf16.msra.mxu0 %v6830
    %8620 = vmatprep.subr.bf16.mxu0 %v6829
    %8621 = vmatpush1.bf16.msra.mxu0 %v6828
    %8622 = vmatprep.subr.bf16.mxu0 %v6827
    %8623 = vmatpush1.bf16.msra.mxu0 %v6826
    %8624 = vmatprep.subr.bf16.mxu0 %v6825
    %8625 = vmatpush1.bf16.msra.mxu0 %v6824
    %8626 = vmatprep.subr.bf16.mxu0 %v6823
    %8627 = vmatpush1.bf16.msra.mxu0 %v6822
    %8628 = vmatprep.subr.bf16.mxu0 %v6821
    %8629 = vmatpush1.bf16.msra.mxu0 %v6820
    %8630 = vmatprep.subr.bf16.mxu0 %v6819
    %8631 = vmatpush1.bf16.msra.mxu0 %v6818
    %8632 = vmatprep.subr.bf16.mxu0 0
    %8633 = vmatpush2.bf16.msra.mxu0 0
    %8634 = vmatprep.subr.bf16.mxu0 0
    %8635 = vmatpush2.bf16.msra.mxu0 0
    %8636 = vmatprep.subr.bf16.mxu0 0
    %8637 = vmatpush2.bf16.msra.mxu0 0
    %8638 = vmatprep.subr.bf16.mxu0 0
    %8639 = vmatpush2.bf16.msra.mxu0 0
    %8640 = vmatprep.subr.bf16.mxu0 0
    %8641 = vmatpush2.bf16.msra.mxu0 0
    %8642 = vmatprep.subr.bf16.mxu0 0
    %8643 = vmatpush2.bf16.msra.mxu0 0
    %8644 = vmatprep.subr.bf16.mxu0 0
    %8645 = vmatpush2.bf16.msra.mxu0 0
    %8646 = vmatprep.subr.bf16.mxu0 0
    %8647 = vmatpush2.bf16.msra.mxu0 0
    %8648 = vmatprep.mubr.bf16.mxu0 0
    %8649 = vmatmul.mubr.bf16.gmra.mxu0 %v1945
    %v8650 = vpop.f32.mrf.mxu0
    %v8651 = vadd.f32 0.0, %v8650
    %v8652 = vpop.f32.mrf.mxu0
    %v8653 = vadd.f32 0.0, %v8652
    %v8654 = vpop.f32.mrf.mxu0
    %v8655 = vadd.f32 0.0, %v8654
    %v8656 = vpop.f32.mrf.mxu0
    %v8657 = vadd.f32 0.0, %v8656
    %8658 = vmatprep.mubr.bf16.mxu0 0
    %8659 = vmatmul.mubr.bf16.gmra.mxu0 %v1946
    %v8660 = vpop.f32.mrf.mxu0
    %v8661 = vadd.f32 0.0, %v8660
    %v8662 = vpop.f32.mrf.mxu0
    %v8663 = vadd.f32 0.0, %v8662
    %v8664 = vpop.f32.mrf.mxu0
    %v8665 = vadd.f32 0.0, %v8664
    %v8666 = vpop.f32.mrf.mxu0
    %v8667 = vadd.f32 0.0, %v8666
    %8668 = vmatprep.mubr.bf16.mxu0 0
    %8669 = vmatmul.mubr.bf16.gmra.mxu0 %v1947
    %v8670 = vpop.f32.mrf.mxu0
    %v8671 = vadd.f32 0.0, %v8670
    %v8672 = vpop.f32.mrf.mxu0
    %v8673 = vadd.f32 0.0, %v8672
    %v8674 = vpop.f32.mrf.mxu0
    %v8675 = vadd.f32 0.0, %v8674
    %v8676 = vpop.f32.mrf.mxu0
    %v8677 = vadd.f32 0.0, %v8676
    %8678 = vmatprep.mubr.bf16.mxu0 0
    %8679 = vmatmul.mubr.bf16.gmra.mxu0 %v1948
    %v8680 = vpop.f32.mrf.mxu0
    %v8681 = vadd.f32 0.0, %v8680
    %v8682 = vpop.f32.mrf.mxu0
    %v8683 = vadd.f32 0.0, %v8682
    %v8684 = vpop.f32.mrf.mxu0
    %v8685 = vadd.f32 0.0, %v8684
    %v8686 = vpop.f32.mrf.mxu0
    %v8687 = vadd.f32 0.0, %v8686
    %8688 = vmatprep.mubr.bf16.mxu0 0
    %8689 = vmatmul.mubr.bf16.gmra.mxu0 %v1949
    %v8690 = vpop.f32.mrf.mxu0
    %v8691 = vadd.f32 0.0, %v8690
    %v8692 = vpop.f32.mrf.mxu0
    %v8693 = vadd.f32 0.0, %v8692
    %v8694 = vpop.f32.mrf.mxu0
    %v8695 = vadd.f32 0.0, %v8694
    %v8696 = vpop.f32.mrf.mxu0
    %v8697 = vadd.f32 0.0, %v8696
    %8698 = vmatprep.mubr.bf16.mxu0 0
    %8699 = vmatmul.mubr.bf16.gmra.mxu0 %v1950
    %v8700 = vpop.f32.mrf.mxu0
    %v8701 = vadd.f32 0.0, %v8700
    %v8702 = vpop.f32.mrf.mxu0
    %v8703 = vadd.f32 0.0, %v8702
    %v8704 = vpop.f32.mrf.mxu0
    %v8705 = vadd.f32 0.0, %v8704
    %v8706 = vpop.f32.mrf.mxu0
    %v8707 = vadd.f32 0.0, %v8706
    %8708 = vmatprep.mubr.bf16.mxu0 0
    %8709 = vmatmul.mubr.bf16.gmra.mxu0 %v1951
    %v8710 = vpop.f32.mrf.mxu0
    %v8711 = vadd.f32 0.0, %v8710
    %v8712 = vpop.f32.mrf.mxu0
    %v8713 = vadd.f32 0.0, %v8712
    %v8714 = vpop.f32.mrf.mxu0
    %v8715 = vadd.f32 0.0, %v8714
    %v8716 = vpop.f32.mrf.mxu0
    %v8717 = vadd.f32 0.0, %v8716
    %8718 = vmatprep.mubr.bf16.mxu0 0
    %8719 = vmatmul.mubr.bf16.gmra.mxu0 %v1952
    %v8720 = vpop.f32.mrf.mxu0
    %v8721 = vadd.f32 0.0, %v8720
    %v8722 = vpop.f32.mrf.mxu0
    %v8723 = vadd.f32 0.0, %v8722
    %v8724 = vpop.f32.mrf.mxu0
    %v8725 = vadd.f32 0.0, %v8724
    %v8726 = vpop.f32.mrf.mxu0
    %v8727 = vadd.f32 0.0, %v8726
    %8728 = vdwg.mxu0
    %v8729 = vpack.c.bf16 %v8655, %v8651
    %v8730 = vpack.c.bf16 %v8657, %v8653
    %v8731 = vpack.c.bf16 %v8665, %v8661
    %v8732 = vpack.c.bf16 %v8667, %v8663
    %v8733 = vpack.c.bf16 %v8675, %v8671
    %v8734 = vpack.c.bf16 %v8677, %v8673
    %v8735 = vpack.c.bf16 %v8685, %v8681
    %v8736 = vpack.c.bf16 %v8687, %v8683
    %v8737 = vpack.c.bf16 %v8695, %v8691
    %v8738 = vpack.c.bf16 %v8697, %v8693
    %v8739 = vpack.c.bf16 %v8705, %v8701
    %v8740 = vpack.c.bf16 %v8707, %v8703
    %v8741 = vpack.c.bf16 %v8715, %v8711
    %v8742 = vpack.c.bf16 %v8717, %v8713
    %v8743 = vpack.c.bf16 %v8725, %v8721
    %v8744 = vpack.c.bf16 %v8727, %v8723
    %s8745 = scalar_lea.vmem [#allocation13], 480
    %v8746 = vld [vmem:[%s8745] sm:$0xf]
    %v8747 = vld [vmem:[%s8745 + $0x4] sm:$0xf]
    %v8748 = vld [vmem:[%s8745 + $0x8] sm:$0xf]
    %v8749 = vld [vmem:[%s8745 + $0xc] sm:$0xf]
    %v8750 = vld [vmem:[%s8745 + $0x10] sm:$0xf]
    %v8751 = vld [vmem:[%s8745 + $0x14] sm:$0xf]
    %v8752 = vld [vmem:[%s8745 + $0x18] sm:$0xf]
    %v8753 = vld [vmem:[%s8745 + $0x1c] sm:$0xf]
    %v8754 = vld [vmem:[%s8745 + $0x20] sm:$0xf]
    %v8755 = vld [vmem:[%s8745 + $0x24] sm:$0xf]
    %v8756 = vld [vmem:[%s8745 + $0x28] sm:$0xf]
    %v8757 = vld [vmem:[%s8745 + $0x2c] sm:$0xf]
    %v8758 = vld [vmem:[%s8745 + $0x30] sm:$0xf]
    %v8759 = vld [vmem:[%s8745 + $0x34] sm:$0xf]
    %v8760 = vld [vmem:[%s8745 + $0x38] sm:$0xf]
    %v8761 = vld [vmem:[%s8745 + $0x3c] sm:$0xf]
    %v8762 = vld [vmem:[%s8745 + $0x40] sm:$0xf]
    %v8763 = vld [vmem:[%s8745 + $0x44] sm:$0xf]
    %v8764 = vld [vmem:[%s8745 + $0x48] sm:$0xf]
    %v8765 = vld [vmem:[%s8745 + $0x4c] sm:$0xf]
    %v8766 = vld [vmem:[%s8745 + $0x50] sm:$0xf]
    %v8767 = vld [vmem:[%s8745 + $0x54] sm:$0xf]
    %v8768 = vld [vmem:[%s8745 + $0x58] sm:$0xf]
    %v8769 = vld [vmem:[%s8745 + $0x5c] sm:$0xf]
    %v8794 = vunpack.c.l.b16 %v8746
    %v8795 = vunpack.c.l.b16 %v8747
    %v8796 = vunpack.c.l.b16 %v8748
    %v8797 = vunpack.c.l.b16 %v8749
    %v8798 = vunpack.c.l.b16 %v8750
    %v8799 = vunpack.c.l.b16 %v8751
    %v8800 = vunpack.c.l.b16 %v8752
    %v8801 = vunpack.c.l.b16 %v8753
    %v8802 = vunpack.c.l.b16 %v8754
    %v8803 = vunpack.c.l.b16 %v8755
    %v8804 = vunpack.c.l.b16 %v8756
    %v8805 = vunpack.c.l.b16 %v8757
    %v8806 = vunpack.c.l.b16 %v8758
    %v8807 = vunpack.c.l.b16 %v8759
    %v8808 = vunpack.c.l.b16 %v8760
    %v8809 = vunpack.c.l.b16 %v8761
    %v8810 = vunpack.c.l.b16 %v8762
    %v8811 = vunpack.c.l.b16 %v8763
    %v8812 = vunpack.c.l.b16 %v8764
    %v8813 = vunpack.c.l.b16 %v8765
    %v8814 = vunpack.c.l.b16 %v8766
    %v8815 = vunpack.c.l.b16 %v8767
    %v8816 = vunpack.c.l.b16 %v8768
    %v8817 = vunpack.c.l.b16 %v8769
    %v8818 = vpack.c.b16 %v8795, %v8794
    %v8819 = vpack.c.b16 %v8797, %v8796
    %v8820 = vpack.c.b16 %v8799, %v8798
    %v8821 = vpack.c.b16 %v8801, %v8800
    %v8822 = vpack.c.b16 %v8803, %v8802
    %v8823 = vpack.c.b16 %v8805, %v8804
    %v8824 = vpack.c.b16 %v8807, %v8806
    %v8825 = vpack.c.b16 %v8809, %v8808
    %v8826 = vpack.c.b16 %v8811, %v8810
    %v8827 = vpack.c.b16 %v8813, %v8812
    %v8828 = vpack.c.b16 %v8815, %v8814
    %v8829 = vpack.c.b16 %v8817, %v8816
    %v8843 = vsel %vm203, %v8730, 0
    %v8846 = vsel %vm203, %v8732, 0
    %v8849 = vsel %vm203, %v8734, 0
    %v8852 = vsel %vm203, %v8736, 0
    %v8855 = vsel %vm203, %v8738, 0
    %v8858 = vsel %vm203, %v8740, 0
    %v8861 = vsel %vm203, %v8742, 0
    %v8864 = vsel %vm203, %v8744, 0
    %8866 = vmatprep.subr.bf16.mxu0 0
    %8867 = vmatpush1.bf16.msra.mxu0 %v8825
    %8868 = vmatprep.subr.bf16.mxu0 0
    %8869 = vmatpush1.bf16.msra.mxu0 %v8824
    %8870 = vmatprep.subr.bf16.mxu0 0
    %8871 = vmatpush1.bf16.msra.mxu0 %v8823
    %8872 = vmatprep.subr.bf16.mxu0 0
    %8873 = vmatpush1.bf16.msra.mxu0 %v8822
    %8874 = vmatprep.subr.bf16.mxu0 0
    %8875 = vmatpush1.bf16.msra.mxu0 %v8821
    %8876 = vmatprep.subr.bf16.mxu0 0
    %8877 = vmatpush1.bf16.msra.mxu0 %v8820
    %8878 = vmatprep.subr.bf16.mxu0 0
    %8879 = vmatpush1.bf16.msra.mxu0 %v8819
    %8880 = vmatprep.subr.bf16.mxu0 0
    %8881 = vmatpush1.bf16.msra.mxu0 %v8818
    %8882 = vmatprep.subr.bf16.mxu0 0
    %8883 = vmatpush2.bf16.msra.mxu0 0
    %8884 = vmatprep.subr.bf16.mxu0 0
    %8885 = vmatpush2.bf16.msra.mxu0 0
    %8886 = vmatprep.subr.bf16.mxu0 0
    %8887 = vmatpush2.bf16.msra.mxu0 0
    %8888 = vmatprep.subr.bf16.mxu0 0
    %8889 = vmatpush2.bf16.msra.mxu0 0
    %8890 = vmatprep.subr.bf16.mxu0 0
    %8891 = vmatpush2.bf16.msra.mxu0 %v8829
    %8892 = vmatprep.subr.bf16.mxu0 0
    %8893 = vmatpush2.bf16.msra.mxu0 %v8828
    %8894 = vmatprep.subr.bf16.mxu0 0
    %8895 = vmatpush2.bf16.msra.mxu0 %v8827
    %8896 = vmatprep.subr.bf16.mxu0 0
    %8897 = vmatpush2.bf16.msra.mxu0 %v8826
    %8898 = vmatprep.mubr.bf16.mxu0 %v8843
    %8899 = vmatmul.mubr.bf16.gmra.mxu0 %v8729
    %v8900 = vpop.f32.mrf.mxu0
    %v8901 = vadd.f32 0.0, %v8900
    %v8902 = vpop.f32.mrf.mxu0
    %v8903 = vpop.f32.mrf.mxu0
    %v8904 = vadd.f32 0.0, %v8903
    %v8905 = vpop.f32.mrf.mxu0
    %8906 = vmatprep.mubr.bf16.mxu0 %v8846
    %8907 = vmatmul.mubr.bf16.gmra.mxu0 %v8731
    %v8908 = vpop.f32.mrf.mxu0
    %v8909 = vadd.f32 0.0, %v8908
    %v8910 = vpop.f32.mrf.mxu0
    %v8911 = vpop.f32.mrf.mxu0
    %v8912 = vadd.f32 0.0, %v8911
    %v8913 = vpop.f32.mrf.mxu0
    %8914 = vmatprep.mubr.bf16.mxu0 %v8849
    %8915 = vmatmul.mubr.bf16.gmra.mxu0 %v8733
    %v8916 = vpop.f32.mrf.mxu0
    %v8917 = vadd.f32 0.0, %v8916
    %v8918 = vpop.f32.mrf.mxu0
    %v8919 = vpop.f32.mrf.mxu0
    %v8920 = vadd.f32 0.0, %v8919
    %v8921 = vpop.f32.mrf.mxu0
    %8922 = vmatprep.mubr.bf16.mxu0 %v8852
    %8923 = vmatmul.mubr.bf16.gmra.mxu0 %v8735
    %v8924 = vpop.f32.mrf.mxu0
    %v8925 = vadd.f32 0.0, %v8924
    %v8926 = vpop.f32.mrf.mxu0
    %v8927 = vpop.f32.mrf.mxu0
    %v8928 = vadd.f32 0.0, %v8927
    %v8929 = vpop.f32.mrf.mxu0
    %8930 = vmatprep.mubr.bf16.mxu0 %v8855
    %8931 = vmatmul.mubr.bf16.gmra.mxu0 %v8737
    %v8932 = vpop.f32.mrf.mxu0
    %v8933 = vadd.f32 0.0, %v8932
    %v8934 = vpop.f32.mrf.mxu0
    %v8935 = vpop.f32.mrf.mxu0
    %v8936 = vadd.f32 0.0, %v8935
    %v8937 = vpop.f32.mrf.mxu0
    %8938 = vmatprep.mubr.bf16.mxu0 %v8858
    %8939 = vmatmul.mubr.bf16.gmra.mxu0 %v8739
    %v8940 = vpop.f32.mrf.mxu0
    %v8941 = vadd.f32 0.0, %v8940
    %v8942 = vpop.f32.mrf.mxu0
    %v8943 = vpop.f32.mrf.mxu0
    %v8944 = vadd.f32 0.0, %v8943
    %v8945 = vpop.f32.mrf.mxu0
    %8946 = vmatprep.mubr.bf16.mxu0 %v8861
    %8947 = vmatmul.mubr.bf16.gmra.mxu0 %v8741
    %v8948 = vpop.f32.mrf.mxu0
    %v8949 = vadd.f32 0.0, %v8948
    %v8950 = vpop.f32.mrf.mxu0
    %v8951 = vpop.f32.mrf.mxu0
    %v8952 = vadd.f32 0.0, %v8951
    %v8953 = vpop.f32.mrf.mxu0
    %8954 = vmatprep.mubr.bf16.mxu0 %v8864
    %8955 = vmatmul.mubr.bf16.gmra.mxu0 %v8743
    %v8956 = vpop.f32.mrf.mxu0
    %v8957 = vadd.f32 0.0, %v8956
    %v8958 = vpop.f32.mrf.mxu0
    %v8959 = vpop.f32.mrf.mxu0
    %v8960 = vadd.f32 0.0, %v8959
    %v8961 = vpop.f32.mrf.mxu0
    %8962 = vdwg.mxu0
    %v8963 = vadd.f32 %v8600, %v8901
    %v8964 = vadd.f32 %v8601, %v8904
    %v8965 = vadd.f32 %v8602, %v8909
    %v8966 = vadd.f32 %v8603, %v8912
    %v8967 = vadd.f32 %v8604, %v8917
    %v8968 = vadd.f32 %v8605, %v8920
    %v8969 = vadd.f32 %v8606, %v8925
    %v8970 = vadd.f32 %v8607, %v8928
    %v8971 = vadd.f32 %v8608, %v8933
    %v8972 = vadd.f32 %v8609, %v8936
    %v8973 = vadd.f32 %v8610, %v8941
    %v8974 = vadd.f32 %v8611, %v8944
    %v8975 = vadd.f32 %v8612, %v8949
    %v8976 = vadd.f32 %v8613, %v8952
    %v8977 = vadd.f32 %v8614, %v8957
    %v8978 = vadd.f32 %v8615, %v8960
    %8979 = vmatprep.subr.bf16.mxu0 %v6833
    %8980 = vmatpush1.bf16.msra.mxu0 %v6832
    %8981 = vmatprep.subr.bf16.mxu0 %v6831
    %8982 = vmatpush1.bf16.msra.mxu0 %v6830
    %8983 = vmatprep.subr.bf16.mxu0 %v6829
    %8984 = vmatpush1.bf16.msra.mxu0 %v6828
    %8985 = vmatprep.subr.bf16.mxu0 %v6827
    %8986 = vmatpush1.bf16.msra.mxu0 %v6826
    %8987 = vmatprep.subr.bf16.mxu0 %v6825
    %8988 = vmatpush1.bf16.msra.mxu0 %v6824
    %8989 = vmatprep.subr.bf16.mxu0 %v6823
    %8990 = vmatpush1.bf16.msra.mxu0 %v6822
    %8991 = vmatprep.subr.bf16.mxu0 %v6821
    %8992 = vmatpush1.bf16.msra.mxu0 %v6820
    %8993 = vmatprep.subr.bf16.mxu0 %v6819
    %8994 = vmatpush1.bf16.msra.mxu0 %v6818
    %8995 = vmatprep.subr.bf16.mxu0 0
    %8996 = vmatpush2.bf16.msra.mxu0 0
    %8997 = vmatprep.subr.bf16.mxu0 0
    %8998 = vmatpush2.bf16.msra.mxu0 0
    %8999 = vmatprep.subr.bf16.mxu0 0
    %9000 = vmatpush2.bf16.msra.mxu0 0
    %9001 = vmatprep.subr.bf16.mxu0 0
    %9002 = vmatpush2.bf16.msra.mxu0 0
    %9003 = vmatprep.subr.bf16.mxu0 0
    %9004 = vmatpush2.bf16.msra.mxu0 0
    %9005 = vmatprep.subr.bf16.mxu0 0
    %9006 = vmatpush2.bf16.msra.mxu0 0
    %9007 = vmatprep.subr.bf16.mxu0 0
    %9008 = vmatpush2.bf16.msra.mxu0 0
    %9009 = vmatprep.subr.bf16.mxu0 0
    %9010 = vmatpush2.bf16.msra.mxu0 0
    %9011 = vmatprep.mubr.bf16.mxu0 0
    %9012 = vmatmul.mubr.bf16.gmra.mxu0 %v2261
    %v9013 = vpop.f32.mrf.mxu0
    %v9014 = vadd.f32 0.0, %v9013
    %v9015 = vpop.f32.mrf.mxu0
    %v9016 = vadd.f32 0.0, %v9015
    %v9017 = vpop.f32.mrf.mxu0
    %v9018 = vadd.f32 0.0, %v9017
    %v9019 = vpop.f32.mrf.mxu0
    %v9020 = vadd.f32 0.0, %v9019
    %9021 = vmatprep.mubr.bf16.mxu0 0
    %9022 = vmatmul.mubr.bf16.gmra.mxu0 %v2262
    %v9023 = vpop.f32.mrf.mxu0
    %v9024 = vadd.f32 0.0, %v9023
    %v9025 = vpop.f32.mrf.mxu0
    %v9026 = vadd.f32 0.0, %v9025
    %v9027 = vpop.f32.mrf.mxu0
    %v9028 = vadd.f32 0.0, %v9027
    %v9029 = vpop.f32.mrf.mxu0
    %v9030 = vadd.f32 0.0, %v9029
    %9031 = vmatprep.mubr.bf16.mxu0 0
    %9032 = vmatmul.mubr.bf16.gmra.mxu0 %v2263
    %v9033 = vpop.f32.mrf.mxu0
    %v9034 = vadd.f32 0.0, %v9033
    %v9035 = vpop.f32.mrf.mxu0
    %v9036 = vadd.f32 0.0, %v9035
    %v9037 = vpop.f32.mrf.mxu0
    %v9038 = vadd.f32 0.0, %v9037
    %v9039 = vpop.f32.mrf.mxu0
    %v9040 = vadd.f32 0.0, %v9039
    %9041 = vmatprep.mubr.bf16.mxu0 0
    %9042 = vmatmul.mubr.bf16.gmra.mxu0 %v2264
    %v9043 = vpop.f32.mrf.mxu0
    %v9044 = vadd.f32 0.0, %v9043
    %v9045 = vpop.f32.mrf.mxu0
    %v9046 = vadd.f32 0.0, %v9045
    %v9047 = vpop.f32.mrf.mxu0
    %v9048 = vadd.f32 0.0, %v9047
    %v9049 = vpop.f32.mrf.mxu0
    %v9050 = vadd.f32 0.0, %v9049
    %9051 = vmatprep.mubr.bf16.mxu0 0
    %9052 = vmatmul.mubr.bf16.gmra.mxu0 %v2265
    %v9053 = vpop.f32.mrf.mxu0
    %v9054 = vadd.f32 0.0, %v9053
    %v9055 = vpop.f32.mrf.mxu0
    %v9056 = vadd.f32 0.0, %v9055
    %v9057 = vpop.f32.mrf.mxu0
    %v9058 = vadd.f32 0.0, %v9057
    %v9059 = vpop.f32.mrf.mxu0
    %v9060 = vadd.f32 0.0, %v9059
    %9061 = vmatprep.mubr.bf16.mxu0 0
    %9062 = vmatmul.mubr.bf16.gmra.mxu0 %v2266
    %v9063 = vpop.f32.mrf.mxu0
    %v9064 = vadd.f32 0.0, %v9063
    %v9065 = vpop.f32.mrf.mxu0
    %v9066 = vadd.f32 0.0, %v9065
    %v9067 = vpop.f32.mrf.mxu0
    %v9068 = vadd.f32 0.0, %v9067
    %v9069 = vpop.f32.mrf.mxu0
    %v9070 = vadd.f32 0.0, %v9069
    %9071 = vmatprep.mubr.bf16.mxu0 0
    %9072 = vmatmul.mubr.bf16.gmra.mxu0 %v2267
    %v9073 = vpop.f32.mrf.mxu0
    %v9074 = vadd.f32 0.0, %v9073
    %v9075 = vpop.f32.mrf.mxu0
    %v9076 = vadd.f32 0.0, %v9075
    %v9077 = vpop.f32.mrf.mxu0
    %v9078 = vadd.f32 0.0, %v9077
    %v9079 = vpop.f32.mrf.mxu0
    %v9080 = vadd.f32 0.0, %v9079
    %9081 = vmatprep.mubr.bf16.mxu0 0
    %9082 = vmatmul.mubr.bf16.gmra.mxu0 %v2268
    %v9083 = vpop.f32.mrf.mxu0
    %v9084 = vadd.f32 0.0, %v9083
    %v9085 = vpop.f32.mrf.mxu0
    %v9086 = vadd.f32 0.0, %v9085
    %v9087 = vpop.f32.mrf.mxu0
    %v9088 = vadd.f32 0.0, %v9087
    %v9089 = vpop.f32.mrf.mxu0
    %v9090 = vadd.f32 0.0, %v9089
    %9091 = vdwg.mxu0
    %v9092 = vpack.c.bf16 %v9018, %v9014
    %v9093 = vpack.c.bf16 %v9020, %v9016
    %v9094 = vpack.c.bf16 %v9028, %v9024
    %v9095 = vpack.c.bf16 %v9030, %v9026
    %v9096 = vpack.c.bf16 %v9038, %v9034
    %v9097 = vpack.c.bf16 %v9040, %v9036
    %v9098 = vpack.c.bf16 %v9048, %v9044
    %v9099 = vpack.c.bf16 %v9050, %v9046
    %v9100 = vpack.c.bf16 %v9058, %v9054
    %v9101 = vpack.c.bf16 %v9060, %v9056
    %v9102 = vpack.c.bf16 %v9068, %v9064
    %v9103 = vpack.c.bf16 %v9070, %v9066
    %v9104 = vpack.c.bf16 %v9078, %v9074
    %v9105 = vpack.c.bf16 %v9080, %v9076
    %v9106 = vpack.c.bf16 %v9088, %v9084
    %v9107 = vpack.c.bf16 %v9090, %v9086
    %s9108 = scalar_lea.vmem [#allocation13], 576
    %v9109 = vld [vmem:[%s9108] sm:$0xf]
    %v9110 = vld [vmem:[%s9108 + $0x4] sm:$0xf]
    %v9111 = vld [vmem:[%s9108 + $0x8] sm:$0xf]
    %v9112 = vld [vmem:[%s9108 + $0xc] sm:$0xf]
    %v9113 = vld [vmem:[%s9108 + $0x10] sm:$0xf]
    %v9114 = vld [vmem:[%s9108 + $0x14] sm:$0xf]
    %v9115 = vld [vmem:[%s9108 + $0x18] sm:$0xf]
    %v9116 = vld [vmem:[%s9108 + $0x1c] sm:$0xf]
    %v9117 = vld [vmem:[%s9108 + $0x20] sm:$0xf]
    %v9118 = vld [vmem:[%s9108 + $0x24] sm:$0xf]
    %v9119 = vld [vmem:[%s9108 + $0x28] sm:$0xf]
    %v9120 = vld [vmem:[%s9108 + $0x2c] sm:$0xf]
    %v9121 = vld [vmem:[%s9108 + $0x30] sm:$0xf]
    %v9122 = vld [vmem:[%s9108 + $0x34] sm:$0xf]
    %v9123 = vld [vmem:[%s9108 + $0x38] sm:$0xf]
    %v9124 = vld [vmem:[%s9108 + $0x3c] sm:$0xf]
    %v9125 = vld [vmem:[%s9108 + $0x40] sm:$0xf]
    %v9126 = vld [vmem:[%s9108 + $0x44] sm:$0xf]
    %v9127 = vld [vmem:[%s9108 + $0x48] sm:$0xf]
    %v9128 = vld [vmem:[%s9108 + $0x4c] sm:$0xf]
    %v9129 = vld [vmem:[%s9108 + $0x50] sm:$0xf]
    %v9130 = vld [vmem:[%s9108 + $0x54] sm:$0xf]
    %v9131 = vld [vmem:[%s9108 + $0x58] sm:$0xf]
    %v9132 = vld [vmem:[%s9108 + $0x5c] sm:$0xf]
    %v9157 = vunpack.c.l.b16 %v9109
    %v9158 = vunpack.c.l.b16 %v9110
    %v9159 = vunpack.c.l.b16 %v9111
    %v9160 = vunpack.c.l.b16 %v9112
    %v9161 = vunpack.c.l.b16 %v9113
    %v9162 = vunpack.c.l.b16 %v9114
    %v9163 = vunpack.c.l.b16 %v9115
    %v9164 = vunpack.c.l.b16 %v9116
    %v9165 = vunpack.c.l.b16 %v9117
    %v9166 = vunpack.c.l.b16 %v9118
    %v9167 = vunpack.c.l.b16 %v9119
    %v9168 = vunpack.c.l.b16 %v9120
    %v9169 = vunpack.c.l.b16 %v9121
    %v9170 = vunpack.c.l.b16 %v9122
    %v9171 = vunpack.c.l.b16 %v9123
    %v9172 = vunpack.c.l.b16 %v9124
    %v9173 = vunpack.c.l.b16 %v9125
    %v9174 = vunpack.c.l.b16 %v9126
    %v9175 = vunpack.c.l.b16 %v9127
    %v9176 = vunpack.c.l.b16 %v9128
    %v9177 = vunpack.c.l.b16 %v9129
    %v9178 = vunpack.c.l.b16 %v9130
    %v9179 = vunpack.c.l.b16 %v9131
    %v9180 = vunpack.c.l.b16 %v9132
    %v9181 = vpack.c.b16 %v9158, %v9157
    %v9182 = vpack.c.b16 %v9160, %v9159
    %v9183 = vpack.c.b16 %v9162, %v9161
    %v9184 = vpack.c.b16 %v9164, %v9163
    %v9185 = vpack.c.b16 %v9166, %v9165
    %v9186 = vpack.c.b16 %v9168, %v9167
    %v9187 = vpack.c.b16 %v9170, %v9169
    %v9188 = vpack.c.b16 %v9172, %v9171
    %v9189 = vpack.c.b16 %v9174, %v9173
    %v9190 = vpack.c.b16 %v9176, %v9175
    %v9191 = vpack.c.b16 %v9178, %v9177
    %v9192 = vpack.c.b16 %v9180, %v9179
    %v9206 = vsel %vm203, %v9093, 0
    %v9209 = vsel %vm203, %v9095, 0
    %v9212 = vsel %vm203, %v9097, 0
    %v9215 = vsel %vm203, %v9099, 0
    %v9218 = vsel %vm203, %v9101, 0
    %v9221 = vsel %vm203, %v9103, 0
    %v9224 = vsel %vm203, %v9105, 0
    %v9227 = vsel %vm203, %v9107, 0
    %9229 = vmatprep.subr.bf16.mxu0 0
    %9230 = vmatpush1.bf16.msra.mxu0 %v9188
    %9231 = vmatprep.subr.bf16.mxu0 0
    %9232 = vmatpush1.bf16.msra.mxu0 %v9187
    %9233 = vmatprep.subr.bf16.mxu0 0
    %9234 = vmatpush1.bf16.msra.mxu0 %v9186
    %9235 = vmatprep.subr.bf16.mxu0 0
    %9236 = vmatpush1.bf16.msra.mxu0 %v9185
    %9237 = vmatprep.subr.bf16.mxu0 0
    %9238 = vmatpush1.bf16.msra.mxu0 %v9184
    %9239 = vmatprep.subr.bf16.mxu0 0
    %9240 = vmatpush1.bf16.msra.mxu0 %v9183
    %9241 = vmatprep.subr.bf16.mxu0 0
    %9242 = vmatpush1.bf16.msra.mxu0 %v9182
    %9243 = vmatprep.subr.bf16.mxu0 0
    %9244 = vmatpush1.bf16.msra.mxu0 %v9181
    %9245 = vmatprep.subr.bf16.mxu0 0
    %9246 = vmatpush2.bf16.msra.mxu0 0
    %9247 = vmatprep.subr.bf16.mxu0 0
    %9248 = vmatpush2.bf16.msra.mxu0 0
    %9249 = vmatprep.subr.bf16.mxu0 0
    %9250 = vmatpush2.bf16.msra.mxu0 0
    %9251 = vmatprep.subr.bf16.mxu0 0
    %9252 = vmatpush2.bf16.msra.mxu0 0
    %9253 = vmatprep.subr.bf16.mxu0 0
    %9254 = vmatpush2.bf16.msra.mxu0 %v9192
    %9255 = vmatprep.subr.bf16.mxu0 0
    %9256 = vmatpush2.bf16.msra.mxu0 %v9191
    %9257 = vmatprep.subr.bf16.mxu0 0
    %9258 = vmatpush2.bf16.msra.mxu0 %v9190
    %9259 = vmatprep.subr.bf16.mxu0 0
    %9260 = vmatpush2.bf16.msra.mxu0 %v9189
    %9261 = vmatprep.mubr.bf16.mxu0 %v9206
    %9262 = vmatmul.mubr.bf16.gmra.mxu0 %v9092
    %v9263 = vpop.f32.mrf.mxu0
    %v9264 = vadd.f32 0.0, %v9263
    %v9265 = vpop.f32.mrf.mxu0
    %v9266 = vpop.f32.mrf.mxu0
    %v9267 = vadd.f32 0.0, %v9266
    %v9268 = vpop.f32.mrf.mxu0
    %9269 = vmatprep.mubr.bf16.mxu0 %v9209
    %9270 = vmatmul.mubr.bf16.gmra.mxu0 %v9094
    %v9271 = vpop.f32.mrf.mxu0
    %v9272 = vadd.f32 0.0, %v9271
    %v9273 = vpop.f32.mrf.mxu0
    %v9274 = vpop.f32.mrf.mxu0
    %v9275 = vadd.f32 0.0, %v9274
    %v9276 = vpop.f32.mrf.mxu0
    %9277 = vmatprep.mubr.bf16.mxu0 %v9212
    %9278 = vmatmul.mubr.bf16.gmra.mxu0 %v9096
    %v9279 = vpop.f32.mrf.mxu0
    %v9280 = vadd.f32 0.0, %v9279
    %v9281 = vpop.f32.mrf.mxu0
    %v9282 = vpop.f32.mrf.mxu0
    %v9283 = vadd.f32 0.0, %v9282
    %v9284 = vpop.f32.mrf.mxu0
    %9285 = vmatprep.mubr.bf16.mxu0 %v9215
    %9286 = vmatmul.mubr.bf16.gmra.mxu0 %v9098
    %v9287 = vpop.f32.mrf.mxu0
    %v9288 = vadd.f32 0.0, %v9287
    %v9289 = vpop.f32.mrf.mxu0
    %v9290 = vpop.f32.mrf.mxu0
    %v9291 = vadd.f32 0.0, %v9290
    %v9292 = vpop.f32.mrf.mxu0
    %9293 = vmatprep.mubr.bf16.mxu0 %v9218
    %9294 = vmatmul.mubr.bf16.gmra.mxu0 %v9100
    %v9295 = vpop.f32.mrf.mxu0
    %v9296 = vadd.f32 0.0, %v9295
    %v9297 = vpop.f32.mrf.mxu0
    %v9298 = vpop.f32.mrf.mxu0
    %v9299 = vadd.f32 0.0, %v9298
    %v9300 = vpop.f32.mrf.mxu0
    %9301 = vmatprep.mubr.bf16.mxu0 %v9221
    %9302 = vmatmul.mubr.bf16.gmra.mxu0 %v9102
    %v9303 = vpop.f32.mrf.mxu0
    %v9304 = vadd.f32 0.0, %v9303
    %v9305 = vpop.f32.mrf.mxu0
    %v9306 = vpop.f32.mrf.mxu0
    %v9307 = vadd.f32 0.0, %v9306
    %v9308 = vpop.f32.mrf.mxu0
    %9309 = vmatprep.mubr.bf16.mxu0 %v9224
    %9310 = vmatmul.mubr.bf16.gmra.mxu0 %v9104
    %v9311 = vpop.f32.mrf.mxu0
    %v9312 = vadd.f32 0.0, %v9311
    %v9313 = vpop.f32.mrf.mxu0
    %v9314 = vpop.f32.mrf.mxu0
    %v9315 = vadd.f32 0.0, %v9314
    %v9316 = vpop.f32.mrf.mxu0
    %9317 = vmatprep.mubr.bf16.mxu0 %v9227
    %9318 = vmatmul.mubr.bf16.gmra.mxu0 %v9106
    %v9319 = vpop.f32.mrf.mxu0
    %v9320 = vadd.f32 0.0, %v9319
    %v9321 = vpop.f32.mrf.mxu0
    %v9322 = vpop.f32.mrf.mxu0
    %v9323 = vadd.f32 0.0, %v9322
    %v9324 = vpop.f32.mrf.mxu0
    %9325 = vdwg.mxu0
    %v9326 = vadd.f32 %v8963, %v9264
    %v9327 = vadd.f32 %v8964, %v9267
    %v9328 = vadd.f32 %v8965, %v9272
    %v9329 = vadd.f32 %v8966, %v9275
    %v9330 = vadd.f32 %v8967, %v9280
    %v9331 = vadd.f32 %v8968, %v9283
    %v9332 = vadd.f32 %v8969, %v9288
    %v9333 = vadd.f32 %v8970, %v9291
    %v9334 = vadd.f32 %v8971, %v9296
    %v9335 = vadd.f32 %v8972, %v9299
    %v9336 = vadd.f32 %v8973, %v9304
    %v9337 = vadd.f32 %v8974, %v9307
    %v9338 = vadd.f32 %v8975, %v9312
    %v9339 = vadd.f32 %v8976, %v9315
    %v9340 = vadd.f32 %v8977, %v9320
    %v9341 = vadd.f32 %v8978, %v9323
    %9342 = vmatprep.subr.bf16.mxu0 %v6833
    %9343 = vmatpush1.bf16.msra.mxu0 %v6832
    %9344 = vmatprep.subr.bf16.mxu0 %v6831
    %9345 = vmatpush1.bf16.msra.mxu0 %v6830
    %9346 = vmatprep.subr.bf16.mxu0 %v6829
    %9347 = vmatpush1.bf16.msra.mxu0 %v6828
    %9348 = vmatprep.subr.bf16.mxu0 %v6827
    %9349 = vmatpush1.bf16.msra.mxu0 %v6826
    %9350 = vmatprep.subr.bf16.mxu0 %v6825
    %9351 = vmatpush1.bf16.msra.mxu0 %v6824
    %9352 = vmatprep.subr.bf16.mxu0 %v6823
    %9353 = vmatpush1.bf16.msra.mxu0 %v6822
    %9354 = vmatprep.subr.bf16.mxu0 %v6821
    %9355 = vmatpush1.bf16.msra.mxu0 %v6820
    %9356 = vmatprep.subr.bf16.mxu0 %v6819
    %9357 = vmatpush1.bf16.msra.mxu0 %v6818
    %9358 = vmatprep.subr.bf16.mxu0 0
    %9359 = vmatpush2.bf16.msra.mxu0 0
    %9360 = vmatprep.subr.bf16.mxu0 0
    %9361 = vmatpush2.bf16.msra.mxu0 0
    %9362 = vmatprep.subr.bf16.mxu0 0
    %9363 = vmatpush2.bf16.msra.mxu0 0
    %9364 = vmatprep.subr.bf16.mxu0 0
    %9365 = vmatpush2.bf16.msra.mxu0 0
    %9366 = vmatprep.subr.bf16.mxu0 0
    %9367 = vmatpush2.bf16.msra.mxu0 0
    %9368 = vmatprep.subr.bf16.mxu0 0
    %9369 = vmatpush2.bf16.msra.mxu0 0
    %9370 = vmatprep.subr.bf16.mxu0 0
    %9371 = vmatpush2.bf16.msra.mxu0 0
    %9372 = vmatprep.subr.bf16.mxu0 0
    %9373 = vmatpush2.bf16.msra.mxu0 0
    %9374 = vmatprep.mubr.bf16.mxu0 0
    %9375 = vmatmul.mubr.bf16.gmra.mxu0 %v2577
    %v9376 = vpop.f32.mrf.mxu0
    %v9377 = vadd.f32 0.0, %v9376
    %v9378 = vpop.f32.mrf.mxu0
    %v9379 = vadd.f32 0.0, %v9378
    %v9380 = vpop.f32.mrf.mxu0
    %v9381 = vadd.f32 0.0, %v9380
    %v9382 = vpop.f32.mrf.mxu0
    %v9383 = vadd.f32 0.0, %v9382
    %9384 = vmatprep.mubr.bf16.mxu0 0
    %9385 = vmatmul.mubr.bf16.gmra.mxu0 %v2578
    %v9386 = vpop.f32.mrf.mxu0
    %v9387 = vadd.f32 0.0, %v9386
    %v9388 = vpop.f32.mrf.mxu0
    %v9389 = vadd.f32 0.0, %v9388
    %v9390 = vpop.f32.mrf.mxu0
    %v9391 = vadd.f32 0.0, %v9390
    %v9392 = vpop.f32.mrf.mxu0
    %v9393 = vadd.f32 0.0, %v9392
    %9394 = vmatprep.mubr.bf16.mxu0 0
    %9395 = vmatmul.mubr.bf16.gmra.mxu0 %v2579
    %v9396 = vpop.f32.mrf.mxu0
    %v9397 = vadd.f32 0.0, %v9396
    %v9398 = vpop.f32.mrf.mxu0
    %v9399 = vadd.f32 0.0, %v9398
    %v9400 = vpop.f32.mrf.mxu0
    %v9401 = vadd.f32 0.0, %v9400
    %v9402 = vpop.f32.mrf.mxu0
    %v9403 = vadd.f32 0.0, %v9402
    %9404 = vmatprep.mubr.bf16.mxu0 0
    %9405 = vmatmul.mubr.bf16.gmra.mxu0 %v2580
    %v9406 = vpop.f32.mrf.mxu0
    %v9407 = vadd.f32 0.0, %v9406
    %v9408 = vpop.f32.mrf.mxu0
    %v9409 = vadd.f32 0.0, %v9408
    %v9410 = vpop.f32.mrf.mxu0
    %v9411 = vadd.f32 0.0, %v9410
    %v9412 = vpop.f32.mrf.mxu0
    %v9413 = vadd.f32 0.0, %v9412
    %9414 = vmatprep.mubr.bf16.mxu0 0
    %9415 = vmatmul.mubr.bf16.gmra.mxu0 %v2581
    %v9416 = vpop.f32.mrf.mxu0
    %v9417 = vadd.f32 0.0, %v9416
    %v9418 = vpop.f32.mrf.mxu0
    %v9419 = vadd.f32 0.0, %v9418
    %v9420 = vpop.f32.mrf.mxu0
    %v9421 = vadd.f32 0.0, %v9420
    %v9422 = vpop.f32.mrf.mxu0
    %v9423 = vadd.f32 0.0, %v9422
    %9424 = vmatprep.mubr.bf16.mxu0 0
    %9425 = vmatmul.mubr.bf16.gmra.mxu0 %v2582
    %v9426 = vpop.f32.mrf.mxu0
    %v9427 = vadd.f32 0.0, %v9426
    %v9428 = vpop.f32.mrf.mxu0
    %v9429 = vadd.f32 0.0, %v9428
    %v9430 = vpop.f32.mrf.mxu0
    %v9431 = vadd.f32 0.0, %v9430
    %v9432 = vpop.f32.mrf.mxu0
    %v9433 = vadd.f32 0.0, %v9432
    %9434 = vmatprep.mubr.bf16.mxu0 0
    %9435 = vmatmul.mubr.bf16.gmra.mxu0 %v2583
    %v9436 = vpop.f32.mrf.mxu0
    %v9437 = vadd.f32 0.0, %v9436
    %v9438 = vpop.f32.mrf.mxu0
    %v9439 = vadd.f32 0.0, %v9438
    %v9440 = vpop.f32.mrf.mxu0
    %v9441 = vadd.f32 0.0, %v9440
    %v9442 = vpop.f32.mrf.mxu0
    %v9443 = vadd.f32 0.0, %v9442
    %9444 = vmatprep.mubr.bf16.mxu0 0
    %9445 = vmatmul.mubr.bf16.gmra.mxu0 %v2584
    %v9446 = vpop.f32.mrf.mxu0
    %v9447 = vadd.f32 0.0, %v9446
    %v9448 = vpop.f32.mrf.mxu0
    %v9449 = vadd.f32 0.0, %v9448
    %v9450 = vpop.f32.mrf.mxu0
    %v9451 = vadd.f32 0.0, %v9450
    %v9452 = vpop.f32.mrf.mxu0
    %v9453 = vadd.f32 0.0, %v9452
    %9454 = vdwg.mxu0
    %v9455 = vpack.c.bf16 %v9381, %v9377
    %v9456 = vpack.c.bf16 %v9383, %v9379
    %v9457 = vpack.c.bf16 %v9391, %v9387
    %v9458 = vpack.c.bf16 %v9393, %v9389
    %v9459 = vpack.c.bf16 %v9401, %v9397
    %v9460 = vpack.c.bf16 %v9403, %v9399
    %v9461 = vpack.c.bf16 %v9411, %v9407
    %v9462 = vpack.c.bf16 %v9413, %v9409
    %v9463 = vpack.c.bf16 %v9421, %v9417
    %v9464 = vpack.c.bf16 %v9423, %v9419
    %v9465 = vpack.c.bf16 %v9431, %v9427
    %v9466 = vpack.c.bf16 %v9433, %v9429
    %v9467 = vpack.c.bf16 %v9441, %v9437
    %v9468 = vpack.c.bf16 %v9443, %v9439
    %v9469 = vpack.c.bf16 %v9451, %v9447
    %v9470 = vpack.c.bf16 %v9453, %v9449
    %s9471 = scalar_lea.vmem [#allocation13], 672
    %v9472 = vld [vmem:[%s9471] sm:$0xf]
    %v9473 = vld [vmem:[%s9471 + $0x4] sm:$0xf]
    %v9474 = vld [vmem:[%s9471 + $0x8] sm:$0xf]
    %v9475 = vld [vmem:[%s9471 + $0xc] sm:$0xf]
    %v9476 = vld [vmem:[%s9471 + $0x10] sm:$0xf]
    %v9477 = vld [vmem:[%s9471 + $0x14] sm:$0xf]
    %v9478 = vld [vmem:[%s9471 + $0x18] sm:$0xf]
    %v9479 = vld [vmem:[%s9471 + $0x1c] sm:$0xf]
    %v9480 = vld [vmem:[%s9471 + $0x20] sm:$0xf]
    %v9481 = vld [vmem:[%s9471 + $0x24] sm:$0xf]
    %v9482 = vld [vmem:[%s9471 + $0x28] sm:$0xf]
    %v9483 = vld [vmem:[%s9471 + $0x2c] sm:$0xf]
    %v9484 = vld [vmem:[%s9471 + $0x30] sm:$0xf]
    %v9485 = vld [vmem:[%s9471 + $0x34] sm:$0xf]
    %v9486 = vld [vmem:[%s9471 + $0x38] sm:$0xf]
    %v9487 = vld [vmem:[%s9471 + $0x3c] sm:$0xf]
    %v9488 = vld [vmem:[%s9471 + $0x40] sm:$0xf]
    %v9489 = vld [vmem:[%s9471 + $0x44] sm:$0xf]
    %v9490 = vld [vmem:[%s9471 + $0x48] sm:$0xf]
    %v9491 = vld [vmem:[%s9471 + $0x4c] sm:$0xf]
    %v9492 = vld [vmem:[%s9471 + $0x50] sm:$0xf]
    %v9493 = vld [vmem:[%s9471 + $0x54] sm:$0xf]
    %v9494 = vld [vmem:[%s9471 + $0x58] sm:$0xf]
    %v9495 = vld [vmem:[%s9471 + $0x5c] sm:$0xf]
    %v9520 = vunpack.c.l.b16 %v9472
    %v9521 = vunpack.c.l.b16 %v9473
    %v9522 = vunpack.c.l.b16 %v9474
    %v9523 = vunpack.c.l.b16 %v9475
    %v9524 = vunpack.c.l.b16 %v9476
    %v9525 = vunpack.c.l.b16 %v9477
    %v9526 = vunpack.c.l.b16 %v9478
    %v9527 = vunpack.c.l.b16 %v9479
    %v9528 = vunpack.c.l.b16 %v9480
    %v9529 = vunpack.c.l.b16 %v9481
    %v9530 = vunpack.c.l.b16 %v9482
    %v9531 = vunpack.c.l.b16 %v9483
    %v9532 = vunpack.c.l.b16 %v9484
    %v9533 = vunpack.c.l.b16 %v9485
    %v9534 = vunpack.c.l.b16 %v9486
    %v9535 = vunpack.c.l.b16 %v9487
    %v9536 = vunpack.c.l.b16 %v9488
    %v9537 = vunpack.c.l.b16 %v9489
    %v9538 = vunpack.c.l.b16 %v9490
    %v9539 = vunpack.c.l.b16 %v9491
    %v9540 = vunpack.c.l.b16 %v9492
    %v9541 = vunpack.c.l.b16 %v9493
    %v9542 = vunpack.c.l.b16 %v9494
    %v9543 = vunpack.c.l.b16 %v9495
    %v9544 = vpack.c.b16 %v9521, %v9520
    %v9545 = vpack.c.b16 %v9523, %v9522
    %v9546 = vpack.c.b16 %v9525, %v9524
    %v9547 = vpack.c.b16 %v9527, %v9526
    %v9548 = vpack.c.b16 %v9529, %v9528
    %v9549 = vpack.c.b16 %v9531, %v9530
    %v9550 = vpack.c.b16 %v9533, %v9532
    %v9551 = vpack.c.b16 %v9535, %v9534
    %v9552 = vpack.c.b16 %v9537, %v9536
    %v9553 = vpack.c.b16 %v9539, %v9538
    %v9554 = vpack.c.b16 %v9541, %v9540
    %v9555 = vpack.c.b16 %v9543, %v9542
    %v9569 = vsel %vm203, %v9456, 0
    %v9572 = vsel %vm203, %v9458, 0
    %v9575 = vsel %vm203, %v9460, 0
    %v9578 = vsel %vm203, %v9462, 0
    %v9581 = vsel %vm203, %v9464, 0
    %v9584 = vsel %vm203, %v9466, 0
    %v9587 = vsel %vm203, %v9468, 0
    %v9590 = vsel %vm203, %v9470, 0
    %9592 = vmatprep.subr.bf16.mxu0 0
    %9593 = vmatpush1.bf16.msra.mxu0 %v9551
    %9594 = vmatprep.subr.bf16.mxu0 0
    %9595 = vmatpush1.bf16.msra.mxu0 %v9550
    %9596 = vmatprep.subr.bf16.mxu0 0
    %9597 = vmatpush1.bf16.msra.mxu0 %v9549
    %9598 = vmatprep.subr.bf16.mxu0 0
    %9599 = vmatpush1.bf16.msra.mxu0 %v9548
    %9600 = vmatprep.subr.bf16.mxu0 0
    %9601 = vmatpush1.bf16.msra.mxu0 %v9547
    %9602 = vmatprep.subr.bf16.mxu0 0
    %9603 = vmatpush1.bf16.msra.mxu0 %v9546
    %9604 = vmatprep.subr.bf16.mxu0 0
    %9605 = vmatpush1.bf16.msra.mxu0 %v9545
    %9606 = vmatprep.subr.bf16.mxu0 0
    %9607 = vmatpush1.bf16.msra.mxu0 %v9544
    %9608 = vmatprep.subr.bf16.mxu0 0
    %9609 = vmatpush2.bf16.msra.mxu0 0
    %9610 = vmatprep.subr.bf16.mxu0 0
    %9611 = vmatpush2.bf16.msra.mxu0 0
    %9612 = vmatprep.subr.bf16.mxu0 0
    %9613 = vmatpush2.bf16.msra.mxu0 0
    %9614 = vmatprep.subr.bf16.mxu0 0
    %9615 = vmatpush2.bf16.msra.mxu0 0
    %9616 = vmatprep.subr.bf16.mxu0 0
    %9617 = vmatpush2.bf16.msra.mxu0 %v9555
    %9618 = vmatprep.subr.bf16.mxu0 0
    %9619 = vmatpush2.bf16.msra.mxu0 %v9554
    %9620 = vmatprep.subr.bf16.mxu0 0
    %9621 = vmatpush2.bf16.msra.mxu0 %v9553
    %9622 = vmatprep.subr.bf16.mxu0 0
    %9623 = vmatpush2.bf16.msra.mxu0 %v9552
    %9624 = vmatprep.mubr.bf16.mxu0 %v9569
    %9625 = vmatmul.mubr.bf16.gmra.mxu0 %v9455
    %v9626 = vpop.f32.mrf.mxu0
    %v9627 = vadd.f32 0.0, %v9626
    %v9628 = vpop.f32.mrf.mxu0
    %v9629 = vpop.f32.mrf.mxu0
    %v9630 = vadd.f32 0.0, %v9629
    %v9631 = vpop.f32.mrf.mxu0
    %9632 = vmatprep.mubr.bf16.mxu0 %v9572
    %9633 = vmatmul.mubr.bf16.gmra.mxu0 %v9457
    %v9634 = vpop.f32.mrf.mxu0
    %v9635 = vadd.f32 0.0, %v9634
    %v9636 = vpop.f32.mrf.mxu0
    %v9637 = vpop.f32.mrf.mxu0
    %v9638 = vadd.f32 0.0, %v9637
    %v9639 = vpop.f32.mrf.mxu0
    %9640 = vmatprep.mubr.bf16.mxu0 %v9575
    %9641 = vmatmul.mubr.bf16.gmra.mxu0 %v9459
    %v9642 = vpop.f32.mrf.mxu0
    %v9643 = vadd.f32 0.0, %v9642
    %v9644 = vpop.f32.mrf.mxu0
    %v9645 = vpop.f32.mrf.mxu0
    %v9646 = vadd.f32 0.0, %v9645
    %v9647 = vpop.f32.mrf.mxu0
    %9648 = vmatprep.mubr.bf16.mxu0 %v9578
    %9649 = vmatmul.mubr.bf16.gmra.mxu0 %v9461
    %v9650 = vpop.f32.mrf.mxu0
    %v9651 = vadd.f32 0.0, %v9650
    %v9652 = vpop.f32.mrf.mxu0
    %v9653 = vpop.f32.mrf.mxu0
    %v9654 = vadd.f32 0.0, %v9653
    %v9655 = vpop.f32.mrf.mxu0
    %9656 = vmatprep.mubr.bf16.mxu0 %v9581
    %9657 = vmatmul.mubr.bf16.gmra.mxu0 %v9463
    %v9658 = vpop.f32.mrf.mxu0
    %v9659 = vadd.f32 0.0, %v9658
    %v9660 = vpop.f32.mrf.mxu0
    %v9661 = vpop.f32.mrf.mxu0
    %v9662 = vadd.f32 0.0, %v9661
    %v9663 = vpop.f32.mrf.mxu0
    %9664 = vmatprep.mubr.bf16.mxu0 %v9584
    %9665 = vmatmul.mubr.bf16.gmra.mxu0 %v9465
    %v9666 = vpop.f32.mrf.mxu0
    %v9667 = vadd.f32 0.0, %v9666
    %v9668 = vpop.f32.mrf.mxu0
    %v9669 = vpop.f32.mrf.mxu0
    %v9670 = vadd.f32 0.0, %v9669
    %v9671 = vpop.f32.mrf.mxu0
    %9672 = vmatprep.mubr.bf16.mxu0 %v9587
    %9673 = vmatmul.mubr.bf16.gmra.mxu0 %v9467
    %v9674 = vpop.f32.mrf.mxu0
    %v9675 = vadd.f32 0.0, %v9674
    %v9676 = vpop.f32.mrf.mxu0
    %v9677 = vpop.f32.mrf.mxu0
    %v9678 = vadd.f32 0.0, %v9677
    %v9679 = vpop.f32.mrf.mxu0
    %9680 = vmatprep.mubr.bf16.mxu0 %v9590
    %9681 = vmatmul.mubr.bf16.gmra.mxu0 %v9469
    %v9682 = vpop.f32.mrf.mxu0
    %v9683 = vadd.f32 0.0, %v9682
    %v9684 = vpop.f32.mrf.mxu0
    %v9685 = vpop.f32.mrf.mxu0
    %v9686 = vadd.f32 0.0, %v9685
    %v9687 = vpop.f32.mrf.mxu0
    %9688 = vdwg.mxu0
    %v9689 = vadd.f32 %v9326, %v9627
    %v9690 = vadd.f32 %v9327, %v9630
    %v9691 = vadd.f32 %v9328, %v9635
    %v9692 = vadd.f32 %v9329, %v9638
    %v9693 = vadd.f32 %v9330, %v9643
    %v9694 = vadd.f32 %v9331, %v9646
    %v9695 = vadd.f32 %v9332, %v9651
    %v9696 = vadd.f32 %v9333, %v9654
    %v9697 = vadd.f32 %v9334, %v9659
    %v9698 = vadd.f32 %v9335, %v9662
    %v9699 = vadd.f32 %v9336, %v9667
    %v9700 = vadd.f32 %v9337, %v9670
    %v9701 = vadd.f32 %v9338, %v9675
    %v9702 = vadd.f32 %v9339, %v9678
    %v9703 = vadd.f32 %v9340, %v9683
    %v9704 = vadd.f32 %v9341, %v9686
    %9705 = vmatprep.subr.bf16.mxu0 %v6833
    %9706 = vmatpush1.bf16.msra.mxu0 %v6832
    %9707 = vmatprep.subr.bf16.mxu0 %v6831
    %9708 = vmatpush1.bf16.msra.mxu0 %v6830
    %9709 = vmatprep.subr.bf16.mxu0 %v6829
    %9710 = vmatpush1.bf16.msra.mxu0 %v6828
    %9711 = vmatprep.subr.bf16.mxu0 %v6827
    %9712 = vmatpush1.bf16.msra.mxu0 %v6826
    %9713 = vmatprep.subr.bf16.mxu0 %v6825
    %9714 = vmatpush1.bf16.msra.mxu0 %v6824
    %9715 = vmatprep.subr.bf16.mxu0 %v6823
    %9716 = vmatpush1.bf16.msra.mxu0 %v6822
    %9717 = vmatprep.subr.bf16.mxu0 %v6821
    %9718 = vmatpush1.bf16.msra.mxu0 %v6820
    %9719 = vmatprep.subr.bf16.mxu0 %v6819
    %9720 = vmatpush1.bf16.msra.mxu0 %v6818
    %9721 = vmatprep.subr.bf16.mxu0 0
    %9722 = vmatpush2.bf16.msra.mxu0 0
    %9723 = vmatprep.subr.bf16.mxu0 0
    %9724 = vmatpush2.bf16.msra.mxu0 0
    %9725 = vmatprep.subr.bf16.mxu0 0
    %9726 = vmatpush2.bf16.msra.mxu0 0
    %9727 = vmatprep.subr.bf16.mxu0 0
    %9728 = vmatpush2.bf16.msra.mxu0 0
    %9729 = vmatprep.subr.bf16.mxu0 0
    %9730 = vmatpush2.bf16.msra.mxu0 0
    %9731 = vmatprep.subr.bf16.mxu0 0
    %9732 = vmatpush2.bf16.msra.mxu0 0
    %9733 = vmatprep.subr.bf16.mxu0 0
    %9734 = vmatpush2.bf16.msra.mxu0 0
    %9735 = vmatprep.subr.bf16.mxu0 0
    %9736 = vmatpush2.bf16.msra.mxu0 0
    %9737 = vmatprep.mubr.bf16.mxu0 0
    %9738 = vmatmul.mubr.bf16.gmra.mxu0 %v2893
    %v9739 = vpop.f32.mrf.mxu0
    %v9740 = vadd.f32 0.0, %v9739
    %v9741 = vpop.f32.mrf.mxu0
    %v9742 = vadd.f32 0.0, %v9741
    %v9743 = vpop.f32.mrf.mxu0
    %v9744 = vadd.f32 0.0, %v9743
    %v9745 = vpop.f32.mrf.mxu0
    %v9746 = vadd.f32 0.0, %v9745
    %9747 = vmatprep.mubr.bf16.mxu0 0
    %9748 = vmatmul.mubr.bf16.gmra.mxu0 %v2894
    %v9749 = vpop.f32.mrf.mxu0
    %v9750 = vadd.f32 0.0, %v9749
    %v9751 = vpop.f32.mrf.mxu0
    %v9752 = vadd.f32 0.0, %v9751
    %v9753 = vpop.f32.mrf.mxu0
    %v9754 = vadd.f32 0.0, %v9753
    %v9755 = vpop.f32.mrf.mxu0
    %v9756 = vadd.f32 0.0, %v9755
    %9757 = vmatprep.mubr.bf16.mxu0 0
    %9758 = vmatmul.mubr.bf16.gmra.mxu0 %v2895
    %v9759 = vpop.f32.mrf.mxu0
    %v9760 = vadd.f32 0.0, %v9759
    %v9761 = vpop.f32.mrf.mxu0
    %v9762 = vadd.f32 0.0, %v9761
    %v9763 = vpop.f32.mrf.mxu0
    %v9764 = vadd.f32 0.0, %v9763
    %v9765 = vpop.f32.mrf.mxu0
    %v9766 = vadd.f32 0.0, %v9765
    %9767 = vmatprep.mubr.bf16.mxu0 0
    %9768 = vmatmul.mubr.bf16.gmra.mxu0 %v2896
    %v9769 = vpop.f32.mrf.mxu0
    %v9770 = vadd.f32 0.0, %v9769
    %v9771 = vpop.f32.mrf.mxu0
    %v9772 = vadd.f32 0.0, %v9771
    %v9773 = vpop.f32.mrf.mxu0
    %v9774 = vadd.f32 0.0, %v9773
    %v9775 = vpop.f32.mrf.mxu0
    %v9776 = vadd.f32 0.0, %v9775
    %9777 = vmatprep.mubr.bf16.mxu0 0
    %9778 = vmatmul.mubr.bf16.gmra.mxu0 %v2897
    %v9779 = vpop.f32.mrf.mxu0
    %v9780 = vadd.f32 0.0, %v9779
    %v9781 = vpop.f32.mrf.mxu0
    %v9782 = vadd.f32 0.0, %v9781
    %v9783 = vpop.f32.mrf.mxu0
    %v9784 = vadd.f32 0.0, %v9783
    %v9785 = vpop.f32.mrf.mxu0
    %v9786 = vadd.f32 0.0, %v9785
    %9787 = vmatprep.mubr.bf16.mxu0 0
    %9788 = vmatmul.mubr.bf16.gmra.mxu0 %v2898
    %v9789 = vpop.f32.mrf.mxu0
    %v9790 = vadd.f32 0.0, %v9789
    %v9791 = vpop.f32.mrf.mxu0
    %v9792 = vadd.f32 0.0, %v9791
    %v9793 = vpop.f32.mrf.mxu0
    %v9794 = vadd.f32 0.0, %v9793
    %v9795 = vpop.f32.mrf.mxu0
    %v9796 = vadd.f32 0.0, %v9795
    %9797 = vmatprep.mubr.bf16.mxu0 0
    %9798 = vmatmul.mubr.bf16.gmra.mxu0 %v2899
    %v9799 = vpop.f32.mrf.mxu0
    %v9800 = vadd.f32 0.0, %v9799
    %v9801 = vpop.f32.mrf.mxu0
    %v9802 = vadd.f32 0.0, %v9801
    %v9803 = vpop.f32.mrf.mxu0
    %v9804 = vadd.f32 0.0, %v9803
    %v9805 = vpop.f32.mrf.mxu0
    %v9806 = vadd.f32 0.0, %v9805
    %9807 = vmatprep.mubr.bf16.mxu0 0
    %9808 = vmatmul.mubr.bf16.gmra.mxu0 %v2900
    %v9809 = vpop.f32.mrf.mxu0
    %v9810 = vadd.f32 0.0, %v9809
    %v9811 = vpop.f32.mrf.mxu0
    %v9812 = vadd.f32 0.0, %v9811
    %v9813 = vpop.f32.mrf.mxu0
    %v9814 = vadd.f32 0.0, %v9813
    %v9815 = vpop.f32.mrf.mxu0
    %v9816 = vadd.f32 0.0, %v9815
    %9817 = vdwg.mxu0
    %v9818 = vpack.c.bf16 %v9744, %v9740
    %v9819 = vpack.c.bf16 %v9746, %v9742
    %v9820 = vpack.c.bf16 %v9754, %v9750
    %v9821 = vpack.c.bf16 %v9756, %v9752
    %v9822 = vpack.c.bf16 %v9764, %v9760
    %v9823 = vpack.c.bf16 %v9766, %v9762
    %v9824 = vpack.c.bf16 %v9774, %v9770
    %v9825 = vpack.c.bf16 %v9776, %v9772
    %v9826 = vpack.c.bf16 %v9784, %v9780
    %v9827 = vpack.c.bf16 %v9786, %v9782
    %v9828 = vpack.c.bf16 %v9794, %v9790
    %v9829 = vpack.c.bf16 %v9796, %v9792
    %v9830 = vpack.c.bf16 %v9804, %v9800
    %v9831 = vpack.c.bf16 %v9806, %v9802
    %v9832 = vpack.c.bf16 %v9814, %v9810
    %v9833 = vpack.c.bf16 %v9816, %v9812
    %s9834 = scalar_lea.vmem [#allocation13], 768
    %v9835 = vld [vmem:[%s9834] sm:$0xf]
    %v9836 = vld [vmem:[%s9834 + $0x4] sm:$0xf]
    %v9837 = vld [vmem:[%s9834 + $0x8] sm:$0xf]
    %v9838 = vld [vmem:[%s9834 + $0xc] sm:$0xf]
    %v9839 = vld [vmem:[%s9834 + $0x10] sm:$0xf]
    %v9840 = vld [vmem:[%s9834 + $0x14] sm:$0xf]
    %v9841 = vld [vmem:[%s9834 + $0x18] sm:$0xf]
    %v9842 = vld [vmem:[%s9834 + $0x1c] sm:$0xf]
    %v9843 = vld [vmem:[%s9834 + $0x20] sm:$0xf]
    %v9844 = vld [vmem:[%s9834 + $0x24] sm:$0xf]
    %v9845 = vld [vmem:[%s9834 + $0x28] sm:$0xf]
    %v9846 = vld [vmem:[%s9834 + $0x2c] sm:$0xf]
    %v9847 = vld [vmem:[%s9834 + $0x30] sm:$0xf]
    %v9848 = vld [vmem:[%s9834 + $0x34] sm:$0xf]
    %v9849 = vld [vmem:[%s9834 + $0x38] sm:$0xf]
    %v9850 = vld [vmem:[%s9834 + $0x3c] sm:$0xf]
    %v9851 = vld [vmem:[%s9834 + $0x40] sm:$0xf]
    %v9852 = vld [vmem:[%s9834 + $0x44] sm:$0xf]
    %v9853 = vld [vmem:[%s9834 + $0x48] sm:$0xf]
    %v9854 = vld [vmem:[%s9834 + $0x4c] sm:$0xf]
    %v9855 = vld [vmem:[%s9834 + $0x50] sm:$0xf]
    %v9856 = vld [vmem:[%s9834 + $0x54] sm:$0xf]
    %v9857 = vld [vmem:[%s9834 + $0x58] sm:$0xf]
    %v9858 = vld [vmem:[%s9834 + $0x5c] sm:$0xf]
    %v9883 = vunpack.c.l.b16 %v9835
    %v9884 = vunpack.c.l.b16 %v9836
    %v9885 = vunpack.c.l.b16 %v9837
    %v9886 = vunpack.c.l.b16 %v9838
    %v9887 = vunpack.c.l.b16 %v9839
    %v9888 = vunpack.c.l.b16 %v9840
    %v9889 = vunpack.c.l.b16 %v9841
    %v9890 = vunpack.c.l.b16 %v9842
    %v9891 = vunpack.c.l.b16 %v9843
    %v9892 = vunpack.c.l.b16 %v9844
    %v9893 = vunpack.c.l.b16 %v9845
    %v9894 = vunpack.c.l.b16 %v9846
    %v9895 = vunpack.c.l.b16 %v9847
    %v9896 = vunpack.c.l.b16 %v9848
    %v9897 = vunpack.c.l.b16 %v9849
    %v9898 = vunpack.c.l.b16 %v9850
    %v9899 = vunpack.c.l.b16 %v9851
    %v9900 = vunpack.c.l.b16 %v9852
    %v9901 = vunpack.c.l.b16 %v9853
    %v9902 = vunpack.c.l.b16 %v9854
    %v9903 = vunpack.c.l.b16 %v9855
    %v9904 = vunpack.c.l.b16 %v9856
    %v9905 = vunpack.c.l.b16 %v9857
    %v9906 = vunpack.c.l.b16 %v9858
    %v9907 = vpack.c.b16 %v9884, %v9883
    %v9908 = vpack.c.b16 %v9886, %v9885
    %v9909 = vpack.c.b16 %v9888, %v9887
    %v9910 = vpack.c.b16 %v9890, %v9889
    %v9911 = vpack.c.b16 %v9892, %v9891
    %v9912 = vpack.c.b16 %v9894, %v9893
    %v9913 = vpack.c.b16 %v9896, %v9895
    %v9914 = vpack.c.b16 %v9898, %v9897
    %v9915 = vpack.c.b16 %v9900, %v9899
    %v9916 = vpack.c.b16 %v9902, %v9901
    %v9917 = vpack.c.b16 %v9904, %v9903
    %v9918 = vpack.c.b16 %v9906, %v9905
    %v9932 = vsel %vm203, %v9819, 0
    %v9935 = vsel %vm203, %v9821, 0
    %v9938 = vsel %vm203, %v9823, 0
    %v9941 = vsel %vm203, %v9825, 0
    %v9944 = vsel %vm203, %v9827, 0
    %v9947 = vsel %vm203, %v9829, 0
    %v9950 = vsel %vm203, %v9831, 0
    %v9953 = vsel %vm203, %v9833, 0
    %9955 = vmatprep.subr.bf16.mxu0 0
    %9956 = vmatpush1.bf16.msra.mxu0 %v9914
    %9957 = vmatprep.subr.bf16.mxu0 0
    %9958 = vmatpush1.bf16.msra.mxu0 %v9913
    %9959 = vmatprep.subr.bf16.mxu0 0
    %9960 = vmatpush1.bf16.msra.mxu0 %v9912
    %9961 = vmatprep.subr.bf16.mxu0 0
    %9962 = vmatpush1.bf16.msra.mxu0 %v9911
    %9963 = vmatprep.subr.bf16.mxu0 0
    %9964 = vmatpush1.bf16.msra.mxu0 %v9910
    %9965 = vmatprep.subr.bf16.mxu0 0
    %9966 = vmatpush1.bf16.msra.mxu0 %v9909
    %9967 = vmatprep.subr.bf16.mxu0 0
    %9968 = vmatpush1.bf16.msra.mxu0 %v9908
    %9969 = vmatprep.subr.bf16.mxu0 0
    %9970 = vmatpush1.bf16.msra.mxu0 %v9907
    %9971 = vmatprep.subr.bf16.mxu0 0
    %9972 = vmatpush2.bf16.msra.mxu0 0
    %9973 = vmatprep.subr.bf16.mxu0 0
    %9974 = vmatpush2.bf16.msra.mxu0 0
    %9975 = vmatprep.subr.bf16.mxu0 0
    %9976 = vmatpush2.bf16.msra.mxu0 0
    %9977 = vmatprep.subr.bf16.mxu0 0
    %9978 = vmatpush2.bf16.msra.mxu0 0
    %9979 = vmatprep.subr.bf16.mxu0 0
    %9980 = vmatpush2.bf16.msra.mxu0 %v9918
    %9981 = vmatprep.subr.bf16.mxu0 0
    %9982 = vmatpush2.bf16.msra.mxu0 %v9917
    %9983 = vmatprep.subr.bf16.mxu0 0
    %9984 = vmatpush2.bf16.msra.mxu0 %v9916
    %9985 = vmatprep.subr.bf16.mxu0 0
    %9986 = vmatpush2.bf16.msra.mxu0 %v9915
    %9987 = vmatprep.mubr.bf16.mxu0 %v9932
    %9988 = vmatmul.mubr.bf16.gmra.mxu0 %v9818
    %v9989 = vpop.f32.mrf.mxu0
    %v9990 = vadd.f32 0.0, %v9989
    %v9991 = vpop.f32.mrf.mxu0
    %v9992 = vpop.f32.mrf.mxu0
    %v9993 = vadd.f32 0.0, %v9992
    %v9994 = vpop.f32.mrf.mxu0
    %9995 = vmatprep.mubr.bf16.mxu0 %v9935
    %9996 = vmatmul.mubr.bf16.gmra.mxu0 %v9820
    %v9997 = vpop.f32.mrf.mxu0
    %v9998 = vadd.f32 0.0, %v9997
    %v9999 = vpop.f32.mrf.mxu0
    %v10000 = vpop.f32.mrf.mxu0
    %v10001 = vadd.f32 0.0, %v10000
    %v10002 = vpop.f32.mrf.mxu0
    %10003 = vmatprep.mubr.bf16.mxu0 %v9938
    %10004 = vmatmul.mubr.bf16.gmra.mxu0 %v9822
    %v10005 = vpop.f32.mrf.mxu0
    %v10006 = vadd.f32 0.0, %v10005
    %v10007 = vpop.f32.mrf.mxu0
    %v10008 = vpop.f32.mrf.mxu0
    %v10009 = vadd.f32 0.0, %v10008
    %v10010 = vpop.f32.mrf.mxu0
    %10011 = vmatprep.mubr.bf16.mxu0 %v9941
    %10012 = vmatmul.mubr.bf16.gmra.mxu0 %v9824
    %v10013 = vpop.f32.mrf.mxu0
    %v10014 = vadd.f32 0.0, %v10013
    %v10015 = vpop.f32.mrf.mxu0
    %v10016 = vpop.f32.mrf.mxu0
    %v10017 = vadd.f32 0.0, %v10016
    %v10018 = vpop.f32.mrf.mxu0
    %10019 = vmatprep.mubr.bf16.mxu0 %v9944
    %10020 = vmatmul.mubr.bf16.gmra.mxu0 %v9826
    %v10021 = vpop.f32.mrf.mxu0
    %v10022 = vadd.f32 0.0, %v10021
    %v10023 = vpop.f32.mrf.mxu0
    %v10024 = vpop.f32.mrf.mxu0
    %v10025 = vadd.f32 0.0, %v10024
    %v10026 = vpop.f32.mrf.mxu0
    %10027 = vmatprep.mubr.bf16.mxu0 %v9947
    %10028 = vmatmul.mubr.bf16.gmra.mxu0 %v9828
    %v10029 = vpop.f32.mrf.mxu0
    %v10030 = vadd.f32 0.0, %v10029
    %v10031 = vpop.f32.mrf.mxu0
    %v10032 = vpop.f32.mrf.mxu0
    %v10033 = vadd.f32 0.0, %v10032
    %v10034 = vpop.f32.mrf.mxu0
    %10035 = vmatprep.mubr.bf16.mxu0 %v9950
    %10036 = vmatmul.mubr.bf16.gmra.mxu0 %v9830
    %v10037 = vpop.f32.mrf.mxu0
    %v10038 = vadd.f32 0.0, %v10037
    %v10039 = vpop.f32.mrf.mxu0
    %v10040 = vpop.f32.mrf.mxu0
    %v10041 = vadd.f32 0.0, %v10040
    %v10042 = vpop.f32.mrf.mxu0
    %10043 = vmatprep.mubr.bf16.mxu0 %v9953
    %10044 = vmatmul.mubr.bf16.gmra.mxu0 %v9832
    %v10045 = vpop.f32.mrf.mxu0
    %v10046 = vadd.f32 0.0, %v10045
    %v10047 = vpop.f32.mrf.mxu0
    %v10048 = vpop.f32.mrf.mxu0
    %v10049 = vadd.f32 0.0, %v10048
    %v10050 = vpop.f32.mrf.mxu0
    %10051 = vdwg.mxu0
    %v10052 = vadd.f32 %v9689, %v9990
    %v10053 = vadd.f32 %v9690, %v9993
    %v10054 = vadd.f32 %v9691, %v9998
    %v10055 = vadd.f32 %v9692, %v10001
    %v10056 = vadd.f32 %v9693, %v10006
    %v10057 = vadd.f32 %v9694, %v10009
    %v10058 = vadd.f32 %v9695, %v10014
    %v10059 = vadd.f32 %v9696, %v10017
    %v10060 = vadd.f32 %v9697, %v10022
    %v10061 = vadd.f32 %v9698, %v10025
    %v10062 = vadd.f32 %v9699, %v10030
    %v10063 = vadd.f32 %v9700, %v10033
    %v10064 = vadd.f32 %v9701, %v10038
    %v10065 = vadd.f32 %v9702, %v10041
    %v10066 = vadd.f32 %v9703, %v10046
    %v10067 = vadd.f32 %v9704, %v10049
    %v10068 = vld [vmem:[%s13] sm:$0x1]
    %v10070 = vlaneseq
    %v10071 = vshrl.u32 %v10070, 7
    %v10072 = vsub.s32 0, %v10071
    %v10073 = vrot.slane %v10068, %v10072
    %v10075 = vadd.f32 %v10052, %v10073
    %v10076 = vadd.f32 %v10053, %v10073
    %v10077 = vadd.f32 %v10054, %v10073
    %v10078 = vadd.f32 %v10055, %v10073
    %v10079 = vadd.f32 %v10056, %v10073
    %v10080 = vadd.f32 %v10057, %v10073
    %v10081 = vadd.f32 %v10058, %v10073
    %v10082 = vadd.f32 %v10059, %v10073
    %v10083 = vadd.f32 %v10060, %v10073
    %v10084 = vadd.f32 %v10061, %v10073
    %v10085 = vadd.f32 %v10062, %v10073
    %v10086 = vadd.f32 %v10063, %v10073
    %v10087 = vadd.f32 %v10064, %v10073
    %v10088 = vadd.f32 %v10065, %v10073
    %v10089 = vadd.f32 %v10066, %v10073
    %v10090 = vadd.f32 %v10067, %v10073
    %v10091 = vlaneseq
    %v10092 = vand.u32 %v10091, 127
    %vm10093 = vcmp.ge.s32.totalorder %v10092, 27
    %vm10094 = vcmp.lt.s32.totalorder %v10092, 51
    %vm10095 = vmand %vm10093, %vm10094
    %v10096 = vtanh.pop %v10075
    %v10097 = vtanh.pop %v10076
    %v10098 = vtanh.pop %v10077
    %v10099 = vtanh.pop %v10078
    %v10100 = vtanh.pop %v10079
    %v10101 = vtanh.pop %v10080
    %v10102 = vtanh.pop %v10081
    %v10103 = vtanh.pop %v10082
    %v10104 = vtanh.pop %v10083
    %v10105 = vtanh.pop %v10084
    %v10106 = vtanh.pop %v10085
    %v10107 = vtanh.pop %v10086
    %v10108 = vtanh.pop %v10087
    %v10109 = vtanh.pop %v10088
    %v10110 = vtanh.pop %v10089
    %v10111 = vtanh.pop %v10090
    %v10112 = vsel %vm10095, %v10096, %v10075
    %v10113 = vsel %vm10095, %v10097, %v10076
    %v10114 = vsel %vm10095, %v10098, %v10077
    %v10115 = vsel %vm10095, %v10099, %v10078
    %v10116 = vsel %vm10095, %v10100, %v10079
    %v10117 = vsel %vm10095, %v10101, %v10080
    %v10118 = vsel %vm10095, %v10102, %v10081
    %v10119 = vsel %vm10095, %v10103, %v10082
    %v10120 = vsel %vm10095, %v10104, %v10083
    %v10121 = vsel %vm10095, %v10105, %v10084
    %v10122 = vsel %vm10095, %v10106, %v10085
    %v10123 = vsel %vm10095, %v10107, %v10086
    %v10124 = vsel %vm10095, %v10108, %v10087
    %v10125 = vsel %vm10095, %v10109, %v10088
    %v10126 = vsel %vm10095, %v10110, %v10089
    %v10127 = vsel %vm10095, %v10111, %v10090
    %10128 = vst [vmem:[#allocation14] sm:$0xff] %v10112
    %10129 = vst [vmem:[#allocation14 + $0x8] sm:$0xff] %v10113
    %10130 = vst [vmem:[#allocation14 + $0x10] sm:$0xff] %v10114
    %10131 = vst [vmem:[#allocation14 + $0x18] sm:$0xff] %v10115
    %10132 = vst [vmem:[#allocation14 + $0x20] sm:$0xff] %v10116
    %10133 = vst [vmem:[#allocation14 + $0x28] sm:$0xff] %v10117
    %10134 = vst [vmem:[#allocation14 + $0x30] sm:$0xff] %v10118
    %10135 = vst [vmem:[#allocation14 + $0x38] sm:$0xff] %v10119
    %10136 = vst [vmem:[#allocation14 + $0x40] sm:$0xff] %v10120
    %10137 = vst [vmem:[#allocation14 + $0x48] sm:$0xff] %v10121
    %10138 = vst [vmem:[#allocation14 + $0x50] sm:$0xff] %v10122
    %10139 = vst [vmem:[#allocation14 + $0x58] sm:$0xff] %v10123
    %10140 = vst [vmem:[#allocation14 + $0x60] sm:$0xff] %v10124
    %10141 = vst [vmem:[#allocation14 + $0x68] sm:$0xff] %v10125
    %10142 = vst [vmem:[#allocation14 + $0x70] sm:$0xff] %v10126
    %10143 = vst [vmem:[#allocation14 + $0x78] sm:$0xff] %v10127
    // Predicated region
    $region86: #{tpu_custom_call.1} parent=1 // pred_check
      _
    $region87: #{tpu_custom_call.1} parent=1 // pred_check_branch
      %10145 = sbr.rel (0) target = $region89
    $region88: #{tpu_custom_call.1} parent=1 // pred_region
      %s10147 = ssub.s32 2048, 2048
      %10148 = vsyncadd [#allocation4], %s10147
      %s10149 = sshll.u32 [#allocation14], 4
      %s10150 = int_to_ptr.vmem [resolvable:$true] %s10149
      %10155 = dma.vmem_to_hbm [thread:$0]  %s10150, 2048, %s14, [#allocation4], 128, 128, 8
    $region89: #{tpu_custom_call.1} parent=1 // pred_fallthru
      _
    // Predicated region
    $region90: #{tpu_custom_call.1} parent=1 // pred_check
      _
    $region91: #{tpu_custom_call.1} parent=1 // pred_check_branch
      %10157 = sbr.rel (0) target = $region93
    $region92: #{tpu_custom_call.1} parent=1 // pred_region
      %10158 = dma.done [#allocation4], 2048
    $region93: #{tpu_custom_call.1} parent=1 // pred_fallthru
      _
    %10159 = vsyncpa [#allocation3], 1
    %10160 = vsyncpa [#allocation6], 1
    %10161 = vsyncpa [#allocation9], 1
    %10162 = vsyncpa [#allocation12], 1
    %10163 = vsyncpa [#allocation4], 1

</llo_original>
